<compile_context>
chip_gen: v7x
topology: tpu7x:2x2x1
jax: 0.10.0
libtpu: 0.0.40
codegen_flags: <defaults>
</compile_context>

<pallas_src>
import jax
import jax.numpy as jnp
from jax.experimental import pallas as pl
from jax.experimental.pallas import tpu as pltpu

EPS = 1e-5


def _block_forward_impl(x_nchw, weight, bias, gamma, beta, *, stride=1, padding=1):
    """weight: [Cout, Cin, KH, KW] (PyTorch OIHW); bias/gamma/beta: [Cout]."""
    del bias  # exactly cancelled by train-mode BN mean subtraction
    N, Cin, H, W = x_nchw.shape
    Cout, _, KH, KW = weight.shape
    s, p = stride, padding
    Ho = (H + 2 * p - KH) // s + 1
    Wo = (W + 2 * p - KW) // s + 1
    dh_max = (KH - 1) // s
    dw_max = (KW - 1) // s
    Hph = Ho + dh_max            # per-phase padded height
    Wph = Wo + dw_max            # per-phase padded width
    Hp, Wp = s * Hph, s * Wph    # total padded extent laid out host-side
    L = Ho * Wph                 # conv rows computed per image (Wph-Wo junk cols/row)
    FL = Hph * Wph + 8           # flat phase rows (+8 so the last tap never overruns)
    n_phase = s * s
    M = N * Ho * Wo
    assert Hp >= H + 2 * p and Wp >= W + 2 * p

    # ---- host-side prep (one fused XLA pass over the input, no im2col) ----
    x_nhwc = jnp.transpose(x_nchw, (0, 2, 3, 1)).astype(jnp.bfloat16)
    x_pad = jnp.pad(x_nhwc, ((0, 0), (p, Hp - H - p), (p, Wp - W - p), (0, 0)))
    xp = x_pad.reshape(N, Hph, s, Wph, s, Cin)
    xp = jnp.transpose(xp, (0, 2, 4, 1, 3, 5))              # [N, a, b, Hph, Wph, Cin]
    x_flat = xp.reshape(N, n_phase, Hph * Wph, Cin)
    x_flat = jnp.pad(x_flat, ((0, 0), (0, 0), (0, FL - Hph * Wph), (0, 0)))

    # weight OIHW -> [KH*KW, Cin, Cout] bf16 (tap-major)
    w_taps = jnp.transpose(weight, (2, 3, 1, 0)).reshape(KH * KW, Cin, Cout)
    w_taps = w_taps.astype(jnp.bfloat16)

    # valid-position mask over the L conv rows (junk columns wo >= Wo -> 0)
    mask = (jnp.arange(L, dtype=jnp.int32) % Wph < Wo).astype(jnp.float32)
    mask = mask.reshape(L, 1)

    def conv_acc(x_ref, w_ref):
        # x_ref: [n_phase, FL, Cin] bf16; w_ref: [KH*KW, Cin, Cout] bf16
        acc = None
        for kh in range(KH):
            for kw in range(KW):
                a, dh = kh % s, kh // s
                b, dw = kw % s, kw // s
                off = dh * Wph + dw
                tap = x_ref[a * s + b, off:off + L, :]          # [L, Cin]
                contrib = jnp.dot(tap, w_ref[kh * KW + kw],
                                  preferred_element_type=jnp.float32)
                acc = contrib if acc is None else acc + contrib
        return acc                                              # [L, Cout] f32

    def stats_kernel(x_ref, w_ref, mask_ref, stats_ref):
        conv = conv_acc(x_ref, w_ref)
        m = mask_ref[...]                                       # [L, 1]
        stats_ref[0:1, :] = jnp.sum(conv * m, axis=0, keepdims=True)
        stats_ref[1:2, :] = jnp.sum(conv * conv * m, axis=0, keepdims=True)

    def apply_kernel(x_ref, w_ref, scale_ref, shift_ref, o_ref):
        conv = conv_acc(x_ref, w_ref)
        o_ref[...] = jnp.maximum(conv * scale_ref[...] + shift_ref[...], 0.0)

    cparams = pltpu.CompilerParams(
        dimension_semantics=("parallel",),       # v7x: 2 TCs split the batch
        vmem_limit_bytes=32 * 1024 * 1024)       # << 64 MiB physical on v7x

    x_spec = pl.BlockSpec((None, n_phase, FL, Cin), lambda n: (n, 0, 0, 0))
    w_spec = pl.BlockSpec((KH * KW, Cin, Cout), lambda n: (0, 0, 0))

    conv_flops = 2 * N * KH * KW * L * Cin * Cout
    x_bytes = N * n_phase * FL * Cin * 2
    w_bytes = KH * KW * Cin * Cout * 2

    # ---- pass 1: conv stays in VMEM; only per-image BN partial sums hit HBM ----
    stats = pl.pallas_call(
        stats_kernel,
        out_shape=jax.ShapeDtypeStruct((N, 2, Cout), jnp.float32),
        grid=(N,),
        in_specs=[x_spec, w_spec, pl.BlockSpec((L, 1), lambda n: (0, 0))],
        out_specs=pl.BlockSpec((None, 2, Cout), lambda n: (n, 0, 0)),
        compiler_params=cparams,
        cost_estimate=pl.CostEstimate(
            flops=conv_flops,
            bytes_accessed=x_bytes + w_bytes + L * 4 + N * 2 * Cout * 4,
            transcendentals=0),
    )(x_flat, w_taps, mask)

    # ---- finalize batch stats; fold BN affine into one per-channel scale/shift ----
    sum_c = jnp.sum(stats[:, 0, :], axis=0)
    ssq_c = jnp.sum(stats[:, 1, :], axis=0)
    mean = sum_c / M
    # TODO(synk): E[x^2]-E[x]^2 cancels badly when |mean| >> std; use a shifted /
    # Welford accumulation for the general UNet case.
    var = jnp.maximum(ssq_c / M - mean * mean, 0.0)
    scale = gamma.astype(jnp.float32) * jax.lax.rsqrt(var + EPS)
    shift = beta.astype(jnp.float32) - mean * scale

    # ---- pass 2: recompute conv (cheaper than a f32 slab round trip), BN+ReLU ----
    out_flat = pl.pallas_call(
        apply_kernel,
        out_shape=jax.ShapeDtypeStruct((N, L, Cout), jnp.float32),
        grid=(N,),
        in_specs=[x_spec, w_spec,
                  pl.BlockSpec((1, Cout), lambda n: (0, 0)),
                  pl.BlockSpec((1, Cout), lambda n: (0, 0))],
        out_specs=pl.BlockSpec((None, L, Cout), lambda n: (n, 0, 0)),
        compiler_params=cparams,
        cost_estimate=pl.CostEstimate(
            flops=conv_flops + 2 * N * L * Cout,
            bytes_accessed=x_bytes + w_bytes + N * L * Cout * 4 + 2 * Cout * 4,
            transcendentals=0),
    )(x_flat, w_taps, scale.reshape(1, Cout), shift.reshape(1, Cout))

    # drop the Wph-Wo junk columns; return NCHW f32 (module semantics).
    out = out_flat.reshape(N, Ho, Wph, Cout)[:, :, :Wo, :]
    return jnp.transpose(out, (0, 3, 1, 2))


block_forward = jax.jit(_block_forward_impl, static_argnames=("stride", "padding"))


def reference_forward(x_nchw, weight, bias, gamma, beta, *, stride=1, padding=1):
    """Pure-JAX reference: conv2d + train-mode BN + ReLU (module semantics)."""
    conv = jax.lax.conv_general_dilated(
        x_nchw.astype(jnp.float32), weight.astype(jnp.float32),
        window_strides=(stride, stride),
        padding=((padding, padding), (padding, padding)),
        dimension_numbers=("NCHW", "OIHW", "NCHW"),
    ) + bias.reshape(1, -1, 1, 1).astype(jnp.float32)
    mean = jnp.mean(conv, axis=(0, 2, 3), keepdims=True)
    var = jnp.mean((conv - mean) ** 2, axis=(0, 2, 3), keepdims=True)
    xhat = (conv - mean) * jax.lax.rsqrt(var + EPS)
    y = xhat * gamma.reshape(1, -1, 1, 1) + beta.reshape(1, -1, 1, 1)
    return jnp.maximum(y, 0.0)


if __name__ == "__main__":
    # Small shapes consistent with the module: block(in_filters=4, n_filters=8)
    N, Cin, H, W = 2, 4, 16, 16
    Cout, K = 8, 3

    key = jax.random.PRNGKey(0)
    kx, kw, kb, kg, kbe = jax.random.split(key, 5)
    x = jax.random.normal(kx, (N, Cin, H, W), dtype=jnp.float32)
    fan_in = Cin * K * K
    weight = jax.random.normal(kw, (Cout, Cin, K, K), dtype=jnp.float32) / jnp.sqrt(fan_in)
    bias = 0.1 * jax.random.normal(kb, (Cout,), dtype=jnp.float32)
    gamma = 1.0 + 0.1 * jax.random.normal(kg, (Cout,), dtype=jnp.float32)
    beta = 0.1 * jax.random.normal(kbe, (Cout,), dtype=jnp.float32)

    # bf16-quantized-input reference (tight check: same quantization as the MXU path)
    x_q = x.astype(jnp.bfloat16).astype(jnp.float32)
    w_q = weight.astype(jnp.bfloat16).astype(jnp.float32)

    for stride in (1, 2):
        out = jax.block_until_ready(
            block_forward(x, weight, bias, gamma, beta, stride=stride))
        ref_q = jax.block_until_ready(
            reference_forward(x_q, w_q, bias, gamma, beta, stride=stride))
        ref_f = jax.block_until_ready(
            reference_forward(x, weight, bias, gamma, beta, stride=stride))

        Ho = (H + 2 - K) // stride + 1
        assert out.shape == (N, Cout, Ho, Ho), out.shape
        err_q = float(jnp.max(jnp.abs(out - ref_q)))
        err_f = float(jnp.max(jnp.abs(out - ref_f)))
        assert err_q < 2e-3, ("tight check failed", stride, err_q)
        assert err_f < 4e-2, ("loose check failed", stride, err_f)

    print("KERNEL_OK")
</pallas_src>

<mosaic_0001>
module attributes {stable_mosaic.version = 11 : i64} {
  func.func @stats_kernel(%arg0: i32, %arg1: memref<1x1x332x4xbf16, #tpu.memory_space<vmem>>, %arg2: memref<9x4x8xbf16, #tpu.memory_space<vmem>>, %arg3: memref<288x1xf32, #tpu.memory_space<vmem>>, %arg4: memref<1x2x8xf32, #tpu.memory_space<vmem>>) attributes {dimension_semantics = [#tpu.dimension_semantics<parallel>], iteration_bounds = array<i64: 2>, scalar_prefetch = 0 : i64, scratch_operands = 0 : i64, tpu.core_type = #tpu.core_type<tc>, window_params = [{transform_indices = @transform_0, window_bounds = array<i64: 1, 1, 332, 4>}, {pipeline_mode = #tpu.pipeline_mode<synchronous>, transform_indices = @transform_1, window_bounds = array<i64: 9, 4, 8>}, {pipeline_mode = #tpu.pipeline_mode<synchronous>, transform_indices = @transform_2, window_bounds = array<i64: 288, 1>}, {transform_indices = @transform_3, window_bounds = array<i64: 1, 2, 8>}]} {
    %c0 = arith.constant 0 : index
    %c0_0 = arith.constant 0 : index
    %c0_1 = arith.constant 0 : index
    %c0_2 = arith.constant 0 : index
    %0 = vector.load %arg1[%c0, %c0_0, %c0_1, %c0_2] : memref<1x1x332x4xbf16, #tpu.memory_space<vmem>>, vector<1x1x288x4xbf16>
    %1 = vector.shape_cast %0 : vector<1x1x288x4xbf16> to vector<288x4xbf16>
    %c0_3 = arith.constant 0 : index
    %c0_4 = arith.constant 0 : index
    %c0_5 = arith.constant 0 : index
    %2 = vector.load %arg2[%c0_3, %c0_4, %c0_5] : memref<9x4x8xbf16, #tpu.memory_space<vmem>>, vector<1x4x8xbf16>
    %3 = vector.shape_cast %2 : vector<1x4x8xbf16> to vector<4x8xbf16>
    %cst = arith.constant dense<0.000000e+00> : vector<288x8xf32>
    %4 = tpu.matmul %1, %3, %cst {dimension_numbers = #tpu.dot_dimension_numbers<[1], [0], [0], [1], [0, 0, 1, 1], [], []>} : vector<288x4xbf16>, vector<4x8xbf16>, vector<288x8xf32> -> vector<288x8xf32>
    %c0_6 = arith.constant 0 : index
    %c0_7 = arith.constant 0 : index
    %c1 = arith.constant 1 : index
    %c0_8 = arith.constant 0 : index
    %5 = vector.load %arg1[%c0_6, %c0_7, %c1, %c0_8] : memref<1x1x332x4xbf16, #tpu.memory_space<vmem>>, vector<1x1x288x4xbf16>
    %6 = vector.shape_cast %5 : vector<1x1x288x4xbf16> to vector<288x4xbf16>
    %c1_9 = arith.constant 1 : index
    %c0_10 = arith.constant 0 : index
    %c0_11 = arith.constant 0 : index
    %7 = vector.load %arg2[%c1_9, %c0_10, %c0_11] : memref<9x4x8xbf16, #tpu.memory_space<vmem>>, vector<1x4x8xbf16>
    %8 = vector.shape_cast %7 : vector<1x4x8xbf16> to vector<4x8xbf16>
    %cst_12 = arith.constant dense<0.000000e+00> : vector<288x8xf32>
    %9 = tpu.matmul %6, %8, %cst_12 {dimension_numbers = #tpu.dot_dimension_numbers<[1], [0], [0], [1], [0, 0, 1, 1], [], []>} : vector<288x4xbf16>, vector<4x8xbf16>, vector<288x8xf32> -> vector<288x8xf32>
    %10 = arith.addf %4, %9 : vector<288x8xf32>
    %c0_13 = arith.constant 0 : index
    %c0_14 = arith.constant 0 : index
    %c2 = arith.constant 2 : index
    %c0_15 = arith.constant 0 : index
    %11 = vector.load %arg1[%c0_13, %c0_14, %c2, %c0_15] : memref<1x1x332x4xbf16, #tpu.memory_space<vmem>>, vector<1x1x288x4xbf16>
    %12 = vector.shape_cast %11 : vector<1x1x288x4xbf16> to vector<288x4xbf16>
    %c2_16 = arith.constant 2 : index
    %c0_17 = arith.constant 0 : index
    %c0_18 = arith.constant 0 : index
    %13 = vector.load %arg2[%c2_16, %c0_17, %c0_18] : memref<9x4x8xbf16, #tpu.memory_space<vmem>>, vector<1x4x8xbf16>
    %14 = vector.shape_cast %13 : vector<1x4x8xbf16> to vector<4x8xbf16>
    %cst_19 = arith.constant dense<0.000000e+00> : vector<288x8xf32>
    %15 = tpu.matmul %12, %14, %cst_19 {dimension_numbers = #tpu.dot_dimension_numbers<[1], [0], [0], [1], [0, 0, 1, 1], [], []>} : vector<288x4xbf16>, vector<4x8xbf16>, vector<288x8xf32> -> vector<288x8xf32>
    %16 = arith.addf %10, %15 : vector<288x8xf32>
    %c0_20 = arith.constant 0 : index
    %c0_21 = arith.constant 0 : index
    %c18 = arith.constant 18 : index
    %c0_22 = arith.constant 0 : index
    %17 = vector.load %arg1[%c0_20, %c0_21, %c18, %c0_22] : memref<1x1x332x4xbf16, #tpu.memory_space<vmem>>, vector<1x1x288x4xbf16>
    %18 = vector.shape_cast %17 : vector<1x1x288x4xbf16> to vector<288x4xbf16>
    %c3 = arith.constant 3 : index
    %c0_23 = arith.constant 0 : index
    %c0_24 = arith.constant 0 : index
    %19 = vector.load %arg2[%c3, %c0_23, %c0_24] : memref<9x4x8xbf16, #tpu.memory_space<vmem>>, vector<1x4x8xbf16>
    %20 = vector.shape_cast %19 : vector<1x4x8xbf16> to vector<4x8xbf16>
    %cst_25 = arith.constant dense<0.000000e+00> : vector<288x8xf32>
    %21 = tpu.matmul %18, %20, %cst_25 {dimension_numbers = #tpu.dot_dimension_numbers<[1], [0], [0], [1], [0, 0, 1, 1], [], []>} : vector<288x4xbf16>, vector<4x8xbf16>, vector<288x8xf32> -> vector<288x8xf32>
    %22 = arith.addf %16, %21 : vector<288x8xf32>
    %c0_26 = arith.constant 0 : index
    %c0_27 = arith.constant 0 : index
    %c19 = arith.constant 19 : index
    %c0_28 = arith.constant 0 : index
    %23 = vector.load %arg1[%c0_26, %c0_27, %c19, %c0_28] : memref<1x1x332x4xbf16, #tpu.memory_space<vmem>>, vector<1x1x288x4xbf16>
    %24 = vector.shape_cast %23 : vector<1x1x288x4xbf16> to vector<288x4xbf16>
    %c4 = arith.constant 4 : index
    %c0_29 = arith.constant 0 : index
    %c0_30 = arith.constant 0 : index
    %25 = vector.load %arg2[%c4, %c0_29, %c0_30] : memref<9x4x8xbf16, #tpu.memory_space<vmem>>, vector<1x4x8xbf16>
    %26 = vector.shape_cast %25 : vector<1x4x8xbf16> to vector<4x8xbf16>
    %cst_31 = arith.constant dense<0.000000e+00> : vector<288x8xf32>
    %27 = tpu.matmul %24, %26, %cst_31 {dimension_numbers = #tpu.dot_dimension_numbers<[1], [0], [0], [1], [0, 0, 1, 1], [], []>} : vector<288x4xbf16>, vector<4x8xbf16>, vector<288x8xf32> -> vector<288x8xf32>
    %28 = arith.addf %22, %27 : vector<288x8xf32>
    %c0_32 = arith.constant 0 : index
    %c0_33 = arith.constant 0 : index
    %c20 = arith.constant 20 : index
    %c0_34 = arith.constant 0 : index
    %29 = vector.load %arg1[%c0_32, %c0_33, %c20, %c0_34] : memref<1x1x332x4xbf16, #tpu.memory_space<vmem>>, vector<1x1x288x4xbf16>
    %30 = vector.shape_cast %29 : vector<1x1x288x4xbf16> to vector<288x4xbf16>
    %c5 = arith.constant 5 : index
    %c0_35 = arith.constant 0 : index
    %c0_36 = arith.constant 0 : index
    %31 = vector.load %arg2[%c5, %c0_35, %c0_36] : memref<9x4x8xbf16, #tpu.memory_space<vmem>>, vector<1x4x8xbf16>
    %32 = vector.shape_cast %31 : vector<1x4x8xbf16> to vector<4x8xbf16>
    %cst_37 = arith.constant dense<0.000000e+00> : vector<288x8xf32>
    %33 = tpu.matmul %30, %32, %cst_37 {dimension_numbers = #tpu.dot_dimension_numbers<[1], [0], [0], [1], [0, 0, 1, 1], [], []>} : vector<288x4xbf16>, vector<4x8xbf16>, vector<288x8xf32> -> vector<288x8xf32>
    %34 = arith.addf %28, %33 : vector<288x8xf32>
    %c0_38 = arith.constant 0 : index
    %c0_39 = arith.constant 0 : index
    %c36 = arith.constant 36 : index
    %c0_40 = arith.constant 0 : index
    %35 = vector.load %arg1[%c0_38, %c0_39, %c36, %c0_40] : memref<1x1x332x4xbf16, #tpu.memory_space<vmem>>, vector<1x1x288x4xbf16>
    %36 = vector.shape_cast %35 : vector<1x1x288x4xbf16> to vector<288x4xbf16>
    %c6 = arith.constant 6 : index
    %c0_41 = arith.constant 0 : index
    %c0_42 = arith.constant 0 : index
    %37 = vector.load %arg2[%c6, %c0_41, %c0_42] : memref<9x4x8xbf16, #tpu.memory_space<vmem>>, vector<1x4x8xbf16>
    %38 = vector.shape_cast %37 : vector<1x4x8xbf16> to vector<4x8xbf16>
    %cst_43 = arith.constant dense<0.000000e+00> : vector<288x8xf32>
    %39 = tpu.matmul %36, %38, %cst_43 {dimension_numbers = #tpu.dot_dimension_numbers<[1], [0], [0], [1], [0, 0, 1, 1], [], []>} : vector<288x4xbf16>, vector<4x8xbf16>, vector<288x8xf32> -> vector<288x8xf32>
    %40 = arith.addf %34, %39 : vector<288x8xf32>
    %c0_44 = arith.constant 0 : index
    %c0_45 = arith.constant 0 : index
    %c37 = arith.constant 37 : index
    %c0_46 = arith.constant 0 : index
    %41 = vector.load %arg1[%c0_44, %c0_45, %c37, %c0_46] : memref<1x1x332x4xbf16, #tpu.memory_space<vmem>>, vector<1x1x288x4xbf16>
    %42 = vector.shape_cast %41 : vector<1x1x288x4xbf16> to vector<288x4xbf16>
    %c7 = arith.constant 7 : index
    %c0_47 = arith.constant 0 : index
    %c0_48 = arith.constant 0 : index
    %43 = vector.load %arg2[%c7, %c0_47, %c0_48] : memref<9x4x8xbf16, #tpu.memory_space<vmem>>, vector<1x4x8xbf16>
    %44 = vector.shape_cast %43 : vector<1x4x8xbf16> to vector<4x8xbf16>
    %cst_49 = arith.constant dense<0.000000e+00> : vector<288x8xf32>
    %45 = tpu.matmul %42, %44, %cst_49 {dimension_numbers = #tpu.dot_dimension_numbers<[1], [0], [0], [1], [0, 0, 1, 1], [], []>} : vector<288x4xbf16>, vector<4x8xbf16>, vector<288x8xf32> -> vector<288x8xf32>
    %46 = arith.addf %40, %45 : vector<288x8xf32>
    %c0_50 = arith.constant 0 : index
    %c0_51 = arith.constant 0 : index
    %c38 = arith.constant 38 : index
    %c0_52 = arith.constant 0 : index
    %47 = vector.load %arg1[%c0_50, %c0_51, %c38, %c0_52] : memref<1x1x332x4xbf16, #tpu.memory_space<vmem>>, vector<1x1x288x4xbf16>
    %48 = vector.shape_cast %47 : vector<1x1x288x4xbf16> to vector<288x4xbf16>
    %c8 = arith.constant 8 : index
    %c0_53 = arith.constant 0 : index
    %c0_54 = arith.constant 0 : index
    %49 = vector.load %arg2[%c8, %c0_53, %c0_54] : memref<9x4x8xbf16, #tpu.memory_space<vmem>>, vector<1x4x8xbf16>
    %50 = vector.shape_cast %49 : vector<1x4x8xbf16> to vector<4x8xbf16>
    %cst_55 = arith.constant dense<0.000000e+00> : vector<288x8xf32>
    %51 = tpu.matmul %48, %50, %cst_55 {dimension_numbers = #tpu.dot_dimension_numbers<[1], [0], [0], [1], [0, 0, 1, 1], [], []>} : vector<288x4xbf16>, vector<4x8xbf16>, vector<288x8xf32> -> vector<288x8xf32>
    %52 = arith.addf %46, %51 : vector<288x8xf32>
    %c0_56 = arith.constant 0 : index
    %c0_57 = arith.constant 0 : index
    %53 = vector.load %arg3[%c0_56, %c0_57] : memref<288x1xf32, #tpu.memory_space<vmem>>, vector<288x1xf32>
    %54 = vector.broadcast %53 : vector<288x1xf32> to vector<288x8xf32>
    %55 = arith.mulf %52, %54 : vector<288x8xf32>
    %cst_58 = arith.constant dense<0.000000e+00> : vector<8xf32>
    %56 = vector.multi_reduction <add>, %55, %cst_58 [0] : vector<288x8xf32> to vector<8xf32>
    %57 = vector.shape_cast %56 : vector<8xf32> to vector<1x8xf32>
    %c0_59 = arith.constant 0 : index
    %c0_60 = arith.constant 0 : index
    %c0_61 = arith.constant 0 : index
    %58 = vector.load %arg4[%c0_59, %c0_60, %c0_61] : memref<1x2x8xf32, #tpu.memory_space<vmem>>, vector<1x1x8xf32>
    %59 = vector.shape_cast %58 : vector<1x1x8xf32> to vector<1x8xf32>
    %60 = vector.shape_cast %57 : vector<1x8xf32> to vector<1x1x8xf32>
    tpu.vector_store %arg4[%c0_59, %c0_60, %c0_61], %60 {strides = array<i32>} : memref<1x2x8xf32, #tpu.memory_space<vmem>>, vector<1x1x8xf32>,
    %61 = arith.mulf %52, %52 : vector<288x8xf32>
    %62 = vector.broadcast %53 : vector<288x1xf32> to vector<288x8xf32>
    %63 = arith.mulf %61, %62 : vector<288x8xf32>
    %cst_62 = arith.constant dense<0.000000e+00> : vector<8xf32>
    %64 = vector.multi_reduction <add>, %63, %cst_62 [0] : vector<288x8xf32> to vector<8xf32>
    %65 = vector.shape_cast %64 : vector<8xf32> to vector<1x8xf32>
    %c0_63 = arith.constant 0 : index
    %c1_64 = arith.constant 1 : index
    %c0_65 = arith.constant 0 : index
    %66 = vector.load %arg4[%c0_63, %c1_64, %c0_65] : memref<1x2x8xf32, #tpu.memory_space<vmem>>, vector<1x1x8xf32>
    %67 = vector.shape_cast %66 : vector<1x1x8xf32> to vector<1x8xf32>
    %68 = vector.shape_cast %65 : vector<1x8xf32> to vector<1x1x8xf32>
    tpu.vector_store %arg4[%c0_63, %c1_64, %c0_65], %68 {strides = array<i32>} : memref<1x2x8xf32, #tpu.memory_space<vmem>>, vector<1x1x8xf32>,
    return
  }
  func.func @transform_0(%arg0: i32) -> (i32, i32, i32, i32) {
    %c0_i32 = arith.constant 0 : i32
    %c0_i32_0 = arith.constant 0 : i32
    %c0_i32_1 = arith.constant 0 : i32
    %c0_i32_2 = arith.constant 0 : i32
    return %arg0, %c0_i32, %c0_i32_0, %c0_i32_1 : i32, i32, i32, i32
  }
  func.func @transform_1(%arg0: i32) -> (i32, i32, i32) {
    %c0_i32 = arith.constant 0 : i32
    %c0_i32_0 = arith.constant 0 : i32
    %c0_i32_1 = arith.constant 0 : i32
    %c0_i32_2 = arith.constant 0 : i32
    return %c0_i32, %c0_i32_0, %c0_i32_1 : i32, i32, i32
  }
  func.func @transform_2(%arg0: i32) -> (i32, i32) {
    %c0_i32 = arith.constant 0 : i32
    %c0_i32_0 = arith.constant 0 : i32
    %c0_i32_1 = arith.constant 0 : i32
    return %c0_i32, %c0_i32_0 : i32, i32
  }
  func.func @transform_3(%arg0: i32) -> (i32, i32, i32) {
    %c0_i32 = arith.constant 0 : i32
    %c0_i32_0 = arith.constant 0 : i32
    %c0_i32_1 = arith.constant 0 : i32
    return %arg0, %c0_i32, %c0_i32_0 : i32, i32, i32
  }
}

module attributes {stable_mosaic.version = 11 : i64} {
  func.func @apply_kernel(%arg0: i32, %arg1: memref<1x1x332x4xbf16, #tpu.memory_space<vmem>>, %arg2: memref<9x4x8xbf16, #tpu.memory_space<vmem>>, %arg3: memref<1x8xf32, #tpu.memory_space<vmem>>, %arg4: memref<1x8xf32, #tpu.memory_space<vmem>>, %arg5: memref<1x288x8xf32, #tpu.memory_space<vmem>>) attributes {dimension_semantics = [#tpu.dimension_semantics<parallel>], iteration_bounds = array<i64: 2>, scalar_prefetch = 0 : i64, scratch_operands = 0 : i64, tpu.core_type = #tpu.core_type<tc>, window_params = [{transform_indices = @transform_0, window_bounds = array<i64: 1, 1, 332, 4>}, {pipeline_mode = #tpu.pipeline_mode<synchronous>, transform_indices = @transform_1, window_bounds = array<i64: 9, 4, 8>}, {pipeline_mode = #tpu.pipeline_mode<synchronous>, transform_indices = @transform_2, window_bounds = array<i64: 1, 8>}, {pipeline_mode = #tpu.pipeline_mode<synchronous>, transform_indices = @transform_3, window_bounds = array<i64: 1, 8>}, {transform_indices = @transform_4, window_bounds = array<i64: 1, 288, 8>}]} {
    %c0 = arith.constant 0 : index
    %c0_0 = arith.constant 0 : index
    %c0_1 = arith.constant 0 : index
    %c0_2 = arith.constant 0 : index
    %0 = vector.load %arg1[%c0, %c0_0, %c0_1, %c0_2] : memref<1x1x332x4xbf16, #tpu.memory_space<vmem>>, vector<1x1x288x4xbf16>
    %1 = vector.shape_cast %0 : vector<1x1x288x4xbf16> to vector<288x4xbf16>
    %c0_3 = arith.constant 0 : index
    %c0_4 = arith.constant 0 : index
    %c0_5 = arith.constant 0 : index
    %2 = vector.load %arg2[%c0_3, %c0_4, %c0_5] : memref<9x4x8xbf16, #tpu.memory_space<vmem>>, vector<1x4x8xbf16>
    %3 = vector.shape_cast %2 : vector<1x4x8xbf16> to vector<4x8xbf16>
    %cst = arith.constant dense<0.000000e+00> : vector<288x8xf32>
    %4 = tpu.matmul %1, %3, %cst {dimension_numbers = #tpu.dot_dimension_numbers<[1], [0], [0], [1], [0, 0, 1, 1], [], []>} : vector<288x4xbf16>, vector<4x8xbf16>, vector<288x8xf32> -> vector<288x8xf32>
    %c0_6 = arith.constant 0 : index
    %c0_7 = arith.constant 0 : index
    %c1 = arith.constant 1 : index
    %c0_8 = arith.constant 0 : index
    %5 = vector.load %arg1[%c0_6, %c0_7, %c1, %c0_8] : memref<1x1x332x4xbf16, #tpu.memory_space<vmem>>, vector<1x1x288x4xbf16>
    %6 = vector.shape_cast %5 : vector<1x1x288x4xbf16> to vector<288x4xbf16>
    %c1_9 = arith.constant 1 : index
    %c0_10 = arith.constant 0 : index
    %c0_11 = arith.constant 0 : index
    %7 = vector.load %arg2[%c1_9, %c0_10, %c0_11] : memref<9x4x8xbf16, #tpu.memory_space<vmem>>, vector<1x4x8xbf16>
    %8 = vector.shape_cast %7 : vector<1x4x8xbf16> to vector<4x8xbf16>
    %cst_12 = arith.constant dense<0.000000e+00> : vector<288x8xf32>
    %9 = tpu.matmul %6, %8, %cst_12 {dimension_numbers = #tpu.dot_dimension_numbers<[1], [0], [0], [1], [0, 0, 1, 1], [], []>} : vector<288x4xbf16>, vector<4x8xbf16>, vector<288x8xf32> -> vector<288x8xf32>
    %10 = arith.addf %4, %9 : vector<288x8xf32>
    %c0_13 = arith.constant 0 : index
    %c0_14 = arith.constant 0 : index
    %c2 = arith.constant 2 : index
    %c0_15 = arith.constant 0 : index
    %11 = vector.load %arg1[%c0_13, %c0_14, %c2, %c0_15] : memref<1x1x332x4xbf16, #tpu.memory_space<vmem>>, vector<1x1x288x4xbf16>
    %12 = vector.shape_cast %11 : vector<1x1x288x4xbf16> to vector<288x4xbf16>
    %c2_16 = arith.constant 2 : index
    %c0_17 = arith.constant 0 : index
    %c0_18 = arith.constant 0 : index
    %13 = vector.load %arg2[%c2_16, %c0_17, %c0_18] : memref<9x4x8xbf16, #tpu.memory_space<vmem>>, vector<1x4x8xbf16>
    %14 = vector.shape_cast %13 : vector<1x4x8xbf16> to vector<4x8xbf16>
    %cst_19 = arith.constant dense<0.000000e+00> : vector<288x8xf32>
    %15 = tpu.matmul %12, %14, %cst_19 {dimension_numbers = #tpu.dot_dimension_numbers<[1], [0], [0], [1], [0, 0, 1, 1], [], []>} : vector<288x4xbf16>, vector<4x8xbf16>, vector<288x8xf32> -> vector<288x8xf32>
    %16 = arith.addf %10, %15 : vector<288x8xf32>
    %c0_20 = arith.constant 0 : index
    %c0_21 = arith.constant 0 : index
    %c18 = arith.constant 18 : index
    %c0_22 = arith.constant 0 : index
    %17 = vector.load %arg1[%c0_20, %c0_21, %c18, %c0_22] : memref<1x1x332x4xbf16, #tpu.memory_space<vmem>>, vector<1x1x288x4xbf16>
    %18 = vector.shape_cast %17 : vector<1x1x288x4xbf16> to vector<288x4xbf16>
    %c3 = arith.constant 3 : index
    %c0_23 = arith.constant 0 : index
    %c0_24 = arith.constant 0 : index
    %19 = vector.load %arg2[%c3, %c0_23, %c0_24] : memref<9x4x8xbf16, #tpu.memory_space<vmem>>, vector<1x4x8xbf16>
    %20 = vector.shape_cast %19 : vector<1x4x8xbf16> to vector<4x8xbf16>
    %cst_25 = arith.constant dense<0.000000e+00> : vector<288x8xf32>
    %21 = tpu.matmul %18, %20, %cst_25 {dimension_numbers = #tpu.dot_dimension_numbers<[1], [0], [0], [1], [0, 0, 1, 1], [], []>} : vector<288x4xbf16>, vector<4x8xbf16>, vector<288x8xf32> -> vector<288x8xf32>
    %22 = arith.addf %16, %21 : vector<288x8xf32>
    %c0_26 = arith.constant 0 : index
    %c0_27 = arith.constant 0 : index
    %c19 = arith.constant 19 : index
    %c0_28 = arith.constant 0 : index
    %23 = vector.load %arg1[%c0_26, %c0_27, %c19, %c0_28] : memref<1x1x332x4xbf16, #tpu.memory_space<vmem>>, vector<1x1x288x4xbf16>
    %24 = vector.shape_cast %23 : vector<1x1x288x4xbf16> to vector<288x4xbf16>
    %c4 = arith.constant 4 : index
    %c0_29 = arith.constant 0 : index
    %c0_30 = arith.constant 0 : index
    %25 = vector.load %arg2[%c4, %c0_29, %c0_30] : memref<9x4x8xbf16, #tpu.memory_space<vmem>>, vector<1x4x8xbf16>
    %26 = vector.shape_cast %25 : vector<1x4x8xbf16> to vector<4x8xbf16>
    %cst_31 = arith.constant dense<0.000000e+00> : vector<288x8xf32>
    %27 = tpu.matmul %24, %26, %cst_31 {dimension_numbers = #tpu.dot_dimension_numbers<[1], [0], [0], [1], [0, 0, 1, 1], [], []>} : vector<288x4xbf16>, vector<4x8xbf16>, vector<288x8xf32> -> vector<288x8xf32>
    %28 = arith.addf %22, %27 : vector<288x8xf32>
    %c0_32 = arith.constant 0 : index
    %c0_33 = arith.constant 0 : index
    %c20 = arith.constant 20 : index
    %c0_34 = arith.constant 0 : index
    %29 = vector.load %arg1[%c0_32, %c0_33, %c20, %c0_34] : memref<1x1x332x4xbf16, #tpu.memory_space<vmem>>, vector<1x1x288x4xbf16>
    %30 = vector.shape_cast %29 : vector<1x1x288x4xbf16> to vector<288x4xbf16>
    %c5 = arith.constant 5 : index
    %c0_35 = arith.constant 0 : index
    %c0_36 = arith.constant 0 : index
    %31 = vector.load %arg2[%c5, %c0_35, %c0_36] : memref<9x4x8xbf16, #tpu.memory_space<vmem>>, vector<1x4x8xbf16>
    %32 = vector.shape_cast %31 : vector<1x4x8xbf16> to vector<4x8xbf16>
    %cst_37 = arith.constant dense<0.000000e+00> : vector<288x8xf32>
    %33 = tpu.matmul %30, %32, %cst_37 {dimension_numbers = #tpu.dot_dimension_numbers<[1], [0], [0], [1], [0, 0, 1, 1], [], []>} : vector<288x4xbf16>, vector<4x8xbf16>, vector<288x8xf32> -> vector<288x8xf32>
    %34 = arith.addf %28, %33 : vector<288x8xf32>
    %c0_38 = arith.constant 0 : index
    %c0_39 = arith.constant 0 : index
    %c36 = arith.constant 36 : index
    %c0_40 = arith.constant 0 : index
    %35 = vector.load %arg1[%c0_38, %c0_39, %c36, %c0_40] : memref<1x1x332x4xbf16, #tpu.memory_space<vmem>>, vector<1x1x288x4xbf16>
    %36 = vector.shape_cast %35 : vector<1x1x288x4xbf16> to vector<288x4xbf16>
    %c6 = arith.constant 6 : index
    %c0_41 = arith.constant 0 : index
    %c0_42 = arith.constant 0 : index
    %37 = vector.load %arg2[%c6, %c0_41, %c0_42] : memref<9x4x8xbf16, #tpu.memory_space<vmem>>, vector<1x4x8xbf16>
    %38 = vector.shape_cast %37 : vector<1x4x8xbf16> to vector<4x8xbf16>
    %cst_43 = arith.constant dense<0.000000e+00> : vector<288x8xf32>
    %39 = tpu.matmul %36, %38, %cst_43 {dimension_numbers = #tpu.dot_dimension_numbers<[1], [0], [0], [1], [0, 0, 1, 1], [], []>} : vector<288x4xbf16>, vector<4x8xbf16>, vector<288x8xf32> -> vector<288x8xf32>
    %40 = arith.addf %34, %39 : vector<288x8xf32>
    %c0_44 = arith.constant 0 : index
    %c0_45 = arith.constant 0 : index
    %c37 = arith.constant 37 : index
    %c0_46 = arith.constant 0 : index
    %41 = vector.load %arg1[%c0_44, %c0_45, %c37, %c0_46] : memref<1x1x332x4xbf16, #tpu.memory_space<vmem>>, vector<1x1x288x4xbf16>
    %42 = vector.shape_cast %41 : vector<1x1x288x4xbf16> to vector<288x4xbf16>
    %c7 = arith.constant 7 : index
    %c0_47 = arith.constant 0 : index
    %c0_48 = arith.constant 0 : index
    %43 = vector.load %arg2[%c7, %c0_47, %c0_48] : memref<9x4x8xbf16, #tpu.memory_space<vmem>>, vector<1x4x8xbf16>
    %44 = vector.shape_cast %43 : vector<1x4x8xbf16> to vector<4x8xbf16>
    %cst_49 = arith.constant dense<0.000000e+00> : vector<288x8xf32>
    %45 = tpu.matmul %42, %44, %cst_49 {dimension_numbers = #tpu.dot_dimension_numbers<[1], [0], [0], [1], [0, 0, 1, 1], [], []>} : vector<288x4xbf16>, vector<4x8xbf16>, vector<288x8xf32> -> vector<288x8xf32>
    %46 = arith.addf %40, %45 : vector<288x8xf32>
    %c0_50 = arith.constant 0 : index
    %c0_51 = arith.constant 0 : index
    %c38 = arith.constant 38 : index
    %c0_52 = arith.constant 0 : index
    %47 = vector.load %arg1[%c0_50, %c0_51, %c38, %c0_52] : memref<1x1x332x4xbf16, #tpu.memory_space<vmem>>, vector<1x1x288x4xbf16>
    %48 = vector.shape_cast %47 : vector<1x1x288x4xbf16> to vector<288x4xbf16>
    %c8 = arith.constant 8 : index
    %c0_53 = arith.constant 0 : index
    %c0_54 = arith.constant 0 : index
    %49 = vector.load %arg2[%c8, %c0_53, %c0_54] : memref<9x4x8xbf16, #tpu.memory_space<vmem>>, vector<1x4x8xbf16>
    %50 = vector.shape_cast %49 : vector<1x4x8xbf16> to vector<4x8xbf16>
    %cst_55 = arith.constant dense<0.000000e+00> : vector<288x8xf32>
    %51 = tpu.matmul %48, %50, %cst_55 {dimension_numbers = #tpu.dot_dimension_numbers<[1], [0], [0], [1], [0, 0, 1, 1], [], []>} : vector<288x4xbf16>, vector<4x8xbf16>, vector<288x8xf32> -> vector<288x8xf32>
    %52 = arith.addf %46, %51 : vector<288x8xf32>
    %c0_56 = arith.constant 0 : index
    %c0_57 = arith.constant 0 : index
    %53 = vector.load %arg3[%c0_56, %c0_57] : memref<1x8xf32, #tpu.memory_space<vmem>>, vector<1x8xf32>
    %54 = vector.broadcast %53 : vector<1x8xf32> to vector<288x8xf32>
    %55 = arith.mulf %52, %54 : vector<288x8xf32>
    %c0_58 = arith.constant 0 : index
    %c0_59 = arith.constant 0 : index
    %56 = vector.load %arg4[%c0_58, %c0_59] : memref<1x8xf32, #tpu.memory_space<vmem>>, vector<1x8xf32>
    %57 = vector.broadcast %56 : vector<1x8xf32> to vector<288x8xf32>
    %58 = arith.addf %55, %57 : vector<288x8xf32>
    %cst_60 = arith.constant 0.000000e+00 : f32
    %59 = vector.broadcast %cst_60 : f32 to vector<288x8xf32>
    %60 = arith.maximumf %58, %59 : vector<288x8xf32>
    %c0_61 = arith.constant 0 : index
    %c0_62 = arith.constant 0 : index
    %c0_63 = arith.constant 0 : index
    %61 = vector.load %arg5[%c0_61, %c0_62, %c0_63] : memref<1x288x8xf32, #tpu.memory_space<vmem>>, vector<1x288x8xf32>
    %62 = vector.shape_cast %61 : vector<1x288x8xf32> to vector<288x8xf32>
    %63 = vector.shape_cast %60 : vector<288x8xf32> to vector<1x288x8xf32>
    tpu.vector_store %arg5[%c0_61, %c0_62, %c0_63], %63 {strides = array<i32>} : memref<1x288x8xf32, #tpu.memory_space<vmem>>, vector<1x288x8xf32>,
    return
  }
  func.func @transform_0(%arg0: i32) -> (i32, i32, i32, i32) {
    %c0_i32 = arith.constant 0 : i32
    %c0_i32_0 = arith.constant 0 : i32
    %c0_i32_1 = arith.constant 0 : i32
    %c0_i32_2 = arith.constant 0 : i32
    return %arg0, %c0_i32, %c0_i32_0, %c0_i32_1 : i32, i32, i32, i32
  }
  func.func @transform_1(%arg0: i32) -> (i32, i32, i32) {
    %c0_i32 = arith.constant 0 : i32
    %c0_i32_0 = arith.constant 0 : i32
    %c0_i32_1 = arith.constant 0 : i32
    %c0_i32_2 = arith.constant 0 : i32
    return %c0_i32, %c0_i32_0, %c0_i32_1 : i32, i32, i32
  }
  func.func @transform_2(%arg0: i32) -> (i32, i32) {
    %c0_i32 = arith.constant 0 : i32
    %c0_i32_0 = arith.constant 0 : i32
    %c0_i32_1 = arith.constant 0 : i32
    return %c0_i32, %c0_i32_0 : i32, i32
  }
  func.func @transform_3(%arg0: i32) -> (i32, i32) {
    %c0_i32 = arith.constant 0 : i32
    %c0_i32_0 = arith.constant 0 : i32
    %c0_i32_1 = arith.constant 0 : i32
    return %c0_i32, %c0_i32_0 : i32, i32
  }
  func.func @transform_4(%arg0: i32) -> (i32, i32, i32) {
    %c0_i32 = arith.constant 0 : i32
    %c0_i32_0 = arith.constant 0 : i32
    %c0_i32_1 = arith.constant 0 : i32
    return %arg0, %c0_i32, %c0_i32_0 : i32, i32, i32
  }
}

</mosaic_0001>

<llo_original>
// kernel: _block_forward_impl.2
$region0: #{_block_forward_impl.2}
  #allocation0 [shape = 'u32[]', space=smem, size = 0x4, offset = 0x4, fixed_abs, tag = 'smem constant byte address 0x4 - core index']
  #allocation1 [shape = 'u32[144,128]{1,0:T(1,128)}', space=vmem, size = 0x12000, scoped, tag = 'internal scratch']
  %s0 = inlined_call_operand.vmem [shape: bf16[2,1,332,4], index: 0, kind: input, shape index: {}]
  %s1 = inlined_call_operand.vmem [shape: bf16[9,4,8], index: 1, kind: input, shape index: {}]
  %s2 = inlined_call_operand.vmem [shape: f32[288,1], index: 2, kind: input, shape index: {}]
  %s3 = inlined_call_operand.vmem [shape: f32[2,2,8], index: 3, kind: output, shape index: {}]
  %s4 = sld [smem:[#allocation0]]
  $region45: #{_block_forward_impl.2} parent=0
    _
  %s6 = ssub.s32 1, %s4
  %s7 = scalar_select 0, %s6, %s4
  loop: start=0, step=1, limit=4
  $region2: #{_block_forward_impl.2} parent=0 // loop_pre_header
    _
  $region3: #{_block_forward_impl.2} parent=0 // loop_header
    %s9 = sphi 0, %s13
    %p10 = scmp.ge.s32.totalorder %s9, 4
    %s19 = sphi 0, %s21
    %s22 = sphi 0, %s19
    %s23 = sphi 0, %s22
    %s39 = sphi 0, %s23
    %s43 = sphi 0, %s43
    %s45 = sphi 0, %s43
    %s46 = sphi 0, %s45
    %s60 = sphi 0, %s46
    %s64 = sphi 0, %s64
    %s66 = sphi 0, %s64
    %s67 = sphi 0, %s66
    %s81 = sphi 0, %s67
    %s87 = sphi 0, %s89
    %s90 = sphi 0, %s87
    %s91 = sphi 0, %s90
    %s107 = sphi 0, %s91
  $region4: #{_block_forward_impl.2} parent=0 // loop_header_branch
    %12 = sbr.rel (%p10) target = $region8
  $region5: #{_block_forward_impl.2} parent=0 // loop_body
    %s14 = ssub.s32 %s9, 1
    %s15 = ssub.s32 %s9, 2
    %s16 = sadd.s32 %s9, 1
    %s17 = ssub.s32 %s9, %s16
    %p18 = scmp.eq.s32.totalorder %s17, 0
    %s20 = sadd.s32 %s19, 1
    %s21 = scalar_select %p18, %s19, %s20
    %p24 = pneg %p18
    %p25 = scmp.eq.s32.totalorder %s9, 1
    %p26 = por %p24, %p25
    %p27 = scmp.ne.s32.totalorder %s19, %s22
    %p28 = scmp.eq.s32.totalorder %s9, 0
    %p29 = por %p27, %p28
    %p30 = scmp.ne.s32.totalorder %s19, %s22
    %p31 = scmp.eq.s32.totalorder %s14, 1
    %p32 = por %p30, %p31
    %p33 = scmp.ne.s32.totalorder %s22, %s23
    %p34 = scmp.eq.s32.totalorder %s14, 0
    %p35 = por %p33, %p34
    %p36 = scmp.ne.s32.totalorder %s22, %s23
    %p37 = scmp.eq.s32.totalorder %s15, 1
    %p38 = por %p36, %p37
    %p40 = scmp.ne.s32.totalorder %s23, %s39
    %p41 = scmp.eq.s32.totalorder %s15, 0
    %p42 = por %p40, %p41
    %s44 = sadd.s32 %s43, 1
    %p47 = scmp.eq.s32.totalorder %s9, 1
    %p48 = scmp.ne.s32.totalorder %s43, %s45
    %p49 = scmp.eq.s32.totalorder %s9, 0
    %p50 = por %p48, %p49
    %p51 = scmp.ne.s32.totalorder %s43, %s45
    %p52 = scmp.eq.s32.totalorder %s14, 1
    %p53 = por %p51, %p52
    %p54 = scmp.ne.s32.totalorder %s45, %s46
    %p55 = scmp.eq.s32.totalorder %s14, 0
    %p56 = por %p54, %p55
    %p57 = scmp.ne.s32.totalorder %s45, %s46
    %p58 = scmp.eq.s32.totalorder %s15, 1
    %p59 = por %p57, %p58
    %p61 = scmp.ne.s32.totalorder %s46, %s60
    %p62 = scmp.eq.s32.totalorder %s15, 0
    %p63 = por %p61, %p62
    %s65 = sadd.s32 %s64, 1
    %p68 = scmp.eq.s32.totalorder %s9, 1
    %p69 = scmp.ne.s32.totalorder %s64, %s66
    %p70 = scmp.eq.s32.totalorder %s9, 0
    %p71 = por %p69, %p70
    %p72 = scmp.ne.s32.totalorder %s64, %s66
    %p73 = scmp.eq.s32.totalorder %s14, 1
    %p74 = por %p72, %p73
    %p75 = scmp.ne.s32.totalorder %s66, %s67
    %p76 = scmp.eq.s32.totalorder %s14, 0
    %p77 = por %p75, %p76
    %p78 = scmp.ne.s32.totalorder %s66, %s67
    %p79 = scmp.eq.s32.totalorder %s15, 1
    %p80 = por %p78, %p79
    %p82 = scmp.ne.s32.totalorder %s67, %s81
    %p83 = scmp.eq.s32.totalorder %s15, 0
    %p84 = por %p82, %p83
    %s85 = ssub.s32 %s9, %s16
    %p86 = scmp.eq.s32.totalorder %s85, 0
    %s88 = sadd.s32 %s87, 1
    %s89 = scalar_select %p86, %s87, %s88
    %p92 = pneg %p86
    %p93 = scmp.eq.s32.totalorder %s9, 1
    %p94 = por %p92, %p93
    %p95 = scmp.ne.s32.totalorder %s87, %s90
    %p96 = scmp.eq.s32.totalorder %s9, 0
    %p97 = por %p95, %p96
    %p98 = scmp.ne.s32.totalorder %s87, %s90
    %p99 = scmp.eq.s32.totalorder %s14, 1
    %p100 = por %p98, %p99
    %p101 = scmp.ne.s32.totalorder %s90, %s91
    %p102 = scmp.eq.s32.totalorder %s14, 0
    %p103 = por %p101, %p102
    %p104 = scmp.ne.s32.totalorder %s90, %s91
    %p105 = scmp.eq.s32.totalorder %s15, 1
    %p106 = por %p104, %p105
    %p108 = scmp.ne.s32.totalorder %s91, %s107
    %p109 = scmp.eq.s32.totalorder %s15, 0
    %p110 = por %p108, %p109
    %p111 = scmp.le.s32.totalorder 1, %s9
    %p112 = scmp.lt.s32.totalorder %s9, 3
    %p113 = pnand %p111, %p112
    %p114 = pneg %p113
    // Predicated region
    $region9: #{_block_forward_impl.2} parent=5 // pred_check
      _
    $region10: #{_block_forward_impl.2} parent=5 // pred_check_branch
      %116 = sbr.rel (%p113) target = $region12
    $region11: #{_block_forward_impl.2} parent=5 // pred_region
      %s117 = ssub.s32 %s9, 1
      // Predicated region
      $region13: #{_block_forward_impl.2} parent=11 // pred_check
        %p118 = pneg %p56
      $region14: #{_block_forward_impl.2} parent=11 // pred_check_branch
        %120 = sbr.rel (%p118) target = $region16
      $region15: #{_block_forward_impl.2} parent=11 // pred_region
        _
      $region16: #{_block_forward_impl.2} parent=11 // pred_fallthru
        _
      // Predicated region
      $region17: #{_block_forward_impl.2} parent=11 // pred_check
        %p121 = pneg %p77
      $region18: #{_block_forward_impl.2} parent=11 // pred_check_branch
        %123 = sbr.rel (%p121) target = $region20
      $region19: #{_block_forward_impl.2} parent=11 // pred_region
        _
      $region20: #{_block_forward_impl.2} parent=11 // pred_fallthru
        _
    $region12: #{_block_forward_impl.2} parent=5 // pred_fallthru
      _
    %p124 = scmp.lt.s32.totalorder %s9, 2
    // Predicated region
    $region21: #{_block_forward_impl.2} parent=5 // pred_check
      %p125 = pneg %p124
    $region22: #{_block_forward_impl.2} parent=5 // pred_check_branch
      %127 = sbr.rel (%p125) target = $region24
    $region23: #{_block_forward_impl.2} parent=5 // pred_region
      // Predicated region
      $region25: #{_block_forward_impl.2} parent=23 // pred_check
        %p128 = pneg %p29
      $region26: #{_block_forward_impl.2} parent=23 // pred_check_branch
        %130 = sbr.rel (%p128) target = $region28
      $region27: #{_block_forward_impl.2} parent=23 // pred_region
        %p131 = scmp.lt.s32.totalorder %s9, 1
        %s132 = scalar_select %p131, %s9, 1
        %s133 = smul.addr %s132, 42
        %s134 = smul.addr %s133, 4
        %s135 = scalar_lea.vmem %s0, %s134
      $region28: #{_block_forward_impl.2} parent=23 // pred_fallthru
        _
    $region24: #{_block_forward_impl.2} parent=5 // pred_fallthru
      _
    %p136 = scmp.le.s32.totalorder 1, %s9
    %p137 = scmp.lt.s32.totalorder %s9, 3
    %p138 = pnand %p136, %p137
    %p139 = pneg %p138
    // Predicated region
    $region29: #{_block_forward_impl.2} parent=5 // pred_check
      _
    $region30: #{_block_forward_impl.2} parent=5 // pred_check_branch
      %141 = sbr.rel (%p138) target = $region32
    $region31: #{_block_forward_impl.2} parent=5 // pred_region
      %s142 = ssub.s32 %s9, 1
      %p143 = scmp.lt.s32.totalorder %s14, 1
      %s144 = scalar_select %p143, %s14, 1
      %s145 = smul.addr %s144, 42
      %s146 = smul.addr %s145, 4
      %s147 = scalar_lea.vmem %s0, %s146
      %p148 = pneg %p35
      %p149 = pneg %p32
      %p150 = pneg %p56
      %p151 = pneg %p53
      %p152 = pneg %p77
      %p153 = pneg %p74
      %p154 = pneg %p103
      %p155 = pneg %p100
      %p156 = scmp.lt.s32.totalorder %s14, 1
      %s157 = scalar_select %p156, %s14, 1
      %s158 = smul.addr %s157, 2
      %s159 = scalar_lea.vmem %s3, %s158
      %p160 = scmp.lt.s32.totalorder %s14, 1
      %s161 = scalar_select %p160, %s14, 1
      %s162 = smul.addr %s161, 42
      %s163 = smul.addr %s162, 4
      %s164 = scalar_lea.vmem %s0, %s163
      %p165 = scmp.lt.s32.totalorder %s14, 1
      %s166 = scalar_select %p165, %s14, 1
      %s167 = smul.addr %s166, 2
      %s168 = scalar_lea.vmem %s3, %s167
      %v170 = vld [vmem:[%s164] sm:$0xf]
      %v171 = vld [vmem:[%s164 + $0x4] sm:$0xf]
      %v172 = vld [vmem:[%s164 + $0x8] sm:$0xf]
      %v173 = vld [vmem:[%s164 + $0xc] sm:$0xf]
      %v174 = vld [vmem:[%s164 + $0x10] sm:$0xf]
      %v175 = vld [vmem:[%s164 + $0x14] sm:$0xf]
      %v176 = vld [vmem:[%s164 + $0x18] sm:$0xf]
      %v177 = vld [vmem:[%s164 + $0x1c] sm:$0xf]
      %v178 = vld [vmem:[%s164 + $0x20] sm:$0xf]
      %v179 = vld [vmem:[%s164 + $0x24] sm:$0xf]
      %v180 = vld [vmem:[%s164 + $0x28] sm:$0xf]
      %v181 = vld [vmem:[%s164 + $0x2c] sm:$0xf]
      %v182 = vld [vmem:[%s164 + $0x30] sm:$0xf]
      %v183 = vld [vmem:[%s164 + $0x34] sm:$0xf]
      %v184 = vld [vmem:[%s164 + $0x38] sm:$0xf]
      %v185 = vld [vmem:[%s164 + $0x3c] sm:$0xf]
      %v186 = vld [vmem:[%s164 + $0x40] sm:$0xf]
      %v187 = vld [vmem:[%s164 + $0x44] sm:$0xf]
      %v188 = vld [vmem:[%s164 + $0x48] sm:$0xf]
      %v189 = vld [vmem:[%s164 + $0x4c] sm:$0xf]
      %v190 = vld [vmem:[%s164 + $0x50] sm:$0xf]
      %v191 = vld [vmem:[%s164 + $0x54] sm:$0xf]
      %v192 = vld [vmem:[%s164 + $0x58] sm:$0xf]
      %v193 = vld [vmem:[%s164 + $0x5c] sm:$0xf]
      %v194 = vld [vmem:[%s164 + $0x60] sm:$0xf]
      %v195 = vld [vmem:[%s164 + $0x64] sm:$0xf]
      %v196 = vld [vmem:[%s164 + $0x68] sm:$0xf]
      %v197 = vld [vmem:[%s164 + $0x6c] sm:$0xf]
      %v198 = vld [vmem:[%s164 + $0x70] sm:$0xf]
      %v199 = vld [vmem:[%s164 + $0x74] sm:$0xf]
      %v200 = vld [vmem:[%s164 + $0x78] sm:$0xf]
      %v201 = vld [vmem:[%s164 + $0x7c] sm:$0xf]
      %v202 = vld [vmem:[%s164 + $0x80] sm:$0xf]
      %v203 = vld [vmem:[%s164 + $0x84] sm:$0xf]
      %v204 = vld [vmem:[%s164 + $0x88] sm:$0xf]
      %v205 = vld [vmem:[%s164 + $0x8c] sm:$0xf]
      %v206 = vld [vmem:[%s1] sm:$0x3]
      %v207 = vld [vmem:[%s164 + $0x90] sm:$0x1]
      %s208 = scalar_lea.vmem %s1, 2
      %v209 = vld [vmem:[%s208] sm:$0x3]
      %v247 = vunpack.c.l.b16 %v170
      %v248 = vunpack.c.l.b16 %v171
      %v249 = vunpack.c.l.b16 %v172
      %v250 = vunpack.c.l.b16 %v173
      %v251 = vunpack.c.l.b16 %v174
      %v252 = vunpack.c.l.b16 %v175
      %v253 = vunpack.c.l.b16 %v176
      %v254 = vunpack.c.l.b16 %v177
      %v255 = vunpack.c.l.b16 %v178
      %v256 = vunpack.c.l.b16 %v179
      %v257 = vunpack.c.l.b16 %v180
      %v258 = vunpack.c.l.b16 %v181
      %v259 = vunpack.c.l.b16 %v182
      %v260 = vunpack.c.l.b16 %v183
      %v261 = vunpack.c.l.b16 %v184
      %v262 = vunpack.c.l.b16 %v185
      %v263 = vunpack.c.l.b16 %v186
      %v264 = vunpack.c.l.b16 %v187
      %v265 = vunpack.c.l.b16 %v188
      %v266 = vunpack.c.l.b16 %v189
      %v267 = vunpack.c.l.b16 %v190
      %v268 = vunpack.c.l.b16 %v191
      %v269 = vunpack.c.l.b16 %v192
      %v270 = vunpack.c.l.b16 %v193
      %v271 = vunpack.c.l.b16 %v194
      %v272 = vunpack.c.l.b16 %v195
      %v273 = vunpack.c.l.b16 %v196
      %v274 = vunpack.c.l.b16 %v197
      %v275 = vunpack.c.l.b16 %v198
      %v276 = vunpack.c.l.b16 %v199
      %v277 = vunpack.c.l.b16 %v200
      %v278 = vunpack.c.l.b16 %v201
      %v279 = vunpack.c.l.b16 %v202
      %v280 = vunpack.c.l.b16 %v203
      %v281 = vunpack.c.l.b16 %v204
      %v282 = vunpack.c.l.b16 %v205
      %v283 = vunpack.c.l.b16 %v207
      %v284 = vpack.c.b16 %v248, %v247
      %v285 = vpack.c.b16 %v250, %v249
      %v286 = vpack.c.b16 %v252, %v251
      %v287 = vpack.c.b16 %v254, %v253
      %v288 = vpack.c.b16 %v256, %v255
      %v289 = vpack.c.b16 %v258, %v257
      %v290 = vpack.c.b16 %v260, %v259
      %v291 = vpack.c.b16 %v262, %v261
      %v292 = vpack.c.b16 %v264, %v263
      %v293 = vpack.c.b16 %v266, %v265
      %v294 = vpack.c.b16 %v268, %v267
      %v295 = vpack.c.b16 %v270, %v269
      %v296 = vpack.c.b16 %v272, %v271
      %v297 = vpack.c.b16 %v274, %v273
      %v298 = vpack.c.b16 %v276, %v275
      %v299 = vpack.c.b16 %v278, %v277
      %v300 = vpack.c.b16 %v280, %v279
      %v301 = vpack.c.b16 %v282, %v281
      %v302 = vpack.c.b16 %v283, %v283
      %vm303 = vsmask.f32 7424
      %v305 = vshrl.u32 %v284, 16
      %v307 = vshll.u32 %v284, 16
      %v309 = vrot.slane %v307, 1
      %v310 = vor.u32 %v305, %v309
      %v312 = vshll.u32 %v285, 16
      %v314 = vrot.slane %v312, 1
      %v315 = vsel %vm303, %v310, %v314
      %v316 = vshrl.u32 %v285, 16
      %v318 = vor.u32 %v316, %v314
      %v320 = vshll.u32 %v286, 16
      %v322 = vrot.slane %v320, 1
      %v323 = vsel %vm303, %v318, %v322
      %v324 = vshrl.u32 %v286, 16
      %v326 = vor.u32 %v324, %v322
      %v328 = vshll.u32 %v287, 16
      %v330 = vrot.slane %v328, 1
      %v331 = vsel %vm303, %v326, %v330
      %v332 = vshrl.u32 %v287, 16
      %v334 = vor.u32 %v332, %v330
      %v336 = vshll.u32 %v288, 16
      %v338 = vrot.slane %v336, 1
      %v339 = vsel %vm303, %v334, %v338
      %v340 = vshrl.u32 %v288, 16
      %v342 = vor.u32 %v340, %v338
      %v344 = vshll.u32 %v289, 16
      %v346 = vrot.slane %v344, 1
      %v347 = vsel %vm303, %v342, %v346
      %v348 = vshrl.u32 %v289, 16
      %v350 = vor.u32 %v348, %v346
      %v352 = vshll.u32 %v290, 16
      %v354 = vrot.slane %v352, 1
      %v355 = vsel %vm303, %v350, %v354
      %v356 = vshrl.u32 %v290, 16
      %v358 = vor.u32 %v356, %v354
      %v360 = vshll.u32 %v291, 16
      %v362 = vrot.slane %v360, 1
      %v363 = vsel %vm303, %v358, %v362
      %v364 = vshrl.u32 %v291, 16
      %v366 = vor.u32 %v364, %v362
      %v368 = vshll.u32 %v292, 16
      %v370 = vrot.slane %v368, 1
      %v371 = vsel %vm303, %v366, %v370
      %v372 = vshrl.u32 %v292, 16
      %v374 = vor.u32 %v372, %v370
      %v376 = vshll.u32 %v293, 16
      %v378 = vrot.slane %v376, 1
      %v379 = vsel %vm303, %v374, %v378
      %v380 = vshrl.u32 %v293, 16
      %v382 = vor.u32 %v380, %v378
      %v384 = vshll.u32 %v294, 16
      %v386 = vrot.slane %v384, 1
      %v387 = vsel %vm303, %v382, %v386
      %v388 = vshrl.u32 %v294, 16
      %v390 = vor.u32 %v388, %v386
      %v392 = vshll.u32 %v295, 16
      %v394 = vrot.slane %v392, 1
      %v395 = vsel %vm303, %v390, %v394
      %v396 = vshrl.u32 %v295, 16
      %v398 = vor.u32 %v396, %v394
      %v400 = vshll.u32 %v296, 16
      %v402 = vrot.slane %v400, 1
      %v403 = vsel %vm303, %v398, %v402
      %v404 = vshrl.u32 %v296, 16
      %v406 = vor.u32 %v404, %v402
      %v408 = vshll.u32 %v297, 16
      %v410 = vrot.slane %v408, 1
      %v411 = vsel %vm303, %v406, %v410
      %v412 = vshrl.u32 %v297, 16
      %v414 = vor.u32 %v412, %v410
      %v416 = vshll.u32 %v298, 16
      %v418 = vrot.slane %v416, 1
      %v419 = vsel %vm303, %v414, %v418
      %v420 = vshrl.u32 %v298, 16
      %v422 = vor.u32 %v420, %v418
      %v424 = vshll.u32 %v299, 16
      %v426 = vrot.slane %v424, 1
      %v427 = vsel %vm303, %v422, %v426
      %v428 = vshrl.u32 %v299, 16
      %v430 = vor.u32 %v428, %v426
      %v432 = vshll.u32 %v300, 16
      %v434 = vrot.slane %v432, 1
      %v435 = vsel %vm303, %v430, %v434
      %v436 = vshrl.u32 %v300, 16
      %v438 = vor.u32 %v436, %v434
      %v440 = vshll.u32 %v301, 16
      %v442 = vrot.slane %v440, 1
      %v443 = vsel %vm303, %v438, %v442
      %v444 = vshrl.u32 %v301, 16
      %v446 = vor.u32 %v444, %v442
      %v448 = vshll.u32 %v302, 16
      %v450 = vrot.slane %v448, 1
      %v451 = vsel %vm303, %v446, %v450
      %vm452 = vcmask 31744
      %v454 = vsel %vm452, %v315, 0
      %v457 = vsel %vm452, %v323, 0
      %v460 = vsel %vm452, %v331, 0
      %v463 = vsel %vm452, %v339, 0
      %v466 = vsel %vm452, %v347, 0
      %v469 = vsel %vm452, %v355, 0
      %v472 = vsel %vm452, %v363, 0
      %v475 = vsel %vm452, %v371, 0
      %v478 = vsel %vm452, %v379, 0
      %v481 = vsel %vm452, %v387, 0
      %v484 = vsel %vm452, %v395, 0
      %v487 = vsel %vm452, %v403, 0
      %v490 = vsel %vm452, %v411, 0
      %v493 = vsel %vm452, %v419, 0
      %v496 = vsel %vm452, %v427, 0
      %v499 = vsel %vm452, %v435, 0
      %v502 = vsel %vm452, %v443, 0
      %v505 = vsel %vm452, %v451, 0
      %vm507 = vcmask 1041408
      %v509 = vsel %vm507, %v209, 0
      %511 = vmatprep.subr.bf16.mxu0 0
      %512 = vmatpush1.bf16.msra.mxu0 %v509
      %513 = vmatprep.subr.bf16.mxu0 0
      %514 = vmatpush1.bf16.msra.mxu0 0
      %515 = vmatprep.subr.bf16.mxu0 0
      %516 = vmatpush1.bf16.msra.mxu0 0
      %517 = vmatprep.subr.bf16.mxu0 0
      %518 = vmatpush1.bf16.msra.mxu0 0
      %519 = vmatprep.subr.bf16.mxu0 0
      %520 = vmatpush1.bf16.msra.mxu0 0
      %521 = vmatprep.subr.bf16.mxu0 0
      %522 = vmatpush1.bf16.msra.mxu0 0
      %523 = vmatprep.subr.bf16.mxu0 0
      %524 = vmatpush1.bf16.msra.mxu0 0
      %525 = vmatprep.subr.bf16.mxu0 0
      %526 = vmatpush1.bf16.msra.mxu0 0
      %527 = vmatprep.subr.bf16.mxu0 0
      %528 = vmatpush1.bf16.msra.mxu0 0
      %529 = vmatprep.subr.bf16.mxu0 0
      %530 = vmatpush1.bf16.msra.mxu0 0
      %531 = vmatprep.subr.bf16.mxu0 0
      %532 = vmatpush1.bf16.msra.mxu0 0
      %533 = vmatprep.subr.bf16.mxu0 0
      %534 = vmatpush1.bf16.msra.mxu0 0
      %535 = vmatprep.subr.bf16.mxu0 0
      %536 = vmatpush1.bf16.msra.mxu0 0
      %537 = vmatprep.subr.bf16.mxu0 0
      %538 = vmatpush1.bf16.msra.mxu0 0
      %539 = vmatprep.subr.bf16.mxu0 0
      %540 = vmatpush1.bf16.msra.mxu0 0
      %541 = vmatprep.subr.bf16.mxu0 0
      %542 = vmatpush1.bf16.msra.mxu0 0
      %543 = vmatprep.mubr.bf16.mxu0 0
      %544 = vmatmul.mubr.bf16.gmra.mrb[0].mxu0 %v454
      %v545 = vpop.f32.mrb[0].mxu0
      %v546 = vadd.f32 0.0, %v545
      %v547 = vpop.f32.mrb[0].mxu0
      %v548 = vpop.f32.mrb[0].mxu0
      %v549 = vadd.f32 0.0, %v548
      %v550 = vpop.f32.mrb[0].mxu0
      %551 = vmatprep.mubr.bf16.mxu0 0
      %552 = vmatmul.mubr.bf16.gmra.mrb[0].mxu0 %v457
      %v553 = vpop.f32.mrb[0].mxu0
      %v554 = vadd.f32 0.0, %v553
      %v555 = vpop.f32.mrb[0].mxu0
      %v556 = vpop.f32.mrb[0].mxu0
      %v557 = vadd.f32 0.0, %v556
      %v558 = vpop.f32.mrb[0].mxu0
      %559 = vmatprep.mubr.bf16.mxu0 0
      %560 = vmatmul.mubr.bf16.gmra.mrb[0].mxu0 %v460
      %v561 = vpop.f32.mrb[0].mxu0
      %v562 = vadd.f32 0.0, %v561
      %v563 = vpop.f32.mrb[0].mxu0
      %v564 = vpop.f32.mrb[0].mxu0
      %v565 = vadd.f32 0.0, %v564
      %v566 = vpop.f32.mrb[0].mxu0
      %567 = vmatprep.mubr.bf16.mxu0 0
      %568 = vmatmul.mubr.bf16.gmra.mrb[0].mxu0 %v463
      %v569 = vpop.f32.mrb[0].mxu0
      %v570 = vadd.f32 0.0, %v569
      %v571 = vpop.f32.mrb[0].mxu0
      %v572 = vpop.f32.mrb[0].mxu0
      %v573 = vadd.f32 0.0, %v572
      %v574 = vpop.f32.mrb[0].mxu0
      %575 = vmatprep.mubr.bf16.mxu0 0
      %576 = vmatmul.mubr.bf16.gmra.mrb[0].mxu0 %v466
      %v577 = vpop.f32.mrb[0].mxu0
      %v578 = vadd.f32 0.0, %v577
      %v579 = vpop.f32.mrb[0].mxu0
      %v580 = vpop.f32.mrb[0].mxu0
      %v581 = vadd.f32 0.0, %v580
      %v582 = vpop.f32.mrb[0].mxu0
      %583 = vmatprep.mubr.bf16.mxu0 0
      %584 = vmatmul.mubr.bf16.gmra.mrb[0].mxu0 %v469
      %v585 = vpop.f32.mrb[0].mxu0
      %v586 = vadd.f32 0.0, %v585
      %v587 = vpop.f32.mrb[0].mxu0
      %v588 = vpop.f32.mrb[0].mxu0
      %v589 = vadd.f32 0.0, %v588
      %v590 = vpop.f32.mrb[0].mxu0
      %591 = vmatprep.mubr.bf16.mxu0 0
      %592 = vmatmul.mubr.bf16.gmra.mrb[0].mxu0 %v472
      %v593 = vpop.f32.mrb[0].mxu0
      %v594 = vadd.f32 0.0, %v593
      %v595 = vpop.f32.mrb[0].mxu0
      %v596 = vpop.f32.mrb[0].mxu0
      %v597 = vadd.f32 0.0, %v596
      %v598 = vpop.f32.mrb[0].mxu0
      %599 = vmatprep.mubr.bf16.mxu0 0
      %600 = vmatmul.mubr.bf16.gmra.mrb[0].mxu0 %v475
      %v601 = vpop.f32.mrb[0].mxu0
      %v602 = vadd.f32 0.0, %v601
      %v603 = vpop.f32.mrb[0].mxu0
      %v604 = vpop.f32.mrb[0].mxu0
      %v605 = vadd.f32 0.0, %v604
      %v606 = vpop.f32.mrb[0].mxu0
      %607 = vmatprep.mubr.bf16.mxu0 0
      %608 = vmatmul.mubr.bf16.gmra.mrb[0].mxu0 %v478
      %v609 = vpop.f32.mrb[0].mxu0
      %v610 = vadd.f32 0.0, %v609
      %v611 = vpop.f32.mrb[0].mxu0
      %v612 = vpop.f32.mrb[0].mxu0
      %v613 = vadd.f32 0.0, %v612
      %v614 = vpop.f32.mrb[0].mxu0
      %615 = vmatprep.mubr.bf16.mxu0 0
      %616 = vmatmul.mubr.bf16.gmra.mrb[0].mxu0 %v481
      %v617 = vpop.f32.mrb[0].mxu0
      %v618 = vadd.f32 0.0, %v617
      %v619 = vpop.f32.mrb[0].mxu0
      %v620 = vpop.f32.mrb[0].mxu0
      %v621 = vadd.f32 0.0, %v620
      %v622 = vpop.f32.mrb[0].mxu0
      %623 = vmatprep.mubr.bf16.mxu0 0
      %624 = vmatmul.mubr.bf16.gmra.mrb[0].mxu0 %v484
      %v625 = vpop.f32.mrb[0].mxu0
      %v626 = vadd.f32 0.0, %v625
      %v627 = vpop.f32.mrb[0].mxu0
      %v628 = vpop.f32.mrb[0].mxu0
      %v629 = vadd.f32 0.0, %v628
      %v630 = vpop.f32.mrb[0].mxu0
      %631 = vmatprep.mubr.bf16.mxu0 0
      %632 = vmatmul.mubr.bf16.gmra.mrb[0].mxu0 %v487
      %v633 = vpop.f32.mrb[0].mxu0
      %v634 = vadd.f32 0.0, %v633
      %v635 = vpop.f32.mrb[0].mxu0
      %v636 = vpop.f32.mrb[0].mxu0
      %v637 = vadd.f32 0.0, %v636
      %v638 = vpop.f32.mrb[0].mxu0
      %639 = vmatprep.mubr.bf16.mxu0 0
      %640 = vmatmul.mubr.bf16.gmra.mrb[0].mxu0 %v490
      %v641 = vpop.f32.mrb[0].mxu0
      %v642 = vadd.f32 0.0, %v641
      %v643 = vpop.f32.mrb[0].mxu0
      %v644 = vpop.f32.mrb[0].mxu0
      %v645 = vadd.f32 0.0, %v644
      %v646 = vpop.f32.mrb[0].mxu0
      %647 = vmatprep.mubr.bf16.mxu0 0
      %648 = vmatmul.mubr.bf16.gmra.mrb[0].mxu0 %v493
      %v649 = vpop.f32.mrb[0].mxu0
      %v650 = vadd.f32 0.0, %v649
      %v651 = vpop.f32.mrb[0].mxu0
      %v652 = vpop.f32.mrb[0].mxu0
      %v653 = vadd.f32 0.0, %v652
      %v654 = vpop.f32.mrb[0].mxu0
      %655 = vmatprep.mubr.bf16.mxu0 0
      %656 = vmatmul.mubr.bf16.gmra.mrb[0].mxu0 %v496
      %v657 = vpop.f32.mrb[0].mxu0
      %v658 = vadd.f32 0.0, %v657
      %v659 = vpop.f32.mrb[0].mxu0
      %v660 = vpop.f32.mrb[0].mxu0
      %v661 = vadd.f32 0.0, %v660
      %v662 = vpop.f32.mrb[0].mxu0
      %663 = vmatprep.mubr.bf16.mxu0 0
      %664 = vmatmul.mubr.bf16.gmra.mrb[0].mxu0 %v499
      %v665 = vpop.f32.mrb[0].mxu0
      %v666 = vadd.f32 0.0, %v665
      %v667 = vpop.f32.mrb[0].mxu0
      %v668 = vpop.f32.mrb[0].mxu0
      %v669 = vadd.f32 0.0, %v668
      %v670 = vpop.f32.mrb[0].mxu0
      %671 = vmatprep.mubr.bf16.mxu0 0
      %672 = vmatmul.mubr.bf16.gmra.mrb[0].mxu0 %v502
      %v673 = vpop.f32.mrb[0].mxu0
      %v674 = vadd.f32 0.0, %v673
      %v675 = vpop.f32.mrb[0].mxu0
      %v676 = vpop.f32.mrb[0].mxu0
      %v677 = vadd.f32 0.0, %v676
      %v678 = vpop.f32.mrb[0].mxu0
      %679 = vmatprep.mubr.bf16.mxu0 0
      %680 = vmatmul.mubr.bf16.gmra.mrb[0].mxu0 %v505
      %v681 = vpop.f32.mrb[0].mxu0
      %v682 = vadd.f32 0.0, %v681
      %v683 = vpop.f32.mrb[0].mxu0
      %v684 = vpop.f32.mrb[0].mxu0
      %v685 = vadd.f32 0.0, %v684
      %v686 = vpop.f32.mrb[0].mxu0
      %687 = vdwg.mxu0
      %v688 = vsel %vm452, %v284, 0
      %v690 = vsel %vm452, %v285, 0
      %v692 = vsel %vm452, %v286, 0
      %v694 = vsel %vm452, %v287, 0
      %v696 = vsel %vm452, %v288, 0
      %v698 = vsel %vm452, %v289, 0
      %v700 = vsel %vm452, %v290, 0
      %v702 = vsel %vm452, %v291, 0
      %v704 = vsel %vm452, %v292, 0
      %v706 = vsel %vm452, %v293, 0
      %v708 = vsel %vm452, %v294, 0
      %v710 = vsel %vm452, %v295, 0
      %v712 = vsel %vm452, %v296, 0
      %v714 = vsel %vm452, %v297, 0
      %v716 = vsel %vm452, %v298, 0
      %v718 = vsel %vm452, %v299, 0
      %v720 = vsel %vm452, %v300, 0
      %v722 = vsel %vm452, %v301, 0
      %v725 = vsel %vm507, %v206, 0
      %727 = vmatprep.subr.bf16.mxu0 0
      %728 = vmatpush1.bf16.msra.mxu0 %v725
      %729 = vmatprep.subr.bf16.mxu0 0
      %730 = vmatpush1.bf16.msra.mxu0 0
      %731 = vmatprep.subr.bf16.mxu0 0
      %732 = vmatpush1.bf16.msra.mxu0 0
      %733 = vmatprep.subr.bf16.mxu0 0
      %734 = vmatpush1.bf16.msra.mxu0 0
      %735 = vmatprep.subr.bf16.mxu0 0
      %736 = vmatpush1.bf16.msra.mxu0 0
      %737 = vmatprep.subr.bf16.mxu0 0
      %738 = vmatpush1.bf16.msra.mxu0 0
      %739 = vmatprep.subr.bf16.mxu0 0
      %740 = vmatpush1.bf16.msra.mxu0 0
      %741 = vmatprep.subr.bf16.mxu0 0
      %742 = vmatpush1.bf16.msra.mxu0 0
      %743 = vmatprep.subr.bf16.mxu0 0
      %744 = vmatpush1.bf16.msra.mxu0 0
      %745 = vmatprep.subr.bf16.mxu0 0
      %746 = vmatpush1.bf16.msra.mxu0 0
      %747 = vmatprep.subr.bf16.mxu0 0
      %748 = vmatpush1.bf16.msra.mxu0 0
      %749 = vmatprep.subr.bf16.mxu0 0
      %750 = vmatpush1.bf16.msra.mxu0 0
      %751 = vmatprep.subr.bf16.mxu0 0
      %752 = vmatpush1.bf16.msra.mxu0 0
      %753 = vmatprep.subr.bf16.mxu0 0
      %754 = vmatpush1.bf16.msra.mxu0 0
      %755 = vmatprep.subr.bf16.mxu0 0
      %756 = vmatpush1.bf16.msra.mxu0 0
      %757 = vmatprep.subr.bf16.mxu0 0
      %758 = vmatpush1.bf16.msra.mxu0 0
      %759 = vmatprep.mubr.bf16.mxu0 0
      %760 = vmatmul.mubr.bf16.gmra.mrb[0].mxu0 %v688
      %v761 = vpop.f32.mrb[0].mxu0
      %v762 = vadd.f32 %v546, %v761
      %v763 = vpop.f32.mrb[0].mxu0
      %v764 = vpop.f32.mrb[0].mxu0
      %v765 = vadd.f32 %v549, %v764
      %v766 = vpop.f32.mrb[0].mxu0
      %767 = vmatprep.mubr.bf16.mxu0 0
      %768 = vmatmul.mubr.bf16.gmra.mrb[0].mxu0 %v690
      %v769 = vpop.f32.mrb[0].mxu0
      %v770 = vadd.f32 %v554, %v769
      %v771 = vpop.f32.mrb[0].mxu0
      %v772 = vpop.f32.mrb[0].mxu0
      %v773 = vadd.f32 %v557, %v772
      %v774 = vpop.f32.mrb[0].mxu0
      %775 = vmatprep.mubr.bf16.mxu0 0
      %776 = vmatmul.mubr.bf16.gmra.mrb[0].mxu0 %v692
      %v777 = vpop.f32.mrb[0].mxu0
      %v778 = vadd.f32 %v562, %v777
      %v779 = vpop.f32.mrb[0].mxu0
      %v780 = vpop.f32.mrb[0].mxu0
      %v781 = vadd.f32 %v565, %v780
      %v782 = vpop.f32.mrb[0].mxu0
      %783 = vmatprep.mubr.bf16.mxu0 0
      %784 = vmatmul.mubr.bf16.gmra.mrb[0].mxu0 %v694
      %v785 = vpop.f32.mrb[0].mxu0
      %v786 = vadd.f32 %v570, %v785
      %v787 = vpop.f32.mrb[0].mxu0
      %v788 = vpop.f32.mrb[0].mxu0
      %v789 = vadd.f32 %v573, %v788
      %v790 = vpop.f32.mrb[0].mxu0
      %791 = vmatprep.mubr.bf16.mxu0 0
      %792 = vmatmul.mubr.bf16.gmra.mrb[0].mxu0 %v696
      %v793 = vpop.f32.mrb[0].mxu0
      %v794 = vadd.f32 %v578, %v793
      %v795 = vpop.f32.mrb[0].mxu0
      %v796 = vpop.f32.mrb[0].mxu0
      %v797 = vadd.f32 %v581, %v796
      %v798 = vpop.f32.mrb[0].mxu0
      %799 = vmatprep.mubr.bf16.mxu0 0
      %800 = vmatmul.mubr.bf16.gmra.mrb[0].mxu0 %v698
      %v801 = vpop.f32.mrb[0].mxu0
      %v802 = vadd.f32 %v586, %v801
      %v803 = vpop.f32.mrb[0].mxu0
      %v804 = vpop.f32.mrb[0].mxu0
      %v805 = vadd.f32 %v589, %v804
      %v806 = vpop.f32.mrb[0].mxu0
      %807 = vmatprep.mubr.bf16.mxu0 0
      %808 = vmatmul.mubr.bf16.gmra.mrb[0].mxu0 %v700
      %v809 = vpop.f32.mrb[0].mxu0
      %v810 = vadd.f32 %v594, %v809
      %v811 = vpop.f32.mrb[0].mxu0
      %v812 = vpop.f32.mrb[0].mxu0
      %v813 = vadd.f32 %v597, %v812
      %v814 = vpop.f32.mrb[0].mxu0
      %815 = vmatprep.mubr.bf16.mxu0 0
      %816 = vmatmul.mubr.bf16.gmra.mrb[0].mxu0 %v702
      %v817 = vpop.f32.mrb[0].mxu0
      %v818 = vadd.f32 %v602, %v817
      %v819 = vpop.f32.mrb[0].mxu0
      %v820 = vpop.f32.mrb[0].mxu0
      %v821 = vadd.f32 %v605, %v820
      %v822 = vpop.f32.mrb[0].mxu0
      %823 = vmatprep.mubr.bf16.mxu0 0
      %824 = vmatmul.mubr.bf16.gmra.mrb[0].mxu0 %v704
      %v825 = vpop.f32.mrb[0].mxu0
      %v826 = vadd.f32 %v610, %v825
      %v827 = vpop.f32.mrb[0].mxu0
      %v828 = vpop.f32.mrb[0].mxu0
      %v829 = vadd.f32 %v613, %v828
      %v830 = vpop.f32.mrb[0].mxu0
      %831 = vmatprep.mubr.bf16.mxu0 0
      %832 = vmatmul.mubr.bf16.gmra.mrb[0].mxu0 %v706
      %v833 = vpop.f32.mrb[0].mxu0
      %v834 = vadd.f32 %v618, %v833
      %v835 = vpop.f32.mrb[0].mxu0
      %v836 = vpop.f32.mrb[0].mxu0
      %v837 = vadd.f32 %v621, %v836
      %v838 = vpop.f32.mrb[0].mxu0
      %839 = vmatprep.mubr.bf16.mxu0 0
      %840 = vmatmul.mubr.bf16.gmra.mrb[0].mxu0 %v708
      %v841 = vpop.f32.mrb[0].mxu0
      %v842 = vadd.f32 %v626, %v841
      %v843 = vpop.f32.mrb[0].mxu0
      %v844 = vpop.f32.mrb[0].mxu0
      %v845 = vadd.f32 %v629, %v844
      %v846 = vpop.f32.mrb[0].mxu0
      %847 = vmatprep.mubr.bf16.mxu0 0
      %848 = vmatmul.mubr.bf16.gmra.mrb[0].mxu0 %v710
      %v849 = vpop.f32.mrb[0].mxu0
      %v850 = vadd.f32 %v634, %v849
      %v851 = vpop.f32.mrb[0].mxu0
      %v852 = vpop.f32.mrb[0].mxu0
      %v853 = vadd.f32 %v637, %v852
      %v854 = vpop.f32.mrb[0].mxu0
      %855 = vmatprep.mubr.bf16.mxu0 0
      %856 = vmatmul.mubr.bf16.gmra.mrb[0].mxu0 %v712
      %v857 = vpop.f32.mrb[0].mxu0
      %v858 = vadd.f32 %v642, %v857
      %v859 = vpop.f32.mrb[0].mxu0
      %v860 = vpop.f32.mrb[0].mxu0
      %v861 = vadd.f32 %v645, %v860
      %v862 = vpop.f32.mrb[0].mxu0
      %863 = vmatprep.mubr.bf16.mxu0 0
      %864 = vmatmul.mubr.bf16.gmra.mrb[0].mxu0 %v714
      %v865 = vpop.f32.mrb[0].mxu0
      %v866 = vadd.f32 %v650, %v865
      %v867 = vpop.f32.mrb[0].mxu0
      %v868 = vpop.f32.mrb[0].mxu0
      %v869 = vadd.f32 %v653, %v868
      %v870 = vpop.f32.mrb[0].mxu0
      %871 = vmatprep.mubr.bf16.mxu0 0
      %872 = vmatmul.mubr.bf16.gmra.mrb[0].mxu0 %v716
      %v873 = vpop.f32.mrb[0].mxu0
      %v874 = vadd.f32 %v658, %v873
      %v875 = vpop.f32.mrb[0].mxu0
      %v876 = vpop.f32.mrb[0].mxu0
      %v877 = vadd.f32 %v661, %v876
      %v878 = vpop.f32.mrb[0].mxu0
      %879 = vmatprep.mubr.bf16.mxu0 0
      %880 = vmatmul.mubr.bf16.gmra.mrb[0].mxu0 %v718
      %v881 = vpop.f32.mrb[0].mxu0
      %v882 = vadd.f32 %v666, %v881
      %v883 = vpop.f32.mrb[0].mxu0
      %v884 = vpop.f32.mrb[0].mxu0
      %v885 = vadd.f32 %v669, %v884
      %v886 = vpop.f32.mrb[0].mxu0
      %887 = vmatprep.mubr.bf16.mxu0 0
      %888 = vmatmul.mubr.bf16.gmra.mrb[0].mxu0 %v720
      %v889 = vpop.f32.mrb[0].mxu0
      %v890 = vadd.f32 %v674, %v889
      %v891 = vpop.f32.mrb[0].mxu0
      %v892 = vpop.f32.mrb[0].mxu0
      %v893 = vadd.f32 %v677, %v892
      %v894 = vpop.f32.mrb[0].mxu0
      %895 = vmatprep.mubr.bf16.mxu0 0
      %896 = vmatmul.mubr.bf16.gmra.mrb[0].mxu0 %v722
      %v897 = vpop.f32.mrb[0].mxu0
      %v898 = vadd.f32 %v682, %v897
      %v899 = vpop.f32.mrb[0].mxu0
      %v900 = vpop.f32.mrb[0].mxu0
      %v901 = vadd.f32 %v685, %v900
      %v902 = vpop.f32.mrb[0].mxu0
      %903 = vdwg.mxu0
      %v904 = vld [vmem:[%s164] sm:$0xe]
      %s905 = scalar_lea.vmem %s1, 4
      %v906 = vld [vmem:[%s905] sm:$0x3]
      %v908 = vunpack.c.l.b16 %v904
      %v909 = vpack.c.b16 %v248, %v908
      %vm910 = vcmask 1046528
      %v911 = vrot.slane %v909, 1
      %v912 = vrot.slane %v285, 1
      %v913 = vsel %vm910, %v911, %v912
      %v914 = vrot.slane %v286, 1
      %v915 = vsel %vm910, %v912, %v914
      %v916 = vrot.slane %v287, 1
      %v917 = vsel %vm910, %v914, %v916
      %v918 = vrot.slane %v288, 1
      %v919 = vsel %vm910, %v916, %v918
      %v920 = vrot.slane %v289, 1
      %v921 = vsel %vm910, %v918, %v920
      %v922 = vrot.slane %v290, 1
      %v923 = vsel %vm910, %v920, %v922
      %v924 = vrot.slane %v291, 1
      %v925 = vsel %vm910, %v922, %v924
      %v926 = vrot.slane %v292, 1
      %v927 = vsel %vm910, %v924, %v926
      %v928 = vrot.slane %v293, 1
      %v929 = vsel %vm910, %v926, %v928
      %v930 = vrot.slane %v294, 1
      %v931 = vsel %vm910, %v928, %v930
      %v932 = vrot.slane %v295, 1
      %v933 = vsel %vm910, %v930, %v932
      %v934 = vrot.slane %v296, 1
      %v935 = vsel %vm910, %v932, %v934
      %v936 = vrot.slane %v297, 1
      %v937 = vsel %vm910, %v934, %v936
      %v938 = vrot.slane %v298, 1
      %v939 = vsel %vm910, %v936, %v938
      %v940 = vrot.slane %v299, 1
      %v941 = vsel %vm910, %v938, %v940
      %v942 = vrot.slane %v300, 1
      %v943 = vsel %vm910, %v940, %v942
      %v944 = vrot.slane %v301, 1
      %v945 = vsel %vm910, %v942, %v944
      %v946 = vrot.slane %v302, 1
      %v947 = vsel %vm910, %v944, %v946
      %v949 = vsel %vm452, %v913, 0
      %v952 = vsel %vm452, %v915, 0
      %v955 = vsel %vm452, %v917, 0
      %v958 = vsel %vm452, %v919, 0
      %v961 = vsel %vm452, %v921, 0
      %v964 = vsel %vm452, %v923, 0
      %v967 = vsel %vm452, %v925, 0
      %v970 = vsel %vm452, %v927, 0
      %v973 = vsel %vm452, %v929, 0
      %v976 = vsel %vm452, %v931, 0
      %v979 = vsel %vm452, %v933, 0
      %v982 = vsel %vm452, %v935, 0
      %v985 = vsel %vm452, %v937, 0
      %v988 = vsel %vm452, %v939, 0
      %v991 = vsel %vm452, %v941, 0
      %v994 = vsel %vm452, %v943, 0
      %v997 = vsel %vm452, %v945, 0
      %v1000 = vsel %vm452, %v947, 0
      %v1003 = vsel %vm507, %v906, 0
      %1005 = vmatprep.subr.bf16.mxu0 0
      %1006 = vmatpush1.bf16.msra.mxu0 %v1003
      %1007 = vmatprep.subr.bf16.mxu0 0
      %1008 = vmatpush1.bf16.msra.mxu0 0
      %1009 = vmatprep.subr.bf16.mxu0 0
      %1010 = vmatpush1.bf16.msra.mxu0 0
      %1011 = vmatprep.subr.bf16.mxu0 0
      %1012 = vmatpush1.bf16.msra.mxu0 0
      %1013 = vmatprep.subr.bf16.mxu0 0
      %1014 = vmatpush1.bf16.msra.mxu0 0
      %1015 = vmatprep.subr.bf16.mxu0 0
      %1016 = vmatpush1.bf16.msra.mxu0 0
      %1017 = vmatprep.subr.bf16.mxu0 0
      %1018 = vmatpush1.bf16.msra.mxu0 0
      %1019 = vmatprep.subr.bf16.mxu0 0
      %1020 = vmatpush1.bf16.msra.mxu0 0
      %1021 = vmatprep.subr.bf16.mxu0 0
      %1022 = vmatpush1.bf16.msra.mxu0 0
      %1023 = vmatprep.subr.bf16.mxu0 0
      %1024 = vmatpush1.bf16.msra.mxu0 0
      %1025 = vmatprep.subr.bf16.mxu0 0
      %1026 = vmatpush1.bf16.msra.mxu0 0
      %1027 = vmatprep.subr.bf16.mxu0 0
      %1028 = vmatpush1.bf16.msra.mxu0 0
      %1029 = vmatprep.subr.bf16.mxu0 0
      %1030 = vmatpush1.bf16.msra.mxu0 0
      %1031 = vmatprep.subr.bf16.mxu0 0
      %1032 = vmatpush1.bf16.msra.mxu0 0
      %1033 = vmatprep.subr.bf16.mxu0 0
      %1034 = vmatpush1.bf16.msra.mxu0 0
      %1035 = vmatprep.subr.bf16.mxu0 0
      %1036 = vmatpush1.bf16.msra.mxu0 0
      %1037 = vmatprep.mubr.bf16.mxu0 0
      %1038 = vmatmul.mubr.bf16.gmra.mrb[0].mxu0 %v949
      %v1039 = vpop.f32.mrb[0].mxu0
      %v1040 = vadd.f32 0.0, %v1039
      %v1041 = vpop.f32.mrb[0].mxu0
      %v1042 = vpop.f32.mrb[0].mxu0
      %v1043 = vadd.f32 0.0, %v1042
      %v1044 = vpop.f32.mrb[0].mxu0
      %1045 = vmatprep.mubr.bf16.mxu0 0
      %1046 = vmatmul.mubr.bf16.gmra.mrb[0].mxu0 %v952
      %v1047 = vpop.f32.mrb[0].mxu0
      %v1048 = vadd.f32 0.0, %v1047
      %v1049 = vpop.f32.mrb[0].mxu0
      %v1050 = vpop.f32.mrb[0].mxu0
      %v1051 = vadd.f32 0.0, %v1050
      %v1052 = vpop.f32.mrb[0].mxu0
      %1053 = vmatprep.mubr.bf16.mxu0 0
      %1054 = vmatmul.mubr.bf16.gmra.mrb[0].mxu0 %v955
      %v1055 = vpop.f32.mrb[0].mxu0
      %v1056 = vadd.f32 0.0, %v1055
      %v1057 = vpop.f32.mrb[0].mxu0
      %v1058 = vpop.f32.mrb[0].mxu0
      %v1059 = vadd.f32 0.0, %v1058
      %v1060 = vpop.f32.mrb[0].mxu0
      %1061 = vmatprep.mubr.bf16.mxu0 0
      %1062 = vmatmul.mubr.bf16.gmra.mrb[0].mxu0 %v958
      %v1063 = vpop.f32.mrb[0].mxu0
      %v1064 = vadd.f32 0.0, %v1063
      %v1065 = vpop.f32.mrb[0].mxu0
      %v1066 = vpop.f32.mrb[0].mxu0
      %v1067 = vadd.f32 0.0, %v1066
      %v1068 = vpop.f32.mrb[0].mxu0
      %1069 = vmatprep.mubr.bf16.mxu0 0
      %1070 = vmatmul.mubr.bf16.gmra.mrb[0].mxu0 %v961
      %v1071 = vpop.f32.mrb[0].mxu0
      %v1072 = vadd.f32 0.0, %v1071
      %v1073 = vpop.f32.mrb[0].mxu0
      %v1074 = vpop.f32.mrb[0].mxu0
      %v1075 = vadd.f32 0.0, %v1074
      %v1076 = vpop.f32.mrb[0].mxu0
      %1077 = vmatprep.mubr.bf16.mxu0 0
      %1078 = vmatmul.mubr.bf16.gmra.mrb[0].mxu0 %v964
      %v1079 = vpop.f32.mrb[0].mxu0
      %v1080 = vadd.f32 0.0, %v1079
      %v1081 = vpop.f32.mrb[0].mxu0
      %v1082 = vpop.f32.mrb[0].mxu0
      %v1083 = vadd.f32 0.0, %v1082
      %v1084 = vpop.f32.mrb[0].mxu0
      %1085 = vmatprep.mubr.bf16.mxu0 0
      %1086 = vmatmul.mubr.bf16.gmra.mrb[0].mxu0 %v967
      %v1087 = vpop.f32.mrb[0].mxu0
      %v1088 = vadd.f32 0.0, %v1087
      %v1089 = vpop.f32.mrb[0].mxu0
      %v1090 = vpop.f32.mrb[0].mxu0
      %v1091 = vadd.f32 0.0, %v1090
      %v1092 = vpop.f32.mrb[0].mxu0
      %1093 = vmatprep.mubr.bf16.mxu0 0
      %1094 = vmatmul.mubr.bf16.gmra.mrb[0].mxu0 %v970
      %v1095 = vpop.f32.mrb[0].mxu0
      %v1096 = vadd.f32 0.0, %v1095
      %v1097 = vpop.f32.mrb[0].mxu0
      %v1098 = vpop.f32.mrb[0].mxu0
      %v1099 = vadd.f32 0.0, %v1098
      %v1100 = vpop.f32.mrb[0].mxu0
      %1101 = vmatprep.mubr.bf16.mxu0 0
      %1102 = vmatmul.mubr.bf16.gmra.mrb[0].mxu0 %v973
      %v1103 = vpop.f32.mrb[0].mxu0
      %v1104 = vadd.f32 0.0, %v1103
      %v1105 = vpop.f32.mrb[0].mxu0
      %v1106 = vpop.f32.mrb[0].mxu0
      %v1107 = vadd.f32 0.0, %v1106
      %v1108 = vpop.f32.mrb[0].mxu0
      %1109 = vmatprep.mubr.bf16.mxu0 0
      %1110 = vmatmul.mubr.bf16.gmra.mrb[0].mxu0 %v976
      %v1111 = vpop.f32.mrb[0].mxu0
      %v1112 = vadd.f32 0.0, %v1111
      %v1113 = vpop.f32.mrb[0].mxu0
      %v1114 = vpop.f32.mrb[0].mxu0
      %v1115 = vadd.f32 0.0, %v1114
      %v1116 = vpop.f32.mrb[0].mxu0
      %1117 = vmatprep.mubr.bf16.mxu0 0
      %1118 = vmatmul.mubr.bf16.gmra.mrb[0].mxu0 %v979
      %v1119 = vpop.f32.mrb[0].mxu0
      %v1120 = vadd.f32 0.0, %v1119
      %v1121 = vpop.f32.mrb[0].mxu0
      %v1122 = vpop.f32.mrb[0].mxu0
      %v1123 = vadd.f32 0.0, %v1122
      %v1124 = vpop.f32.mrb[0].mxu0
      %1125 = vmatprep.mubr.bf16.mxu0 0
      %1126 = vmatmul.mubr.bf16.gmra.mrb[0].mxu0 %v982
      %v1127 = vpop.f32.mrb[0].mxu0
      %v1128 = vadd.f32 0.0, %v1127
      %v1129 = vpop.f32.mrb[0].mxu0
      %v1130 = vpop.f32.mrb[0].mxu0
      %v1131 = vadd.f32 0.0, %v1130
      %v1132 = vpop.f32.mrb[0].mxu0
      %1133 = vmatprep.mubr.bf16.mxu0 0
      %1134 = vmatmul.mubr.bf16.gmra.mrb[0].mxu0 %v985
      %v1135 = vpop.f32.mrb[0].mxu0
      %v1136 = vadd.f32 0.0, %v1135
      %v1137 = vpop.f32.mrb[0].mxu0
      %v1138 = vpop.f32.mrb[0].mxu0
      %v1139 = vadd.f32 0.0, %v1138
      %v1140 = vpop.f32.mrb[0].mxu0
      %1141 = vmatprep.mubr.bf16.mxu0 0
      %1142 = vmatmul.mubr.bf16.gmra.mrb[0].mxu0 %v988
      %v1143 = vpop.f32.mrb[0].mxu0
      %v1144 = vadd.f32 0.0, %v1143
      %v1145 = vpop.f32.mrb[0].mxu0
      %v1146 = vpop.f32.mrb[0].mxu0
      %v1147 = vadd.f32 0.0, %v1146
      %v1148 = vpop.f32.mrb[0].mxu0
      %1149 = vmatprep.mubr.bf16.mxu0 0
      %1150 = vmatmul.mubr.bf16.gmra.mrb[0].mxu0 %v991
      %v1151 = vpop.f32.mrb[0].mxu0
      %v1152 = vadd.f32 0.0, %v1151
      %v1153 = vpop.f32.mrb[0].mxu0
      %v1154 = vpop.f32.mrb[0].mxu0
      %v1155 = vadd.f32 0.0, %v1154
      %v1156 = vpop.f32.mrb[0].mxu0
      %1157 = vmatprep.mubr.bf16.mxu0 0
      %1158 = vmatmul.mubr.bf16.gmra.mrb[0].mxu0 %v994
      %v1159 = vpop.f32.mrb[0].mxu0
      %v1160 = vadd.f32 0.0, %v1159
      %v1161 = vpop.f32.mrb[0].mxu0
      %v1162 = vpop.f32.mrb[0].mxu0
      %v1163 = vadd.f32 0.0, %v1162
      %v1164 = vpop.f32.mrb[0].mxu0
      %1165 = vmatprep.mubr.bf16.mxu0 0
      %1166 = vmatmul.mubr.bf16.gmra.mrb[0].mxu0 %v997
      %v1167 = vpop.f32.mrb[0].mxu0
      %v1168 = vadd.f32 0.0, %v1167
      %v1169 = vpop.f32.mrb[0].mxu0
      %v1170 = vpop.f32.mrb[0].mxu0
      %v1171 = vadd.f32 0.0, %v1170
      %v1172 = vpop.f32.mrb[0].mxu0
      %1173 = vmatprep.mubr.bf16.mxu0 0
      %1174 = vmatmul.mubr.bf16.gmra.mrb[0].mxu0 %v1000
      %v1175 = vpop.f32.mrb[0].mxu0
      %v1176 = vadd.f32 0.0, %v1175
      %v1177 = vpop.f32.mrb[0].mxu0
      %v1178 = vpop.f32.mrb[0].mxu0
      %v1179 = vadd.f32 0.0, %v1178
      %v1180 = vpop.f32.mrb[0].mxu0
      %1181 = vdwg.mxu0
      %v1182 = vadd.f32 %v762, %v1040
      %v1183 = vadd.f32 %v765, %v1043
      %v1184 = vadd.f32 %v770, %v1048
      %v1185 = vadd.f32 %v773, %v1051
      %v1186 = vadd.f32 %v778, %v1056
      %v1187 = vadd.f32 %v781, %v1059
      %v1188 = vadd.f32 %v786, %v1064
      %v1189 = vadd.f32 %v789, %v1067
      %v1190 = vadd.f32 %v794, %v1072
      %v1191 = vadd.f32 %v797, %v1075
      %v1192 = vadd.f32 %v802, %v1080
      %v1193 = vadd.f32 %v805, %v1083
      %v1194 = vadd.f32 %v810, %v1088
      %v1195 = vadd.f32 %v813, %v1091
      %v1196 = vadd.f32 %v818, %v1096
      %v1197 = vadd.f32 %v821, %v1099
      %v1198 = vadd.f32 %v826, %v1104
      %v1199 = vadd.f32 %v829, %v1107
      %v1200 = vadd.f32 %v834, %v1112
      %v1201 = vadd.f32 %v837, %v1115
      %v1202 = vadd.f32 %v842, %v1120
      %v1203 = vadd.f32 %v845, %v1123
      %v1204 = vadd.f32 %v850, %v1128
      %v1205 = vadd.f32 %v853, %v1131
      %v1206 = vadd.f32 %v858, %v1136
      %v1207 = vadd.f32 %v861, %v1139
      %v1208 = vadd.f32 %v866, %v1144
      %v1209 = vadd.f32 %v869, %v1147
      %v1210 = vadd.f32 %v874, %v1152
      %v1211 = vadd.f32 %v877, %v1155
      %v1212 = vadd.f32 %v882, %v1160
      %v1213 = vadd.f32 %v885, %v1163
      %v1214 = vadd.f32 %v890, %v1168
      %v1215 = vadd.f32 %v893, %v1171
      %v1216 = vadd.f32 %v898, %v1176
      %v1217 = vadd.f32 %v901, %v1179
      %v1218 = vld [vmem:[%s164 + $0x8] sm:$0xe]
      %v1219 = vld [vmem:[%s164 + $0xc] sm:$0xf]
      %v1220 = vld [vmem:[%s164 + $0x10] sm:$0xf]
      %v1221 = vld [vmem:[%s164 + $0x14] sm:$0xf]
      %v1222 = vld [vmem:[%s164 + $0x18] sm:$0xf]
      %v1223 = vld [vmem:[%s164 + $0x1c] sm:$0xf]
      %v1224 = vld [vmem:[%s164 + $0x20] sm:$0xf]
      %v1225 = vld [vmem:[%s164 + $0x24] sm:$0xf]
      %v1226 = vld [vmem:[%s164 + $0x28] sm:$0xf]
      %v1227 = vld [vmem:[%s164 + $0x2c] sm:$0xf]
      %v1228 = vld [vmem:[%s164 + $0x30] sm:$0xf]
      %v1229 = vld [vmem:[%s164 + $0x34] sm:$0xf]
      %v1230 = vld [vmem:[%s164 + $0x38] sm:$0xf]
      %v1231 = vld [vmem:[%s164 + $0x3c] sm:$0xf]
      %v1232 = vld [vmem:[%s164 + $0x40] sm:$0xf]
      %v1233 = vld [vmem:[%s164 + $0x44] sm:$0xf]
      %v1234 = vld [vmem:[%s164 + $0x48] sm:$0xf]
      %v1235 = vld [vmem:[%s164 + $0x4c] sm:$0xf]
      %v1236 = vld [vmem:[%s164 + $0x50] sm:$0xf]
      %v1237 = vld [vmem:[%s164 + $0x54] sm:$0xf]
      %v1238 = vld [vmem:[%s164 + $0x58] sm:$0xf]
      %v1239 = vld [vmem:[%s164 + $0x5c] sm:$0xf]
      %v1240 = vld [vmem:[%s164 + $0x60] sm:$0xf]
      %v1241 = vld [vmem:[%s164 + $0x64] sm:$0xf]
      %v1242 = vld [vmem:[%s164 + $0x68] sm:$0xf]
      %v1243 = vld [vmem:[%s164 + $0x6c] sm:$0xf]
      %v1244 = vld [vmem:[%s164 + $0x70] sm:$0xf]
      %v1245 = vld [vmem:[%s164 + $0x74] sm:$0xf]
      %v1246 = vld [vmem:[%s164 + $0x78] sm:$0xf]
      %v1247 = vld [vmem:[%s164 + $0x7c] sm:$0xf]
      %v1248 = vld [vmem:[%s164 + $0x80] sm:$0xf]
      %v1249 = vld [vmem:[%s164 + $0x84] sm:$0xf]
      %v1250 = vld [vmem:[%s164 + $0x88] sm:$0xf]
      %v1251 = vld [vmem:[%s164 + $0x8c] sm:$0xf]
      %v1252 = vld [vmem:[%s164 + $0x90] sm:$0xf]
      %v1253 = vld [vmem:[%s164 + $0x94] sm:$0xf]
      %v1254 = vld [vmem:[%s164 + $0x98] sm:$0x1]
      %s1255 = scalar_lea.vmem %s1, 6
      %v1256 = vld [vmem:[%s1255] sm:$0x3]
      %v1294 = vunpack.c.l.b16 %v1218
      %v1295 = vunpack.c.l.b16 %v1219
      %v1296 = vunpack.c.l.b16 %v1220
      %v1297 = vunpack.c.l.b16 %v1221
      %v1298 = vunpack.c.l.b16 %v1222
      %v1299 = vunpack.c.l.b16 %v1223
      %v1300 = vunpack.c.l.b16 %v1224
      %v1301 = vunpack.c.l.b16 %v1225
      %v1302 = vunpack.c.l.b16 %v1226
      %v1303 = vunpack.c.l.b16 %v1227
      %v1304 = vunpack.c.l.b16 %v1228
      %v1305 = vunpack.c.l.b16 %v1229
      %v1306 = vunpack.c.l.b16 %v1230
      %v1307 = vunpack.c.l.b16 %v1231
      %v1308 = vunpack.c.l.b16 %v1232
      %v1309 = vunpack.c.l.b16 %v1233
      %v1310 = vunpack.c.l.b16 %v1234
      %v1311 = vunpack.c.l.b16 %v1235
      %v1312 = vunpack.c.l.b16 %v1236
      %v1313 = vunpack.c.l.b16 %v1237
      %v1314 = vunpack.c.l.b16 %v1238
      %v1315 = vunpack.c.l.b16 %v1239
      %v1316 = vunpack.c.l.b16 %v1240
      %v1317 = vunpack.c.l.b16 %v1241
      %v1318 = vunpack.c.l.b16 %v1242
      %v1319 = vunpack.c.l.b16 %v1243
      %v1320 = vunpack.c.l.b16 %v1244
      %v1321 = vunpack.c.l.b16 %v1245
      %v1322 = vunpack.c.l.b16 %v1246
      %v1323 = vunpack.c.l.b16 %v1247
      %v1324 = vunpack.c.l.b16 %v1248
      %v1325 = vunpack.c.l.b16 %v1249
      %v1326 = vunpack.c.l.b16 %v1250
      %v1327 = vunpack.c.l.b16 %v1251
      %v1328 = vunpack.c.l.b16 %v1252
      %v1329 = vunpack.c.l.b16 %v1253
      %v1330 = vunpack.c.l.b16 %v1254
      %v1331 = vpack.c.b16 %v1295, %v1294
      %v1332 = vpack.c.b16 %v1297, %v1296
      %v1333 = vpack.c.b16 %v1299, %v1298
      %v1334 = vpack.c.b16 %v1301, %v1300
      %v1335 = vpack.c.b16 %v1303, %v1302
      %v1336 = vpack.c.b16 %v1305, %v1304
      %v1337 = vpack.c.b16 %v1307, %v1306
      %v1338 = vpack.c.b16 %v1309, %v1308
      %v1339 = vpack.c.b16 %v1311, %v1310
      %v1340 = vpack.c.b16 %v1313, %v1312
      %v1341 = vpack.c.b16 %v1315, %v1314
      %v1342 = vpack.c.b16 %v1317, %v1316
      %v1343 = vpack.c.b16 %v1319, %v1318
      %v1344 = vpack.c.b16 %v1321, %v1320
      %v1345 = vpack.c.b16 %v1323, %v1322
      %v1346 = vpack.c.b16 %v1325, %v1324
      %v1347 = vpack.c.b16 %v1327, %v1326
      %v1348 = vpack.c.b16 %v1329, %v1328
      %v1349 = vpack.c.b16 %v1330, %v1330
      %v1350 = vrot.slane %v1331, 1
      %v1351 = vrot.slane %v1332, 1
      %v1352 = vsel %vm910, %v1350, %v1351
      %v1353 = vrot.slane %v1333, 1
      %v1354 = vsel %vm910, %v1351, %v1353
      %v1355 = vrot.slane %v1334, 1
      %v1356 = vsel %vm910, %v1353, %v1355
      %v1357 = vrot.slane %v1335, 1
      %v1358 = vsel %vm910, %v1355, %v1357
      %v1359 = vrot.slane %v1336, 1
      %v1360 = vsel %vm910, %v1357, %v1359
      %v1361 = vrot.slane %v1337, 1
      %v1362 = vsel %vm910, %v1359, %v1361
      %v1363 = vrot.slane %v1338, 1
      %v1364 = vsel %vm910, %v1361, %v1363
      %v1365 = vrot.slane %v1339, 1
      %v1366 = vsel %vm910, %v1363, %v1365
      %v1367 = vrot.slane %v1340, 1
      %v1368 = vsel %vm910, %v1365, %v1367
      %v1369 = vrot.slane %v1341, 1
      %v1370 = vsel %vm910, %v1367, %v1369
      %v1371 = vrot.slane %v1342, 1
      %v1372 = vsel %vm910, %v1369, %v1371
      %v1373 = vrot.slane %v1343, 1
      %v1374 = vsel %vm910, %v1371, %v1373
      %v1375 = vrot.slane %v1344, 1
      %v1376 = vsel %vm910, %v1373, %v1375
      %v1377 = vrot.slane %v1345, 1
      %v1378 = vsel %vm910, %v1375, %v1377
      %v1379 = vrot.slane %v1346, 1
      %v1380 = vsel %vm910, %v1377, %v1379
      %v1381 = vrot.slane %v1347, 1
      %v1382 = vsel %vm910, %v1379, %v1381
      %v1383 = vrot.slane %v1348, 1
      %v1384 = vsel %vm910, %v1381, %v1383
      %v1385 = vrot.slane %v1349, 1
      %v1386 = vsel %vm910, %v1383, %v1385
      %v1388 = vsel %vm452, %v1352, 0
      %v1391 = vsel %vm452, %v1354, 0
      %v1394 = vsel %vm452, %v1356, 0
      %v1397 = vsel %vm452, %v1358, 0
      %v1400 = vsel %vm452, %v1360, 0
      %v1403 = vsel %vm452, %v1362, 0
      %v1406 = vsel %vm452, %v1364, 0
      %v1409 = vsel %vm452, %v1366, 0
      %v1412 = vsel %vm452, %v1368, 0
      %v1415 = vsel %vm452, %v1370, 0
      %v1418 = vsel %vm452, %v1372, 0
      %v1421 = vsel %vm452, %v1374, 0
      %v1424 = vsel %vm452, %v1376, 0
      %v1427 = vsel %vm452, %v1378, 0
      %v1430 = vsel %vm452, %v1380, 0
      %v1433 = vsel %vm452, %v1382, 0
      %v1436 = vsel %vm452, %v1384, 0
      %v1439 = vsel %vm452, %v1386, 0
      %v1442 = vsel %vm507, %v1256, 0
      %1444 = vmatprep.subr.bf16.mxu0 0
      %1445 = vmatpush1.bf16.msra.mxu0 %v1442
      %1446 = vmatprep.subr.bf16.mxu0 0
      %1447 = vmatpush1.bf16.msra.mxu0 0
      %1448 = vmatprep.subr.bf16.mxu0 0
      %1449 = vmatpush1.bf16.msra.mxu0 0
      %1450 = vmatprep.subr.bf16.mxu0 0
      %1451 = vmatpush1.bf16.msra.mxu0 0
      %1452 = vmatprep.subr.bf16.mxu0 0
      %1453 = vmatpush1.bf16.msra.mxu0 0
      %1454 = vmatprep.subr.bf16.mxu0 0
      %1455 = vmatpush1.bf16.msra.mxu0 0
      %1456 = vmatprep.subr.bf16.mxu0 0
      %1457 = vmatpush1.bf16.msra.mxu0 0
      %1458 = vmatprep.subr.bf16.mxu0 0
      %1459 = vmatpush1.bf16.msra.mxu0 0
      %1460 = vmatprep.subr.bf16.mxu0 0
      %1461 = vmatpush1.bf16.msra.mxu0 0
      %1462 = vmatprep.subr.bf16.mxu0 0
      %1463 = vmatpush1.bf16.msra.mxu0 0
      %1464 = vmatprep.subr.bf16.mxu0 0
      %1465 = vmatpush1.bf16.msra.mxu0 0
      %1466 = vmatprep.subr.bf16.mxu0 0
      %1467 = vmatpush1.bf16.msra.mxu0 0
      %1468 = vmatprep.subr.bf16.mxu0 0
      %1469 = vmatpush1.bf16.msra.mxu0 0
      %1470 = vmatprep.subr.bf16.mxu0 0
      %1471 = vmatpush1.bf16.msra.mxu0 0
      %1472 = vmatprep.subr.bf16.mxu0 0
      %1473 = vmatpush1.bf16.msra.mxu0 0
      %1474 = vmatprep.subr.bf16.mxu0 0
      %1475 = vmatpush1.bf16.msra.mxu0 0
      %1476 = vmatprep.mubr.bf16.mxu0 0
      %1477 = vmatmul.mubr.bf16.gmra.mrb[0].mxu0 %v1388
      %v1478 = vpop.f32.mrb[0].mxu0
      %v1479 = vadd.f32 0.0, %v1478
      %v1480 = vpop.f32.mrb[0].mxu0
      %v1481 = vpop.f32.mrb[0].mxu0
      %v1482 = vadd.f32 0.0, %v1481
      %v1483 = vpop.f32.mrb[0].mxu0
      %1484 = vmatprep.mubr.bf16.mxu0 0
      %1485 = vmatmul.mubr.bf16.gmra.mrb[0].mxu0 %v1391
      %v1486 = vpop.f32.mrb[0].mxu0
      %v1487 = vadd.f32 0.0, %v1486
      %v1488 = vpop.f32.mrb[0].mxu0
      %v1489 = vpop.f32.mrb[0].mxu0
      %v1490 = vadd.f32 0.0, %v1489
      %v1491 = vpop.f32.mrb[0].mxu0
      %1492 = vmatprep.mubr.bf16.mxu0 0
      %1493 = vmatmul.mubr.bf16.gmra.mrb[0].mxu0 %v1394
      %v1494 = vpop.f32.mrb[0].mxu0
      %v1495 = vadd.f32 0.0, %v1494
      %v1496 = vpop.f32.mrb[0].mxu0
      %v1497 = vpop.f32.mrb[0].mxu0
      %v1498 = vadd.f32 0.0, %v1497
      %v1499 = vpop.f32.mrb[0].mxu0
      %1500 = vmatprep.mubr.bf16.mxu0 0
      %1501 = vmatmul.mubr.bf16.gmra.mrb[0].mxu0 %v1397
      %v1502 = vpop.f32.mrb[0].mxu0
      %v1503 = vadd.f32 0.0, %v1502
      %v1504 = vpop.f32.mrb[0].mxu0
      %v1505 = vpop.f32.mrb[0].mxu0
      %v1506 = vadd.f32 0.0, %v1505
      %v1507 = vpop.f32.mrb[0].mxu0
      %1508 = vmatprep.mubr.bf16.mxu0 0
      %1509 = vmatmul.mubr.bf16.gmra.mrb[0].mxu0 %v1400
      %v1510 = vpop.f32.mrb[0].mxu0
      %v1511 = vadd.f32 0.0, %v1510
      %v1512 = vpop.f32.mrb[0].mxu0
      %v1513 = vpop.f32.mrb[0].mxu0
      %v1514 = vadd.f32 0.0, %v1513
      %v1515 = vpop.f32.mrb[0].mxu0
      %1516 = vmatprep.mubr.bf16.mxu0 0
      %1517 = vmatmul.mubr.bf16.gmra.mrb[0].mxu0 %v1403
      %v1518 = vpop.f32.mrb[0].mxu0
      %v1519 = vadd.f32 0.0, %v1518
      %v1520 = vpop.f32.mrb[0].mxu0
      %v1521 = vpop.f32.mrb[0].mxu0
      %v1522 = vadd.f32 0.0, %v1521
      %v1523 = vpop.f32.mrb[0].mxu0
      %1524 = vmatprep.mubr.bf16.mxu0 0
      %1525 = vmatmul.mubr.bf16.gmra.mrb[0].mxu0 %v1406
      %v1526 = vpop.f32.mrb[0].mxu0
      %v1527 = vadd.f32 0.0, %v1526
      %v1528 = vpop.f32.mrb[0].mxu0
      %v1529 = vpop.f32.mrb[0].mxu0
      %v1530 = vadd.f32 0.0, %v1529
      %v1531 = vpop.f32.mrb[0].mxu0
      %1532 = vmatprep.mubr.bf16.mxu0 0
      %1533 = vmatmul.mubr.bf16.gmra.mrb[0].mxu0 %v1409
      %v1534 = vpop.f32.mrb[0].mxu0
      %v1535 = vadd.f32 0.0, %v1534
      %v1536 = vpop.f32.mrb[0].mxu0
      %v1537 = vpop.f32.mrb[0].mxu0
      %v1538 = vadd.f32 0.0, %v1537
      %v1539 = vpop.f32.mrb[0].mxu0
      %1540 = vmatprep.mubr.bf16.mxu0 0
      %1541 = vmatmul.mubr.bf16.gmra.mrb[0].mxu0 %v1412
      %v1542 = vpop.f32.mrb[0].mxu0
      %v1543 = vadd.f32 0.0, %v1542
      %v1544 = vpop.f32.mrb[0].mxu0
      %v1545 = vpop.f32.mrb[0].mxu0
      %v1546 = vadd.f32 0.0, %v1545
      %v1547 = vpop.f32.mrb[0].mxu0
      %1548 = vmatprep.mubr.bf16.mxu0 0
      %1549 = vmatmul.mubr.bf16.gmra.mrb[0].mxu0 %v1415
      %v1550 = vpop.f32.mrb[0].mxu0
      %v1551 = vadd.f32 0.0, %v1550
      %v1552 = vpop.f32.mrb[0].mxu0
      %v1553 = vpop.f32.mrb[0].mxu0
      %v1554 = vadd.f32 0.0, %v1553
      %v1555 = vpop.f32.mrb[0].mxu0
      %1556 = vmatprep.mubr.bf16.mxu0 0
      %1557 = vmatmul.mubr.bf16.gmra.mrb[0].mxu0 %v1418
      %v1558 = vpop.f32.mrb[0].mxu0
      %v1559 = vadd.f32 0.0, %v1558
      %v1560 = vpop.f32.mrb[0].mxu0
      %v1561 = vpop.f32.mrb[0].mxu0
      %v1562 = vadd.f32 0.0, %v1561
      %v1563 = vpop.f32.mrb[0].mxu0
      %1564 = vmatprep.mubr.bf16.mxu0 0
      %1565 = vmatmul.mubr.bf16.gmra.mrb[0].mxu0 %v1421
      %v1566 = vpop.f32.mrb[0].mxu0
      %v1567 = vadd.f32 0.0, %v1566
      %v1568 = vpop.f32.mrb[0].mxu0
      %v1569 = vpop.f32.mrb[0].mxu0
      %v1570 = vadd.f32 0.0, %v1569
      %v1571 = vpop.f32.mrb[0].mxu0
      %1572 = vmatprep.mubr.bf16.mxu0 0
      %1573 = vmatmul.mubr.bf16.gmra.mrb[0].mxu0 %v1424
      %v1574 = vpop.f32.mrb[0].mxu0
      %v1575 = vadd.f32 0.0, %v1574
      %v1576 = vpop.f32.mrb[0].mxu0
      %v1577 = vpop.f32.mrb[0].mxu0
      %v1578 = vadd.f32 0.0, %v1577
      %v1579 = vpop.f32.mrb[0].mxu0
      %1580 = vmatprep.mubr.bf16.mxu0 0
      %1581 = vmatmul.mubr.bf16.gmra.mrb[0].mxu0 %v1427
      %v1582 = vpop.f32.mrb[0].mxu0
      %v1583 = vadd.f32 0.0, %v1582
      %v1584 = vpop.f32.mrb[0].mxu0
      %v1585 = vpop.f32.mrb[0].mxu0
      %v1586 = vadd.f32 0.0, %v1585
      %v1587 = vpop.f32.mrb[0].mxu0
      %1588 = vmatprep.mubr.bf16.mxu0 0
      %1589 = vmatmul.mubr.bf16.gmra.mrb[0].mxu0 %v1430
      %v1590 = vpop.f32.mrb[0].mxu0
      %v1591 = vadd.f32 0.0, %v1590
      %v1592 = vpop.f32.mrb[0].mxu0
      %v1593 = vpop.f32.mrb[0].mxu0
      %v1594 = vadd.f32 0.0, %v1593
      %v1595 = vpop.f32.mrb[0].mxu0
      %1596 = vmatprep.mubr.bf16.mxu0 0
      %1597 = vmatmul.mubr.bf16.gmra.mrb[0].mxu0 %v1433
      %v1598 = vpop.f32.mrb[0].mxu0
      %v1599 = vadd.f32 0.0, %v1598
      %v1600 = vpop.f32.mrb[0].mxu0
      %v1601 = vpop.f32.mrb[0].mxu0
      %v1602 = vadd.f32 0.0, %v1601
      %v1603 = vpop.f32.mrb[0].mxu0
      %1604 = vmatprep.mubr.bf16.mxu0 0
      %1605 = vmatmul.mubr.bf16.gmra.mrb[0].mxu0 %v1436
      %v1606 = vpop.f32.mrb[0].mxu0
      %v1607 = vadd.f32 0.0, %v1606
      %v1608 = vpop.f32.mrb[0].mxu0
      %v1609 = vpop.f32.mrb[0].mxu0
      %v1610 = vadd.f32 0.0, %v1609
      %v1611 = vpop.f32.mrb[0].mxu0
      %1612 = vmatprep.mubr.bf16.mxu0 0
      %1613 = vmatmul.mubr.bf16.gmra.mrb[0].mxu0 %v1439
      %v1614 = vpop.f32.mrb[0].mxu0
      %v1615 = vadd.f32 0.0, %v1614
      %v1616 = vpop.f32.mrb[0].mxu0
      %v1617 = vpop.f32.mrb[0].mxu0
      %v1618 = vadd.f32 0.0, %v1617
      %v1619 = vpop.f32.mrb[0].mxu0
      %1620 = vdwg.mxu0
      %v1621 = vadd.f32 %v1182, %v1479
      %v1622 = vadd.f32 %v1183, %v1482
      %v1623 = vadd.f32 %v1184, %v1487
      %v1624 = vadd.f32 %v1185, %v1490
      %v1625 = vadd.f32 %v1186, %v1495
      %v1626 = vadd.f32 %v1187, %v1498
      %v1627 = vadd.f32 %v1188, %v1503
      %v1628 = vadd.f32 %v1189, %v1506
      %v1629 = vadd.f32 %v1190, %v1511
      %v1630 = vadd.f32 %v1191, %v1514
      %v1631 = vadd.f32 %v1192, %v1519
      %v1632 = vadd.f32 %v1193, %v1522
      %v1633 = vadd.f32 %v1194, %v1527
      %v1634 = vadd.f32 %v1195, %v1530
      %v1635 = vadd.f32 %v1196, %v1535
      %v1636 = vadd.f32 %v1197, %v1538
      %v1637 = vadd.f32 %v1198, %v1543
      %v1638 = vadd.f32 %v1199, %v1546
      %v1639 = vadd.f32 %v1200, %v1551
      %v1640 = vadd.f32 %v1201, %v1554
      %v1641 = vadd.f32 %v1202, %v1559
      %v1642 = vadd.f32 %v1203, %v1562
      %v1643 = vadd.f32 %v1204, %v1567
      %v1644 = vadd.f32 %v1205, %v1570
      %v1645 = vadd.f32 %v1206, %v1575
      %v1646 = vadd.f32 %v1207, %v1578
      %v1647 = vadd.f32 %v1208, %v1583
      %v1648 = vadd.f32 %v1209, %v1586
      %v1649 = vadd.f32 %v1210, %v1591
      %v1650 = vadd.f32 %v1211, %v1594
      %v1651 = vadd.f32 %v1212, %v1599
      %v1652 = vadd.f32 %v1213, %v1602
      %v1653 = vadd.f32 %v1214, %v1607
      %v1654 = vadd.f32 %v1215, %v1610
      %v1655 = vadd.f32 %v1216, %v1615
      %v1656 = vadd.f32 %v1217, %v1618
      %v1657 = vld [vmem:[%s164 + $0x98] sm:$0x3]
      %s1658 = scalar_lea.vmem %s1, 8
      %v1659 = vld [vmem:[%s1658] sm:$0x3]
      %v1661 = vunpack.c.l.b16 %v1657
      %v1662 = vpack.c.b16 %v1661, %v1661
      %vm1663 = vsmask.f32 6400
      %v1665 = vshrl.u32 %v1331, 16
      %v1667 = vrot.slane %v1665, 1
      %v1668 = vshll.u32 %v1331, 16
      %v1670 = vrot.slane %v1668, 2
      %v1671 = vor.u32 %v1667, %v1670
      %v1673 = vshrl.u32 %v1332, 16
      %v1675 = vrot.slane %v1673, 1
      %v1676 = vshll.u32 %v1332, 16
      %v1678 = vrot.slane %v1676, 2
      %v1679 = vor.u32 %v1675, %v1678
      %v1680 = vsel %vm1663, %v1671, %v1679
      %v1682 = vshrl.u32 %v1333, 16
      %v1684 = vrot.slane %v1682, 1
      %v1685 = vshll.u32 %v1333, 16
      %v1687 = vrot.slane %v1685, 2
      %v1688 = vor.u32 %v1684, %v1687
      %v1689 = vsel %vm1663, %v1679, %v1688
      %v1691 = vshrl.u32 %v1334, 16
      %v1693 = vrot.slane %v1691, 1
      %v1694 = vshll.u32 %v1334, 16
      %v1696 = vrot.slane %v1694, 2
      %v1697 = vor.u32 %v1693, %v1696
      %v1698 = vsel %vm1663, %v1688, %v1697
      %v1700 = vshrl.u32 %v1335, 16
      %v1702 = vrot.slane %v1700, 1
      %v1703 = vshll.u32 %v1335, 16
      %v1705 = vrot.slane %v1703, 2
      %v1706 = vor.u32 %v1702, %v1705
      %v1707 = vsel %vm1663, %v1697, %v1706
      %v1709 = vshrl.u32 %v1336, 16
      %v1711 = vrot.slane %v1709, 1
      %v1712 = vshll.u32 %v1336, 16
      %v1714 = vrot.slane %v1712, 2
      %v1715 = vor.u32 %v1711, %v1714
      %v1716 = vsel %vm1663, %v1706, %v1715
      %v1718 = vshrl.u32 %v1337, 16
      %v1720 = vrot.slane %v1718, 1
      %v1721 = vshll.u32 %v1337, 16
      %v1723 = vrot.slane %v1721, 2
      %v1724 = vor.u32 %v1720, %v1723
      %v1725 = vsel %vm1663, %v1715, %v1724
      %v1727 = vshrl.u32 %v1338, 16
      %v1729 = vrot.slane %v1727, 1
      %v1730 = vshll.u32 %v1338, 16
      %v1732 = vrot.slane %v1730, 2
      %v1733 = vor.u32 %v1729, %v1732
      %v1734 = vsel %vm1663, %v1724, %v1733
      %v1736 = vshrl.u32 %v1339, 16
      %v1738 = vrot.slane %v1736, 1
      %v1739 = vshll.u32 %v1339, 16
      %v1741 = vrot.slane %v1739, 2
      %v1742 = vor.u32 %v1738, %v1741
      %v1743 = vsel %vm1663, %v1733, %v1742
      %v1745 = vshrl.u32 %v1340, 16
      %v1747 = vrot.slane %v1745, 1
      %v1748 = vshll.u32 %v1340, 16
      %v1750 = vrot.slane %v1748, 2
      %v1751 = vor.u32 %v1747, %v1750
      %v1752 = vsel %vm1663, %v1742, %v1751
      %v1754 = vshrl.u32 %v1341, 16
      %v1756 = vrot.slane %v1754, 1
      %v1757 = vshll.u32 %v1341, 16
      %v1759 = vrot.slane %v1757, 2
      %v1760 = vor.u32 %v1756, %v1759
      %v1761 = vsel %vm1663, %v1751, %v1760
      %v1763 = vshrl.u32 %v1342, 16
      %v1765 = vrot.slane %v1763, 1
      %v1766 = vshll.u32 %v1342, 16
      %v1768 = vrot.slane %v1766, 2
      %v1769 = vor.u32 %v1765, %v1768
      %v1770 = vsel %vm1663, %v1760, %v1769
      %v1772 = vshrl.u32 %v1343, 16
      %v1774 = vrot.slane %v1772, 1
      %v1775 = vshll.u32 %v1343, 16
      %v1777 = vrot.slane %v1775, 2
      %v1778 = vor.u32 %v1774, %v1777
      %v1779 = vsel %vm1663, %v1769, %v1778
      %v1781 = vshrl.u32 %v1344, 16
      %v1783 = vrot.slane %v1781, 1
      %v1784 = vshll.u32 %v1344, 16
      %v1786 = vrot.slane %v1784, 2
      %v1787 = vor.u32 %v1783, %v1786
      %v1788 = vsel %vm1663, %v1778, %v1787
      %v1790 = vshrl.u32 %v1345, 16
      %v1792 = vrot.slane %v1790, 1
      %v1793 = vshll.u32 %v1345, 16
      %v1795 = vrot.slane %v1793, 2
      %v1796 = vor.u32 %v1792, %v1795
      %v1797 = vsel %vm1663, %v1787, %v1796
      %v1799 = vshrl.u32 %v1346, 16
      %v1801 = vrot.slane %v1799, 1
      %v1802 = vshll.u32 %v1346, 16
      %v1804 = vrot.slane %v1802, 2
      %v1805 = vor.u32 %v1801, %v1804
      %v1806 = vsel %vm1663, %v1796, %v1805
      %v1808 = vshrl.u32 %v1347, 16
      %v1810 = vrot.slane %v1808, 1
      %v1811 = vshll.u32 %v1347, 16
      %v1813 = vrot.slane %v1811, 2
      %v1814 = vor.u32 %v1810, %v1813
      %v1815 = vsel %vm1663, %v1805, %v1814
      %v1817 = vshrl.u32 %v1348, 16
      %v1819 = vrot.slane %v1817, 1
      %v1820 = vshll.u32 %v1348, 16
      %v1822 = vrot.slane %v1820, 2
      %v1823 = vor.u32 %v1819, %v1822
      %v1824 = vsel %vm1663, %v1814, %v1823
      %v1826 = vshrl.u32 %v1662, 16
      %v1828 = vrot.slane %v1826, 1
      %v1829 = vshll.u32 %v1662, 16
      %v1831 = vrot.slane %v1829, 2
      %v1832 = vor.u32 %v1828, %v1831
      %v1833 = vsel %vm1663, %v1823, %v1832
      %v1835 = vsel %vm452, %v1680, 0
      %v1838 = vsel %vm452, %v1689, 0
      %v1841 = vsel %vm452, %v1698, 0
      %v1844 = vsel %vm452, %v1707, 0
      %v1847 = vsel %vm452, %v1716, 0
      %v1850 = vsel %vm452, %v1725, 0
      %v1853 = vsel %vm452, %v1734, 0
      %v1856 = vsel %vm452, %v1743, 0
      %v1859 = vsel %vm452, %v1752, 0
      %v1862 = vsel %vm452, %v1761, 0
      %v1865 = vsel %vm452, %v1770, 0
      %v1868 = vsel %vm452, %v1779, 0
      %v1871 = vsel %vm452, %v1788, 0
      %v1874 = vsel %vm452, %v1797, 0
      %v1877 = vsel %vm452, %v1806, 0
      %v1880 = vsel %vm452, %v1815, 0
      %v1883 = vsel %vm452, %v1824, 0
      %v1886 = vsel %vm452, %v1833, 0
      %v1889 = vsel %vm507, %v1659, 0
      %1891 = vmatprep.subr.bf16.mxu0 0
      %1892 = vmatpush1.bf16.msra.mxu0 %v1889
      %1893 = vmatprep.subr.bf16.mxu0 0
      %1894 = vmatpush1.bf16.msra.mxu0 0
      %1895 = vmatprep.subr.bf16.mxu0 0
      %1896 = vmatpush1.bf16.msra.mxu0 0
      %1897 = vmatprep.subr.bf16.mxu0 0
      %1898 = vmatpush1.bf16.msra.mxu0 0
      %1899 = vmatprep.subr.bf16.mxu0 0
      %1900 = vmatpush1.bf16.msra.mxu0 0
      %1901 = vmatprep.subr.bf16.mxu0 0
      %1902 = vmatpush1.bf16.msra.mxu0 0
      %1903 = vmatprep.subr.bf16.mxu0 0
      %1904 = vmatpush1.bf16.msra.mxu0 0
      %1905 = vmatprep.subr.bf16.mxu0 0
      %1906 = vmatpush1.bf16.msra.mxu0 0
      %1907 = vmatprep.subr.bf16.mxu0 0
      %1908 = vmatpush1.bf16.msra.mxu0 0
      %1909 = vmatprep.subr.bf16.mxu0 0
      %1910 = vmatpush1.bf16.msra.mxu0 0
      %1911 = vmatprep.subr.bf16.mxu0 0
      %1912 = vmatpush1.bf16.msra.mxu0 0
      %1913 = vmatprep.subr.bf16.mxu0 0
      %1914 = vmatpush1.bf16.msra.mxu0 0
      %1915 = vmatprep.subr.bf16.mxu0 0
      %1916 = vmatpush1.bf16.msra.mxu0 0
      %1917 = vmatprep.subr.bf16.mxu0 0
      %1918 = vmatpush1.bf16.msra.mxu0 0
      %1919 = vmatprep.subr.bf16.mxu0 0
      %1920 = vmatpush1.bf16.msra.mxu0 0
      %1921 = vmatprep.subr.bf16.mxu0 0
      %1922 = vmatpush1.bf16.msra.mxu0 0
      %1923 = vmatprep.mubr.bf16.mxu0 0
      %1924 = vmatmul.mubr.bf16.gmra.mrb[0].mxu0 %v1835
      %v1925 = vpop.f32.mrb[0].mxu0
      %v1926 = vadd.f32 0.0, %v1925
      %v1927 = vpop.f32.mrb[0].mxu0
      %v1928 = vpop.f32.mrb[0].mxu0
      %v1929 = vadd.f32 0.0, %v1928
      %v1930 = vpop.f32.mrb[0].mxu0
      %1931 = vmatprep.mubr.bf16.mxu0 0
      %1932 = vmatmul.mubr.bf16.gmra.mrb[0].mxu0 %v1838
      %v1933 = vpop.f32.mrb[0].mxu0
      %v1934 = vadd.f32 0.0, %v1933
      %v1935 = vpop.f32.mrb[0].mxu0
      %v1936 = vpop.f32.mrb[0].mxu0
      %v1937 = vadd.f32 0.0, %v1936
      %v1938 = vpop.f32.mrb[0].mxu0
      %1939 = vmatprep.mubr.bf16.mxu0 0
      %1940 = vmatmul.mubr.bf16.gmra.mrb[0].mxu0 %v1841
      %v1941 = vpop.f32.mrb[0].mxu0
      %v1942 = vadd.f32 0.0, %v1941
      %v1943 = vpop.f32.mrb[0].mxu0
      %v1944 = vpop.f32.mrb[0].mxu0
      %v1945 = vadd.f32 0.0, %v1944
      %v1946 = vpop.f32.mrb[0].mxu0
      %1947 = vmatprep.mubr.bf16.mxu0 0
      %1948 = vmatmul.mubr.bf16.gmra.mrb[0].mxu0 %v1844
      %v1949 = vpop.f32.mrb[0].mxu0
      %v1950 = vadd.f32 0.0, %v1949
      %v1951 = vpop.f32.mrb[0].mxu0
      %v1952 = vpop.f32.mrb[0].mxu0
      %v1953 = vadd.f32 0.0, %v1952
      %v1954 = vpop.f32.mrb[0].mxu0
      %1955 = vmatprep.mubr.bf16.mxu0 0
      %1956 = vmatmul.mubr.bf16.gmra.mrb[0].mxu0 %v1847
      %v1957 = vpop.f32.mrb[0].mxu0
      %v1958 = vadd.f32 0.0, %v1957
      %v1959 = vpop.f32.mrb[0].mxu0
      %v1960 = vpop.f32.mrb[0].mxu0
      %v1961 = vadd.f32 0.0, %v1960
      %v1962 = vpop.f32.mrb[0].mxu0
      %1963 = vmatprep.mubr.bf16.mxu0 0
      %1964 = vmatmul.mubr.bf16.gmra.mrb[0].mxu0 %v1850
      %v1965 = vpop.f32.mrb[0].mxu0
      %v1966 = vadd.f32 0.0, %v1965
      %v1967 = vpop.f32.mrb[0].mxu0
      %v1968 = vpop.f32.mrb[0].mxu0
      %v1969 = vadd.f32 0.0, %v1968
      %v1970 = vpop.f32.mrb[0].mxu0
      %1971 = vmatprep.mubr.bf16.mxu0 0
      %1972 = vmatmul.mubr.bf16.gmra.mrb[0].mxu0 %v1853
      %v1973 = vpop.f32.mrb[0].mxu0
      %v1974 = vadd.f32 0.0, %v1973
      %v1975 = vpop.f32.mrb[0].mxu0
      %v1976 = vpop.f32.mrb[0].mxu0
      %v1977 = vadd.f32 0.0, %v1976
      %v1978 = vpop.f32.mrb[0].mxu0
      %1979 = vmatprep.mubr.bf16.mxu0 0
      %1980 = vmatmul.mubr.bf16.gmra.mrb[0].mxu0 %v1856
      %v1981 = vpop.f32.mrb[0].mxu0
      %v1982 = vadd.f32 0.0, %v1981
      %v1983 = vpop.f32.mrb[0].mxu0
      %v1984 = vpop.f32.mrb[0].mxu0
      %v1985 = vadd.f32 0.0, %v1984
      %v1986 = vpop.f32.mrb[0].mxu0
      %1987 = vmatprep.mubr.bf16.mxu0 0
      %1988 = vmatmul.mubr.bf16.gmra.mrb[0].mxu0 %v1859
      %v1989 = vpop.f32.mrb[0].mxu0
      %v1990 = vadd.f32 0.0, %v1989
      %v1991 = vpop.f32.mrb[0].mxu0
      %v1992 = vpop.f32.mrb[0].mxu0
      %v1993 = vadd.f32 0.0, %v1992
      %v1994 = vpop.f32.mrb[0].mxu0
      %1995 = vmatprep.mubr.bf16.mxu0 0
      %1996 = vmatmul.mubr.bf16.gmra.mrb[0].mxu0 %v1862
      %v1997 = vpop.f32.mrb[0].mxu0
      %v1998 = vadd.f32 0.0, %v1997
      %v1999 = vpop.f32.mrb[0].mxu0
      %v2000 = vpop.f32.mrb[0].mxu0
      %v2001 = vadd.f32 0.0, %v2000
      %v2002 = vpop.f32.mrb[0].mxu0
      %2003 = vmatprep.mubr.bf16.mxu0 0
      %2004 = vmatmul.mubr.bf16.gmra.mrb[0].mxu0 %v1865
      %v2005 = vpop.f32.mrb[0].mxu0
      %v2006 = vadd.f32 0.0, %v2005
      %v2007 = vpop.f32.mrb[0].mxu0
      %v2008 = vpop.f32.mrb[0].mxu0
      %v2009 = vadd.f32 0.0, %v2008
      %v2010 = vpop.f32.mrb[0].mxu0
      %2011 = vmatprep.mubr.bf16.mxu0 0
      %2012 = vmatmul.mubr.bf16.gmra.mrb[0].mxu0 %v1868
      %v2013 = vpop.f32.mrb[0].mxu0
      %v2014 = vadd.f32 0.0, %v2013
      %v2015 = vpop.f32.mrb[0].mxu0
      %v2016 = vpop.f32.mrb[0].mxu0
      %v2017 = vadd.f32 0.0, %v2016
      %v2018 = vpop.f32.mrb[0].mxu0
      %2019 = vmatprep.mubr.bf16.mxu0 0
      %2020 = vmatmul.mubr.bf16.gmra.mrb[0].mxu0 %v1871
      %v2021 = vpop.f32.mrb[0].mxu0
      %v2022 = vadd.f32 0.0, %v2021
      %v2023 = vpop.f32.mrb[0].mxu0
      %v2024 = vpop.f32.mrb[0].mxu0
      %v2025 = vadd.f32 0.0, %v2024
      %v2026 = vpop.f32.mrb[0].mxu0
      %2027 = vmatprep.mubr.bf16.mxu0 0
      %2028 = vmatmul.mubr.bf16.gmra.mrb[0].mxu0 %v1874
      %v2029 = vpop.f32.mrb[0].mxu0
      %v2030 = vadd.f32 0.0, %v2029
      %v2031 = vpop.f32.mrb[0].mxu0
      %v2032 = vpop.f32.mrb[0].mxu0
      %v2033 = vadd.f32 0.0, %v2032
      %v2034 = vpop.f32.mrb[0].mxu0
      %2035 = vmatprep.mubr.bf16.mxu0 0
      %2036 = vmatmul.mubr.bf16.gmra.mrb[0].mxu0 %v1877
      %v2037 = vpop.f32.mrb[0].mxu0
      %v2038 = vadd.f32 0.0, %v2037
      %v2039 = vpop.f32.mrb[0].mxu0
      %v2040 = vpop.f32.mrb[0].mxu0
      %v2041 = vadd.f32 0.0, %v2040
      %v2042 = vpop.f32.mrb[0].mxu0
      %2043 = vmatprep.mubr.bf16.mxu0 0
      %2044 = vmatmul.mubr.bf16.gmra.mrb[0].mxu0 %v1880
      %v2045 = vpop.f32.mrb[0].mxu0
      %v2046 = vadd.f32 0.0, %v2045
      %v2047 = vpop.f32.mrb[0].mxu0
      %v2048 = vpop.f32.mrb[0].mxu0
      %v2049 = vadd.f32 0.0, %v2048
      %v2050 = vpop.f32.mrb[0].mxu0
      %2051 = vmatprep.mubr.bf16.mxu0 0
      %2052 = vmatmul.mubr.bf16.gmra.mrb[0].mxu0 %v1883
      %v2053 = vpop.f32.mrb[0].mxu0
      %v2054 = vadd.f32 0.0, %v2053
      %v2055 = vpop.f32.mrb[0].mxu0
      %v2056 = vpop.f32.mrb[0].mxu0
      %v2057 = vadd.f32 0.0, %v2056
      %v2058 = vpop.f32.mrb[0].mxu0
      %2059 = vmatprep.mubr.bf16.mxu0 0
      %2060 = vmatmul.mubr.bf16.gmra.mrb[0].mxu0 %v1886
      %v2061 = vpop.f32.mrb[0].mxu0
      %v2062 = vadd.f32 0.0, %v2061
      %v2063 = vpop.f32.mrb[0].mxu0
      %v2064 = vpop.f32.mrb[0].mxu0
      %v2065 = vadd.f32 0.0, %v2064
      %v2066 = vpop.f32.mrb[0].mxu0
      %2067 = vdwg.mxu0
      %v2068 = vadd.f32 %v1621, %v1926
      %v2069 = vadd.f32 %v1622, %v1929
      %v2070 = vadd.f32 %v1623, %v1934
      %v2071 = vadd.f32 %v1624, %v1937
      %v2072 = vadd.f32 %v1625, %v1942
      %v2073 = vadd.f32 %v1626, %v1945
      %v2074 = vadd.f32 %v1627, %v1950
      %v2075 = vadd.f32 %v1628, %v1953
      %v2076 = vadd.f32 %v1629, %v1958
      %v2077 = vadd.f32 %v1630, %v1961
      %v2078 = vadd.f32 %v1631, %v1966
      %v2079 = vadd.f32 %v1632, %v1969
      %v2080 = vadd.f32 %v1633, %v1974
      %v2081 = vadd.f32 %v1634, %v1977
      %v2082 = vadd.f32 %v1635, %v1982
      %v2083 = vadd.f32 %v1636, %v1985
      %v2084 = vadd.f32 %v1637, %v1990
      %v2085 = vadd.f32 %v1638, %v1993
      %v2086 = vadd.f32 %v1639, %v1998
      %v2087 = vadd.f32 %v1640, %v2001
      %v2088 = vadd.f32 %v1641, %v2006
      %v2089 = vadd.f32 %v1642, %v2009
      %v2090 = vadd.f32 %v1643, %v2014
      %v2091 = vadd.f32 %v1644, %v2017
      %v2092 = vadd.f32 %v1645, %v2022
      %v2093 = vadd.f32 %v1646, %v2025
      %v2094 = vadd.f32 %v1647, %v2030
      %v2095 = vadd.f32 %v1648, %v2033
      %v2096 = vadd.f32 %v1649, %v2038
      %v2097 = vadd.f32 %v1650, %v2041
      %v2098 = vadd.f32 %v1651, %v2046
      %v2099 = vadd.f32 %v1652, %v2049
      %v2100 = vadd.f32 %v1653, %v2054
      %v2101 = vadd.f32 %v1654, %v2057
      %v2102 = vadd.f32 %v1655, %v2062
      %v2103 = vadd.f32 %v1656, %v2065
      %v2104 = vld [vmem:[%s164 + $0x8] sm:$0xc]
      %s2105 = scalar_lea.vmem %s1, 10
      %v2106 = vld [vmem:[%s2105] sm:$0x3]
      %v2108 = vunpack.c.l.b16 %v2104
      %v2109 = vpack.c.b16 %v1295, %v2108
      %vm2110 = vcmask 1045504
      %v2111 = vrot.slane %v2109, 2
      %v2112 = vrot.slane %v1332, 2
      %v2113 = vsel %vm2110, %v2111, %v2112
      %v2114 = vrot.slane %v1333, 2
      %v2115 = vsel %vm2110, %v2112, %v2114
      %v2116 = vrot.slane %v1334, 2
      %v2117 = vsel %vm2110, %v2114, %v2116
      %v2118 = vrot.slane %v1335, 2
      %v2119 = vsel %vm2110, %v2116, %v2118
      %v2120 = vrot.slane %v1336, 2
      %v2121 = vsel %vm2110, %v2118, %v2120
      %v2122 = vrot.slane %v1337, 2
      %v2123 = vsel %vm2110, %v2120, %v2122
      %v2124 = vrot.slane %v1338, 2
      %v2125 = vsel %vm2110, %v2122, %v2124
      %v2126 = vrot.slane %v1339, 2
      %v2127 = vsel %vm2110, %v2124, %v2126
      %v2128 = vrot.slane %v1340, 2
      %v2129 = vsel %vm2110, %v2126, %v2128
      %v2130 = vrot.slane %v1341, 2
      %v2131 = vsel %vm2110, %v2128, %v2130
      %v2132 = vrot.slane %v1342, 2
      %v2133 = vsel %vm2110, %v2130, %v2132
      %v2134 = vrot.slane %v1343, 2
      %v2135 = vsel %vm2110, %v2132, %v2134
      %v2136 = vrot.slane %v1344, 2
      %v2137 = vsel %vm2110, %v2134, %v2136
      %v2138 = vrot.slane %v1345, 2
      %v2139 = vsel %vm2110, %v2136, %v2138
      %v2140 = vrot.slane %v1346, 2
      %v2141 = vsel %vm2110, %v2138, %v2140
      %v2142 = vrot.slane %v1347, 2
      %v2143 = vsel %vm2110, %v2140, %v2142
      %v2144 = vrot.slane %v1348, 2
      %v2145 = vsel %vm2110, %v2142, %v2144
      %v2146 = vrot.slane %v1662, 2
      %v2147 = vsel %vm2110, %v2144, %v2146
      %v2149 = vsel %vm452, %v2113, 0
      %v2152 = vsel %vm452, %v2115, 0
      %v2155 = vsel %vm452, %v2117, 0
      %v2158 = vsel %vm452, %v2119, 0
      %v2161 = vsel %vm452, %v2121, 0
      %v2164 = vsel %vm452, %v2123, 0
      %v2167 = vsel %vm452, %v2125, 0
      %v2170 = vsel %vm452, %v2127, 0
      %v2173 = vsel %vm452, %v2129, 0
      %v2176 = vsel %vm452, %v2131, 0
      %v2179 = vsel %vm452, %v2133, 0
      %v2182 = vsel %vm452, %v2135, 0
      %v2185 = vsel %vm452, %v2137, 0
      %v2188 = vsel %vm452, %v2139, 0
      %v2191 = vsel %vm452, %v2141, 0
      %v2194 = vsel %vm452, %v2143, 0
      %v2197 = vsel %vm452, %v2145, 0
      %v2200 = vsel %vm452, %v2147, 0
      %v2203 = vsel %vm507, %v2106, 0
      %2205 = vmatprep.subr.bf16.mxu0 0
      %2206 = vmatpush1.bf16.msra.mxu0 %v2203
      %2207 = vmatprep.subr.bf16.mxu0 0
      %2208 = vmatpush1.bf16.msra.mxu0 0
      %2209 = vmatprep.subr.bf16.mxu0 0
      %2210 = vmatpush1.bf16.msra.mxu0 0
      %2211 = vmatprep.subr.bf16.mxu0 0
      %2212 = vmatpush1.bf16.msra.mxu0 0
      %2213 = vmatprep.subr.bf16.mxu0 0
      %2214 = vmatpush1.bf16.msra.mxu0 0
      %2215 = vmatprep.subr.bf16.mxu0 0
      %2216 = vmatpush1.bf16.msra.mxu0 0
      %2217 = vmatprep.subr.bf16.mxu0 0
      %2218 = vmatpush1.bf16.msra.mxu0 0
      %2219 = vmatprep.subr.bf16.mxu0 0
      %2220 = vmatpush1.bf16.msra.mxu0 0
      %2221 = vmatprep.subr.bf16.mxu0 0
      %2222 = vmatpush1.bf16.msra.mxu0 0
      %2223 = vmatprep.subr.bf16.mxu0 0
      %2224 = vmatpush1.bf16.msra.mxu0 0
      %2225 = vmatprep.subr.bf16.mxu0 0
      %2226 = vmatpush1.bf16.msra.mxu0 0
      %2227 = vmatprep.subr.bf16.mxu0 0
      %2228 = vmatpush1.bf16.msra.mxu0 0
      %2229 = vmatprep.subr.bf16.mxu0 0
      %2230 = vmatpush1.bf16.msra.mxu0 0
      %2231 = vmatprep.subr.bf16.mxu0 0
      %2232 = vmatpush1.bf16.msra.mxu0 0
      %2233 = vmatprep.subr.bf16.mxu0 0
      %2234 = vmatpush1.bf16.msra.mxu0 0
      %2235 = vmatprep.subr.bf16.mxu0 0
      %2236 = vmatpush1.bf16.msra.mxu0 0
      %2237 = vmatprep.mubr.bf16.mxu0 0
      %2238 = vmatmul.mubr.bf16.gmra.mrb[0].mxu0 %v2149
      %v2239 = vpop.f32.mrb[0].mxu0
      %v2240 = vadd.f32 0.0, %v2239
      %v2241 = vpop.f32.mrb[0].mxu0
      %v2242 = vpop.f32.mrb[0].mxu0
      %v2243 = vadd.f32 0.0, %v2242
      %v2244 = vpop.f32.mrb[0].mxu0
      %2245 = vmatprep.mubr.bf16.mxu0 0
      %2246 = vmatmul.mubr.bf16.gmra.mrb[0].mxu0 %v2152
      %v2247 = vpop.f32.mrb[0].mxu0
      %v2248 = vadd.f32 0.0, %v2247
      %v2249 = vpop.f32.mrb[0].mxu0
      %v2250 = vpop.f32.mrb[0].mxu0
      %v2251 = vadd.f32 0.0, %v2250
      %v2252 = vpop.f32.mrb[0].mxu0
      %2253 = vmatprep.mubr.bf16.mxu0 0
      %2254 = vmatmul.mubr.bf16.gmra.mrb[0].mxu0 %v2155
      %v2255 = vpop.f32.mrb[0].mxu0
      %v2256 = vadd.f32 0.0, %v2255
      %v2257 = vpop.f32.mrb[0].mxu0
      %v2258 = vpop.f32.mrb[0].mxu0
      %v2259 = vadd.f32 0.0, %v2258
      %v2260 = vpop.f32.mrb[0].mxu0
      %2261 = vmatprep.mubr.bf16.mxu0 0
      %2262 = vmatmul.mubr.bf16.gmra.mrb[0].mxu0 %v2158
      %v2263 = vpop.f32.mrb[0].mxu0
      %v2264 = vadd.f32 0.0, %v2263
      %v2265 = vpop.f32.mrb[0].mxu0
      %v2266 = vpop.f32.mrb[0].mxu0
      %v2267 = vadd.f32 0.0, %v2266
      %v2268 = vpop.f32.mrb[0].mxu0
      %2269 = vmatprep.mubr.bf16.mxu0 0
      %2270 = vmatmul.mubr.bf16.gmra.mrb[0].mxu0 %v2161
      %v2271 = vpop.f32.mrb[0].mxu0
      %v2272 = vadd.f32 0.0, %v2271
      %v2273 = vpop.f32.mrb[0].mxu0
      %v2274 = vpop.f32.mrb[0].mxu0
      %v2275 = vadd.f32 0.0, %v2274
      %v2276 = vpop.f32.mrb[0].mxu0
      %2277 = vmatprep.mubr.bf16.mxu0 0
      %2278 = vmatmul.mubr.bf16.gmra.mrb[0].mxu0 %v2164
      %v2279 = vpop.f32.mrb[0].mxu0
      %v2280 = vadd.f32 0.0, %v2279
      %v2281 = vpop.f32.mrb[0].mxu0
      %v2282 = vpop.f32.mrb[0].mxu0
      %v2283 = vadd.f32 0.0, %v2282
      %v2284 = vpop.f32.mrb[0].mxu0
      %2285 = vmatprep.mubr.bf16.mxu0 0
      %2286 = vmatmul.mubr.bf16.gmra.mrb[0].mxu0 %v2167
      %v2287 = vpop.f32.mrb[0].mxu0
      %v2288 = vadd.f32 0.0, %v2287
      %v2289 = vpop.f32.mrb[0].mxu0
      %v2290 = vpop.f32.mrb[0].mxu0
      %v2291 = vadd.f32 0.0, %v2290
      %v2292 = vpop.f32.mrb[0].mxu0
      %2293 = vmatprep.mubr.bf16.mxu0 0
      %2294 = vmatmul.mubr.bf16.gmra.mrb[0].mxu0 %v2170
      %v2295 = vpop.f32.mrb[0].mxu0
      %v2296 = vadd.f32 0.0, %v2295
      %v2297 = vpop.f32.mrb[0].mxu0
      %v2298 = vpop.f32.mrb[0].mxu0
      %v2299 = vadd.f32 0.0, %v2298
      %v2300 = vpop.f32.mrb[0].mxu0
      %2301 = vmatprep.mubr.bf16.mxu0 0
      %2302 = vmatmul.mubr.bf16.gmra.mrb[0].mxu0 %v2173
      %v2303 = vpop.f32.mrb[0].mxu0
      %v2304 = vadd.f32 0.0, %v2303
      %v2305 = vpop.f32.mrb[0].mxu0
      %v2306 = vpop.f32.mrb[0].mxu0
      %v2307 = vadd.f32 0.0, %v2306
      %v2308 = vpop.f32.mrb[0].mxu0
      %2309 = vmatprep.mubr.bf16.mxu0 0
      %2310 = vmatmul.mubr.bf16.gmra.mrb[0].mxu0 %v2176
      %v2311 = vpop.f32.mrb[0].mxu0
      %v2312 = vadd.f32 0.0, %v2311
      %v2313 = vpop.f32.mrb[0].mxu0
      %v2314 = vpop.f32.mrb[0].mxu0
      %v2315 = vadd.f32 0.0, %v2314
      %v2316 = vpop.f32.mrb[0].mxu0
      %2317 = vmatprep.mubr.bf16.mxu0 0
      %2318 = vmatmul.mubr.bf16.gmra.mrb[0].mxu0 %v2179
      %v2319 = vpop.f32.mrb[0].mxu0
      %v2320 = vadd.f32 0.0, %v2319
      %v2321 = vpop.f32.mrb[0].mxu0
      %v2322 = vpop.f32.mrb[0].mxu0
      %v2323 = vadd.f32 0.0, %v2322
      %v2324 = vpop.f32.mrb[0].mxu0
      %2325 = vmatprep.mubr.bf16.mxu0 0
      %2326 = vmatmul.mubr.bf16.gmra.mrb[0].mxu0 %v2182
      %v2327 = vpop.f32.mrb[0].mxu0
      %v2328 = vadd.f32 0.0, %v2327
      %v2329 = vpop.f32.mrb[0].mxu0
      %v2330 = vpop.f32.mrb[0].mxu0
      %v2331 = vadd.f32 0.0, %v2330
      %v2332 = vpop.f32.mrb[0].mxu0
      %2333 = vmatprep.mubr.bf16.mxu0 0
      %2334 = vmatmul.mubr.bf16.gmra.mrb[0].mxu0 %v2185
      %v2335 = vpop.f32.mrb[0].mxu0
      %v2336 = vadd.f32 0.0, %v2335
      %v2337 = vpop.f32.mrb[0].mxu0
      %v2338 = vpop.f32.mrb[0].mxu0
      %v2339 = vadd.f32 0.0, %v2338
      %v2340 = vpop.f32.mrb[0].mxu0
      %2341 = vmatprep.mubr.bf16.mxu0 0
      %2342 = vmatmul.mubr.bf16.gmra.mrb[0].mxu0 %v2188
      %v2343 = vpop.f32.mrb[0].mxu0
      %v2344 = vadd.f32 0.0, %v2343
      %v2345 = vpop.f32.mrb[0].mxu0
      %v2346 = vpop.f32.mrb[0].mxu0
      %v2347 = vadd.f32 0.0, %v2346
      %v2348 = vpop.f32.mrb[0].mxu0
      %2349 = vmatprep.mubr.bf16.mxu0 0
      %2350 = vmatmul.mubr.bf16.gmra.mrb[0].mxu0 %v2191
      %v2351 = vpop.f32.mrb[0].mxu0
      %v2352 = vadd.f32 0.0, %v2351
      %v2353 = vpop.f32.mrb[0].mxu0
      %v2354 = vpop.f32.mrb[0].mxu0
      %v2355 = vadd.f32 0.0, %v2354
      %v2356 = vpop.f32.mrb[0].mxu0
      %2357 = vmatprep.mubr.bf16.mxu0 0
      %2358 = vmatmul.mubr.bf16.gmra.mrb[0].mxu0 %v2194
      %v2359 = vpop.f32.mrb[0].mxu0
      %v2360 = vadd.f32 0.0, %v2359
      %v2361 = vpop.f32.mrb[0].mxu0
      %v2362 = vpop.f32.mrb[0].mxu0
      %v2363 = vadd.f32 0.0, %v2362
      %v2364 = vpop.f32.mrb[0].mxu0
      %2365 = vmatprep.mubr.bf16.mxu0 0
      %2366 = vmatmul.mubr.bf16.gmra.mrb[0].mxu0 %v2197
      %v2367 = vpop.f32.mrb[0].mxu0
      %v2368 = vadd.f32 0.0, %v2367
      %v2369 = vpop.f32.mrb[0].mxu0
      %v2370 = vpop.f32.mrb[0].mxu0
      %v2371 = vadd.f32 0.0, %v2370
      %v2372 = vpop.f32.mrb[0].mxu0
      %2373 = vmatprep.mubr.bf16.mxu0 0
      %2374 = vmatmul.mubr.bf16.gmra.mrb[0].mxu0 %v2200
      %v2375 = vpop.f32.mrb[0].mxu0
      %v2376 = vadd.f32 0.0, %v2375
      %v2377 = vpop.f32.mrb[0].mxu0
      %v2378 = vpop.f32.mrb[0].mxu0
      %v2379 = vadd.f32 0.0, %v2378
      %v2380 = vpop.f32.mrb[0].mxu0
      %2381 = vdwg.mxu0
      %v2382 = vadd.f32 %v2068, %v2240
      %v2383 = vadd.f32 %v2069, %v2243
      %v2384 = vadd.f32 %v2070, %v2248
      %v2385 = vadd.f32 %v2071, %v2251
      %v2386 = vadd.f32 %v2072, %v2256
      %v2387 = vadd.f32 %v2073, %v2259
      %v2388 = vadd.f32 %v2074, %v2264
      %v2389 = vadd.f32 %v2075, %v2267
      %v2390 = vadd.f32 %v2076, %v2272
      %v2391 = vadd.f32 %v2077, %v2275
      %v2392 = vadd.f32 %v2078, %v2280
      %v2393 = vadd.f32 %v2079, %v2283
      %v2394 = vadd.f32 %v2080, %v2288
      %v2395 = vadd.f32 %v2081, %v2291
      %v2396 = vadd.f32 %v2082, %v2296
      %v2397 = vadd.f32 %v2083, %v2299
      %v2398 = vadd.f32 %v2084, %v2304
      %v2399 = vadd.f32 %v2085, %v2307
      %v2400 = vadd.f32 %v2086, %v2312
      %v2401 = vadd.f32 %v2087, %v2315
      %v2402 = vadd.f32 %v2088, %v2320
      %v2403 = vadd.f32 %v2089, %v2323
      %v2404 = vadd.f32 %v2090, %v2328
      %v2405 = vadd.f32 %v2091, %v2331
      %v2406 = vadd.f32 %v2092, %v2336
      %v2407 = vadd.f32 %v2093, %v2339
      %v2408 = vadd.f32 %v2094, %v2344
      %v2409 = vadd.f32 %v2095, %v2347
      %v2410 = vadd.f32 %v2096, %v2352
      %v2411 = vadd.f32 %v2097, %v2355
      %v2412 = vadd.f32 %v2098, %v2360
      %v2413 = vadd.f32 %v2099, %v2363
      %v2414 = vadd.f32 %v2100, %v2368
      %v2415 = vadd.f32 %v2101, %v2371
      %v2416 = vadd.f32 %v2102, %v2376
      %v2417 = vadd.f32 %v2103, %v2379
      %v2418 = vld [vmem:[%s164 + $0x10] sm:$0xc]
      %v2419 = vld [vmem:[%s164 + $0x14] sm:$0xf]
      %v2420 = vld [vmem:[%s164 + $0x18] sm:$0xf]
      %v2421 = vld [vmem:[%s164 + $0x1c] sm:$0xf]
      %v2422 = vld [vmem:[%s164 + $0x20] sm:$0xf]
      %v2423 = vld [vmem:[%s164 + $0x24] sm:$0xf]
      %v2424 = vld [vmem:[%s164 + $0x28] sm:$0xf]
      %v2425 = vld [vmem:[%s164 + $0x2c] sm:$0xf]
      %v2426 = vld [vmem:[%s164 + $0x30] sm:$0xf]
      %v2427 = vld [vmem:[%s164 + $0x34] sm:$0xf]
      %v2428 = vld [vmem:[%s164 + $0x38] sm:$0xf]
      %v2429 = vld [vmem:[%s164 + $0x3c] sm:$0xf]
      %v2430 = vld [vmem:[%s164 + $0x40] sm:$0xf]
      %v2431 = vld [vmem:[%s164 + $0x44] sm:$0xf]
      %v2432 = vld [vmem:[%s164 + $0x48] sm:$0xf]
      %v2433 = vld [vmem:[%s164 + $0x4c] sm:$0xf]
      %v2434 = vld [vmem:[%s164 + $0x50] sm:$0xf]
      %v2435 = vld [vmem:[%s164 + $0x54] sm:$0xf]
      %v2436 = vld [vmem:[%s164 + $0x58] sm:$0xf]
      %v2437 = vld [vmem:[%s164 + $0x5c] sm:$0xf]
      %v2438 = vld [vmem:[%s164 + $0x60] sm:$0xf]
      %v2439 = vld [vmem:[%s164 + $0x64] sm:$0xf]
      %v2440 = vld [vmem:[%s164 + $0x68] sm:$0xf]
      %v2441 = vld [vmem:[%s164 + $0x6c] sm:$0xf]
      %v2442 = vld [vmem:[%s164 + $0x70] sm:$0xf]
      %v2443 = vld [vmem:[%s164 + $0x74] sm:$0xf]
      %v2444 = vld [vmem:[%s164 + $0x78] sm:$0xf]
      %v2445 = vld [vmem:[%s164 + $0x7c] sm:$0xf]
      %v2446 = vld [vmem:[%s164 + $0x80] sm:$0xf]
      %v2447 = vld [vmem:[%s164 + $0x84] sm:$0xf]
      %v2448 = vld [vmem:[%s164 + $0x88] sm:$0xf]
      %v2449 = vld [vmem:[%s164 + $0x8c] sm:$0xf]
      %v2450 = vld [vmem:[%s164 + $0x90] sm:$0xf]
      %v2451 = vld [vmem:[%s164 + $0x94] sm:$0xf]
      %v2452 = vld [vmem:[%s164 + $0x98] sm:$0xf]
      %v2453 = vld [vmem:[%s164 + $0x9c] sm:$0xf]
      %v2454 = vld [vmem:[%s164 + $0xa0] sm:$0x3]
      %s2455 = scalar_lea.vmem %s1, 12
      %v2456 = vld [vmem:[%s2455] sm:$0x3]
      %v2494 = vunpack.c.l.b16 %v2418
      %v2495 = vunpack.c.l.b16 %v2419
      %v2496 = vunpack.c.l.b16 %v2420
      %v2497 = vunpack.c.l.b16 %v2421
      %v2498 = vunpack.c.l.b16 %v2422
      %v2499 = vunpack.c.l.b16 %v2423
      %v2500 = vunpack.c.l.b16 %v2424
      %v2501 = vunpack.c.l.b16 %v2425
      %v2502 = vunpack.c.l.b16 %v2426
      %v2503 = vunpack.c.l.b16 %v2427
      %v2504 = vunpack.c.l.b16 %v2428
      %v2505 = vunpack.c.l.b16 %v2429
      %v2506 = vunpack.c.l.b16 %v2430
      %v2507 = vunpack.c.l.b16 %v2431
      %v2508 = vunpack.c.l.b16 %v2432
      %v2509 = vunpack.c.l.b16 %v2433
      %v2510 = vunpack.c.l.b16 %v2434
      %v2511 = vunpack.c.l.b16 %v2435
      %v2512 = vunpack.c.l.b16 %v2436
      %v2513 = vunpack.c.l.b16 %v2437
      %v2514 = vunpack.c.l.b16 %v2438
      %v2515 = vunpack.c.l.b16 %v2439
      %v2516 = vunpack.c.l.b16 %v2440
      %v2517 = vunpack.c.l.b16 %v2441
      %v2518 = vunpack.c.l.b16 %v2442
      %v2519 = vunpack.c.l.b16 %v2443
      %v2520 = vunpack.c.l.b16 %v2444
      %v2521 = vunpack.c.l.b16 %v2445
      %v2522 = vunpack.c.l.b16 %v2446
      %v2523 = vunpack.c.l.b16 %v2447
      %v2524 = vunpack.c.l.b16 %v2448
      %v2525 = vunpack.c.l.b16 %v2449
      %v2526 = vunpack.c.l.b16 %v2450
      %v2527 = vunpack.c.l.b16 %v2451
      %v2528 = vunpack.c.l.b16 %v2452
      %v2529 = vunpack.c.l.b16 %v2453
      %v2530 = vunpack.c.l.b16 %v2454
      %v2531 = vpack.c.b16 %v2495, %v2494
      %v2532 = vpack.c.b16 %v2497, %v2496
      %v2533 = vpack.c.b16 %v2499, %v2498
      %v2534 = vpack.c.b16 %v2501, %v2500
      %v2535 = vpack.c.b16 %v2503, %v2502
      %v2536 = vpack.c.b16 %v2505, %v2504
      %v2537 = vpack.c.b16 %v2507, %v2506
      %v2538 = vpack.c.b16 %v2509, %v2508
      %v2539 = vpack.c.b16 %v2511, %v2510
      %v2540 = vpack.c.b16 %v2513, %v2512
      %v2541 = vpack.c.b16 %v2515, %v2514
      %v2542 = vpack.c.b16 %v2517, %v2516
      %v2543 = vpack.c.b16 %v2519, %v2518
      %v2544 = vpack.c.b16 %v2521, %v2520
      %v2545 = vpack.c.b16 %v2523, %v2522
      %v2546 = vpack.c.b16 %v2525, %v2524
      %v2547 = vpack.c.b16 %v2527, %v2526
      %v2548 = vpack.c.b16 %v2529, %v2528
      %v2549 = vpack.c.b16 %v2530, %v2530
      %v2550 = vrot.slane %v2531, 2
      %v2551 = vrot.slane %v2532, 2
      %v2552 = vsel %vm2110, %v2550, %v2551
      %v2553 = vrot.slane %v2533, 2
      %v2554 = vsel %vm2110, %v2551, %v2553
      %v2555 = vrot.slane %v2534, 2
      %v2556 = vsel %vm2110, %v2553, %v2555
      %v2557 = vrot.slane %v2535, 2
      %v2558 = vsel %vm2110, %v2555, %v2557
      %v2559 = vrot.slane %v2536, 2
      %v2560 = vsel %vm2110, %v2557, %v2559
      %v2561 = vrot.slane %v2537, 2
      %v2562 = vsel %vm2110, %v2559, %v2561
      %v2563 = vrot.slane %v2538, 2
      %v2564 = vsel %vm2110, %v2561, %v2563
      %v2565 = vrot.slane %v2539, 2
      %v2566 = vsel %vm2110, %v2563, %v2565
      %v2567 = vrot.slane %v2540, 2
      %v2568 = vsel %vm2110, %v2565, %v2567
      %v2569 = vrot.slane %v2541, 2
      %v2570 = vsel %vm2110, %v2567, %v2569
      %v2571 = vrot.slane %v2542, 2
      %v2572 = vsel %vm2110, %v2569, %v2571
      %v2573 = vrot.slane %v2543, 2
      %v2574 = vsel %vm2110, %v2571, %v2573
      %v2575 = vrot.slane %v2544, 2
      %v2576 = vsel %vm2110, %v2573, %v2575
      %v2577 = vrot.slane %v2545, 2
      %v2578 = vsel %vm2110, %v2575, %v2577
      %v2579 = vrot.slane %v2546, 2
      %v2580 = vsel %vm2110, %v2577, %v2579
      %v2581 = vrot.slane %v2547, 2
      %v2582 = vsel %vm2110, %v2579, %v2581
      %v2583 = vrot.slane %v2548, 2
      %v2584 = vsel %vm2110, %v2581, %v2583
      %v2585 = vrot.slane %v2549, 2
      %v2586 = vsel %vm2110, %v2583, %v2585
      %v2588 = vsel %vm452, %v2552, 0
      %v2591 = vsel %vm452, %v2554, 0
      %v2594 = vsel %vm452, %v2556, 0
      %v2597 = vsel %vm452, %v2558, 0
      %v2600 = vsel %vm452, %v2560, 0
      %v2603 = vsel %vm452, %v2562, 0
      %v2606 = vsel %vm452, %v2564, 0
      %v2609 = vsel %vm452, %v2566, 0
      %v2612 = vsel %vm452, %v2568, 0
      %v2615 = vsel %vm452, %v2570, 0
      %v2618 = vsel %vm452, %v2572, 0
      %v2621 = vsel %vm452, %v2574, 0
      %v2624 = vsel %vm452, %v2576, 0
      %v2627 = vsel %vm452, %v2578, 0
      %v2630 = vsel %vm452, %v2580, 0
      %v2633 = vsel %vm452, %v2582, 0
      %v2636 = vsel %vm452, %v2584, 0
      %v2639 = vsel %vm452, %v2586, 0
      %v2642 = vsel %vm507, %v2456, 0
      %2644 = vmatprep.subr.bf16.mxu0 0
      %2645 = vmatpush1.bf16.msra.mxu0 %v2642
      %2646 = vmatprep.subr.bf16.mxu0 0
      %2647 = vmatpush1.bf16.msra.mxu0 0
      %2648 = vmatprep.subr.bf16.mxu0 0
      %2649 = vmatpush1.bf16.msra.mxu0 0
      %2650 = vmatprep.subr.bf16.mxu0 0
      %2651 = vmatpush1.bf16.msra.mxu0 0
      %2652 = vmatprep.subr.bf16.mxu0 0
      %2653 = vmatpush1.bf16.msra.mxu0 0
      %2654 = vmatprep.subr.bf16.mxu0 0
      %2655 = vmatpush1.bf16.msra.mxu0 0
      %2656 = vmatprep.subr.bf16.mxu0 0
      %2657 = vmatpush1.bf16.msra.mxu0 0
      %2658 = vmatprep.subr.bf16.mxu0 0
      %2659 = vmatpush1.bf16.msra.mxu0 0
      %2660 = vmatprep.subr.bf16.mxu0 0
      %2661 = vmatpush1.bf16.msra.mxu0 0
      %2662 = vmatprep.subr.bf16.mxu0 0
      %2663 = vmatpush1.bf16.msra.mxu0 0
      %2664 = vmatprep.subr.bf16.mxu0 0
      %2665 = vmatpush1.bf16.msra.mxu0 0
      %2666 = vmatprep.subr.bf16.mxu0 0
      %2667 = vmatpush1.bf16.msra.mxu0 0
      %2668 = vmatprep.subr.bf16.mxu0 0
      %2669 = vmatpush1.bf16.msra.mxu0 0
      %2670 = vmatprep.subr.bf16.mxu0 0
      %2671 = vmatpush1.bf16.msra.mxu0 0
      %2672 = vmatprep.subr.bf16.mxu0 0
      %2673 = vmatpush1.bf16.msra.mxu0 0
      %2674 = vmatprep.subr.bf16.mxu0 0
      %2675 = vmatpush1.bf16.msra.mxu0 0
      %2676 = vmatprep.mubr.bf16.mxu0 0
      %2677 = vmatmul.mubr.bf16.gmra.mrb[0].mxu0 %v2588
      %v2678 = vpop.f32.mrb[0].mxu0
      %v2679 = vadd.f32 0.0, %v2678
      %v2680 = vpop.f32.mrb[0].mxu0
      %v2681 = vpop.f32.mrb[0].mxu0
      %v2682 = vadd.f32 0.0, %v2681
      %v2683 = vpop.f32.mrb[0].mxu0
      %2684 = vmatprep.mubr.bf16.mxu0 0
      %2685 = vmatmul.mubr.bf16.gmra.mrb[0].mxu0 %v2591
      %v2686 = vpop.f32.mrb[0].mxu0
      %v2687 = vadd.f32 0.0, %v2686
      %v2688 = vpop.f32.mrb[0].mxu0
      %v2689 = vpop.f32.mrb[0].mxu0
      %v2690 = vadd.f32 0.0, %v2689
      %v2691 = vpop.f32.mrb[0].mxu0
      %2692 = vmatprep.mubr.bf16.mxu0 0
      %2693 = vmatmul.mubr.bf16.gmra.mrb[0].mxu0 %v2594
      %v2694 = vpop.f32.mrb[0].mxu0
      %v2695 = vadd.f32 0.0, %v2694
      %v2696 = vpop.f32.mrb[0].mxu0
      %v2697 = vpop.f32.mrb[0].mxu0
      %v2698 = vadd.f32 0.0, %v2697
      %v2699 = vpop.f32.mrb[0].mxu0
      %2700 = vmatprep.mubr.bf16.mxu0 0
      %2701 = vmatmul.mubr.bf16.gmra.mrb[0].mxu0 %v2597
      %v2702 = vpop.f32.mrb[0].mxu0
      %v2703 = vadd.f32 0.0, %v2702
      %v2704 = vpop.f32.mrb[0].mxu0
      %v2705 = vpop.f32.mrb[0].mxu0
      %v2706 = vadd.f32 0.0, %v2705
      %v2707 = vpop.f32.mrb[0].mxu0
      %2708 = vmatprep.mubr.bf16.mxu0 0
      %2709 = vmatmul.mubr.bf16.gmra.mrb[0].mxu0 %v2600
      %v2710 = vpop.f32.mrb[0].mxu0
      %v2711 = vadd.f32 0.0, %v2710
      %v2712 = vpop.f32.mrb[0].mxu0
      %v2713 = vpop.f32.mrb[0].mxu0
      %v2714 = vadd.f32 0.0, %v2713
      %v2715 = vpop.f32.mrb[0].mxu0
      %2716 = vmatprep.mubr.bf16.mxu0 0
      %2717 = vmatmul.mubr.bf16.gmra.mrb[0].mxu0 %v2603
      %v2718 = vpop.f32.mrb[0].mxu0
      %v2719 = vadd.f32 0.0, %v2718
      %v2720 = vpop.f32.mrb[0].mxu0
      %v2721 = vpop.f32.mrb[0].mxu0
      %v2722 = vadd.f32 0.0, %v2721
      %v2723 = vpop.f32.mrb[0].mxu0
      %2724 = vmatprep.mubr.bf16.mxu0 0
      %2725 = vmatmul.mubr.bf16.gmra.mrb[0].mxu0 %v2606
      %v2726 = vpop.f32.mrb[0].mxu0
      %v2727 = vadd.f32 0.0, %v2726
      %v2728 = vpop.f32.mrb[0].mxu0
      %v2729 = vpop.f32.mrb[0].mxu0
      %v2730 = vadd.f32 0.0, %v2729
      %v2731 = vpop.f32.mrb[0].mxu0
      %2732 = vmatprep.mubr.bf16.mxu0 0
      %2733 = vmatmul.mubr.bf16.gmra.mrb[0].mxu0 %v2609
      %v2734 = vpop.f32.mrb[0].mxu0
      %v2735 = vadd.f32 0.0, %v2734
      %v2736 = vpop.f32.mrb[0].mxu0
      %v2737 = vpop.f32.mrb[0].mxu0
      %v2738 = vadd.f32 0.0, %v2737
      %v2739 = vpop.f32.mrb[0].mxu0
      %2740 = vmatprep.mubr.bf16.mxu0 0
      %2741 = vmatmul.mubr.bf16.gmra.mrb[0].mxu0 %v2612
      %v2742 = vpop.f32.mrb[0].mxu0
      %v2743 = vadd.f32 0.0, %v2742
      %v2744 = vpop.f32.mrb[0].mxu0
      %v2745 = vpop.f32.mrb[0].mxu0
      %v2746 = vadd.f32 0.0, %v2745
      %v2747 = vpop.f32.mrb[0].mxu0
      %2748 = vmatprep.mubr.bf16.mxu0 0
      %2749 = vmatmul.mubr.bf16.gmra.mrb[0].mxu0 %v2615
      %v2750 = vpop.f32.mrb[0].mxu0
      %v2751 = vadd.f32 0.0, %v2750
      %v2752 = vpop.f32.mrb[0].mxu0
      %v2753 = vpop.f32.mrb[0].mxu0
      %v2754 = vadd.f32 0.0, %v2753
      %v2755 = vpop.f32.mrb[0].mxu0
      %2756 = vmatprep.mubr.bf16.mxu0 0
      %2757 = vmatmul.mubr.bf16.gmra.mrb[0].mxu0 %v2618
      %v2758 = vpop.f32.mrb[0].mxu0
      %v2759 = vadd.f32 0.0, %v2758
      %v2760 = vpop.f32.mrb[0].mxu0
      %v2761 = vpop.f32.mrb[0].mxu0
      %v2762 = vadd.f32 0.0, %v2761
      %v2763 = vpop.f32.mrb[0].mxu0
      %2764 = vmatprep.mubr.bf16.mxu0 0
      %2765 = vmatmul.mubr.bf16.gmra.mrb[0].mxu0 %v2621
      %v2766 = vpop.f32.mrb[0].mxu0
      %v2767 = vadd.f32 0.0, %v2766
      %v2768 = vpop.f32.mrb[0].mxu0
      %v2769 = vpop.f32.mrb[0].mxu0
      %v2770 = vadd.f32 0.0, %v2769
      %v2771 = vpop.f32.mrb[0].mxu0
      %2772 = vmatprep.mubr.bf16.mxu0 0
      %2773 = vmatmul.mubr.bf16.gmra.mrb[0].mxu0 %v2624
      %v2774 = vpop.f32.mrb[0].mxu0
      %v2775 = vadd.f32 0.0, %v2774
      %v2776 = vpop.f32.mrb[0].mxu0
      %v2777 = vpop.f32.mrb[0].mxu0
      %v2778 = vadd.f32 0.0, %v2777
      %v2779 = vpop.f32.mrb[0].mxu0
      %2780 = vmatprep.mubr.bf16.mxu0 0
      %2781 = vmatmul.mubr.bf16.gmra.mrb[0].mxu0 %v2627
      %v2782 = vpop.f32.mrb[0].mxu0
      %v2783 = vadd.f32 0.0, %v2782
      %v2784 = vpop.f32.mrb[0].mxu0
      %v2785 = vpop.f32.mrb[0].mxu0
      %v2786 = vadd.f32 0.0, %v2785
      %v2787 = vpop.f32.mrb[0].mxu0
      %2788 = vmatprep.mubr.bf16.mxu0 0
      %2789 = vmatmul.mubr.bf16.gmra.mrb[0].mxu0 %v2630
      %v2790 = vpop.f32.mrb[0].mxu0
      %v2791 = vadd.f32 0.0, %v2790
      %v2792 = vpop.f32.mrb[0].mxu0
      %v2793 = vpop.f32.mrb[0].mxu0
      %v2794 = vadd.f32 0.0, %v2793
      %v2795 = vpop.f32.mrb[0].mxu0
      %2796 = vmatprep.mubr.bf16.mxu0 0
      %2797 = vmatmul.mubr.bf16.gmra.mrb[0].mxu0 %v2633
      %v2798 = vpop.f32.mrb[0].mxu0
      %v2799 = vadd.f32 0.0, %v2798
      %v2800 = vpop.f32.mrb[0].mxu0
      %v2801 = vpop.f32.mrb[0].mxu0
      %v2802 = vadd.f32 0.0, %v2801
      %v2803 = vpop.f32.mrb[0].mxu0
      %2804 = vmatprep.mubr.bf16.mxu0 0
      %2805 = vmatmul.mubr.bf16.gmra.mrb[0].mxu0 %v2636
      %v2806 = vpop.f32.mrb[0].mxu0
      %v2807 = vadd.f32 0.0, %v2806
      %v2808 = vpop.f32.mrb[0].mxu0
      %v2809 = vpop.f32.mrb[0].mxu0
      %v2810 = vadd.f32 0.0, %v2809
      %v2811 = vpop.f32.mrb[0].mxu0
      %2812 = vmatprep.mubr.bf16.mxu0 0
      %2813 = vmatmul.mubr.bf16.gmra.mrb[0].mxu0 %v2639
      %v2814 = vpop.f32.mrb[0].mxu0
      %v2815 = vadd.f32 0.0, %v2814
      %v2816 = vpop.f32.mrb[0].mxu0
      %v2817 = vpop.f32.mrb[0].mxu0
      %v2818 = vadd.f32 0.0, %v2817
      %v2819 = vpop.f32.mrb[0].mxu0
      %2820 = vdwg.mxu0
      %v2821 = vadd.f32 %v2382, %v2679
      %v2822 = vadd.f32 %v2383, %v2682
      %v2823 = vadd.f32 %v2384, %v2687
      %v2824 = vadd.f32 %v2385, %v2690
      %v2825 = vadd.f32 %v2386, %v2695
      %v2826 = vadd.f32 %v2387, %v2698
      %v2827 = vadd.f32 %v2388, %v2703
      %v2828 = vadd.f32 %v2389, %v2706
      %v2829 = vadd.f32 %v2390, %v2711
      %v2830 = vadd.f32 %v2391, %v2714
      %v2831 = vadd.f32 %v2392, %v2719
      %v2832 = vadd.f32 %v2393, %v2722
      %v2833 = vadd.f32 %v2394, %v2727
      %v2834 = vadd.f32 %v2395, %v2730
      %v2835 = vadd.f32 %v2396, %v2735
      %v2836 = vadd.f32 %v2397, %v2738
      %v2837 = vadd.f32 %v2398, %v2743
      %v2838 = vadd.f32 %v2399, %v2746
      %v2839 = vadd.f32 %v2400, %v2751
      %v2840 = vadd.f32 %v2401, %v2754
      %v2841 = vadd.f32 %v2402, %v2759
      %v2842 = vadd.f32 %v2403, %v2762
      %v2843 = vadd.f32 %v2404, %v2767
      %v2844 = vadd.f32 %v2405, %v2770
      %v2845 = vadd.f32 %v2406, %v2775
      %v2846 = vadd.f32 %v2407, %v2778
      %v2847 = vadd.f32 %v2408, %v2783
      %v2848 = vadd.f32 %v2409, %v2786
      %v2849 = vadd.f32 %v2410, %v2791
      %v2850 = vadd.f32 %v2411, %v2794
      %v2851 = vadd.f32 %v2412, %v2799
      %v2852 = vadd.f32 %v2413, %v2802
      %v2853 = vadd.f32 %v2414, %v2807
      %v2854 = vadd.f32 %v2415, %v2810
      %v2855 = vadd.f32 %v2416, %v2815
      %v2856 = vadd.f32 %v2417, %v2818
      %v2857 = vld [vmem:[%s164 + $0xa0] sm:$0x7]
      %s2858 = scalar_lea.vmem %s1, 14
      %v2859 = vld [vmem:[%s2858] sm:$0x3]
      %v2861 = vunpack.c.l.b16 %v2857
      %v2862 = vpack.c.b16 %v2861, %v2861
      %vm2863 = vsmask.f32 5376
      %v2865 = vshrl.u32 %v2531, 16
      %v2867 = vrot.slane %v2865, 2
      %v2868 = vshll.u32 %v2531, 16
      %v2870 = vrot.slane %v2868, 3
      %v2871 = vor.u32 %v2867, %v2870
      %v2873 = vshrl.u32 %v2532, 16
      %v2875 = vrot.slane %v2873, 2
      %v2876 = vshll.u32 %v2532, 16
      %v2878 = vrot.slane %v2876, 3
      %v2879 = vor.u32 %v2875, %v2878
      %v2880 = vsel %vm2863, %v2871, %v2879
      %v2882 = vshrl.u32 %v2533, 16
      %v2884 = vrot.slane %v2882, 2
      %v2885 = vshll.u32 %v2533, 16
      %v2887 = vrot.slane %v2885, 3
      %v2888 = vor.u32 %v2884, %v2887
      %v2889 = vsel %vm2863, %v2879, %v2888
      %v2891 = vshrl.u32 %v2534, 16
      %v2893 = vrot.slane %v2891, 2
      %v2894 = vshll.u32 %v2534, 16
      %v2896 = vrot.slane %v2894, 3
      %v2897 = vor.u32 %v2893, %v2896
      %v2898 = vsel %vm2863, %v2888, %v2897
      %v2900 = vshrl.u32 %v2535, 16
      %v2902 = vrot.slane %v2900, 2
      %v2903 = vshll.u32 %v2535, 16
      %v2905 = vrot.slane %v2903, 3
      %v2906 = vor.u32 %v2902, %v2905
      %v2907 = vsel %vm2863, %v2897, %v2906
      %v2909 = vshrl.u32 %v2536, 16
      %v2911 = vrot.slane %v2909, 2
      %v2912 = vshll.u32 %v2536, 16
      %v2914 = vrot.slane %v2912, 3
      %v2915 = vor.u32 %v2911, %v2914
      %v2916 = vsel %vm2863, %v2906, %v2915
      %v2918 = vshrl.u32 %v2537, 16
      %v2920 = vrot.slane %v2918, 2
      %v2921 = vshll.u32 %v2537, 16
      %v2923 = vrot.slane %v2921, 3
      %v2924 = vor.u32 %v2920, %v2923
      %v2925 = vsel %vm2863, %v2915, %v2924
      %v2927 = vshrl.u32 %v2538, 16
      %v2929 = vrot.slane %v2927, 2
      %v2930 = vshll.u32 %v2538, 16
      %v2932 = vrot.slane %v2930, 3
      %v2933 = vor.u32 %v2929, %v2932
      %v2934 = vsel %vm2863, %v2924, %v2933
      %v2936 = vshrl.u32 %v2539, 16
      %v2938 = vrot.slane %v2936, 2
      %v2939 = vshll.u32 %v2539, 16
      %v2941 = vrot.slane %v2939, 3
      %v2942 = vor.u32 %v2938, %v2941
      %v2943 = vsel %vm2863, %v2933, %v2942
      %v2945 = vshrl.u32 %v2540, 16
      %v2947 = vrot.slane %v2945, 2
      %v2948 = vshll.u32 %v2540, 16
      %v2950 = vrot.slane %v2948, 3
      %v2951 = vor.u32 %v2947, %v2950
      %v2952 = vsel %vm2863, %v2942, %v2951
      %v2954 = vshrl.u32 %v2541, 16
      %v2956 = vrot.slane %v2954, 2
      %v2957 = vshll.u32 %v2541, 16
      %v2959 = vrot.slane %v2957, 3
      %v2960 = vor.u32 %v2956, %v2959
      %v2961 = vsel %vm2863, %v2951, %v2960
      %v2963 = vshrl.u32 %v2542, 16
      %v2965 = vrot.slane %v2963, 2
      %v2966 = vshll.u32 %v2542, 16
      %v2968 = vrot.slane %v2966, 3
      %v2969 = vor.u32 %v2965, %v2968
      %v2970 = vsel %vm2863, %v2960, %v2969
      %v2972 = vshrl.u32 %v2543, 16
      %v2974 = vrot.slane %v2972, 2
      %v2975 = vshll.u32 %v2543, 16
      %v2977 = vrot.slane %v2975, 3
      %v2978 = vor.u32 %v2974, %v2977
      %v2979 = vsel %vm2863, %v2969, %v2978
      %v2981 = vshrl.u32 %v2544, 16
      %v2983 = vrot.slane %v2981, 2
      %v2984 = vshll.u32 %v2544, 16
      %v2986 = vrot.slane %v2984, 3
      %v2987 = vor.u32 %v2983, %v2986
      %v2988 = vsel %vm2863, %v2978, %v2987
      %v2990 = vshrl.u32 %v2545, 16
      %v2992 = vrot.slane %v2990, 2
      %v2993 = vshll.u32 %v2545, 16
      %v2995 = vrot.slane %v2993, 3
      %v2996 = vor.u32 %v2992, %v2995
      %v2997 = vsel %vm2863, %v2987, %v2996
      %v2999 = vshrl.u32 %v2546, 16
      %v3001 = vrot.slane %v2999, 2
      %v3002 = vshll.u32 %v2546, 16
      %v3004 = vrot.slane %v3002, 3
      %v3005 = vor.u32 %v3001, %v3004
      %v3006 = vsel %vm2863, %v2996, %v3005
      %v3008 = vshrl.u32 %v2547, 16
      %v3010 = vrot.slane %v3008, 2
      %v3011 = vshll.u32 %v2547, 16
      %v3013 = vrot.slane %v3011, 3
      %v3014 = vor.u32 %v3010, %v3013
      %v3015 = vsel %vm2863, %v3005, %v3014
      %v3017 = vshrl.u32 %v2548, 16
      %v3019 = vrot.slane %v3017, 2
      %v3020 = vshll.u32 %v2548, 16
      %v3022 = vrot.slane %v3020, 3
      %v3023 = vor.u32 %v3019, %v3022
      %v3024 = vsel %vm2863, %v3014, %v3023
      %v3026 = vshrl.u32 %v2862, 16
      %v3028 = vrot.slane %v3026, 2
      %v3029 = vshll.u32 %v2862, 16
      %v3031 = vrot.slane %v3029, 3
      %v3032 = vor.u32 %v3028, %v3031
      %v3033 = vsel %vm2863, %v3023, %v3032
      %v3035 = vsel %vm452, %v2880, 0
      %v3038 = vsel %vm452, %v2889, 0
      %v3041 = vsel %vm452, %v2898, 0
      %v3044 = vsel %vm452, %v2907, 0
      %v3047 = vsel %vm452, %v2916, 0
      %v3050 = vsel %vm452, %v2925, 0
      %v3053 = vsel %vm452, %v2934, 0
      %v3056 = vsel %vm452, %v2943, 0
      %v3059 = vsel %vm452, %v2952, 0
      %v3062 = vsel %vm452, %v2961, 0
      %v3065 = vsel %vm452, %v2970, 0
      %v3068 = vsel %vm452, %v2979, 0
      %v3071 = vsel %vm452, %v2988, 0
      %v3074 = vsel %vm452, %v2997, 0
      %v3077 = vsel %vm452, %v3006, 0
      %v3080 = vsel %vm452, %v3015, 0
      %v3083 = vsel %vm452, %v3024, 0
      %v3086 = vsel %vm452, %v3033, 0
      %v3089 = vsel %vm507, %v2859, 0
      %3091 = vmatprep.subr.bf16.mxu0 0
      %3092 = vmatpush1.bf16.msra.mxu0 %v3089
      %3093 = vmatprep.subr.bf16.mxu0 0
      %3094 = vmatpush1.bf16.msra.mxu0 0
      %3095 = vmatprep.subr.bf16.mxu0 0
      %3096 = vmatpush1.bf16.msra.mxu0 0
      %3097 = vmatprep.subr.bf16.mxu0 0
      %3098 = vmatpush1.bf16.msra.mxu0 0
      %3099 = vmatprep.subr.bf16.mxu0 0
      %3100 = vmatpush1.bf16.msra.mxu0 0
      %3101 = vmatprep.subr.bf16.mxu0 0
      %3102 = vmatpush1.bf16.msra.mxu0 0
      %3103 = vmatprep.subr.bf16.mxu0 0
      %3104 = vmatpush1.bf16.msra.mxu0 0
      %3105 = vmatprep.subr.bf16.mxu0 0
      %3106 = vmatpush1.bf16.msra.mxu0 0
      %3107 = vmatprep.subr.bf16.mxu0 0
      %3108 = vmatpush1.bf16.msra.mxu0 0
      %3109 = vmatprep.subr.bf16.mxu0 0
      %3110 = vmatpush1.bf16.msra.mxu0 0
      %3111 = vmatprep.subr.bf16.mxu0 0
      %3112 = vmatpush1.bf16.msra.mxu0 0
      %3113 = vmatprep.subr.bf16.mxu0 0
      %3114 = vmatpush1.bf16.msra.mxu0 0
      %3115 = vmatprep.subr.bf16.mxu0 0
      %3116 = vmatpush1.bf16.msra.mxu0 0
      %3117 = vmatprep.subr.bf16.mxu0 0
      %3118 = vmatpush1.bf16.msra.mxu0 0
      %3119 = vmatprep.subr.bf16.mxu0 0
      %3120 = vmatpush1.bf16.msra.mxu0 0
      %3121 = vmatprep.subr.bf16.mxu0 0
      %3122 = vmatpush1.bf16.msra.mxu0 0
      %3123 = vmatprep.mubr.bf16.mxu0 0
      %3124 = vmatmul.mubr.bf16.gmra.mrb[0].mxu0 %v3035
      %v3125 = vpop.f32.mrb[0].mxu0
      %v3126 = vadd.f32 0.0, %v3125
      %v3127 = vpop.f32.mrb[0].mxu0
      %v3128 = vpop.f32.mrb[0].mxu0
      %v3129 = vadd.f32 0.0, %v3128
      %v3130 = vpop.f32.mrb[0].mxu0
      %3131 = vmatprep.mubr.bf16.mxu0 0
      %3132 = vmatmul.mubr.bf16.gmra.mrb[0].mxu0 %v3038
      %v3133 = vpop.f32.mrb[0].mxu0
      %v3134 = vadd.f32 0.0, %v3133
      %v3135 = vpop.f32.mrb[0].mxu0
      %v3136 = vpop.f32.mrb[0].mxu0
      %v3137 = vadd.f32 0.0, %v3136
      %v3138 = vpop.f32.mrb[0].mxu0
      %3139 = vmatprep.mubr.bf16.mxu0 0
      %3140 = vmatmul.mubr.bf16.gmra.mrb[0].mxu0 %v3041
      %v3141 = vpop.f32.mrb[0].mxu0
      %v3142 = vadd.f32 0.0, %v3141
      %v3143 = vpop.f32.mrb[0].mxu0
      %v3144 = vpop.f32.mrb[0].mxu0
      %v3145 = vadd.f32 0.0, %v3144
      %v3146 = vpop.f32.mrb[0].mxu0
      %3147 = vmatprep.mubr.bf16.mxu0 0
      %3148 = vmatmul.mubr.bf16.gmra.mrb[0].mxu0 %v3044
      %v3149 = vpop.f32.mrb[0].mxu0
      %v3150 = vadd.f32 0.0, %v3149
      %v3151 = vpop.f32.mrb[0].mxu0
      %v3152 = vpop.f32.mrb[0].mxu0
      %v3153 = vadd.f32 0.0, %v3152
      %v3154 = vpop.f32.mrb[0].mxu0
      %3155 = vmatprep.mubr.bf16.mxu0 0
      %3156 = vmatmul.mubr.bf16.gmra.mrb[0].mxu0 %v3047
      %v3157 = vpop.f32.mrb[0].mxu0
      %v3158 = vadd.f32 0.0, %v3157
      %v3159 = vpop.f32.mrb[0].mxu0
      %v3160 = vpop.f32.mrb[0].mxu0
      %v3161 = vadd.f32 0.0, %v3160
      %v3162 = vpop.f32.mrb[0].mxu0
      %3163 = vmatprep.mubr.bf16.mxu0 0
      %3164 = vmatmul.mubr.bf16.gmra.mrb[0].mxu0 %v3050
      %v3165 = vpop.f32.mrb[0].mxu0
      %v3166 = vadd.f32 0.0, %v3165
      %v3167 = vpop.f32.mrb[0].mxu0
      %v3168 = vpop.f32.mrb[0].mxu0
      %v3169 = vadd.f32 0.0, %v3168
      %v3170 = vpop.f32.mrb[0].mxu0
      %3171 = vmatprep.mubr.bf16.mxu0 0
      %3172 = vmatmul.mubr.bf16.gmra.mrb[0].mxu0 %v3053
      %v3173 = vpop.f32.mrb[0].mxu0
      %v3174 = vadd.f32 0.0, %v3173
      %v3175 = vpop.f32.mrb[0].mxu0
      %v3176 = vpop.f32.mrb[0].mxu0
      %v3177 = vadd.f32 0.0, %v3176
      %v3178 = vpop.f32.mrb[0].mxu0
      %3179 = vmatprep.mubr.bf16.mxu0 0
      %3180 = vmatmul.mubr.bf16.gmra.mrb[0].mxu0 %v3056
      %v3181 = vpop.f32.mrb[0].mxu0
      %v3182 = vadd.f32 0.0, %v3181
      %v3183 = vpop.f32.mrb[0].mxu0
      %v3184 = vpop.f32.mrb[0].mxu0
      %v3185 = vadd.f32 0.0, %v3184
      %v3186 = vpop.f32.mrb[0].mxu0
      %3187 = vmatprep.mubr.bf16.mxu0 0
      %3188 = vmatmul.mubr.bf16.gmra.mrb[0].mxu0 %v3059
      %v3189 = vpop.f32.mrb[0].mxu0
      %v3190 = vadd.f32 0.0, %v3189
      %v3191 = vpop.f32.mrb[0].mxu0
      %v3192 = vpop.f32.mrb[0].mxu0
      %v3193 = vadd.f32 0.0, %v3192
      %v3194 = vpop.f32.mrb[0].mxu0
      %3195 = vmatprep.mubr.bf16.mxu0 0
      %3196 = vmatmul.mubr.bf16.gmra.mrb[0].mxu0 %v3062
      %v3197 = vpop.f32.mrb[0].mxu0
      %v3198 = vadd.f32 0.0, %v3197
      %v3199 = vpop.f32.mrb[0].mxu0
      %v3200 = vpop.f32.mrb[0].mxu0
      %v3201 = vadd.f32 0.0, %v3200
      %v3202 = vpop.f32.mrb[0].mxu0
      %3203 = vmatprep.mubr.bf16.mxu0 0
      %3204 = vmatmul.mubr.bf16.gmra.mrb[0].mxu0 %v3065
      %v3205 = vpop.f32.mrb[0].mxu0
      %v3206 = vadd.f32 0.0, %v3205
      %v3207 = vpop.f32.mrb[0].mxu0
      %v3208 = vpop.f32.mrb[0].mxu0
      %v3209 = vadd.f32 0.0, %v3208
      %v3210 = vpop.f32.mrb[0].mxu0
      %3211 = vmatprep.mubr.bf16.mxu0 0
      %3212 = vmatmul.mubr.bf16.gmra.mrb[0].mxu0 %v3068
      %v3213 = vpop.f32.mrb[0].mxu0
      %v3214 = vadd.f32 0.0, %v3213
      %v3215 = vpop.f32.mrb[0].mxu0
      %v3216 = vpop.f32.mrb[0].mxu0
      %v3217 = vadd.f32 0.0, %v3216
      %v3218 = vpop.f32.mrb[0].mxu0
      %3219 = vmatprep.mubr.bf16.mxu0 0
      %3220 = vmatmul.mubr.bf16.gmra.mrb[0].mxu0 %v3071
      %v3221 = vpop.f32.mrb[0].mxu0
      %v3222 = vadd.f32 0.0, %v3221
      %v3223 = vpop.f32.mrb[0].mxu0
      %v3224 = vpop.f32.mrb[0].mxu0
      %v3225 = vadd.f32 0.0, %v3224
      %v3226 = vpop.f32.mrb[0].mxu0
      %3227 = vmatprep.mubr.bf16.mxu0 0
      %3228 = vmatmul.mubr.bf16.gmra.mrb[0].mxu0 %v3074
      %v3229 = vpop.f32.mrb[0].mxu0
      %v3230 = vadd.f32 0.0, %v3229
      %v3231 = vpop.f32.mrb[0].mxu0
      %v3232 = vpop.f32.mrb[0].mxu0
      %v3233 = vadd.f32 0.0, %v3232
      %v3234 = vpop.f32.mrb[0].mxu0
      %3235 = vmatprep.mubr.bf16.mxu0 0
      %3236 = vmatmul.mubr.bf16.gmra.mrb[0].mxu0 %v3077
      %v3237 = vpop.f32.mrb[0].mxu0
      %v3238 = vadd.f32 0.0, %v3237
      %v3239 = vpop.f32.mrb[0].mxu0
      %v3240 = vpop.f32.mrb[0].mxu0
      %v3241 = vadd.f32 0.0, %v3240
      %v3242 = vpop.f32.mrb[0].mxu0
      %3243 = vmatprep.mubr.bf16.mxu0 0
      %3244 = vmatmul.mubr.bf16.gmra.mrb[0].mxu0 %v3080
      %v3245 = vpop.f32.mrb[0].mxu0
      %v3246 = vadd.f32 0.0, %v3245
      %v3247 = vpop.f32.mrb[0].mxu0
      %v3248 = vpop.f32.mrb[0].mxu0
      %v3249 = vadd.f32 0.0, %v3248
      %v3250 = vpop.f32.mrb[0].mxu0
      %3251 = vmatprep.mubr.bf16.mxu0 0
      %3252 = vmatmul.mubr.bf16.gmra.mrb[0].mxu0 %v3083
      %v3253 = vpop.f32.mrb[0].mxu0
      %v3254 = vadd.f32 0.0, %v3253
      %v3255 = vpop.f32.mrb[0].mxu0
      %v3256 = vpop.f32.mrb[0].mxu0
      %v3257 = vadd.f32 0.0, %v3256
      %v3258 = vpop.f32.mrb[0].mxu0
      %3259 = vmatprep.mubr.bf16.mxu0 0
      %3260 = vmatmul.mubr.bf16.gmra.mrb[0].mxu0 %v3086
      %v3261 = vpop.f32.mrb[0].mxu0
      %v3262 = vadd.f32 0.0, %v3261
      %v3263 = vpop.f32.mrb[0].mxu0
      %v3264 = vpop.f32.mrb[0].mxu0
      %v3265 = vadd.f32 0.0, %v3264
      %v3266 = vpop.f32.mrb[0].mxu0
      %3267 = vdwg.mxu0
      %v3268 = vadd.f32 %v2821, %v3126
      %v3269 = vadd.f32 %v2822, %v3129
      %v3270 = vadd.f32 %v2823, %v3134
      %v3271 = vadd.f32 %v2824, %v3137
      %v3272 = vadd.f32 %v2825, %v3142
      %v3273 = vadd.f32 %v2826, %v3145
      %v3274 = vadd.f32 %v2827, %v3150
      %v3275 = vadd.f32 %v2828, %v3153
      %v3276 = vadd.f32 %v2829, %v3158
      %v3277 = vadd.f32 %v2830, %v3161
      %v3278 = vadd.f32 %v2831, %v3166
      %v3279 = vadd.f32 %v2832, %v3169
      %v3280 = vadd.f32 %v2833, %v3174
      %v3281 = vadd.f32 %v2834, %v3177
      %v3282 = vadd.f32 %v2835, %v3182
      %v3283 = vadd.f32 %v2836, %v3185
      %v3284 = vadd.f32 %v2837, %v3190
      %v3285 = vadd.f32 %v2838, %v3193
      %v3286 = vadd.f32 %v2839, %v3198
      %v3287 = vadd.f32 %v2840, %v3201
      %v3288 = vadd.f32 %v2841, %v3206
      %v3289 = vadd.f32 %v2842, %v3209
      %v3290 = vadd.f32 %v2843, %v3214
      %v3291 = vadd.f32 %v2844, %v3217
      %v3292 = vadd.f32 %v2845, %v3222
      %v3293 = vadd.f32 %v2846, %v3225
      %v3294 = vadd.f32 %v2847, %v3230
      %v3295 = vadd.f32 %v2848, %v3233
      %v3296 = vadd.f32 %v2849, %v3238
      %v3297 = vadd.f32 %v2850, %v3241
      %v3298 = vadd.f32 %v2851, %v3246
      %v3299 = vadd.f32 %v2852, %v3249
      %v3300 = vadd.f32 %v2853, %v3254
      %v3301 = vadd.f32 %v2854, %v3257
      %v3302 = vadd.f32 %v2855, %v3262
      %v3303 = vadd.f32 %v2856, %v3265
      %v3304 = vld [vmem:[%s164 + $0x10] sm:$0x8]
      %s3305 = scalar_lea.vmem %s1, 16
      %v3306 = vld [vmem:[%s3305] sm:$0x3]
      %v3308 = vunpack.c.l.b16 %v3304
      %v3309 = vpack.c.b16 %v2495, %v3308
      %vm3310 = vcmask 1044480
      %v3311 = vrot.slane %v3309, 3
      %v3312 = vrot.slane %v2532, 3
      %v3313 = vsel %vm3310, %v3311, %v3312
      %v3314 = vrot.slane %v2533, 3
      %v3315 = vsel %vm3310, %v3312, %v3314
      %v3316 = vrot.slane %v2534, 3
      %v3317 = vsel %vm3310, %v3314, %v3316
      %v3318 = vrot.slane %v2535, 3
      %v3319 = vsel %vm3310, %v3316, %v3318
      %v3320 = vrot.slane %v2536, 3
      %v3321 = vsel %vm3310, %v3318, %v3320
      %v3322 = vrot.slane %v2537, 3
      %v3323 = vsel %vm3310, %v3320, %v3322
      %v3324 = vrot.slane %v2538, 3
      %v3325 = vsel %vm3310, %v3322, %v3324
      %v3326 = vrot.slane %v2539, 3
      %v3327 = vsel %vm3310, %v3324, %v3326
      %v3328 = vrot.slane %v2540, 3
      %v3329 = vsel %vm3310, %v3326, %v3328
      %v3330 = vrot.slane %v2541, 3
      %v3331 = vsel %vm3310, %v3328, %v3330
      %v3332 = vrot.slane %v2542, 3
      %v3333 = vsel %vm3310, %v3330, %v3332
      %v3334 = vrot.slane %v2543, 3
      %v3335 = vsel %vm3310, %v3332, %v3334
      %v3336 = vrot.slane %v2544, 3
      %v3337 = vsel %vm3310, %v3334, %v3336
      %v3338 = vrot.slane %v2545, 3
      %v3339 = vsel %vm3310, %v3336, %v3338
      %v3340 = vrot.slane %v2546, 3
      %v3341 = vsel %vm3310, %v3338, %v3340
      %v3342 = vrot.slane %v2547, 3
      %v3343 = vsel %vm3310, %v3340, %v3342
      %v3344 = vrot.slane %v2548, 3
      %v3345 = vsel %vm3310, %v3342, %v3344
      %v3346 = vrot.slane %v2862, 3
      %v3347 = vsel %vm3310, %v3344, %v3346
      %v3349 = vsel %vm452, %v3313, 0
      %v3352 = vsel %vm452, %v3315, 0
      %v3355 = vsel %vm452, %v3317, 0
      %v3358 = vsel %vm452, %v3319, 0
      %v3361 = vsel %vm452, %v3321, 0
      %v3364 = vsel %vm452, %v3323, 0
      %v3367 = vsel %vm452, %v3325, 0
      %v3370 = vsel %vm452, %v3327, 0
      %v3373 = vsel %vm452, %v3329, 0
      %v3376 = vsel %vm452, %v3331, 0
      %v3379 = vsel %vm452, %v3333, 0
      %v3382 = vsel %vm452, %v3335, 0
      %v3385 = vsel %vm452, %v3337, 0
      %v3388 = vsel %vm452, %v3339, 0
      %v3391 = vsel %vm452, %v3341, 0
      %v3394 = vsel %vm452, %v3343, 0
      %v3397 = vsel %vm452, %v3345, 0
      %v3400 = vsel %vm452, %v3347, 0
      %v3403 = vsel %vm507, %v3306, 0
      %3405 = vmatprep.subr.bf16.mxu0 0
      %3406 = vmatpush1.bf16.msra.mxu0 %v3403
      %3407 = vmatprep.subr.bf16.mxu0 0
      %3408 = vmatpush1.bf16.msra.mxu0 0
      %3409 = vmatprep.subr.bf16.mxu0 0
      %3410 = vmatpush1.bf16.msra.mxu0 0
      %3411 = vmatprep.subr.bf16.mxu0 0
      %3412 = vmatpush1.bf16.msra.mxu0 0
      %3413 = vmatprep.subr.bf16.mxu0 0
      %3414 = vmatpush1.bf16.msra.mxu0 0
      %3415 = vmatprep.subr.bf16.mxu0 0
      %3416 = vmatpush1.bf16.msra.mxu0 0
      %3417 = vmatprep.subr.bf16.mxu0 0
      %3418 = vmatpush1.bf16.msra.mxu0 0
      %3419 = vmatprep.subr.bf16.mxu0 0
      %3420 = vmatpush1.bf16.msra.mxu0 0
      %3421 = vmatprep.subr.bf16.mxu0 0
      %3422 = vmatpush1.bf16.msra.mxu0 0
      %3423 = vmatprep.subr.bf16.mxu0 0
      %3424 = vmatpush1.bf16.msra.mxu0 0
      %3425 = vmatprep.subr.bf16.mxu0 0
      %3426 = vmatpush1.bf16.msra.mxu0 0
      %3427 = vmatprep.subr.bf16.mxu0 0
      %3428 = vmatpush1.bf16.msra.mxu0 0
      %3429 = vmatprep.subr.bf16.mxu0 0
      %3430 = vmatpush1.bf16.msra.mxu0 0
      %3431 = vmatprep.subr.bf16.mxu0 0
      %3432 = vmatpush1.bf16.msra.mxu0 0
      %3433 = vmatprep.subr.bf16.mxu0 0
      %3434 = vmatpush1.bf16.msra.mxu0 0
      %3435 = vmatprep.subr.bf16.mxu0 0
      %3436 = vmatpush1.bf16.msra.mxu0 0
      %3437 = vmatprep.mubr.bf16.mxu0 0
      %3438 = vmatmul.mubr.bf16.gmra.mrb[0].mxu0 %v3349
      %v3439 = vpop.f32.mrb[0].mxu0
      %v3440 = vadd.f32 0.0, %v3439
      %v3441 = vpop.f32.mrb[0].mxu0
      %v3442 = vpop.f32.mrb[0].mxu0
      %v3443 = vadd.f32 0.0, %v3442
      %v3444 = vpop.f32.mrb[0].mxu0
      %3445 = vmatprep.mubr.bf16.mxu0 0
      %3446 = vmatmul.mubr.bf16.gmra.mrb[0].mxu0 %v3352
      %v3447 = vpop.f32.mrb[0].mxu0
      %v3448 = vadd.f32 0.0, %v3447
      %v3449 = vpop.f32.mrb[0].mxu0
      %v3450 = vpop.f32.mrb[0].mxu0
      %v3451 = vadd.f32 0.0, %v3450
      %v3452 = vpop.f32.mrb[0].mxu0
      %3453 = vmatprep.mubr.bf16.mxu0 0
      %3454 = vmatmul.mubr.bf16.gmra.mrb[0].mxu0 %v3355
      %v3455 = vpop.f32.mrb[0].mxu0
      %v3456 = vadd.f32 0.0, %v3455
      %v3457 = vpop.f32.mrb[0].mxu0
      %v3458 = vpop.f32.mrb[0].mxu0
      %v3459 = vadd.f32 0.0, %v3458
      %v3460 = vpop.f32.mrb[0].mxu0
      %3461 = vmatprep.mubr.bf16.mxu0 0
      %3462 = vmatmul.mubr.bf16.gmra.mrb[0].mxu0 %v3358
      %v3463 = vpop.f32.mrb[0].mxu0
      %v3464 = vadd.f32 0.0, %v3463
      %v3465 = vpop.f32.mrb[0].mxu0
      %v3466 = vpop.f32.mrb[0].mxu0
      %v3467 = vadd.f32 0.0, %v3466
      %v3468 = vpop.f32.mrb[0].mxu0
      %3469 = vmatprep.mubr.bf16.mxu0 0
      %3470 = vmatmul.mubr.bf16.gmra.mrb[0].mxu0 %v3361
      %v3471 = vpop.f32.mrb[0].mxu0
      %v3472 = vadd.f32 0.0, %v3471
      %v3473 = vpop.f32.mrb[0].mxu0
      %v3474 = vpop.f32.mrb[0].mxu0
      %v3475 = vadd.f32 0.0, %v3474
      %v3476 = vpop.f32.mrb[0].mxu0
      %3477 = vmatprep.mubr.bf16.mxu0 0
      %3478 = vmatmul.mubr.bf16.gmra.mrb[0].mxu0 %v3364
      %v3479 = vpop.f32.mrb[0].mxu0
      %v3480 = vadd.f32 0.0, %v3479
      %v3481 = vpop.f32.mrb[0].mxu0
      %v3482 = vpop.f32.mrb[0].mxu0
      %v3483 = vadd.f32 0.0, %v3482
      %v3484 = vpop.f32.mrb[0].mxu0
      %3485 = vmatprep.mubr.bf16.mxu0 0
      %3486 = vmatmul.mubr.bf16.gmra.mrb[0].mxu0 %v3367
      %v3487 = vpop.f32.mrb[0].mxu0
      %v3488 = vadd.f32 0.0, %v3487
      %v3489 = vpop.f32.mrb[0].mxu0
      %v3490 = vpop.f32.mrb[0].mxu0
      %v3491 = vadd.f32 0.0, %v3490
      %v3492 = vpop.f32.mrb[0].mxu0
      %3493 = vmatprep.mubr.bf16.mxu0 0
      %3494 = vmatmul.mubr.bf16.gmra.mrb[0].mxu0 %v3370
      %v3495 = vpop.f32.mrb[0].mxu0
      %v3496 = vadd.f32 0.0, %v3495
      %v3497 = vpop.f32.mrb[0].mxu0
      %v3498 = vpop.f32.mrb[0].mxu0
      %v3499 = vadd.f32 0.0, %v3498
      %v3500 = vpop.f32.mrb[0].mxu0
      %3501 = vmatprep.mubr.bf16.mxu0 0
      %3502 = vmatmul.mubr.bf16.gmra.mrb[0].mxu0 %v3373
      %v3503 = vpop.f32.mrb[0].mxu0
      %v3504 = vadd.f32 0.0, %v3503
      %v3505 = vpop.f32.mrb[0].mxu0
      %v3506 = vpop.f32.mrb[0].mxu0
      %v3507 = vadd.f32 0.0, %v3506
      %v3508 = vpop.f32.mrb[0].mxu0
      %3509 = vmatprep.mubr.bf16.mxu0 0
      %3510 = vmatmul.mubr.bf16.gmra.mrb[0].mxu0 %v3376
      %v3511 = vpop.f32.mrb[0].mxu0
      %v3512 = vadd.f32 0.0, %v3511
      %v3513 = vpop.f32.mrb[0].mxu0
      %v3514 = vpop.f32.mrb[0].mxu0
      %v3515 = vadd.f32 0.0, %v3514
      %v3516 = vpop.f32.mrb[0].mxu0
      %3517 = vmatprep.mubr.bf16.mxu0 0
      %3518 = vmatmul.mubr.bf16.gmra.mrb[0].mxu0 %v3379
      %v3519 = vpop.f32.mrb[0].mxu0
      %v3520 = vadd.f32 0.0, %v3519
      %v3521 = vpop.f32.mrb[0].mxu0
      %v3522 = vpop.f32.mrb[0].mxu0
      %v3523 = vadd.f32 0.0, %v3522
      %v3524 = vpop.f32.mrb[0].mxu0
      %3525 = vmatprep.mubr.bf16.mxu0 0
      %3526 = vmatmul.mubr.bf16.gmra.mrb[0].mxu0 %v3382
      %v3527 = vpop.f32.mrb[0].mxu0
      %v3528 = vadd.f32 0.0, %v3527
      %v3529 = vpop.f32.mrb[0].mxu0
      %v3530 = vpop.f32.mrb[0].mxu0
      %v3531 = vadd.f32 0.0, %v3530
      %v3532 = vpop.f32.mrb[0].mxu0
      %3533 = vmatprep.mubr.bf16.mxu0 0
      %3534 = vmatmul.mubr.bf16.gmra.mrb[0].mxu0 %v3385
      %v3535 = vpop.f32.mrb[0].mxu0
      %v3536 = vadd.f32 0.0, %v3535
      %v3537 = vpop.f32.mrb[0].mxu0
      %v3538 = vpop.f32.mrb[0].mxu0
      %v3539 = vadd.f32 0.0, %v3538
      %v3540 = vpop.f32.mrb[0].mxu0
      %3541 = vmatprep.mubr.bf16.mxu0 0
      %3542 = vmatmul.mubr.bf16.gmra.mrb[0].mxu0 %v3388
      %v3543 = vpop.f32.mrb[0].mxu0
      %v3544 = vadd.f32 0.0, %v3543
      %v3545 = vpop.f32.mrb[0].mxu0
      %v3546 = vpop.f32.mrb[0].mxu0
      %v3547 = vadd.f32 0.0, %v3546
      %v3548 = vpop.f32.mrb[0].mxu0
      %3549 = vmatprep.mubr.bf16.mxu0 0
      %3550 = vmatmul.mubr.bf16.gmra.mrb[0].mxu0 %v3391
      %v3551 = vpop.f32.mrb[0].mxu0
      %v3552 = vadd.f32 0.0, %v3551
      %v3553 = vpop.f32.mrb[0].mxu0
      %v3554 = vpop.f32.mrb[0].mxu0
      %v3555 = vadd.f32 0.0, %v3554
      %v3556 = vpop.f32.mrb[0].mxu0
      %3557 = vmatprep.mubr.bf16.mxu0 0
      %3558 = vmatmul.mubr.bf16.gmra.mrb[0].mxu0 %v3394
      %v3559 = vpop.f32.mrb[0].mxu0
      %v3560 = vadd.f32 0.0, %v3559
      %v3561 = vpop.f32.mrb[0].mxu0
      %v3562 = vpop.f32.mrb[0].mxu0
      %v3563 = vadd.f32 0.0, %v3562
      %v3564 = vpop.f32.mrb[0].mxu0
      %3565 = vmatprep.mubr.bf16.mxu0 0
      %3566 = vmatmul.mubr.bf16.gmra.mrb[0].mxu0 %v3397
      %v3567 = vpop.f32.mrb[0].mxu0
      %v3568 = vadd.f32 0.0, %v3567
      %v3569 = vpop.f32.mrb[0].mxu0
      %v3570 = vpop.f32.mrb[0].mxu0
      %v3571 = vadd.f32 0.0, %v3570
      %v3572 = vpop.f32.mrb[0].mxu0
      %3573 = vmatprep.mubr.bf16.mxu0 0
      %3574 = vmatmul.mubr.bf16.gmra.mrb[0].mxu0 %v3400
      %v3575 = vpop.f32.mrb[0].mxu0
      %v3576 = vadd.f32 0.0, %v3575
      %v3577 = vpop.f32.mrb[0].mxu0
      %v3578 = vpop.f32.mrb[0].mxu0
      %v3579 = vadd.f32 0.0, %v3578
      %v3580 = vpop.f32.mrb[0].mxu0
      %3581 = vdwg.mxu0
      %v3582 = vadd.f32 %v3268, %v3440
      %v3583 = vadd.f32 %v3269, %v3443
      %v3584 = vadd.f32 %v3270, %v3448
      %v3585 = vadd.f32 %v3271, %v3451
      %v3586 = vadd.f32 %v3272, %v3456
      %v3587 = vadd.f32 %v3273, %v3459
      %v3588 = vadd.f32 %v3274, %v3464
      %v3589 = vadd.f32 %v3275, %v3467
      %v3590 = vadd.f32 %v3276, %v3472
      %v3591 = vadd.f32 %v3277, %v3475
      %v3592 = vadd.f32 %v3278, %v3480
      %v3593 = vadd.f32 %v3279, %v3483
      %v3594 = vadd.f32 %v3280, %v3488
      %v3595 = vadd.f32 %v3281, %v3491
      %v3596 = vadd.f32 %v3282, %v3496
      %v3597 = vadd.f32 %v3283, %v3499
      %v3598 = vadd.f32 %v3284, %v3504
      %v3599 = vadd.f32 %v3285, %v3507
      %v3600 = vadd.f32 %v3286, %v3512
      %v3601 = vadd.f32 %v3287, %v3515
      %v3602 = vadd.f32 %v3288, %v3520
      %v3603 = vadd.f32 %v3289, %v3523
      %v3604 = vadd.f32 %v3290, %v3528
      %v3605 = vadd.f32 %v3291, %v3531
      %v3606 = vadd.f32 %v3292, %v3536
      %v3607 = vadd.f32 %v3293, %v3539
      %v3608 = vadd.f32 %v3294, %v3544
      %v3609 = vadd.f32 %v3295, %v3547
      %v3610 = vadd.f32 %v3296, %v3552
      %v3611 = vadd.f32 %v3297, %v3555
      %v3612 = vadd.f32 %v3298, %v3560
      %v3613 = vadd.f32 %v3299, %v3563
      %v3614 = vadd.f32 %v3300, %v3568
      %v3615 = vadd.f32 %v3301, %v3571
      %v3616 = vadd.f32 %v3302, %v3576
      %v3617 = vadd.f32 %v3303, %v3579
      %v3618 = vld [vmem:[%s2] sm:$0xff]
      %v3619 = vld [vmem:[%s2 + $0x8] sm:$0xff]
      %v3620 = vld [vmem:[%s2 + $0x10] sm:$0xff]
      %v3621 = vld [vmem:[%s2 + $0x18] sm:$0xff]
      %v3622 = vld [vmem:[%s2 + $0x20] sm:$0xff]
      %v3623 = vld [vmem:[%s2 + $0x28] sm:$0xff]
      %v3624 = vld [vmem:[%s2 + $0x30] sm:$0xff]
      %v3625 = vld [vmem:[%s2 + $0x38] sm:$0xff]
      %v3626 = vld [vmem:[%s2 + $0x40] sm:$0xff]
      %v3627 = vld [vmem:[%s2 + $0x48] sm:$0xff]
      %v3628 = vld [vmem:[%s2 + $0x50] sm:$0xff]
      %v3629 = vld [vmem:[%s2 + $0x58] sm:$0xff]
      %v3630 = vld [vmem:[%s2 + $0x60] sm:$0xff]
      %v3631 = vld [vmem:[%s2 + $0x68] sm:$0xff]
      %v3632 = vld [vmem:[%s2 + $0x70] sm:$0xff]
      %v3633 = vld [vmem:[%s2 + $0x78] sm:$0xff]
      %v3634 = vld [vmem:[%s2 + $0x80] sm:$0xff]
      %v3635 = vld [vmem:[%s2 + $0x88] sm:$0xff]
      %v3636 = vld [vmem:[%s2 + $0x90] sm:$0xff]
      %v3637 = vld [vmem:[%s2 + $0x98] sm:$0xff]
      %v3638 = vld [vmem:[%s2 + $0xa0] sm:$0xff]
      %v3639 = vld [vmem:[%s2 + $0xa8] sm:$0xff]
      %v3640 = vld [vmem:[%s2 + $0xb0] sm:$0xff]
      %v3641 = vld [vmem:[%s2 + $0xb8] sm:$0xff]
      %v3642 = vld [vmem:[%s2 + $0xc0] sm:$0xff]
      %v3643 = vld [vmem:[%s2 + $0xc8] sm:$0xff]
      %v3644 = vld [vmem:[%s2 + $0xd0] sm:$0xff]
      %v3645 = vld [vmem:[%s2 + $0xd8] sm:$0xff]
      %v3646 = vld [vmem:[%s2 + $0xe0] sm:$0xff]
      %v3647 = vld [vmem:[%s2 + $0xe8] sm:$0xff]
      %v3648 = vld [vmem:[%s2 + $0xf0] sm:$0xff]
      %v3649 = vld [vmem:[%s2 + $0xf8] sm:$0xff]
      %v3650 = vld [vmem:[%s2 + $0x100] sm:$0xff]
      %v3651 = vld [vmem:[%s2 + $0x108] sm:$0xff]
      %v3652 = vld [vmem:[%s2 + $0x110] sm:$0xff]
      %v3653 = vld [vmem:[%s2 + $0x118] sm:$0xff]
      %3655 = vset.pattern.permute.xlu0 0
      %3656 = vperm.xlu0 %3655, %v3618
      %v3657 = vpop.permute.xlu0 %3656
      %3660 = vset.pattern.permute.xlu0 0
      %3661 = vperm.xlu0 %3660, %v3619
      %v3662 = vpop.permute.xlu0 %3661
      %3665 = vset.pattern.permute.xlu0 0
      %3666 = vperm.xlu0 %3665, %v3620
      %v3667 = vpop.permute.xlu0 %3666
      %3670 = vset.pattern.permute.xlu0 0
      %3671 = vperm.xlu0 %3670, %v3621
      %v3672 = vpop.permute.xlu0 %3671
      %3675 = vset.pattern.permute.xlu0 0
      %3676 = vperm.xlu0 %3675, %v3622
      %v3677 = vpop.permute.xlu0 %3676
      %3680 = vset.pattern.permute.xlu0 0
      %3681 = vperm.xlu0 %3680, %v3623
      %v3682 = vpop.permute.xlu0 %3681
      %3685 = vset.pattern.permute.xlu0 0
      %3686 = vperm.xlu0 %3685, %v3624
      %v3687 = vpop.permute.xlu0 %3686
      %3690 = vset.pattern.permute.xlu0 0
      %3691 = vperm.xlu0 %3690, %v3625
      %v3692 = vpop.permute.xlu0 %3691
      %3695 = vset.pattern.permute.xlu0 0
      %3696 = vperm.xlu0 %3695, %v3626
      %v3697 = vpop.permute.xlu0 %3696
      %3700 = vset.pattern.permute.xlu0 0
      %3701 = vperm.xlu0 %3700, %v3627
      %v3702 = vpop.permute.xlu0 %3701
      %3705 = vset.pattern.permute.xlu0 0
      %3706 = vperm.xlu0 %3705, %v3628
      %v3707 = vpop.permute.xlu0 %3706
      %3710 = vset.pattern.permute.xlu0 0
      %3711 = vperm.xlu0 %3710, %v3629
      %v3712 = vpop.permute.xlu0 %3711
      %3715 = vset.pattern.permute.xlu0 0
      %3716 = vperm.xlu0 %3715, %v3630
      %v3717 = vpop.permute.xlu0 %3716
      %3720 = vset.pattern.permute.xlu0 0
      %3721 = vperm.xlu0 %3720, %v3631
      %v3722 = vpop.permute.xlu0 %3721
      %3725 = vset.pattern.permute.xlu0 0
      %3726 = vperm.xlu0 %3725, %v3632
      %v3727 = vpop.permute.xlu0 %3726
      %3730 = vset.pattern.permute.xlu0 0
      %3731 = vperm.xlu0 %3730, %v3633
      %v3732 = vpop.permute.xlu0 %3731
      %3735 = vset.pattern.permute.xlu0 0
      %3736 = vperm.xlu0 %3735, %v3634
      %v3737 = vpop.permute.xlu0 %3736
      %3740 = vset.pattern.permute.xlu0 0
      %3741 = vperm.xlu0 %3740, %v3635
      %v3742 = vpop.permute.xlu0 %3741
      %3745 = vset.pattern.permute.xlu0 0
      %3746 = vperm.xlu0 %3745, %v3636
      %v3747 = vpop.permute.xlu0 %3746
      %3750 = vset.pattern.permute.xlu0 0
      %3751 = vperm.xlu0 %3750, %v3637
      %v3752 = vpop.permute.xlu0 %3751
      %3755 = vset.pattern.permute.xlu0 0
      %3756 = vperm.xlu0 %3755, %v3638
      %v3757 = vpop.permute.xlu0 %3756
      %3760 = vset.pattern.permute.xlu0 0
      %3761 = vperm.xlu0 %3760, %v3639
      %v3762 = vpop.permute.xlu0 %3761
      %3765 = vset.pattern.permute.xlu0 0
      %3766 = vperm.xlu0 %3765, %v3640
      %v3767 = vpop.permute.xlu0 %3766
      %3770 = vset.pattern.permute.xlu0 0
      %3771 = vperm.xlu0 %3770, %v3641
      %v3772 = vpop.permute.xlu0 %3771
      %3775 = vset.pattern.permute.xlu0 0
      %3776 = vperm.xlu0 %3775, %v3642
      %v3777 = vpop.permute.xlu0 %3776
      %3780 = vset.pattern.permute.xlu0 0
      %3781 = vperm.xlu0 %3780, %v3643
      %v3782 = vpop.permute.xlu0 %3781
      %3785 = vset.pattern.permute.xlu0 0
      %3786 = vperm.xlu0 %3785, %v3644
      %v3787 = vpop.permute.xlu0 %3786
      %3790 = vset.pattern.permute.xlu0 0
      %3791 = vperm.xlu0 %3790, %v3645
      %v3792 = vpop.permute.xlu0 %3791
      %3795 = vset.pattern.permute.xlu0 0
      %3796 = vperm.xlu0 %3795, %v3646
      %v3797 = vpop.permute.xlu0 %3796
      %3800 = vset.pattern.permute.xlu0 0
      %3801 = vperm.xlu0 %3800, %v3647
      %v3802 = vpop.permute.xlu0 %3801
      %3805 = vset.pattern.permute.xlu0 0
      %3806 = vperm.xlu0 %3805, %v3648
      %v3807 = vpop.permute.xlu0 %3806
      %3810 = vset.pattern.permute.xlu0 0
      %3811 = vperm.xlu0 %3810, %v3649
      %v3812 = vpop.permute.xlu0 %3811
      %3815 = vset.pattern.permute.xlu0 0
      %3816 = vperm.xlu0 %3815, %v3650
      %v3817 = vpop.permute.xlu0 %3816
      %3820 = vset.pattern.permute.xlu0 0
      %3821 = vperm.xlu0 %3820, %v3651
      %v3822 = vpop.permute.xlu0 %3821
      %3825 = vset.pattern.permute.xlu0 0
      %3826 = vperm.xlu0 %3825, %v3652
      %v3827 = vpop.permute.xlu0 %3826
      %3830 = vset.pattern.permute.xlu0 0
      %3831 = vperm.xlu0 %3830, %v3653
      %v3832 = vpop.permute.xlu0 %3831
      %v3834 = vmul.f32 %v3582, %v3657
      %v3835 = vmul.f32 %v3583, %v3662
      %v3836 = vmul.f32 %v3584, %v3667
      %v3837 = vmul.f32 %v3585, %v3672
      %v3838 = vmul.f32 %v3586, %v3677
      %v3839 = vmul.f32 %v3587, %v3682
      %v3840 = vmul.f32 %v3588, %v3687
      %v3841 = vmul.f32 %v3589, %v3692
      %v3842 = vmul.f32 %v3590, %v3697
      %v3843 = vmul.f32 %v3591, %v3702
      %v3844 = vmul.f32 %v3592, %v3707
      %v3845 = vmul.f32 %v3593, %v3712
      %v3846 = vmul.f32 %v3594, %v3717
      %v3847 = vmul.f32 %v3595, %v3722
      %v3848 = vmul.f32 %v3596, %v3727
      %v3849 = vmul.f32 %v3597, %v3732
      %v3850 = vmul.f32 %v3598, %v3737
      %v3851 = vmul.f32 %v3599, %v3742
      %v3852 = vmul.f32 %v3600, %v3747
      %v3853 = vmul.f32 %v3601, %v3752
      %v3854 = vmul.f32 %v3602, %v3757
      %v3855 = vmul.f32 %v3603, %v3762
      %v3856 = vmul.f32 %v3604, %v3767
      %v3857 = vmul.f32 %v3605, %v3772
      %v3858 = vmul.f32 %v3606, %v3777
      %v3859 = vmul.f32 %v3607, %v3782
      %v3860 = vmul.f32 %v3608, %v3787
      %v3861 = vmul.f32 %v3609, %v3792
      %v3862 = vmul.f32 %v3610, %v3797
      %v3863 = vmul.f32 %v3611, %v3802
      %v3864 = vmul.f32 %v3612, %v3807
      %v3865 = vmul.f32 %v3613, %v3812
      %v3866 = vmul.f32 %v3614, %v3817
      %v3867 = vmul.f32 %v3615, %v3822
      %v3868 = vmul.f32 %v3616, %v3827
      %v3869 = vmul.f32 %v3617, %v3832
      %vm3870 = vcmask 64512
      %v3871 = vsel %vm3870, %v3834, 0.0
      %v3872 = vsel %vm3870, %v3835, 0.0
      %v3873 = vadd.f32 %v3871, %v3872
      %v3874 = vsel %vm3870, %v3836, 0.0
      %v3875 = vadd.f32 %v3873, %v3874
      %v3876 = vsel %vm3870, %v3837, 0.0
      %v3877 = vadd.f32 %v3875, %v3876
      %v3878 = vsel %vm3870, %v3838, 0.0
      %v3879 = vadd.f32 %v3877, %v3878
      %v3880 = vsel %vm3870, %v3839, 0.0
      %v3881 = vadd.f32 %v3879, %v3880
      %v3882 = vsel %vm3870, %v3840, 0.0
      %v3883 = vadd.f32 %v3881, %v3882
      %v3884 = vsel %vm3870, %v3841, 0.0
      %v3885 = vadd.f32 %v3883, %v3884
      %v3886 = vsel %vm3870, %v3842, 0.0
      %v3887 = vadd.f32 %v3885, %v3886
      %v3888 = vsel %vm3870, %v3843, 0.0
      %v3889 = vadd.f32 %v3887, %v3888
      %v3890 = vsel %vm3870, %v3844, 0.0
      %v3891 = vadd.f32 %v3889, %v3890
      %v3892 = vsel %vm3870, %v3845, 0.0
      %v3893 = vadd.f32 %v3891, %v3892
      %v3894 = vsel %vm3870, %v3846, 0.0
      %v3895 = vadd.f32 %v3893, %v3894
      %v3896 = vsel %vm3870, %v3847, 0.0
      %v3897 = vadd.f32 %v3895, %v3896
      %v3898 = vsel %vm3870, %v3848, 0.0
      %v3899 = vadd.f32 %v3897, %v3898
      %v3900 = vsel %vm3870, %v3849, 0.0
      %v3901 = vadd.f32 %v3899, %v3900
      %v3902 = vsel %vm3870, %v3850, 0.0
      %v3903 = vadd.f32 %v3901, %v3902
      %v3904 = vsel %vm3870, %v3851, 0.0
      %v3905 = vadd.f32 %v3903, %v3904
      %v3906 = vsel %vm3870, %v3852, 0.0
      %v3907 = vadd.f32 %v3905, %v3906
      %v3908 = vsel %vm3870, %v3853, 0.0
      %v3909 = vadd.f32 %v3907, %v3908
      %v3910 = vsel %vm3870, %v3854, 0.0
      %v3911 = vadd.f32 %v3909, %v3910
      %v3912 = vsel %vm3870, %v3855, 0.0
      %v3913 = vadd.f32 %v3911, %v3912
      %v3914 = vsel %vm3870, %v3856, 0.0
      %v3915 = vadd.f32 %v3913, %v3914
      %v3916 = vsel %vm3870, %v3857, 0.0
      %v3917 = vadd.f32 %v3915, %v3916
      %v3918 = vsel %vm3870, %v3858, 0.0
      %v3919 = vadd.f32 %v3917, %v3918
      %v3920 = vsel %vm3870, %v3859, 0.0
      %v3921 = vadd.f32 %v3919, %v3920
      %v3922 = vsel %vm3870, %v3860, 0.0
      %v3923 = vadd.f32 %v3921, %v3922
      %v3924 = vsel %vm3870, %v3861, 0.0
      %v3925 = vadd.f32 %v3923, %v3924
      %v3926 = vsel %vm3870, %v3862, 0.0
      %v3927 = vadd.f32 %v3925, %v3926
      %v3928 = vsel %vm3870, %v3863, 0.0
      %v3929 = vadd.f32 %v3927, %v3928
      %v3930 = vsel %vm3870, %v3864, 0.0
      %v3931 = vadd.f32 %v3929, %v3930
      %v3932 = vsel %vm3870, %v3865, 0.0
      %v3933 = vadd.f32 %v3931, %v3932
      %v3934 = vsel %vm3870, %v3866, 0.0
      %v3935 = vadd.f32 %v3933, %v3934
      %v3936 = vsel %vm3870, %v3867, 0.0
      %v3937 = vadd.f32 %v3935, %v3936
      %v3938 = vsel %vm3870, %v3868, 0.0
      %v3939 = vadd.f32 %v3937, %v3938
      %v3940 = vsel %vm3870, %v3869, 0.0
      %v3941 = vadd.f32 %v3939, %v3940
      %v3942 = vrot.slane %v3941, 4
      %v3943 = vadd.f32 %v3941, %v3942
      %v3944 = vrot.slane %v3943, 2
      %v3945 = vadd.f32 %v3943, %v3944
      %v3946 = vrot.slane %v3945, 1
      %v3947 = vadd.f32 %v3945, %v3946
      %vm3948 = vcmask 57344
      %3949 = vst.msk [vmem:[%s168] sm:$0x1] %vm3948, %v3947
      %v3950 = vmul.f32 %v3582, %v3582
      %v3951 = vmul.f32 %v3583, %v3583
      %v3952 = vmul.f32 %v3584, %v3584
      %v3953 = vmul.f32 %v3585, %v3585
      %v3954 = vmul.f32 %v3586, %v3586
      %v3955 = vmul.f32 %v3587, %v3587
      %v3956 = vmul.f32 %v3588, %v3588
      %v3957 = vmul.f32 %v3589, %v3589
      %v3958 = vmul.f32 %v3590, %v3590
      %v3959 = vmul.f32 %v3591, %v3591
      %v3960 = vmul.f32 %v3592, %v3592
      %v3961 = vmul.f32 %v3593, %v3593
      %v3962 = vmul.f32 %v3594, %v3594
      %v3963 = vmul.f32 %v3595, %v3595
      %v3964 = vmul.f32 %v3596, %v3596
      %v3965 = vmul.f32 %v3597, %v3597
      %v3966 = vmul.f32 %v3598, %v3598
      %v3967 = vmul.f32 %v3599, %v3599
      %v3968 = vmul.f32 %v3600, %v3600
      %v3969 = vmul.f32 %v3601, %v3601
      %v3970 = vmul.f32 %v3602, %v3602
      %v3971 = vmul.f32 %v3603, %v3603
      %v3972 = vmul.f32 %v3604, %v3604
      %v3973 = vmul.f32 %v3605, %v3605
      %v3974 = vmul.f32 %v3606, %v3606
      %v3975 = vmul.f32 %v3607, %v3607
      %v3976 = vmul.f32 %v3608, %v3608
      %v3977 = vmul.f32 %v3609, %v3609
      %v3978 = vmul.f32 %v3610, %v3610
      %v3979 = vmul.f32 %v3611, %v3611
      %v3980 = vmul.f32 %v3612, %v3612
      %v3981 = vmul.f32 %v3613, %v3613
      %v3982 = vmul.f32 %v3614, %v3614
      %v3983 = vmul.f32 %v3615, %v3615
      %v3984 = vmul.f32 %v3616, %v3616
      %v3985 = vmul.f32 %v3617, %v3617
      %v3986 = vmul.f32 %v3950, %v3657
      %v3987 = vmul.f32 %v3951, %v3662
      %v3988 = vmul.f32 %v3952, %v3667
      %v3989 = vmul.f32 %v3953, %v3672
      %v3990 = vmul.f32 %v3954, %v3677
      %v3991 = vmul.f32 %v3955, %v3682
      %v3992 = vmul.f32 %v3956, %v3687
      %v3993 = vmul.f32 %v3957, %v3692
      %v3994 = vmul.f32 %v3958, %v3697
      %v3995 = vmul.f32 %v3959, %v3702
      %v3996 = vmul.f32 %v3960, %v3707
      %v3997 = vmul.f32 %v3961, %v3712
      %v3998 = vmul.f32 %v3962, %v3717
      %v3999 = vmul.f32 %v3963, %v3722
      %v4000 = vmul.f32 %v3964, %v3727
      %v4001 = vmul.f32 %v3965, %v3732
      %v4002 = vmul.f32 %v3966, %v3737
      %v4003 = vmul.f32 %v3967, %v3742
      %v4004 = vmul.f32 %v3968, %v3747
      %v4005 = vmul.f32 %v3969, %v3752
      %v4006 = vmul.f32 %v3970, %v3757
      %v4007 = vmul.f32 %v3971, %v3762
      %v4008 = vmul.f32 %v3972, %v3767
      %v4009 = vmul.f32 %v3973, %v3772
      %v4010 = vmul.f32 %v3974, %v3777
      %v4011 = vmul.f32 %v3975, %v3782
      %v4012 = vmul.f32 %v3976, %v3787
      %v4013 = vmul.f32 %v3977, %v3792
      %v4014 = vmul.f32 %v3978, %v3797
      %v4015 = vmul.f32 %v3979, %v3802
      %v4016 = vmul.f32 %v3980, %v3807
      %v4017 = vmul.f32 %v3981, %v3812
      %v4018 = vmul.f32 %v3982, %v3817
      %v4019 = vmul.f32 %v3983, %v3822
      %v4020 = vmul.f32 %v3984, %v3827
      %v4021 = vmul.f32 %v3985, %v3832
      %v4022 = vsel %vm3870, %v3986, 0.0
      %v4023 = vsel %vm3870, %v3987, 0.0
      %v4024 = vadd.f32 %v4022, %v4023
      %v4025 = vsel %vm3870, %v3988, 0.0
      %v4026 = vadd.f32 %v4024, %v4025
      %v4027 = vsel %vm3870, %v3989, 0.0
      %v4028 = vadd.f32 %v4026, %v4027
      %v4029 = vsel %vm3870, %v3990, 0.0
      %v4030 = vadd.f32 %v4028, %v4029
      %v4031 = vsel %vm3870, %v3991, 0.0
      %v4032 = vadd.f32 %v4030, %v4031
      %v4033 = vsel %vm3870, %v3992, 0.0
      %v4034 = vadd.f32 %v4032, %v4033
      %v4035 = vsel %vm3870, %v3993, 0.0
      %v4036 = vadd.f32 %v4034, %v4035
      %v4037 = vsel %vm3870, %v3994, 0.0
      %v4038 = vadd.f32 %v4036, %v4037
      %v4039 = vsel %vm3870, %v3995, 0.0
      %v4040 = vadd.f32 %v4038, %v4039
      %v4041 = vsel %vm3870, %v3996, 0.0
      %v4042 = vadd.f32 %v4040, %v4041
      %v4043 = vsel %vm3870, %v3997, 0.0
      %v4044 = vadd.f32 %v4042, %v4043
      %v4045 = vsel %vm3870, %v3998, 0.0
      %v4046 = vadd.f32 %v4044, %v4045
      %v4047 = vsel %vm3870, %v3999, 0.0
      %v4048 = vadd.f32 %v4046, %v4047
      %v4049 = vsel %vm3870, %v4000, 0.0
      %v4050 = vadd.f32 %v4048, %v4049
      %v4051 = vsel %vm3870, %v4001, 0.0
      %v4052 = vadd.f32 %v4050, %v4051
      %v4053 = vsel %vm3870, %v4002, 0.0
      %v4054 = vadd.f32 %v4052, %v4053
      %v4055 = vsel %vm3870, %v4003, 0.0
      %v4056 = vadd.f32 %v4054, %v4055
      %v4057 = vsel %vm3870, %v4004, 0.0
      %v4058 = vadd.f32 %v4056, %v4057
      %v4059 = vsel %vm3870, %v4005, 0.0
      %v4060 = vadd.f32 %v4058, %v4059
      %v4061 = vsel %vm3870, %v4006, 0.0
      %v4062 = vadd.f32 %v4060, %v4061
      %v4063 = vsel %vm3870, %v4007, 0.0
      %v4064 = vadd.f32 %v4062, %v4063
      %v4065 = vsel %vm3870, %v4008, 0.0
      %v4066 = vadd.f32 %v4064, %v4065
      %v4067 = vsel %vm3870, %v4009, 0.0
      %v4068 = vadd.f32 %v4066, %v4067
      %v4069 = vsel %vm3870, %v4010, 0.0
      %v4070 = vadd.f32 %v4068, %v4069
      %v4071 = vsel %vm3870, %v4011, 0.0
      %v4072 = vadd.f32 %v4070, %v4071
      %v4073 = vsel %vm3870, %v4012, 0.0
      %v4074 = vadd.f32 %v4072, %v4073
      %v4075 = vsel %vm3870, %v4013, 0.0
      %v4076 = vadd.f32 %v4074, %v4075
      %v4077 = vsel %vm3870, %v4014, 0.0
      %v4078 = vadd.f32 %v4076, %v4077
      %v4079 = vsel %vm3870, %v4015, 0.0
      %v4080 = vadd.f32 %v4078, %v4079
      %v4081 = vsel %vm3870, %v4016, 0.0
      %v4082 = vadd.f32 %v4080, %v4081
      %v4083 = vsel %vm3870, %v4017, 0.0
      %v4084 = vadd.f32 %v4082, %v4083
      %v4085 = vsel %vm3870, %v4018, 0.0
      %v4086 = vadd.f32 %v4084, %v4085
      %v4087 = vsel %vm3870, %v4019, 0.0
      %v4088 = vadd.f32 %v4086, %v4087
      %v4089 = vsel %vm3870, %v4020, 0.0
      %v4090 = vadd.f32 %v4088, %v4089
      %v4091 = vsel %vm3870, %v4021, 0.0
      %v4092 = vadd.f32 %v4090, %v4091
      %v4093 = vrot.slane %v4092, 4
      %v4094 = vadd.f32 %v4092, %v4093
      %v4095 = vrot.slane %v4094, 2
      %v4096 = vadd.f32 %v4094, %v4095
      %v4097 = vrot.slane %v4096, 1
      %v4098 = vadd.f32 %v4096, %v4097
      %4099 = vst.msk [vmem:[%s168 + $0x1] sm:$0x1] %vm3948, %v4098
      %p4100 = scmp.lt.s32.totalorder %s14, 1
      %s4101 = scalar_select %p4100, %s14, 1
      %s4102 = smul.addr %s4101, 2
      %s4103 = scalar_lea.vmem %s3, %s4102
      // Predicated region
      $region33: #{_block_forward_impl.2} parent=31 // pred_check
        %p4104 = pneg %p100
      $region34: #{_block_forward_impl.2} parent=31 // pred_check_branch
        %4106 = sbr.rel (%p4104) target = $region36
      $region35: #{_block_forward_impl.2} parent=31 // pred_region
        _
      $region36: #{_block_forward_impl.2} parent=31 // pred_fallthru
        _
    $region32: #{_block_forward_impl.2} parent=5 // pred_fallthru
      _
    %p4107 = scmp.le.s32.totalorder 2, %s9
    // Predicated region
    $region37: #{_block_forward_impl.2} parent=5 // pred_check
      %p4108 = pneg %p4107
    $region38: #{_block_forward_impl.2} parent=5 // pred_check_branch
      %4110 = sbr.rel (%p4108) target = $region40
    $region39: #{_block_forward_impl.2} parent=5 // pred_region
      %s4111 = ssub.s32 %s9, 2
      // Predicated region
      $region41: #{_block_forward_impl.2} parent=39 // pred_check
        %p4112 = pneg %p106
      $region42: #{_block_forward_impl.2} parent=39 // pred_check_branch
        %4114 = sbr.rel (%p4112) target = $region44
      $region43: #{_block_forward_impl.2} parent=39 // pred_region
        %p4115 = scmp.lt.s32.totalorder %s15, 1
        %s4116 = scalar_select %p4115, %s15, 1
        %s4117 = smul.addr %s4116, 2
        %s4118 = scalar_lea.vmem %s3, %s4117
      $region44: #{_block_forward_impl.2} parent=39 // pred_fallthru
        _
    $region40: #{_block_forward_impl.2} parent=5 // pred_fallthru
      _
  $region6: #{_block_forward_impl.2} parent=0 // loop_footer
    %s13 = sadd.s32 1, %s9
  $region7: #{_block_forward_impl.2} parent=0 // loop_footer_branch
    %8 = sbr.rel target = $region3
  $region8: #{_block_forward_impl.2} parent=0 // loop_exit
    _

// kernel: _block_forward_impl.3
$region0: #{_block_forward_impl.3}
  #allocation0 [shape = 'u32[]', space=smem, size = 0x4, offset = 0x4, fixed_abs, tag = 'smem constant byte address 0x4 - core index']
  #allocation1 [shape = 'u32[144,128]{1,0:T(1,128)}', space=vmem, size = 0x12000, scoped, tag = 'internal scratch']
  %s0 = inlined_call_operand.vmem [shape: bf16[2,1,332,4], index: 0, kind: input, shape index: {}]
  %s1 = inlined_call_operand.vmem [shape: bf16[9,4,8], index: 1, kind: input, shape index: {}]
  %s2 = inlined_call_operand.vmem [shape: f32[1,8], index: 2, kind: input, shape index: {}]
  %s3 = inlined_call_operand.vmem [shape: f32[1,8], index: 3, kind: input, shape index: {}]
  %s4 = inlined_call_operand.vmem [shape: f32[2,288,8], index: 4, kind: output, shape index: {}]
  %s5 = sld [smem:[#allocation0]]
  $region49: #{_block_forward_impl.3} parent=0
    _
  %s7 = ssub.s32 1, %s5
  %s8 = scalar_select 0, %s7, %s5
  loop: start=0, step=1, limit=4
  $region2: #{_block_forward_impl.3} parent=0 // loop_pre_header
    _
  $region3: #{_block_forward_impl.3} parent=0 // loop_header
    %s10 = sphi 0, %s14
    %p11 = scmp.ge.s32.totalorder %s10, 4
    %s20 = sphi 0, %s22
    %s23 = sphi 0, %s20
    %s24 = sphi 0, %s23
    %s40 = sphi 0, %s24
    %s44 = sphi 0, %s44
    %s46 = sphi 0, %s44
    %s47 = sphi 0, %s46
    %s61 = sphi 0, %s47
    %s65 = sphi 0, %s65
    %s67 = sphi 0, %s65
    %s68 = sphi 0, %s67
    %s82 = sphi 0, %s68
    %s86 = sphi 0, %s86
    %s88 = sphi 0, %s86
    %s89 = sphi 0, %s88
    %s103 = sphi 0, %s89
    %s109 = sphi 0, %s111
    %s112 = sphi 0, %s109
    %s113 = sphi 0, %s112
    %s129 = sphi 0, %s113
  $region4: #{_block_forward_impl.3} parent=0 // loop_header_branch
    %13 = sbr.rel (%p11) target = $region8
  $region5: #{_block_forward_impl.3} parent=0 // loop_body
    %s15 = ssub.s32 %s10, 1
    %s16 = ssub.s32 %s10, 2
    %s17 = sadd.s32 %s10, 1
    %s18 = ssub.s32 %s10, %s17
    %p19 = scmp.eq.s32.totalorder %s18, 0
    %s21 = sadd.s32 %s20, 1
    %s22 = scalar_select %p19, %s20, %s21
    %p25 = pneg %p19
    %p26 = scmp.eq.s32.totalorder %s10, 1
    %p27 = por %p25, %p26
    %p28 = scmp.ne.s32.totalorder %s20, %s23
    %p29 = scmp.eq.s32.totalorder %s10, 0
    %p30 = por %p28, %p29
    %p31 = scmp.ne.s32.totalorder %s20, %s23
    %p32 = scmp.eq.s32.totalorder %s15, 1
    %p33 = por %p31, %p32
    %p34 = scmp.ne.s32.totalorder %s23, %s24
    %p35 = scmp.eq.s32.totalorder %s15, 0
    %p36 = por %p34, %p35
    %p37 = scmp.ne.s32.totalorder %s23, %s24
    %p38 = scmp.eq.s32.totalorder %s16, 1
    %p39 = por %p37, %p38
    %p41 = scmp.ne.s32.totalorder %s24, %s40
    %p42 = scmp.eq.s32.totalorder %s16, 0
    %p43 = por %p41, %p42
    %s45 = sadd.s32 %s44, 1
    %p48 = scmp.eq.s32.totalorder %s10, 1
    %p49 = scmp.ne.s32.totalorder %s44, %s46
    %p50 = scmp.eq.s32.totalorder %s10, 0
    %p51 = por %p49, %p50
    %p52 = scmp.ne.s32.totalorder %s44, %s46
    %p53 = scmp.eq.s32.totalorder %s15, 1
    %p54 = por %p52, %p53
    %p55 = scmp.ne.s32.totalorder %s46, %s47
    %p56 = scmp.eq.s32.totalorder %s15, 0
    %p57 = por %p55, %p56
    %p58 = scmp.ne.s32.totalorder %s46, %s47
    %p59 = scmp.eq.s32.totalorder %s16, 1
    %p60 = por %p58, %p59
    %p62 = scmp.ne.s32.totalorder %s47, %s61
    %p63 = scmp.eq.s32.totalorder %s16, 0
    %p64 = por %p62, %p63
    %s66 = sadd.s32 %s65, 1
    %p69 = scmp.eq.s32.totalorder %s10, 1
    %p70 = scmp.ne.s32.totalorder %s65, %s67
    %p71 = scmp.eq.s32.totalorder %s10, 0
    %p72 = por %p70, %p71
    %p73 = scmp.ne.s32.totalorder %s65, %s67
    %p74 = scmp.eq.s32.totalorder %s15, 1
    %p75 = por %p73, %p74
    %p76 = scmp.ne.s32.totalorder %s67, %s68
    %p77 = scmp.eq.s32.totalorder %s15, 0
    %p78 = por %p76, %p77
    %p79 = scmp.ne.s32.totalorder %s67, %s68
    %p80 = scmp.eq.s32.totalorder %s16, 1
    %p81 = por %p79, %p80
    %p83 = scmp.ne.s32.totalorder %s68, %s82
    %p84 = scmp.eq.s32.totalorder %s16, 0
    %p85 = por %p83, %p84
    %s87 = sadd.s32 %s86, 1
    %p90 = scmp.eq.s32.totalorder %s10, 1
    %p91 = scmp.ne.s32.totalorder %s86, %s88
    %p92 = scmp.eq.s32.totalorder %s10, 0
    %p93 = por %p91, %p92
    %p94 = scmp.ne.s32.totalorder %s86, %s88
    %p95 = scmp.eq.s32.totalorder %s15, 1
    %p96 = por %p94, %p95
    %p97 = scmp.ne.s32.totalorder %s88, %s89
    %p98 = scmp.eq.s32.totalorder %s15, 0
    %p99 = por %p97, %p98
    %p100 = scmp.ne.s32.totalorder %s88, %s89
    %p101 = scmp.eq.s32.totalorder %s16, 1
    %p102 = por %p100, %p101
    %p104 = scmp.ne.s32.totalorder %s89, %s103
    %p105 = scmp.eq.s32.totalorder %s16, 0
    %p106 = por %p104, %p105
    %s107 = ssub.s32 %s10, %s17
    %p108 = scmp.eq.s32.totalorder %s107, 0
    %s110 = sadd.s32 %s109, 1
    %s111 = scalar_select %p108, %s109, %s110
    %p114 = pneg %p108
    %p115 = scmp.eq.s32.totalorder %s10, 1
    %p116 = por %p114, %p115
    %p117 = scmp.ne.s32.totalorder %s109, %s112
    %p118 = scmp.eq.s32.totalorder %s10, 0
    %p119 = por %p117, %p118
    %p120 = scmp.ne.s32.totalorder %s109, %s112
    %p121 = scmp.eq.s32.totalorder %s15, 1
    %p122 = por %p120, %p121
    %p123 = scmp.ne.s32.totalorder %s112, %s113
    %p124 = scmp.eq.s32.totalorder %s15, 0
    %p125 = por %p123, %p124
    %p126 = scmp.ne.s32.totalorder %s112, %s113
    %p127 = scmp.eq.s32.totalorder %s16, 1
    %p128 = por %p126, %p127
    %p130 = scmp.ne.s32.totalorder %s113, %s129
    %p131 = scmp.eq.s32.totalorder %s16, 0
    %p132 = por %p130, %p131
    %p133 = scmp.le.s32.totalorder 1, %s10
    %p134 = scmp.lt.s32.totalorder %s10, 3
    %p135 = pnand %p133, %p134
    %p136 = pneg %p135
    // Predicated region
    $region9: #{_block_forward_impl.3} parent=5 // pred_check
      _
    $region10: #{_block_forward_impl.3} parent=5 // pred_check_branch
      %138 = sbr.rel (%p135) target = $region12
    $region11: #{_block_forward_impl.3} parent=5 // pred_region
      %s139 = ssub.s32 %s10, 1
      // Predicated region
      $region13: #{_block_forward_impl.3} parent=11 // pred_check
        %p140 = pneg %p57
      $region14: #{_block_forward_impl.3} parent=11 // pred_check_branch
        %142 = sbr.rel (%p140) target = $region16
      $region15: #{_block_forward_impl.3} parent=11 // pred_region
        _
      $region16: #{_block_forward_impl.3} parent=11 // pred_fallthru
        _
      // Predicated region
      $region17: #{_block_forward_impl.3} parent=11 // pred_check
        %p143 = pneg %p78
      $region18: #{_block_forward_impl.3} parent=11 // pred_check_branch
        %145 = sbr.rel (%p143) target = $region20
      $region19: #{_block_forward_impl.3} parent=11 // pred_region
        _
      $region20: #{_block_forward_impl.3} parent=11 // pred_fallthru
        _
      // Predicated region
      $region21: #{_block_forward_impl.3} parent=11 // pred_check
        %p146 = pneg %p99
      $region22: #{_block_forward_impl.3} parent=11 // pred_check_branch
        %148 = sbr.rel (%p146) target = $region24
      $region23: #{_block_forward_impl.3} parent=11 // pred_region
        _
      $region24: #{_block_forward_impl.3} parent=11 // pred_fallthru
        _
    $region12: #{_block_forward_impl.3} parent=5 // pred_fallthru
      _
    %p149 = scmp.lt.s32.totalorder %s10, 2
    // Predicated region
    $region25: #{_block_forward_impl.3} parent=5 // pred_check
      %p150 = pneg %p149
    $region26: #{_block_forward_impl.3} parent=5 // pred_check_branch
      %152 = sbr.rel (%p150) target = $region28
    $region27: #{_block_forward_impl.3} parent=5 // pred_region
      // Predicated region
      $region29: #{_block_forward_impl.3} parent=27 // pred_check
        %p153 = pneg %p30
      $region30: #{_block_forward_impl.3} parent=27 // pred_check_branch
        %155 = sbr.rel (%p153) target = $region32
      $region31: #{_block_forward_impl.3} parent=27 // pred_region
        %p156 = scmp.lt.s32.totalorder %s10, 1
        %s157 = scalar_select %p156, %s10, 1
        %s158 = smul.addr %s157, 42
        %s159 = smul.addr %s158, 4
        %s160 = scalar_lea.vmem %s0, %s159
      $region32: #{_block_forward_impl.3} parent=27 // pred_fallthru
        _
    $region28: #{_block_forward_impl.3} parent=5 // pred_fallthru
      _
    %p161 = scmp.le.s32.totalorder 1, %s10
    %p162 = scmp.lt.s32.totalorder %s10, 3
    %p163 = pnand %p161, %p162
    %p164 = pneg %p163
    // Predicated region
    $region33: #{_block_forward_impl.3} parent=5 // pred_check
      _
    $region34: #{_block_forward_impl.3} parent=5 // pred_check_branch
      %166 = sbr.rel (%p163) target = $region36
    $region35: #{_block_forward_impl.3} parent=5 // pred_region
      %s167 = ssub.s32 %s10, 1
      %p168 = scmp.lt.s32.totalorder %s15, 1
      %s169 = scalar_select %p168, %s15, 1
      %s170 = smul.addr %s169, 42
      %s171 = smul.addr %s170, 4
      %s172 = scalar_lea.vmem %s0, %s171
      %p173 = pneg %p36
      %p174 = pneg %p33
      %p175 = pneg %p57
      %p176 = pneg %p54
      %p177 = pneg %p78
      %p178 = pneg %p75
      %p179 = pneg %p99
      %p180 = pneg %p96
      %p181 = pneg %p125
      %p182 = pneg %p122
      %p183 = scmp.lt.s32.totalorder %s15, 1
      %s184 = scalar_select %p183, %s15, 1
      %s185 = smul.addr %s184, 36
      %s186 = smul.addr %s185, 8
      %s187 = scalar_lea.vmem %s4, %s186
      %p188 = scmp.lt.s32.totalorder %s15, 1
      %s189 = scalar_select %p188, %s15, 1
      %s190 = smul.addr %s189, 42
      %s191 = smul.addr %s190, 4
      %s192 = scalar_lea.vmem %s0, %s191
      %p193 = scmp.lt.s32.totalorder %s15, 1
      %s194 = scalar_select %p193, %s15, 1
      %s195 = smul.addr %s194, 36
      %s196 = smul.addr %s195, 8
      %s197 = scalar_lea.vmem %s4, %s196
      %v199 = vld [vmem:[%s192] sm:$0xf]
      %v200 = vld [vmem:[%s192 + $0x4] sm:$0xf]
      %v201 = vld [vmem:[%s192 + $0x8] sm:$0xf]
      %v202 = vld [vmem:[%s192 + $0xc] sm:$0xf]
      %v203 = vld [vmem:[%s192 + $0x10] sm:$0xf]
      %v204 = vld [vmem:[%s192 + $0x14] sm:$0xf]
      %v205 = vld [vmem:[%s192 + $0x18] sm:$0xf]
      %v206 = vld [vmem:[%s192 + $0x1c] sm:$0xf]
      %v207 = vld [vmem:[%s192 + $0x20] sm:$0xf]
      %v208 = vld [vmem:[%s192 + $0x24] sm:$0xf]
      %v209 = vld [vmem:[%s192 + $0x28] sm:$0xf]
      %v210 = vld [vmem:[%s192 + $0x2c] sm:$0xf]
      %v211 = vld [vmem:[%s192 + $0x30] sm:$0xf]
      %v212 = vld [vmem:[%s192 + $0x34] sm:$0xf]
      %v213 = vld [vmem:[%s192 + $0x38] sm:$0xf]
      %v214 = vld [vmem:[%s192 + $0x3c] sm:$0xf]
      %v215 = vld [vmem:[%s192 + $0x40] sm:$0xf]
      %v216 = vld [vmem:[%s192 + $0x44] sm:$0xf]
      %v217 = vld [vmem:[%s192 + $0x48] sm:$0xf]
      %v218 = vld [vmem:[%s192 + $0x4c] sm:$0xf]
      %v219 = vld [vmem:[%s192 + $0x50] sm:$0xf]
      %v220 = vld [vmem:[%s192 + $0x54] sm:$0xf]
      %v221 = vld [vmem:[%s192 + $0x58] sm:$0xf]
      %v222 = vld [vmem:[%s192 + $0x5c] sm:$0xf]
      %v223 = vld [vmem:[%s192 + $0x60] sm:$0xf]
      %v224 = vld [vmem:[%s192 + $0x64] sm:$0xf]
      %v225 = vld [vmem:[%s192 + $0x68] sm:$0xf]
      %v226 = vld [vmem:[%s192 + $0x6c] sm:$0xf]
      %v227 = vld [vmem:[%s192 + $0x70] sm:$0xf]
      %v228 = vld [vmem:[%s192 + $0x74] sm:$0xf]
      %v229 = vld [vmem:[%s192 + $0x78] sm:$0xf]
      %v230 = vld [vmem:[%s192 + $0x7c] sm:$0xf]
      %v231 = vld [vmem:[%s192 + $0x80] sm:$0xf]
      %v232 = vld [vmem:[%s192 + $0x84] sm:$0xf]
      %v233 = vld [vmem:[%s192 + $0x88] sm:$0xf]
      %v234 = vld [vmem:[%s192 + $0x8c] sm:$0xf]
      %v235 = vld [vmem:[%s1] sm:$0x3]
      %v236 = vld [vmem:[%s192 + $0x90] sm:$0x1]
      %s237 = scalar_lea.vmem %s1, 2
      %v238 = vld [vmem:[%s237] sm:$0x3]
      %v276 = vunpack.c.l.b16 %v199
      %v277 = vunpack.c.l.b16 %v200
      %v278 = vunpack.c.l.b16 %v201
      %v279 = vunpack.c.l.b16 %v202
      %v280 = vunpack.c.l.b16 %v203
      %v281 = vunpack.c.l.b16 %v204
      %v282 = vunpack.c.l.b16 %v205
      %v283 = vunpack.c.l.b16 %v206
      %v284 = vunpack.c.l.b16 %v207
      %v285 = vunpack.c.l.b16 %v208
      %v286 = vunpack.c.l.b16 %v209
      %v287 = vunpack.c.l.b16 %v210
      %v288 = vunpack.c.l.b16 %v211
      %v289 = vunpack.c.l.b16 %v212
      %v290 = vunpack.c.l.b16 %v213
      %v291 = vunpack.c.l.b16 %v214
      %v292 = vunpack.c.l.b16 %v215
      %v293 = vunpack.c.l.b16 %v216
      %v294 = vunpack.c.l.b16 %v217
      %v295 = vunpack.c.l.b16 %v218
      %v296 = vunpack.c.l.b16 %v219
      %v297 = vunpack.c.l.b16 %v220
      %v298 = vunpack.c.l.b16 %v221
      %v299 = vunpack.c.l.b16 %v222
      %v300 = vunpack.c.l.b16 %v223
      %v301 = vunpack.c.l.b16 %v224
      %v302 = vunpack.c.l.b16 %v225
      %v303 = vunpack.c.l.b16 %v226
      %v304 = vunpack.c.l.b16 %v227
      %v305 = vunpack.c.l.b16 %v228
      %v306 = vunpack.c.l.b16 %v229
      %v307 = vunpack.c.l.b16 %v230
      %v308 = vunpack.c.l.b16 %v231
      %v309 = vunpack.c.l.b16 %v232
      %v310 = vunpack.c.l.b16 %v233
      %v311 = vunpack.c.l.b16 %v234
      %v312 = vunpack.c.l.b16 %v236
      %v313 = vpack.c.b16 %v277, %v276
      %v314 = vpack.c.b16 %v279, %v278
      %v315 = vpack.c.b16 %v281, %v280
      %v316 = vpack.c.b16 %v283, %v282
      %v317 = vpack.c.b16 %v285, %v284
      %v318 = vpack.c.b16 %v287, %v286
      %v319 = vpack.c.b16 %v289, %v288
      %v320 = vpack.c.b16 %v291, %v290
      %v321 = vpack.c.b16 %v293, %v292
      %v322 = vpack.c.b16 %v295, %v294
      %v323 = vpack.c.b16 %v297, %v296
      %v324 = vpack.c.b16 %v299, %v298
      %v325 = vpack.c.b16 %v301, %v300
      %v326 = vpack.c.b16 %v303, %v302
      %v327 = vpack.c.b16 %v305, %v304
      %v328 = vpack.c.b16 %v307, %v306
      %v329 = vpack.c.b16 %v309, %v308
      %v330 = vpack.c.b16 %v311, %v310
      %v331 = vpack.c.b16 %v312, %v312
      %vm332 = vsmask.f32 7424
      %v334 = vshrl.u32 %v313, 16
      %v336 = vshll.u32 %v313, 16
      %v338 = vrot.slane %v336, 1
      %v339 = vor.u32 %v334, %v338
      %v341 = vshll.u32 %v314, 16
      %v343 = vrot.slane %v341, 1
      %v344 = vsel %vm332, %v339, %v343
      %v345 = vshrl.u32 %v314, 16
      %v347 = vor.u32 %v345, %v343
      %v349 = vshll.u32 %v315, 16
      %v351 = vrot.slane %v349, 1
      %v352 = vsel %vm332, %v347, %v351
      %v353 = vshrl.u32 %v315, 16
      %v355 = vor.u32 %v353, %v351
      %v357 = vshll.u32 %v316, 16
      %v359 = vrot.slane %v357, 1
      %v360 = vsel %vm332, %v355, %v359
      %v361 = vshrl.u32 %v316, 16
      %v363 = vor.u32 %v361, %v359
      %v365 = vshll.u32 %v317, 16
      %v367 = vrot.slane %v365, 1
      %v368 = vsel %vm332, %v363, %v367
      %v369 = vshrl.u32 %v317, 16
      %v371 = vor.u32 %v369, %v367
      %v373 = vshll.u32 %v318, 16
      %v375 = vrot.slane %v373, 1
      %v376 = vsel %vm332, %v371, %v375
      %v377 = vshrl.u32 %v318, 16
      %v379 = vor.u32 %v377, %v375
      %v381 = vshll.u32 %v319, 16
      %v383 = vrot.slane %v381, 1
      %v384 = vsel %vm332, %v379, %v383
      %v385 = vshrl.u32 %v319, 16
      %v387 = vor.u32 %v385, %v383
      %v389 = vshll.u32 %v320, 16
      %v391 = vrot.slane %v389, 1
      %v392 = vsel %vm332, %v387, %v391
      %v393 = vshrl.u32 %v320, 16
      %v395 = vor.u32 %v393, %v391
      %v397 = vshll.u32 %v321, 16
      %v399 = vrot.slane %v397, 1
      %v400 = vsel %vm332, %v395, %v399
      %v401 = vshrl.u32 %v321, 16
      %v403 = vor.u32 %v401, %v399
      %v405 = vshll.u32 %v322, 16
      %v407 = vrot.slane %v405, 1
      %v408 = vsel %vm332, %v403, %v407
      %v409 = vshrl.u32 %v322, 16
      %v411 = vor.u32 %v409, %v407
      %v413 = vshll.u32 %v323, 16
      %v415 = vrot.slane %v413, 1
      %v416 = vsel %vm332, %v411, %v415
      %v417 = vshrl.u32 %v323, 16
      %v419 = vor.u32 %v417, %v415
      %v421 = vshll.u32 %v324, 16
      %v423 = vrot.slane %v421, 1
      %v424 = vsel %vm332, %v419, %v423
      %v425 = vshrl.u32 %v324, 16
      %v427 = vor.u32 %v425, %v423
      %v429 = vshll.u32 %v325, 16
      %v431 = vrot.slane %v429, 1
      %v432 = vsel %vm332, %v427, %v431
      %v433 = vshrl.u32 %v325, 16
      %v435 = vor.u32 %v433, %v431
      %v437 = vshll.u32 %v326, 16
      %v439 = vrot.slane %v437, 1
      %v440 = vsel %vm332, %v435, %v439
      %v441 = vshrl.u32 %v326, 16
      %v443 = vor.u32 %v441, %v439
      %v445 = vshll.u32 %v327, 16
      %v447 = vrot.slane %v445, 1
      %v448 = vsel %vm332, %v443, %v447
      %v449 = vshrl.u32 %v327, 16
      %v451 = vor.u32 %v449, %v447
      %v453 = vshll.u32 %v328, 16
      %v455 = vrot.slane %v453, 1
      %v456 = vsel %vm332, %v451, %v455
      %v457 = vshrl.u32 %v328, 16
      %v459 = vor.u32 %v457, %v455
      %v461 = vshll.u32 %v329, 16
      %v463 = vrot.slane %v461, 1
      %v464 = vsel %vm332, %v459, %v463
      %v465 = vshrl.u32 %v329, 16
      %v467 = vor.u32 %v465, %v463
      %v469 = vshll.u32 %v330, 16
      %v471 = vrot.slane %v469, 1
      %v472 = vsel %vm332, %v467, %v471
      %v473 = vshrl.u32 %v330, 16
      %v475 = vor.u32 %v473, %v471
      %v477 = vshll.u32 %v331, 16
      %v479 = vrot.slane %v477, 1
      %v480 = vsel %vm332, %v475, %v479
      %vm481 = vcmask 31744
      %v483 = vsel %vm481, %v344, 0
      %v486 = vsel %vm481, %v352, 0
      %v489 = vsel %vm481, %v360, 0
      %v492 = vsel %vm481, %v368, 0
      %v495 = vsel %vm481, %v376, 0
      %v498 = vsel %vm481, %v384, 0
      %v501 = vsel %vm481, %v392, 0
      %v504 = vsel %vm481, %v400, 0
      %v507 = vsel %vm481, %v408, 0
      %v510 = vsel %vm481, %v416, 0
      %v513 = vsel %vm481, %v424, 0
      %v516 = vsel %vm481, %v432, 0
      %v519 = vsel %vm481, %v440, 0
      %v522 = vsel %vm481, %v448, 0
      %v525 = vsel %vm481, %v456, 0
      %v528 = vsel %vm481, %v464, 0
      %v531 = vsel %vm481, %v472, 0
      %v534 = vsel %vm481, %v480, 0
      %vm536 = vcmask 1041408
      %v538 = vsel %vm536, %v238, 0
      %540 = vmatprep.subr.bf16.mxu0 0
      %541 = vmatpush1.bf16.msra.mxu0 %v538
      %542 = vmatprep.subr.bf16.mxu0 0
      %543 = vmatpush1.bf16.msra.mxu0 0
      %544 = vmatprep.subr.bf16.mxu0 0
      %545 = vmatpush1.bf16.msra.mxu0 0
      %546 = vmatprep.subr.bf16.mxu0 0
      %547 = vmatpush1.bf16.msra.mxu0 0
      %548 = vmatprep.subr.bf16.mxu0 0
      %549 = vmatpush1.bf16.msra.mxu0 0
      %550 = vmatprep.subr.bf16.mxu0 0
      %551 = vmatpush1.bf16.msra.mxu0 0
      %552 = vmatprep.subr.bf16.mxu0 0
      %553 = vmatpush1.bf16.msra.mxu0 0
      %554 = vmatprep.subr.bf16.mxu0 0
      %555 = vmatpush1.bf16.msra.mxu0 0
      %556 = vmatprep.subr.bf16.mxu0 0
      %557 = vmatpush1.bf16.msra.mxu0 0
      %558 = vmatprep.subr.bf16.mxu0 0
      %559 = vmatpush1.bf16.msra.mxu0 0
      %560 = vmatprep.subr.bf16.mxu0 0
      %561 = vmatpush1.bf16.msra.mxu0 0
      %562 = vmatprep.subr.bf16.mxu0 0
      %563 = vmatpush1.bf16.msra.mxu0 0
      %564 = vmatprep.subr.bf16.mxu0 0
      %565 = vmatpush1.bf16.msra.mxu0 0
      %566 = vmatprep.subr.bf16.mxu0 0
      %567 = vmatpush1.bf16.msra.mxu0 0
      %568 = vmatprep.subr.bf16.mxu0 0
      %569 = vmatpush1.bf16.msra.mxu0 0
      %570 = vmatprep.subr.bf16.mxu0 0
      %571 = vmatpush1.bf16.msra.mxu0 0
      %572 = vmatprep.mubr.bf16.mxu0 0
      %573 = vmatmul.mubr.bf16.gmra.mrb[0].mxu0 %v483
      %v574 = vpop.f32.mrb[0].mxu0
      %v575 = vadd.f32 0.0, %v574
      %v576 = vpop.f32.mrb[0].mxu0
      %v577 = vpop.f32.mrb[0].mxu0
      %v578 = vadd.f32 0.0, %v577
      %v579 = vpop.f32.mrb[0].mxu0
      %580 = vmatprep.mubr.bf16.mxu0 0
      %581 = vmatmul.mubr.bf16.gmra.mrb[0].mxu0 %v486
      %v582 = vpop.f32.mrb[0].mxu0
      %v583 = vadd.f32 0.0, %v582
      %v584 = vpop.f32.mrb[0].mxu0
      %v585 = vpop.f32.mrb[0].mxu0
      %v586 = vadd.f32 0.0, %v585
      %v587 = vpop.f32.mrb[0].mxu0
      %588 = vmatprep.mubr.bf16.mxu0 0
      %589 = vmatmul.mubr.bf16.gmra.mrb[0].mxu0 %v489
      %v590 = vpop.f32.mrb[0].mxu0
      %v591 = vadd.f32 0.0, %v590
      %v592 = vpop.f32.mrb[0].mxu0
      %v593 = vpop.f32.mrb[0].mxu0
      %v594 = vadd.f32 0.0, %v593
      %v595 = vpop.f32.mrb[0].mxu0
      %596 = vmatprep.mubr.bf16.mxu0 0
      %597 = vmatmul.mubr.bf16.gmra.mrb[0].mxu0 %v492
      %v598 = vpop.f32.mrb[0].mxu0
      %v599 = vadd.f32 0.0, %v598
      %v600 = vpop.f32.mrb[0].mxu0
      %v601 = vpop.f32.mrb[0].mxu0
      %v602 = vadd.f32 0.0, %v601
      %v603 = vpop.f32.mrb[0].mxu0
      %604 = vmatprep.mubr.bf16.mxu0 0
      %605 = vmatmul.mubr.bf16.gmra.mrb[0].mxu0 %v495
      %v606 = vpop.f32.mrb[0].mxu0
      %v607 = vadd.f32 0.0, %v606
      %v608 = vpop.f32.mrb[0].mxu0
      %v609 = vpop.f32.mrb[0].mxu0
      %v610 = vadd.f32 0.0, %v609
      %v611 = vpop.f32.mrb[0].mxu0
      %612 = vmatprep.mubr.bf16.mxu0 0
      %613 = vmatmul.mubr.bf16.gmra.mrb[0].mxu0 %v498
      %v614 = vpop.f32.mrb[0].mxu0
      %v615 = vadd.f32 0.0, %v614
      %v616 = vpop.f32.mrb[0].mxu0
      %v617 = vpop.f32.mrb[0].mxu0
      %v618 = vadd.f32 0.0, %v617
      %v619 = vpop.f32.mrb[0].mxu0
      %620 = vmatprep.mubr.bf16.mxu0 0
      %621 = vmatmul.mubr.bf16.gmra.mrb[0].mxu0 %v501
      %v622 = vpop.f32.mrb[0].mxu0
      %v623 = vadd.f32 0.0, %v622
      %v624 = vpop.f32.mrb[0].mxu0
      %v625 = vpop.f32.mrb[0].mxu0
      %v626 = vadd.f32 0.0, %v625
      %v627 = vpop.f32.mrb[0].mxu0
      %628 = vmatprep.mubr.bf16.mxu0 0
      %629 = vmatmul.mubr.bf16.gmra.mrb[0].mxu0 %v504
      %v630 = vpop.f32.mrb[0].mxu0
      %v631 = vadd.f32 0.0, %v630
      %v632 = vpop.f32.mrb[0].mxu0
      %v633 = vpop.f32.mrb[0].mxu0
      %v634 = vadd.f32 0.0, %v633
      %v635 = vpop.f32.mrb[0].mxu0
      %636 = vmatprep.mubr.bf16.mxu0 0
      %637 = vmatmul.mubr.bf16.gmra.mrb[0].mxu0 %v507
      %v638 = vpop.f32.mrb[0].mxu0
      %v639 = vadd.f32 0.0, %v638
      %v640 = vpop.f32.mrb[0].mxu0
      %v641 = vpop.f32.mrb[0].mxu0
      %v642 = vadd.f32 0.0, %v641
      %v643 = vpop.f32.mrb[0].mxu0
      %644 = vmatprep.mubr.bf16.mxu0 0
      %645 = vmatmul.mubr.bf16.gmra.mrb[0].mxu0 %v510
      %v646 = vpop.f32.mrb[0].mxu0
      %v647 = vadd.f32 0.0, %v646
      %v648 = vpop.f32.mrb[0].mxu0
      %v649 = vpop.f32.mrb[0].mxu0
      %v650 = vadd.f32 0.0, %v649
      %v651 = vpop.f32.mrb[0].mxu0
      %652 = vmatprep.mubr.bf16.mxu0 0
      %653 = vmatmul.mubr.bf16.gmra.mrb[0].mxu0 %v513
      %v654 = vpop.f32.mrb[0].mxu0
      %v655 = vadd.f32 0.0, %v654
      %v656 = vpop.f32.mrb[0].mxu0
      %v657 = vpop.f32.mrb[0].mxu0
      %v658 = vadd.f32 0.0, %v657
      %v659 = vpop.f32.mrb[0].mxu0
      %660 = vmatprep.mubr.bf16.mxu0 0
      %661 = vmatmul.mubr.bf16.gmra.mrb[0].mxu0 %v516
      %v662 = vpop.f32.mrb[0].mxu0
      %v663 = vadd.f32 0.0, %v662
      %v664 = vpop.f32.mrb[0].mxu0
      %v665 = vpop.f32.mrb[0].mxu0
      %v666 = vadd.f32 0.0, %v665
      %v667 = vpop.f32.mrb[0].mxu0
      %668 = vmatprep.mubr.bf16.mxu0 0
      %669 = vmatmul.mubr.bf16.gmra.mrb[0].mxu0 %v519
      %v670 = vpop.f32.mrb[0].mxu0
      %v671 = vadd.f32 0.0, %v670
      %v672 = vpop.f32.mrb[0].mxu0
      %v673 = vpop.f32.mrb[0].mxu0
      %v674 = vadd.f32 0.0, %v673
      %v675 = vpop.f32.mrb[0].mxu0
      %676 = vmatprep.mubr.bf16.mxu0 0
      %677 = vmatmul.mubr.bf16.gmra.mrb[0].mxu0 %v522
      %v678 = vpop.f32.mrb[0].mxu0
      %v679 = vadd.f32 0.0, %v678
      %v680 = vpop.f32.mrb[0].mxu0
      %v681 = vpop.f32.mrb[0].mxu0
      %v682 = vadd.f32 0.0, %v681
      %v683 = vpop.f32.mrb[0].mxu0
      %684 = vmatprep.mubr.bf16.mxu0 0
      %685 = vmatmul.mubr.bf16.gmra.mrb[0].mxu0 %v525
      %v686 = vpop.f32.mrb[0].mxu0
      %v687 = vadd.f32 0.0, %v686
      %v688 = vpop.f32.mrb[0].mxu0
      %v689 = vpop.f32.mrb[0].mxu0
      %v690 = vadd.f32 0.0, %v689
      %v691 = vpop.f32.mrb[0].mxu0
      %692 = vmatprep.mubr.bf16.mxu0 0
      %693 = vmatmul.mubr.bf16.gmra.mrb[0].mxu0 %v528
      %v694 = vpop.f32.mrb[0].mxu0
      %v695 = vadd.f32 0.0, %v694
      %v696 = vpop.f32.mrb[0].mxu0
      %v697 = vpop.f32.mrb[0].mxu0
      %v698 = vadd.f32 0.0, %v697
      %v699 = vpop.f32.mrb[0].mxu0
      %700 = vmatprep.mubr.bf16.mxu0 0
      %701 = vmatmul.mubr.bf16.gmra.mrb[0].mxu0 %v531
      %v702 = vpop.f32.mrb[0].mxu0
      %v703 = vadd.f32 0.0, %v702
      %v704 = vpop.f32.mrb[0].mxu0
      %v705 = vpop.f32.mrb[0].mxu0
      %v706 = vadd.f32 0.0, %v705
      %v707 = vpop.f32.mrb[0].mxu0
      %708 = vmatprep.mubr.bf16.mxu0 0
      %709 = vmatmul.mubr.bf16.gmra.mrb[0].mxu0 %v534
      %v710 = vpop.f32.mrb[0].mxu0
      %v711 = vadd.f32 0.0, %v710
      %v712 = vpop.f32.mrb[0].mxu0
      %v713 = vpop.f32.mrb[0].mxu0
      %v714 = vadd.f32 0.0, %v713
      %v715 = vpop.f32.mrb[0].mxu0
      %716 = vdwg.mxu0
      %v717 = vsel %vm481, %v313, 0
      %v719 = vsel %vm481, %v314, 0
      %v721 = vsel %vm481, %v315, 0
      %v723 = vsel %vm481, %v316, 0
      %v725 = vsel %vm481, %v317, 0
      %v727 = vsel %vm481, %v318, 0
      %v729 = vsel %vm481, %v319, 0
      %v731 = vsel %vm481, %v320, 0
      %v733 = vsel %vm481, %v321, 0
      %v735 = vsel %vm481, %v322, 0
      %v737 = vsel %vm481, %v323, 0
      %v739 = vsel %vm481, %v324, 0
      %v741 = vsel %vm481, %v325, 0
      %v743 = vsel %vm481, %v326, 0
      %v745 = vsel %vm481, %v327, 0
      %v747 = vsel %vm481, %v328, 0
      %v749 = vsel %vm481, %v329, 0
      %v751 = vsel %vm481, %v330, 0
      %v754 = vsel %vm536, %v235, 0
      %756 = vmatprep.subr.bf16.mxu0 0
      %757 = vmatpush1.bf16.msra.mxu0 %v754
      %758 = vmatprep.subr.bf16.mxu0 0
      %759 = vmatpush1.bf16.msra.mxu0 0
      %760 = vmatprep.subr.bf16.mxu0 0
      %761 = vmatpush1.bf16.msra.mxu0 0
      %762 = vmatprep.subr.bf16.mxu0 0
      %763 = vmatpush1.bf16.msra.mxu0 0
      %764 = vmatprep.subr.bf16.mxu0 0
      %765 = vmatpush1.bf16.msra.mxu0 0
      %766 = vmatprep.subr.bf16.mxu0 0
      %767 = vmatpush1.bf16.msra.mxu0 0
      %768 = vmatprep.subr.bf16.mxu0 0
      %769 = vmatpush1.bf16.msra.mxu0 0
      %770 = vmatprep.subr.bf16.mxu0 0
      %771 = vmatpush1.bf16.msra.mxu0 0
      %772 = vmatprep.subr.bf16.mxu0 0
      %773 = vmatpush1.bf16.msra.mxu0 0
      %774 = vmatprep.subr.bf16.mxu0 0
      %775 = vmatpush1.bf16.msra.mxu0 0
      %776 = vmatprep.subr.bf16.mxu0 0
      %777 = vmatpush1.bf16.msra.mxu0 0
      %778 = vmatprep.subr.bf16.mxu0 0
      %779 = vmatpush1.bf16.msra.mxu0 0
      %780 = vmatprep.subr.bf16.mxu0 0
      %781 = vmatpush1.bf16.msra.mxu0 0
      %782 = vmatprep.subr.bf16.mxu0 0
      %783 = vmatpush1.bf16.msra.mxu0 0
      %784 = vmatprep.subr.bf16.mxu0 0
      %785 = vmatpush1.bf16.msra.mxu0 0
      %786 = vmatprep.subr.bf16.mxu0 0
      %787 = vmatpush1.bf16.msra.mxu0 0
      %788 = vmatprep.mubr.bf16.mxu0 0
      %789 = vmatmul.mubr.bf16.gmra.mrb[0].mxu0 %v717
      %v790 = vpop.f32.mrb[0].mxu0
      %v791 = vadd.f32 %v575, %v790
      %v792 = vpop.f32.mrb[0].mxu0
      %v793 = vpop.f32.mrb[0].mxu0
      %v794 = vadd.f32 %v578, %v793
      %v795 = vpop.f32.mrb[0].mxu0
      %796 = vmatprep.mubr.bf16.mxu0 0
      %797 = vmatmul.mubr.bf16.gmra.mrb[0].mxu0 %v719
      %v798 = vpop.f32.mrb[0].mxu0
      %v799 = vadd.f32 %v583, %v798
      %v800 = vpop.f32.mrb[0].mxu0
      %v801 = vpop.f32.mrb[0].mxu0
      %v802 = vadd.f32 %v586, %v801
      %v803 = vpop.f32.mrb[0].mxu0
      %804 = vmatprep.mubr.bf16.mxu0 0
      %805 = vmatmul.mubr.bf16.gmra.mrb[0].mxu0 %v721
      %v806 = vpop.f32.mrb[0].mxu0
      %v807 = vadd.f32 %v591, %v806
      %v808 = vpop.f32.mrb[0].mxu0
      %v809 = vpop.f32.mrb[0].mxu0
      %v810 = vadd.f32 %v594, %v809
      %v811 = vpop.f32.mrb[0].mxu0
      %812 = vmatprep.mubr.bf16.mxu0 0
      %813 = vmatmul.mubr.bf16.gmra.mrb[0].mxu0 %v723
      %v814 = vpop.f32.mrb[0].mxu0
      %v815 = vadd.f32 %v599, %v814
      %v816 = vpop.f32.mrb[0].mxu0
      %v817 = vpop.f32.mrb[0].mxu0
      %v818 = vadd.f32 %v602, %v817
      %v819 = vpop.f32.mrb[0].mxu0
      %820 = vmatprep.mubr.bf16.mxu0 0
      %821 = vmatmul.mubr.bf16.gmra.mrb[0].mxu0 %v725
      %v822 = vpop.f32.mrb[0].mxu0
      %v823 = vadd.f32 %v607, %v822
      %v824 = vpop.f32.mrb[0].mxu0
      %v825 = vpop.f32.mrb[0].mxu0
      %v826 = vadd.f32 %v610, %v825
      %v827 = vpop.f32.mrb[0].mxu0
      %828 = vmatprep.mubr.bf16.mxu0 0
      %829 = vmatmul.mubr.bf16.gmra.mrb[0].mxu0 %v727
      %v830 = vpop.f32.mrb[0].mxu0
      %v831 = vadd.f32 %v615, %v830
      %v832 = vpop.f32.mrb[0].mxu0
      %v833 = vpop.f32.mrb[0].mxu0
      %v834 = vadd.f32 %v618, %v833
      %v835 = vpop.f32.mrb[0].mxu0
      %836 = vmatprep.mubr.bf16.mxu0 0
      %837 = vmatmul.mubr.bf16.gmra.mrb[0].mxu0 %v729
      %v838 = vpop.f32.mrb[0].mxu0
      %v839 = vadd.f32 %v623, %v838
      %v840 = vpop.f32.mrb[0].mxu0
      %v841 = vpop.f32.mrb[0].mxu0
      %v842 = vadd.f32 %v626, %v841
      %v843 = vpop.f32.mrb[0].mxu0
      %844 = vmatprep.mubr.bf16.mxu0 0
      %845 = vmatmul.mubr.bf16.gmra.mrb[0].mxu0 %v731
      %v846 = vpop.f32.mrb[0].mxu0
      %v847 = vadd.f32 %v631, %v846
      %v848 = vpop.f32.mrb[0].mxu0
      %v849 = vpop.f32.mrb[0].mxu0
      %v850 = vadd.f32 %v634, %v849
      %v851 = vpop.f32.mrb[0].mxu0
      %852 = vmatprep.mubr.bf16.mxu0 0
      %853 = vmatmul.mubr.bf16.gmra.mrb[0].mxu0 %v733
      %v854 = vpop.f32.mrb[0].mxu0
      %v855 = vadd.f32 %v639, %v854
      %v856 = vpop.f32.mrb[0].mxu0
      %v857 = vpop.f32.mrb[0].mxu0
      %v858 = vadd.f32 %v642, %v857
      %v859 = vpop.f32.mrb[0].mxu0
      %860 = vmatprep.mubr.bf16.mxu0 0
      %861 = vmatmul.mubr.bf16.gmra.mrb[0].mxu0 %v735
      %v862 = vpop.f32.mrb[0].mxu0
      %v863 = vadd.f32 %v647, %v862
      %v864 = vpop.f32.mrb[0].mxu0
      %v865 = vpop.f32.mrb[0].mxu0
      %v866 = vadd.f32 %v650, %v865
      %v867 = vpop.f32.mrb[0].mxu0
      %868 = vmatprep.mubr.bf16.mxu0 0
      %869 = vmatmul.mubr.bf16.gmra.mrb[0].mxu0 %v737
      %v870 = vpop.f32.mrb[0].mxu0
      %v871 = vadd.f32 %v655, %v870
      %v872 = vpop.f32.mrb[0].mxu0
      %v873 = vpop.f32.mrb[0].mxu0
      %v874 = vadd.f32 %v658, %v873
      %v875 = vpop.f32.mrb[0].mxu0
      %876 = vmatprep.mubr.bf16.mxu0 0
      %877 = vmatmul.mubr.bf16.gmra.mrb[0].mxu0 %v739
      %v878 = vpop.f32.mrb[0].mxu0
      %v879 = vadd.f32 %v663, %v878
      %v880 = vpop.f32.mrb[0].mxu0
      %v881 = vpop.f32.mrb[0].mxu0
      %v882 = vadd.f32 %v666, %v881
      %v883 = vpop.f32.mrb[0].mxu0
      %884 = vmatprep.mubr.bf16.mxu0 0
      %885 = vmatmul.mubr.bf16.gmra.mrb[0].mxu0 %v741
      %v886 = vpop.f32.mrb[0].mxu0
      %v887 = vadd.f32 %v671, %v886
      %v888 = vpop.f32.mrb[0].mxu0
      %v889 = vpop.f32.mrb[0].mxu0
      %v890 = vadd.f32 %v674, %v889
      %v891 = vpop.f32.mrb[0].mxu0
      %892 = vmatprep.mubr.bf16.mxu0 0
      %893 = vmatmul.mubr.bf16.gmra.mrb[0].mxu0 %v743
      %v894 = vpop.f32.mrb[0].mxu0
      %v895 = vadd.f32 %v679, %v894
      %v896 = vpop.f32.mrb[0].mxu0
      %v897 = vpop.f32.mrb[0].mxu0
      %v898 = vadd.f32 %v682, %v897
      %v899 = vpop.f32.mrb[0].mxu0
      %900 = vmatprep.mubr.bf16.mxu0 0
      %901 = vmatmul.mubr.bf16.gmra.mrb[0].mxu0 %v745
      %v902 = vpop.f32.mrb[0].mxu0
      %v903 = vadd.f32 %v687, %v902
      %v904 = vpop.f32.mrb[0].mxu0
      %v905 = vpop.f32.mrb[0].mxu0
      %v906 = vadd.f32 %v690, %v905
      %v907 = vpop.f32.mrb[0].mxu0
      %908 = vmatprep.mubr.bf16.mxu0 0
      %909 = vmatmul.mubr.bf16.gmra.mrb[0].mxu0 %v747
      %v910 = vpop.f32.mrb[0].mxu0
      %v911 = vadd.f32 %v695, %v910
      %v912 = vpop.f32.mrb[0].mxu0
      %v913 = vpop.f32.mrb[0].mxu0
      %v914 = vadd.f32 %v698, %v913
      %v915 = vpop.f32.mrb[0].mxu0
      %916 = vmatprep.mubr.bf16.mxu0 0
      %917 = vmatmul.mubr.bf16.gmra.mrb[0].mxu0 %v749
      %v918 = vpop.f32.mrb[0].mxu0
      %v919 = vadd.f32 %v703, %v918
      %v920 = vpop.f32.mrb[0].mxu0
      %v921 = vpop.f32.mrb[0].mxu0
      %v922 = vadd.f32 %v706, %v921
      %v923 = vpop.f32.mrb[0].mxu0
      %924 = vmatprep.mubr.bf16.mxu0 0
      %925 = vmatmul.mubr.bf16.gmra.mrb[0].mxu0 %v751
      %v926 = vpop.f32.mrb[0].mxu0
      %v927 = vadd.f32 %v711, %v926
      %v928 = vpop.f32.mrb[0].mxu0
      %v929 = vpop.f32.mrb[0].mxu0
      %v930 = vadd.f32 %v714, %v929
      %v931 = vpop.f32.mrb[0].mxu0
      %932 = vdwg.mxu0
      %v933 = vld [vmem:[%s192] sm:$0xe]
      %s934 = scalar_lea.vmem %s1, 4
      %v935 = vld [vmem:[%s934] sm:$0x3]
      %v937 = vunpack.c.l.b16 %v933
      %v938 = vpack.c.b16 %v277, %v937
      %vm939 = vcmask 1046528
      %v940 = vrot.slane %v938, 1
      %v941 = vrot.slane %v314, 1
      %v942 = vsel %vm939, %v940, %v941
      %v943 = vrot.slane %v315, 1
      %v944 = vsel %vm939, %v941, %v943
      %v945 = vrot.slane %v316, 1
      %v946 = vsel %vm939, %v943, %v945
      %v947 = vrot.slane %v317, 1
      %v948 = vsel %vm939, %v945, %v947
      %v949 = vrot.slane %v318, 1
      %v950 = vsel %vm939, %v947, %v949
      %v951 = vrot.slane %v319, 1
      %v952 = vsel %vm939, %v949, %v951
      %v953 = vrot.slane %v320, 1
      %v954 = vsel %vm939, %v951, %v953
      %v955 = vrot.slane %v321, 1
      %v956 = vsel %vm939, %v953, %v955
      %v957 = vrot.slane %v322, 1
      %v958 = vsel %vm939, %v955, %v957
      %v959 = vrot.slane %v323, 1
      %v960 = vsel %vm939, %v957, %v959
      %v961 = vrot.slane %v324, 1
      %v962 = vsel %vm939, %v959, %v961
      %v963 = vrot.slane %v325, 1
      %v964 = vsel %vm939, %v961, %v963
      %v965 = vrot.slane %v326, 1
      %v966 = vsel %vm939, %v963, %v965
      %v967 = vrot.slane %v327, 1
      %v968 = vsel %vm939, %v965, %v967
      %v969 = vrot.slane %v328, 1
      %v970 = vsel %vm939, %v967, %v969
      %v971 = vrot.slane %v329, 1
      %v972 = vsel %vm939, %v969, %v971
      %v973 = vrot.slane %v330, 1
      %v974 = vsel %vm939, %v971, %v973
      %v975 = vrot.slane %v331, 1
      %v976 = vsel %vm939, %v973, %v975
      %v978 = vsel %vm481, %v942, 0
      %v981 = vsel %vm481, %v944, 0
      %v984 = vsel %vm481, %v946, 0
      %v987 = vsel %vm481, %v948, 0
      %v990 = vsel %vm481, %v950, 0
      %v993 = vsel %vm481, %v952, 0
      %v996 = vsel %vm481, %v954, 0
      %v999 = vsel %vm481, %v956, 0
      %v1002 = vsel %vm481, %v958, 0
      %v1005 = vsel %vm481, %v960, 0
      %v1008 = vsel %vm481, %v962, 0
      %v1011 = vsel %vm481, %v964, 0
      %v1014 = vsel %vm481, %v966, 0
      %v1017 = vsel %vm481, %v968, 0
      %v1020 = vsel %vm481, %v970, 0
      %v1023 = vsel %vm481, %v972, 0
      %v1026 = vsel %vm481, %v974, 0
      %v1029 = vsel %vm481, %v976, 0
      %v1032 = vsel %vm536, %v935, 0
      %1034 = vmatprep.subr.bf16.mxu0 0
      %1035 = vmatpush1.bf16.msra.mxu0 %v1032
      %1036 = vmatprep.subr.bf16.mxu0 0
      %1037 = vmatpush1.bf16.msra.mxu0 0
      %1038 = vmatprep.subr.bf16.mxu0 0
      %1039 = vmatpush1.bf16.msra.mxu0 0
      %1040 = vmatprep.subr.bf16.mxu0 0
      %1041 = vmatpush1.bf16.msra.mxu0 0
      %1042 = vmatprep.subr.bf16.mxu0 0
      %1043 = vmatpush1.bf16.msra.mxu0 0
      %1044 = vmatprep.subr.bf16.mxu0 0
      %1045 = vmatpush1.bf16.msra.mxu0 0
      %1046 = vmatprep.subr.bf16.mxu0 0
      %1047 = vmatpush1.bf16.msra.mxu0 0
      %1048 = vmatprep.subr.bf16.mxu0 0
      %1049 = vmatpush1.bf16.msra.mxu0 0
      %1050 = vmatprep.subr.bf16.mxu0 0
      %1051 = vmatpush1.bf16.msra.mxu0 0
      %1052 = vmatprep.subr.bf16.mxu0 0
      %1053 = vmatpush1.bf16.msra.mxu0 0
      %1054 = vmatprep.subr.bf16.mxu0 0
      %1055 = vmatpush1.bf16.msra.mxu0 0
      %1056 = vmatprep.subr.bf16.mxu0 0
      %1057 = vmatpush1.bf16.msra.mxu0 0
      %1058 = vmatprep.subr.bf16.mxu0 0
      %1059 = vmatpush1.bf16.msra.mxu0 0
      %1060 = vmatprep.subr.bf16.mxu0 0
      %1061 = vmatpush1.bf16.msra.mxu0 0
      %1062 = vmatprep.subr.bf16.mxu0 0
      %1063 = vmatpush1.bf16.msra.mxu0 0
      %1064 = vmatprep.subr.bf16.mxu0 0
      %1065 = vmatpush1.bf16.msra.mxu0 0
      %1066 = vmatprep.mubr.bf16.mxu0 0
      %1067 = vmatmul.mubr.bf16.gmra.mrb[0].mxu0 %v978
      %v1068 = vpop.f32.mrb[0].mxu0
      %v1069 = vadd.f32 0.0, %v1068
      %v1070 = vpop.f32.mrb[0].mxu0
      %v1071 = vpop.f32.mrb[0].mxu0
      %v1072 = vadd.f32 0.0, %v1071
      %v1073 = vpop.f32.mrb[0].mxu0
      %1074 = vmatprep.mubr.bf16.mxu0 0
      %1075 = vmatmul.mubr.bf16.gmra.mrb[0].mxu0 %v981
      %v1076 = vpop.f32.mrb[0].mxu0
      %v1077 = vadd.f32 0.0, %v1076
      %v1078 = vpop.f32.mrb[0].mxu0
      %v1079 = vpop.f32.mrb[0].mxu0
      %v1080 = vadd.f32 0.0, %v1079
      %v1081 = vpop.f32.mrb[0].mxu0
      %1082 = vmatprep.mubr.bf16.mxu0 0
      %1083 = vmatmul.mubr.bf16.gmra.mrb[0].mxu0 %v984
      %v1084 = vpop.f32.mrb[0].mxu0
      %v1085 = vadd.f32 0.0, %v1084
      %v1086 = vpop.f32.mrb[0].mxu0
      %v1087 = vpop.f32.mrb[0].mxu0
      %v1088 = vadd.f32 0.0, %v1087
      %v1089 = vpop.f32.mrb[0].mxu0
      %1090 = vmatprep.mubr.bf16.mxu0 0
      %1091 = vmatmul.mubr.bf16.gmra.mrb[0].mxu0 %v987
      %v1092 = vpop.f32.mrb[0].mxu0
      %v1093 = vadd.f32 0.0, %v1092
      %v1094 = vpop.f32.mrb[0].mxu0
      %v1095 = vpop.f32.mrb[0].mxu0
      %v1096 = vadd.f32 0.0, %v1095
      %v1097 = vpop.f32.mrb[0].mxu0
      %1098 = vmatprep.mubr.bf16.mxu0 0
      %1099 = vmatmul.mubr.bf16.gmra.mrb[0].mxu0 %v990
      %v1100 = vpop.f32.mrb[0].mxu0
      %v1101 = vadd.f32 0.0, %v1100
      %v1102 = vpop.f32.mrb[0].mxu0
      %v1103 = vpop.f32.mrb[0].mxu0
      %v1104 = vadd.f32 0.0, %v1103
      %v1105 = vpop.f32.mrb[0].mxu0
      %1106 = vmatprep.mubr.bf16.mxu0 0
      %1107 = vmatmul.mubr.bf16.gmra.mrb[0].mxu0 %v993
      %v1108 = vpop.f32.mrb[0].mxu0
      %v1109 = vadd.f32 0.0, %v1108
      %v1110 = vpop.f32.mrb[0].mxu0
      %v1111 = vpop.f32.mrb[0].mxu0
      %v1112 = vadd.f32 0.0, %v1111
      %v1113 = vpop.f32.mrb[0].mxu0
      %1114 = vmatprep.mubr.bf16.mxu0 0
      %1115 = vmatmul.mubr.bf16.gmra.mrb[0].mxu0 %v996
      %v1116 = vpop.f32.mrb[0].mxu0
      %v1117 = vadd.f32 0.0, %v1116
      %v1118 = vpop.f32.mrb[0].mxu0
      %v1119 = vpop.f32.mrb[0].mxu0
      %v1120 = vadd.f32 0.0, %v1119
      %v1121 = vpop.f32.mrb[0].mxu0
      %1122 = vmatprep.mubr.bf16.mxu0 0
      %1123 = vmatmul.mubr.bf16.gmra.mrb[0].mxu0 %v999
      %v1124 = vpop.f32.mrb[0].mxu0
      %v1125 = vadd.f32 0.0, %v1124
      %v1126 = vpop.f32.mrb[0].mxu0
      %v1127 = vpop.f32.mrb[0].mxu0
      %v1128 = vadd.f32 0.0, %v1127
      %v1129 = vpop.f32.mrb[0].mxu0
      %1130 = vmatprep.mubr.bf16.mxu0 0
      %1131 = vmatmul.mubr.bf16.gmra.mrb[0].mxu0 %v1002
      %v1132 = vpop.f32.mrb[0].mxu0
      %v1133 = vadd.f32 0.0, %v1132
      %v1134 = vpop.f32.mrb[0].mxu0
      %v1135 = vpop.f32.mrb[0].mxu0
      %v1136 = vadd.f32 0.0, %v1135
      %v1137 = vpop.f32.mrb[0].mxu0
      %1138 = vmatprep.mubr.bf16.mxu0 0
      %1139 = vmatmul.mubr.bf16.gmra.mrb[0].mxu0 %v1005
      %v1140 = vpop.f32.mrb[0].mxu0
      %v1141 = vadd.f32 0.0, %v1140
      %v1142 = vpop.f32.mrb[0].mxu0
      %v1143 = vpop.f32.mrb[0].mxu0
      %v1144 = vadd.f32 0.0, %v1143
      %v1145 = vpop.f32.mrb[0].mxu0
      %1146 = vmatprep.mubr.bf16.mxu0 0
      %1147 = vmatmul.mubr.bf16.gmra.mrb[0].mxu0 %v1008
      %v1148 = vpop.f32.mrb[0].mxu0
      %v1149 = vadd.f32 0.0, %v1148
      %v1150 = vpop.f32.mrb[0].mxu0
      %v1151 = vpop.f32.mrb[0].mxu0
      %v1152 = vadd.f32 0.0, %v1151
      %v1153 = vpop.f32.mrb[0].mxu0
      %1154 = vmatprep.mubr.bf16.mxu0 0
      %1155 = vmatmul.mubr.bf16.gmra.mrb[0].mxu0 %v1011
      %v1156 = vpop.f32.mrb[0].mxu0
      %v1157 = vadd.f32 0.0, %v1156
      %v1158 = vpop.f32.mrb[0].mxu0
      %v1159 = vpop.f32.mrb[0].mxu0
      %v1160 = vadd.f32 0.0, %v1159
      %v1161 = vpop.f32.mrb[0].mxu0
      %1162 = vmatprep.mubr.bf16.mxu0 0
      %1163 = vmatmul.mubr.bf16.gmra.mrb[0].mxu0 %v1014
      %v1164 = vpop.f32.mrb[0].mxu0
      %v1165 = vadd.f32 0.0, %v1164
      %v1166 = vpop.f32.mrb[0].mxu0
      %v1167 = vpop.f32.mrb[0].mxu0
      %v1168 = vadd.f32 0.0, %v1167
      %v1169 = vpop.f32.mrb[0].mxu0
      %1170 = vmatprep.mubr.bf16.mxu0 0
      %1171 = vmatmul.mubr.bf16.gmra.mrb[0].mxu0 %v1017
      %v1172 = vpop.f32.mrb[0].mxu0
      %v1173 = vadd.f32 0.0, %v1172
      %v1174 = vpop.f32.mrb[0].mxu0
      %v1175 = vpop.f32.mrb[0].mxu0
      %v1176 = vadd.f32 0.0, %v1175
      %v1177 = vpop.f32.mrb[0].mxu0
      %1178 = vmatprep.mubr.bf16.mxu0 0
      %1179 = vmatmul.mubr.bf16.gmra.mrb[0].mxu0 %v1020
      %v1180 = vpop.f32.mrb[0].mxu0
      %v1181 = vadd.f32 0.0, %v1180
      %v1182 = vpop.f32.mrb[0].mxu0
      %v1183 = vpop.f32.mrb[0].mxu0
      %v1184 = vadd.f32 0.0, %v1183
      %v1185 = vpop.f32.mrb[0].mxu0
      %1186 = vmatprep.mubr.bf16.mxu0 0
      %1187 = vmatmul.mubr.bf16.gmra.mrb[0].mxu0 %v1023
      %v1188 = vpop.f32.mrb[0].mxu0
      %v1189 = vadd.f32 0.0, %v1188
      %v1190 = vpop.f32.mrb[0].mxu0
      %v1191 = vpop.f32.mrb[0].mxu0
      %v1192 = vadd.f32 0.0, %v1191
      %v1193 = vpop.f32.mrb[0].mxu0
      %1194 = vmatprep.mubr.bf16.mxu0 0
      %1195 = vmatmul.mubr.bf16.gmra.mrb[0].mxu0 %v1026
      %v1196 = vpop.f32.mrb[0].mxu0
      %v1197 = vadd.f32 0.0, %v1196
      %v1198 = vpop.f32.mrb[0].mxu0
      %v1199 = vpop.f32.mrb[0].mxu0
      %v1200 = vadd.f32 0.0, %v1199
      %v1201 = vpop.f32.mrb[0].mxu0
      %1202 = vmatprep.mubr.bf16.mxu0 0
      %1203 = vmatmul.mubr.bf16.gmra.mrb[0].mxu0 %v1029
      %v1204 = vpop.f32.mrb[0].mxu0
      %v1205 = vadd.f32 0.0, %v1204
      %v1206 = vpop.f32.mrb[0].mxu0
      %v1207 = vpop.f32.mrb[0].mxu0
      %v1208 = vadd.f32 0.0, %v1207
      %v1209 = vpop.f32.mrb[0].mxu0
      %1210 = vdwg.mxu0
      %v1211 = vadd.f32 %v791, %v1069
      %v1212 = vadd.f32 %v794, %v1072
      %v1213 = vadd.f32 %v799, %v1077
      %v1214 = vadd.f32 %v802, %v1080
      %v1215 = vadd.f32 %v807, %v1085
      %v1216 = vadd.f32 %v810, %v1088
      %v1217 = vadd.f32 %v815, %v1093
      %v1218 = vadd.f32 %v818, %v1096
      %v1219 = vadd.f32 %v823, %v1101
      %v1220 = vadd.f32 %v826, %v1104
      %v1221 = vadd.f32 %v831, %v1109
      %v1222 = vadd.f32 %v834, %v1112
      %v1223 = vadd.f32 %v839, %v1117
      %v1224 = vadd.f32 %v842, %v1120
      %v1225 = vadd.f32 %v847, %v1125
      %v1226 = vadd.f32 %v850, %v1128
      %v1227 = vadd.f32 %v855, %v1133
      %v1228 = vadd.f32 %v858, %v1136
      %v1229 = vadd.f32 %v863, %v1141
      %v1230 = vadd.f32 %v866, %v1144
      %v1231 = vadd.f32 %v871, %v1149
      %v1232 = vadd.f32 %v874, %v1152
      %v1233 = vadd.f32 %v879, %v1157
      %v1234 = vadd.f32 %v882, %v1160
      %v1235 = vadd.f32 %v887, %v1165
      %v1236 = vadd.f32 %v890, %v1168
      %v1237 = vadd.f32 %v895, %v1173
      %v1238 = vadd.f32 %v898, %v1176
      %v1239 = vadd.f32 %v903, %v1181
      %v1240 = vadd.f32 %v906, %v1184
      %v1241 = vadd.f32 %v911, %v1189
      %v1242 = vadd.f32 %v914, %v1192
      %v1243 = vadd.f32 %v919, %v1197
      %v1244 = vadd.f32 %v922, %v1200
      %v1245 = vadd.f32 %v927, %v1205
      %v1246 = vadd.f32 %v930, %v1208
      %v1247 = vld [vmem:[%s192 + $0x8] sm:$0xe]
      %v1248 = vld [vmem:[%s192 + $0xc] sm:$0xf]
      %v1249 = vld [vmem:[%s192 + $0x10] sm:$0xf]
      %v1250 = vld [vmem:[%s192 + $0x14] sm:$0xf]
      %v1251 = vld [vmem:[%s192 + $0x18] sm:$0xf]
      %v1252 = vld [vmem:[%s192 + $0x1c] sm:$0xf]
      %v1253 = vld [vmem:[%s192 + $0x20] sm:$0xf]
      %v1254 = vld [vmem:[%s192 + $0x24] sm:$0xf]
      %v1255 = vld [vmem:[%s192 + $0x28] sm:$0xf]
      %v1256 = vld [vmem:[%s192 + $0x2c] sm:$0xf]
      %v1257 = vld [vmem:[%s192 + $0x30] sm:$0xf]
      %v1258 = vld [vmem:[%s192 + $0x34] sm:$0xf]
      %v1259 = vld [vmem:[%s192 + $0x38] sm:$0xf]
      %v1260 = vld [vmem:[%s192 + $0x3c] sm:$0xf]
      %v1261 = vld [vmem:[%s192 + $0x40] sm:$0xf]
      %v1262 = vld [vmem:[%s192 + $0x44] sm:$0xf]
      %v1263 = vld [vmem:[%s192 + $0x48] sm:$0xf]
      %v1264 = vld [vmem:[%s192 + $0x4c] sm:$0xf]
      %v1265 = vld [vmem:[%s192 + $0x50] sm:$0xf]
      %v1266 = vld [vmem:[%s192 + $0x54] sm:$0xf]
      %v1267 = vld [vmem:[%s192 + $0x58] sm:$0xf]
      %v1268 = vld [vmem:[%s192 + $0x5c] sm:$0xf]
      %v1269 = vld [vmem:[%s192 + $0x60] sm:$0xf]
      %v1270 = vld [vmem:[%s192 + $0x64] sm:$0xf]
      %v1271 = vld [vmem:[%s192 + $0x68] sm:$0xf]
      %v1272 = vld [vmem:[%s192 + $0x6c] sm:$0xf]
      %v1273 = vld [vmem:[%s192 + $0x70] sm:$0xf]
      %v1274 = vld [vmem:[%s192 + $0x74] sm:$0xf]
      %v1275 = vld [vmem:[%s192 + $0x78] sm:$0xf]
      %v1276 = vld [vmem:[%s192 + $0x7c] sm:$0xf]
      %v1277 = vld [vmem:[%s192 + $0x80] sm:$0xf]
      %v1278 = vld [vmem:[%s192 + $0x84] sm:$0xf]
      %v1279 = vld [vmem:[%s192 + $0x88] sm:$0xf]
      %v1280 = vld [vmem:[%s192 + $0x8c] sm:$0xf]
      %v1281 = vld [vmem:[%s192 + $0x90] sm:$0xf]
      %v1282 = vld [vmem:[%s192 + $0x94] sm:$0xf]
      %v1283 = vld [vmem:[%s192 + $0x98] sm:$0x1]
      %s1284 = scalar_lea.vmem %s1, 6
      %v1285 = vld [vmem:[%s1284] sm:$0x3]
      %v1323 = vunpack.c.l.b16 %v1247
      %v1324 = vunpack.c.l.b16 %v1248
      %v1325 = vunpack.c.l.b16 %v1249
      %v1326 = vunpack.c.l.b16 %v1250
      %v1327 = vunpack.c.l.b16 %v1251
      %v1328 = vunpack.c.l.b16 %v1252
      %v1329 = vunpack.c.l.b16 %v1253
      %v1330 = vunpack.c.l.b16 %v1254
      %v1331 = vunpack.c.l.b16 %v1255
      %v1332 = vunpack.c.l.b16 %v1256
      %v1333 = vunpack.c.l.b16 %v1257
      %v1334 = vunpack.c.l.b16 %v1258
      %v1335 = vunpack.c.l.b16 %v1259
      %v1336 = vunpack.c.l.b16 %v1260
      %v1337 = vunpack.c.l.b16 %v1261
      %v1338 = vunpack.c.l.b16 %v1262
      %v1339 = vunpack.c.l.b16 %v1263
      %v1340 = vunpack.c.l.b16 %v1264
      %v1341 = vunpack.c.l.b16 %v1265
      %v1342 = vunpack.c.l.b16 %v1266
      %v1343 = vunpack.c.l.b16 %v1267
      %v1344 = vunpack.c.l.b16 %v1268
      %v1345 = vunpack.c.l.b16 %v1269
      %v1346 = vunpack.c.l.b16 %v1270
      %v1347 = vunpack.c.l.b16 %v1271
      %v1348 = vunpack.c.l.b16 %v1272
      %v1349 = vunpack.c.l.b16 %v1273
      %v1350 = vunpack.c.l.b16 %v1274
      %v1351 = vunpack.c.l.b16 %v1275
      %v1352 = vunpack.c.l.b16 %v1276
      %v1353 = vunpack.c.l.b16 %v1277
      %v1354 = vunpack.c.l.b16 %v1278
      %v1355 = vunpack.c.l.b16 %v1279
      %v1356 = vunpack.c.l.b16 %v1280
      %v1357 = vunpack.c.l.b16 %v1281
      %v1358 = vunpack.c.l.b16 %v1282
      %v1359 = vunpack.c.l.b16 %v1283
      %v1360 = vpack.c.b16 %v1324, %v1323
      %v1361 = vpack.c.b16 %v1326, %v1325
      %v1362 = vpack.c.b16 %v1328, %v1327
      %v1363 = vpack.c.b16 %v1330, %v1329
      %v1364 = vpack.c.b16 %v1332, %v1331
      %v1365 = vpack.c.b16 %v1334, %v1333
      %v1366 = vpack.c.b16 %v1336, %v1335
      %v1367 = vpack.c.b16 %v1338, %v1337
      %v1368 = vpack.c.b16 %v1340, %v1339
      %v1369 = vpack.c.b16 %v1342, %v1341
      %v1370 = vpack.c.b16 %v1344, %v1343
      %v1371 = vpack.c.b16 %v1346, %v1345
      %v1372 = vpack.c.b16 %v1348, %v1347
      %v1373 = vpack.c.b16 %v1350, %v1349
      %v1374 = vpack.c.b16 %v1352, %v1351
      %v1375 = vpack.c.b16 %v1354, %v1353
      %v1376 = vpack.c.b16 %v1356, %v1355
      %v1377 = vpack.c.b16 %v1358, %v1357
      %v1378 = vpack.c.b16 %v1359, %v1359
      %v1379 = vrot.slane %v1360, 1
      %v1380 = vrot.slane %v1361, 1
      %v1381 = vsel %vm939, %v1379, %v1380
      %v1382 = vrot.slane %v1362, 1
      %v1383 = vsel %vm939, %v1380, %v1382
      %v1384 = vrot.slane %v1363, 1
      %v1385 = vsel %vm939, %v1382, %v1384
      %v1386 = vrot.slane %v1364, 1
      %v1387 = vsel %vm939, %v1384, %v1386
      %v1388 = vrot.slane %v1365, 1
      %v1389 = vsel %vm939, %v1386, %v1388
      %v1390 = vrot.slane %v1366, 1
      %v1391 = vsel %vm939, %v1388, %v1390
      %v1392 = vrot.slane %v1367, 1
      %v1393 = vsel %vm939, %v1390, %v1392
      %v1394 = vrot.slane %v1368, 1
      %v1395 = vsel %vm939, %v1392, %v1394
      %v1396 = vrot.slane %v1369, 1
      %v1397 = vsel %vm939, %v1394, %v1396
      %v1398 = vrot.slane %v1370, 1
      %v1399 = vsel %vm939, %v1396, %v1398
      %v1400 = vrot.slane %v1371, 1
      %v1401 = vsel %vm939, %v1398, %v1400
      %v1402 = vrot.slane %v1372, 1
      %v1403 = vsel %vm939, %v1400, %v1402
      %v1404 = vrot.slane %v1373, 1
      %v1405 = vsel %vm939, %v1402, %v1404
      %v1406 = vrot.slane %v1374, 1
      %v1407 = vsel %vm939, %v1404, %v1406
      %v1408 = vrot.slane %v1375, 1
      %v1409 = vsel %vm939, %v1406, %v1408
      %v1410 = vrot.slane %v1376, 1
      %v1411 = vsel %vm939, %v1408, %v1410
      %v1412 = vrot.slane %v1377, 1
      %v1413 = vsel %vm939, %v1410, %v1412
      %v1414 = vrot.slane %v1378, 1
      %v1415 = vsel %vm939, %v1412, %v1414
      %v1417 = vsel %vm481, %v1381, 0
      %v1420 = vsel %vm481, %v1383, 0
      %v1423 = vsel %vm481, %v1385, 0
      %v1426 = vsel %vm481, %v1387, 0
      %v1429 = vsel %vm481, %v1389, 0
      %v1432 = vsel %vm481, %v1391, 0
      %v1435 = vsel %vm481, %v1393, 0
      %v1438 = vsel %vm481, %v1395, 0
      %v1441 = vsel %vm481, %v1397, 0
      %v1444 = vsel %vm481, %v1399, 0
      %v1447 = vsel %vm481, %v1401, 0
      %v1450 = vsel %vm481, %v1403, 0
      %v1453 = vsel %vm481, %v1405, 0
      %v1456 = vsel %vm481, %v1407, 0
      %v1459 = vsel %vm481, %v1409, 0
      %v1462 = vsel %vm481, %v1411, 0
      %v1465 = vsel %vm481, %v1413, 0
      %v1468 = vsel %vm481, %v1415, 0
      %v1471 = vsel %vm536, %v1285, 0
      %1473 = vmatprep.subr.bf16.mxu0 0
      %1474 = vmatpush1.bf16.msra.mxu0 %v1471
      %1475 = vmatprep.subr.bf16.mxu0 0
      %1476 = vmatpush1.bf16.msra.mxu0 0
      %1477 = vmatprep.subr.bf16.mxu0 0
      %1478 = vmatpush1.bf16.msra.mxu0 0
      %1479 = vmatprep.subr.bf16.mxu0 0
      %1480 = vmatpush1.bf16.msra.mxu0 0
      %1481 = vmatprep.subr.bf16.mxu0 0
      %1482 = vmatpush1.bf16.msra.mxu0 0
      %1483 = vmatprep.subr.bf16.mxu0 0
      %1484 = vmatpush1.bf16.msra.mxu0 0
      %1485 = vmatprep.subr.bf16.mxu0 0
      %1486 = vmatpush1.bf16.msra.mxu0 0
      %1487 = vmatprep.subr.bf16.mxu0 0
      %1488 = vmatpush1.bf16.msra.mxu0 0
      %1489 = vmatprep.subr.bf16.mxu0 0
      %1490 = vmatpush1.bf16.msra.mxu0 0
      %1491 = vmatprep.subr.bf16.mxu0 0
      %1492 = vmatpush1.bf16.msra.mxu0 0
      %1493 = vmatprep.subr.bf16.mxu0 0
      %1494 = vmatpush1.bf16.msra.mxu0 0
      %1495 = vmatprep.subr.bf16.mxu0 0
      %1496 = vmatpush1.bf16.msra.mxu0 0
      %1497 = vmatprep.subr.bf16.mxu0 0
      %1498 = vmatpush1.bf16.msra.mxu0 0
      %1499 = vmatprep.subr.bf16.mxu0 0
      %1500 = vmatpush1.bf16.msra.mxu0 0
      %1501 = vmatprep.subr.bf16.mxu0 0
      %1502 = vmatpush1.bf16.msra.mxu0 0
      %1503 = vmatprep.subr.bf16.mxu0 0
      %1504 = vmatpush1.bf16.msra.mxu0 0
      %1505 = vmatprep.mubr.bf16.mxu0 0
      %1506 = vmatmul.mubr.bf16.gmra.mrb[0].mxu0 %v1417
      %v1507 = vpop.f32.mrb[0].mxu0
      %v1508 = vadd.f32 0.0, %v1507
      %v1509 = vpop.f32.mrb[0].mxu0
      %v1510 = vpop.f32.mrb[0].mxu0
      %v1511 = vadd.f32 0.0, %v1510
      %v1512 = vpop.f32.mrb[0].mxu0
      %1513 = vmatprep.mubr.bf16.mxu0 0
      %1514 = vmatmul.mubr.bf16.gmra.mrb[0].mxu0 %v1420
      %v1515 = vpop.f32.mrb[0].mxu0
      %v1516 = vadd.f32 0.0, %v1515
      %v1517 = vpop.f32.mrb[0].mxu0
      %v1518 = vpop.f32.mrb[0].mxu0
      %v1519 = vadd.f32 0.0, %v1518
      %v1520 = vpop.f32.mrb[0].mxu0
      %1521 = vmatprep.mubr.bf16.mxu0 0
      %1522 = vmatmul.mubr.bf16.gmra.mrb[0].mxu0 %v1423
      %v1523 = vpop.f32.mrb[0].mxu0
      %v1524 = vadd.f32 0.0, %v1523
      %v1525 = vpop.f32.mrb[0].mxu0
      %v1526 = vpop.f32.mrb[0].mxu0
      %v1527 = vadd.f32 0.0, %v1526
      %v1528 = vpop.f32.mrb[0].mxu0
      %1529 = vmatprep.mubr.bf16.mxu0 0
      %1530 = vmatmul.mubr.bf16.gmra.mrb[0].mxu0 %v1426
      %v1531 = vpop.f32.mrb[0].mxu0
      %v1532 = vadd.f32 0.0, %v1531
      %v1533 = vpop.f32.mrb[0].mxu0
      %v1534 = vpop.f32.mrb[0].mxu0
      %v1535 = vadd.f32 0.0, %v1534
      %v1536 = vpop.f32.mrb[0].mxu0
      %1537 = vmatprep.mubr.bf16.mxu0 0
      %1538 = vmatmul.mubr.bf16.gmra.mrb[0].mxu0 %v1429
      %v1539 = vpop.f32.mrb[0].mxu0
      %v1540 = vadd.f32 0.0, %v1539
      %v1541 = vpop.f32.mrb[0].mxu0
      %v1542 = vpop.f32.mrb[0].mxu0
      %v1543 = vadd.f32 0.0, %v1542
      %v1544 = vpop.f32.mrb[0].mxu0
      %1545 = vmatprep.mubr.bf16.mxu0 0
      %1546 = vmatmul.mubr.bf16.gmra.mrb[0].mxu0 %v1432
      %v1547 = vpop.f32.mrb[0].mxu0
      %v1548 = vadd.f32 0.0, %v1547
      %v1549 = vpop.f32.mrb[0].mxu0
      %v1550 = vpop.f32.mrb[0].mxu0
      %v1551 = vadd.f32 0.0, %v1550
      %v1552 = vpop.f32.mrb[0].mxu0
      %1553 = vmatprep.mubr.bf16.mxu0 0
      %1554 = vmatmul.mubr.bf16.gmra.mrb[0].mxu0 %v1435
      %v1555 = vpop.f32.mrb[0].mxu0
      %v1556 = vadd.f32 0.0, %v1555
      %v1557 = vpop.f32.mrb[0].mxu0
      %v1558 = vpop.f32.mrb[0].mxu0
      %v1559 = vadd.f32 0.0, %v1558
      %v1560 = vpop.f32.mrb[0].mxu0
      %1561 = vmatprep.mubr.bf16.mxu0 0
      %1562 = vmatmul.mubr.bf16.gmra.mrb[0].mxu0 %v1438
      %v1563 = vpop.f32.mrb[0].mxu0
      %v1564 = vadd.f32 0.0, %v1563
      %v1565 = vpop.f32.mrb[0].mxu0
      %v1566 = vpop.f32.mrb[0].mxu0
      %v1567 = vadd.f32 0.0, %v1566
      %v1568 = vpop.f32.mrb[0].mxu0
      %1569 = vmatprep.mubr.bf16.mxu0 0
      %1570 = vmatmul.mubr.bf16.gmra.mrb[0].mxu0 %v1441
      %v1571 = vpop.f32.mrb[0].mxu0
      %v1572 = vadd.f32 0.0, %v1571
      %v1573 = vpop.f32.mrb[0].mxu0
      %v1574 = vpop.f32.mrb[0].mxu0
      %v1575 = vadd.f32 0.0, %v1574
      %v1576 = vpop.f32.mrb[0].mxu0
      %1577 = vmatprep.mubr.bf16.mxu0 0
      %1578 = vmatmul.mubr.bf16.gmra.mrb[0].mxu0 %v1444
      %v1579 = vpop.f32.mrb[0].mxu0
      %v1580 = vadd.f32 0.0, %v1579
      %v1581 = vpop.f32.mrb[0].mxu0
      %v1582 = vpop.f32.mrb[0].mxu0
      %v1583 = vadd.f32 0.0, %v1582
      %v1584 = vpop.f32.mrb[0].mxu0
      %1585 = vmatprep.mubr.bf16.mxu0 0
      %1586 = vmatmul.mubr.bf16.gmra.mrb[0].mxu0 %v1447
      %v1587 = vpop.f32.mrb[0].mxu0
      %v1588 = vadd.f32 0.0, %v1587
      %v1589 = vpop.f32.mrb[0].mxu0
      %v1590 = vpop.f32.mrb[0].mxu0
      %v1591 = vadd.f32 0.0, %v1590
      %v1592 = vpop.f32.mrb[0].mxu0
      %1593 = vmatprep.mubr.bf16.mxu0 0
      %1594 = vmatmul.mubr.bf16.gmra.mrb[0].mxu0 %v1450
      %v1595 = vpop.f32.mrb[0].mxu0
      %v1596 = vadd.f32 0.0, %v1595
      %v1597 = vpop.f32.mrb[0].mxu0
      %v1598 = vpop.f32.mrb[0].mxu0
      %v1599 = vadd.f32 0.0, %v1598
      %v1600 = vpop.f32.mrb[0].mxu0
      %1601 = vmatprep.mubr.bf16.mxu0 0
      %1602 = vmatmul.mubr.bf16.gmra.mrb[0].mxu0 %v1453
      %v1603 = vpop.f32.mrb[0].mxu0
      %v1604 = vadd.f32 0.0, %v1603
      %v1605 = vpop.f32.mrb[0].mxu0
      %v1606 = vpop.f32.mrb[0].mxu0
      %v1607 = vadd.f32 0.0, %v1606
      %v1608 = vpop.f32.mrb[0].mxu0
      %1609 = vmatprep.mubr.bf16.mxu0 0
      %1610 = vmatmul.mubr.bf16.gmra.mrb[0].mxu0 %v1456
      %v1611 = vpop.f32.mrb[0].mxu0
      %v1612 = vadd.f32 0.0, %v1611
      %v1613 = vpop.f32.mrb[0].mxu0
      %v1614 = vpop.f32.mrb[0].mxu0
      %v1615 = vadd.f32 0.0, %v1614
      %v1616 = vpop.f32.mrb[0].mxu0
      %1617 = vmatprep.mubr.bf16.mxu0 0
      %1618 = vmatmul.mubr.bf16.gmra.mrb[0].mxu0 %v1459
      %v1619 = vpop.f32.mrb[0].mxu0
      %v1620 = vadd.f32 0.0, %v1619
      %v1621 = vpop.f32.mrb[0].mxu0
      %v1622 = vpop.f32.mrb[0].mxu0
      %v1623 = vadd.f32 0.0, %v1622
      %v1624 = vpop.f32.mrb[0].mxu0
      %1625 = vmatprep.mubr.bf16.mxu0 0
      %1626 = vmatmul.mubr.bf16.gmra.mrb[0].mxu0 %v1462
      %v1627 = vpop.f32.mrb[0].mxu0
      %v1628 = vadd.f32 0.0, %v1627
      %v1629 = vpop.f32.mrb[0].mxu0
      %v1630 = vpop.f32.mrb[0].mxu0
      %v1631 = vadd.f32 0.0, %v1630
      %v1632 = vpop.f32.mrb[0].mxu0
      %1633 = vmatprep.mubr.bf16.mxu0 0
      %1634 = vmatmul.mubr.bf16.gmra.mrb[0].mxu0 %v1465
      %v1635 = vpop.f32.mrb[0].mxu0
      %v1636 = vadd.f32 0.0, %v1635
      %v1637 = vpop.f32.mrb[0].mxu0
      %v1638 = vpop.f32.mrb[0].mxu0
      %v1639 = vadd.f32 0.0, %v1638
      %v1640 = vpop.f32.mrb[0].mxu0
      %1641 = vmatprep.mubr.bf16.mxu0 0
      %1642 = vmatmul.mubr.bf16.gmra.mrb[0].mxu0 %v1468
      %v1643 = vpop.f32.mrb[0].mxu0
      %v1644 = vadd.f32 0.0, %v1643
      %v1645 = vpop.f32.mrb[0].mxu0
      %v1646 = vpop.f32.mrb[0].mxu0
      %v1647 = vadd.f32 0.0, %v1646
      %v1648 = vpop.f32.mrb[0].mxu0
      %1649 = vdwg.mxu0
      %v1650 = vadd.f32 %v1211, %v1508
      %v1651 = vadd.f32 %v1212, %v1511
      %v1652 = vadd.f32 %v1213, %v1516
      %v1653 = vadd.f32 %v1214, %v1519
      %v1654 = vadd.f32 %v1215, %v1524
      %v1655 = vadd.f32 %v1216, %v1527
      %v1656 = vadd.f32 %v1217, %v1532
      %v1657 = vadd.f32 %v1218, %v1535
      %v1658 = vadd.f32 %v1219, %v1540
      %v1659 = vadd.f32 %v1220, %v1543
      %v1660 = vadd.f32 %v1221, %v1548
      %v1661 = vadd.f32 %v1222, %v1551
      %v1662 = vadd.f32 %v1223, %v1556
      %v1663 = vadd.f32 %v1224, %v1559
      %v1664 = vadd.f32 %v1225, %v1564
      %v1665 = vadd.f32 %v1226, %v1567
      %v1666 = vadd.f32 %v1227, %v1572
      %v1667 = vadd.f32 %v1228, %v1575
      %v1668 = vadd.f32 %v1229, %v1580
      %v1669 = vadd.f32 %v1230, %v1583
      %v1670 = vadd.f32 %v1231, %v1588
      %v1671 = vadd.f32 %v1232, %v1591
      %v1672 = vadd.f32 %v1233, %v1596
      %v1673 = vadd.f32 %v1234, %v1599
      %v1674 = vadd.f32 %v1235, %v1604
      %v1675 = vadd.f32 %v1236, %v1607
      %v1676 = vadd.f32 %v1237, %v1612
      %v1677 = vadd.f32 %v1238, %v1615
      %v1678 = vadd.f32 %v1239, %v1620
      %v1679 = vadd.f32 %v1240, %v1623
      %v1680 = vadd.f32 %v1241, %v1628
      %v1681 = vadd.f32 %v1242, %v1631
      %v1682 = vadd.f32 %v1243, %v1636
      %v1683 = vadd.f32 %v1244, %v1639
      %v1684 = vadd.f32 %v1245, %v1644
      %v1685 = vadd.f32 %v1246, %v1647
      %v1686 = vld [vmem:[%s192 + $0x98] sm:$0x3]
      %s1687 = scalar_lea.vmem %s1, 8
      %v1688 = vld [vmem:[%s1687] sm:$0x3]
      %v1690 = vunpack.c.l.b16 %v1686
      %v1691 = vpack.c.b16 %v1690, %v1690
      %vm1692 = vsmask.f32 6400
      %v1694 = vshrl.u32 %v1360, 16
      %v1696 = vrot.slane %v1694, 1
      %v1697 = vshll.u32 %v1360, 16
      %v1699 = vrot.slane %v1697, 2
      %v1700 = vor.u32 %v1696, %v1699
      %v1702 = vshrl.u32 %v1361, 16
      %v1704 = vrot.slane %v1702, 1
      %v1705 = vshll.u32 %v1361, 16
      %v1707 = vrot.slane %v1705, 2
      %v1708 = vor.u32 %v1704, %v1707
      %v1709 = vsel %vm1692, %v1700, %v1708
      %v1711 = vshrl.u32 %v1362, 16
      %v1713 = vrot.slane %v1711, 1
      %v1714 = vshll.u32 %v1362, 16
      %v1716 = vrot.slane %v1714, 2
      %v1717 = vor.u32 %v1713, %v1716
      %v1718 = vsel %vm1692, %v1708, %v1717
      %v1720 = vshrl.u32 %v1363, 16
      %v1722 = vrot.slane %v1720, 1
      %v1723 = vshll.u32 %v1363, 16
      %v1725 = vrot.slane %v1723, 2
      %v1726 = vor.u32 %v1722, %v1725
      %v1727 = vsel %vm1692, %v1717, %v1726
      %v1729 = vshrl.u32 %v1364, 16
      %v1731 = vrot.slane %v1729, 1
      %v1732 = vshll.u32 %v1364, 16
      %v1734 = vrot.slane %v1732, 2
      %v1735 = vor.u32 %v1731, %v1734
      %v1736 = vsel %vm1692, %v1726, %v1735
      %v1738 = vshrl.u32 %v1365, 16
      %v1740 = vrot.slane %v1738, 1
      %v1741 = vshll.u32 %v1365, 16
      %v1743 = vrot.slane %v1741, 2
      %v1744 = vor.u32 %v1740, %v1743
      %v1745 = vsel %vm1692, %v1735, %v1744
      %v1747 = vshrl.u32 %v1366, 16
      %v1749 = vrot.slane %v1747, 1
      %v1750 = vshll.u32 %v1366, 16
      %v1752 = vrot.slane %v1750, 2
      %v1753 = vor.u32 %v1749, %v1752
      %v1754 = vsel %vm1692, %v1744, %v1753
      %v1756 = vshrl.u32 %v1367, 16
      %v1758 = vrot.slane %v1756, 1
      %v1759 = vshll.u32 %v1367, 16
      %v1761 = vrot.slane %v1759, 2
      %v1762 = vor.u32 %v1758, %v1761
      %v1763 = vsel %vm1692, %v1753, %v1762
      %v1765 = vshrl.u32 %v1368, 16
      %v1767 = vrot.slane %v1765, 1
      %v1768 = vshll.u32 %v1368, 16
      %v1770 = vrot.slane %v1768, 2
      %v1771 = vor.u32 %v1767, %v1770
      %v1772 = vsel %vm1692, %v1762, %v1771
      %v1774 = vshrl.u32 %v1369, 16
      %v1776 = vrot.slane %v1774, 1
      %v1777 = vshll.u32 %v1369, 16
      %v1779 = vrot.slane %v1777, 2
      %v1780 = vor.u32 %v1776, %v1779
      %v1781 = vsel %vm1692, %v1771, %v1780
      %v1783 = vshrl.u32 %v1370, 16
      %v1785 = vrot.slane %v1783, 1
      %v1786 = vshll.u32 %v1370, 16
      %v1788 = vrot.slane %v1786, 2
      %v1789 = vor.u32 %v1785, %v1788
      %v1790 = vsel %vm1692, %v1780, %v1789
      %v1792 = vshrl.u32 %v1371, 16
      %v1794 = vrot.slane %v1792, 1
      %v1795 = vshll.u32 %v1371, 16
      %v1797 = vrot.slane %v1795, 2
      %v1798 = vor.u32 %v1794, %v1797
      %v1799 = vsel %vm1692, %v1789, %v1798
      %v1801 = vshrl.u32 %v1372, 16
      %v1803 = vrot.slane %v1801, 1
      %v1804 = vshll.u32 %v1372, 16
      %v1806 = vrot.slane %v1804, 2
      %v1807 = vor.u32 %v1803, %v1806
      %v1808 = vsel %vm1692, %v1798, %v1807
      %v1810 = vshrl.u32 %v1373, 16
      %v1812 = vrot.slane %v1810, 1
      %v1813 = vshll.u32 %v1373, 16
      %v1815 = vrot.slane %v1813, 2
      %v1816 = vor.u32 %v1812, %v1815
      %v1817 = vsel %vm1692, %v1807, %v1816
      %v1819 = vshrl.u32 %v1374, 16
      %v1821 = vrot.slane %v1819, 1
      %v1822 = vshll.u32 %v1374, 16
      %v1824 = vrot.slane %v1822, 2
      %v1825 = vor.u32 %v1821, %v1824
      %v1826 = vsel %vm1692, %v1816, %v1825
      %v1828 = vshrl.u32 %v1375, 16
      %v1830 = vrot.slane %v1828, 1
      %v1831 = vshll.u32 %v1375, 16
      %v1833 = vrot.slane %v1831, 2
      %v1834 = vor.u32 %v1830, %v1833
      %v1835 = vsel %vm1692, %v1825, %v1834
      %v1837 = vshrl.u32 %v1376, 16
      %v1839 = vrot.slane %v1837, 1
      %v1840 = vshll.u32 %v1376, 16
      %v1842 = vrot.slane %v1840, 2
      %v1843 = vor.u32 %v1839, %v1842
      %v1844 = vsel %vm1692, %v1834, %v1843
      %v1846 = vshrl.u32 %v1377, 16
      %v1848 = vrot.slane %v1846, 1
      %v1849 = vshll.u32 %v1377, 16
      %v1851 = vrot.slane %v1849, 2
      %v1852 = vor.u32 %v1848, %v1851
      %v1853 = vsel %vm1692, %v1843, %v1852
      %v1855 = vshrl.u32 %v1691, 16
      %v1857 = vrot.slane %v1855, 1
      %v1858 = vshll.u32 %v1691, 16
      %v1860 = vrot.slane %v1858, 2
      %v1861 = vor.u32 %v1857, %v1860
      %v1862 = vsel %vm1692, %v1852, %v1861
      %v1864 = vsel %vm481, %v1709, 0
      %v1867 = vsel %vm481, %v1718, 0
      %v1870 = vsel %vm481, %v1727, 0
      %v1873 = vsel %vm481, %v1736, 0
      %v1876 = vsel %vm481, %v1745, 0
      %v1879 = vsel %vm481, %v1754, 0
      %v1882 = vsel %vm481, %v1763, 0
      %v1885 = vsel %vm481, %v1772, 0
      %v1888 = vsel %vm481, %v1781, 0
      %v1891 = vsel %vm481, %v1790, 0
      %v1894 = vsel %vm481, %v1799, 0
      %v1897 = vsel %vm481, %v1808, 0
      %v1900 = vsel %vm481, %v1817, 0
      %v1903 = vsel %vm481, %v1826, 0
      %v1906 = vsel %vm481, %v1835, 0
      %v1909 = vsel %vm481, %v1844, 0
      %v1912 = vsel %vm481, %v1853, 0
      %v1915 = vsel %vm481, %v1862, 0
      %v1918 = vsel %vm536, %v1688, 0
      %1920 = vmatprep.subr.bf16.mxu0 0
      %1921 = vmatpush1.bf16.msra.mxu0 %v1918
      %1922 = vmatprep.subr.bf16.mxu0 0
      %1923 = vmatpush1.bf16.msra.mxu0 0
      %1924 = vmatprep.subr.bf16.mxu0 0
      %1925 = vmatpush1.bf16.msra.mxu0 0
      %1926 = vmatprep.subr.bf16.mxu0 0
      %1927 = vmatpush1.bf16.msra.mxu0 0
      %1928 = vmatprep.subr.bf16.mxu0 0
      %1929 = vmatpush1.bf16.msra.mxu0 0
      %1930 = vmatprep.subr.bf16.mxu0 0
      %1931 = vmatpush1.bf16.msra.mxu0 0
      %1932 = vmatprep.subr.bf16.mxu0 0
      %1933 = vmatpush1.bf16.msra.mxu0 0
      %1934 = vmatprep.subr.bf16.mxu0 0
      %1935 = vmatpush1.bf16.msra.mxu0 0
      %1936 = vmatprep.subr.bf16.mxu0 0
      %1937 = vmatpush1.bf16.msra.mxu0 0
      %1938 = vmatprep.subr.bf16.mxu0 0
      %1939 = vmatpush1.bf16.msra.mxu0 0
      %1940 = vmatprep.subr.bf16.mxu0 0
      %1941 = vmatpush1.bf16.msra.mxu0 0
      %1942 = vmatprep.subr.bf16.mxu0 0
      %1943 = vmatpush1.bf16.msra.mxu0 0
      %1944 = vmatprep.subr.bf16.mxu0 0
      %1945 = vmatpush1.bf16.msra.mxu0 0
      %1946 = vmatprep.subr.bf16.mxu0 0
      %1947 = vmatpush1.bf16.msra.mxu0 0
      %1948 = vmatprep.subr.bf16.mxu0 0
      %1949 = vmatpush1.bf16.msra.mxu0 0
      %1950 = vmatprep.subr.bf16.mxu0 0
      %1951 = vmatpush1.bf16.msra.mxu0 0
      %1952 = vmatprep.mubr.bf16.mxu0 0
      %1953 = vmatmul.mubr.bf16.gmra.mrb[0].mxu0 %v1864
      %v1954 = vpop.f32.mrb[0].mxu0
      %v1955 = vadd.f32 0.0, %v1954
      %v1956 = vpop.f32.mrb[0].mxu0
      %v1957 = vpop.f32.mrb[0].mxu0
      %v1958 = vadd.f32 0.0, %v1957
      %v1959 = vpop.f32.mrb[0].mxu0
      %1960 = vmatprep.mubr.bf16.mxu0 0
      %1961 = vmatmul.mubr.bf16.gmra.mrb[0].mxu0 %v1867
      %v1962 = vpop.f32.mrb[0].mxu0
      %v1963 = vadd.f32 0.0, %v1962
      %v1964 = vpop.f32.mrb[0].mxu0
      %v1965 = vpop.f32.mrb[0].mxu0
      %v1966 = vadd.f32 0.0, %v1965
      %v1967 = vpop.f32.mrb[0].mxu0
      %1968 = vmatprep.mubr.bf16.mxu0 0
      %1969 = vmatmul.mubr.bf16.gmra.mrb[0].mxu0 %v1870
      %v1970 = vpop.f32.mrb[0].mxu0
      %v1971 = vadd.f32 0.0, %v1970
      %v1972 = vpop.f32.mrb[0].mxu0
      %v1973 = vpop.f32.mrb[0].mxu0
      %v1974 = vadd.f32 0.0, %v1973
      %v1975 = vpop.f32.mrb[0].mxu0
      %1976 = vmatprep.mubr.bf16.mxu0 0
      %1977 = vmatmul.mubr.bf16.gmra.mrb[0].mxu0 %v1873
      %v1978 = vpop.f32.mrb[0].mxu0
      %v1979 = vadd.f32 0.0, %v1978
      %v1980 = vpop.f32.mrb[0].mxu0
      %v1981 = vpop.f32.mrb[0].mxu0
      %v1982 = vadd.f32 0.0, %v1981
      %v1983 = vpop.f32.mrb[0].mxu0
      %1984 = vmatprep.mubr.bf16.mxu0 0
      %1985 = vmatmul.mubr.bf16.gmra.mrb[0].mxu0 %v1876
      %v1986 = vpop.f32.mrb[0].mxu0
      %v1987 = vadd.f32 0.0, %v1986
      %v1988 = vpop.f32.mrb[0].mxu0
      %v1989 = vpop.f32.mrb[0].mxu0
      %v1990 = vadd.f32 0.0, %v1989
      %v1991 = vpop.f32.mrb[0].mxu0
      %1992 = vmatprep.mubr.bf16.mxu0 0
      %1993 = vmatmul.mubr.bf16.gmra.mrb[0].mxu0 %v1879
      %v1994 = vpop.f32.mrb[0].mxu0
      %v1995 = vadd.f32 0.0, %v1994
      %v1996 = vpop.f32.mrb[0].mxu0
      %v1997 = vpop.f32.mrb[0].mxu0
      %v1998 = vadd.f32 0.0, %v1997
      %v1999 = vpop.f32.mrb[0].mxu0
      %2000 = vmatprep.mubr.bf16.mxu0 0
      %2001 = vmatmul.mubr.bf16.gmra.mrb[0].mxu0 %v1882
      %v2002 = vpop.f32.mrb[0].mxu0
      %v2003 = vadd.f32 0.0, %v2002
      %v2004 = vpop.f32.mrb[0].mxu0
      %v2005 = vpop.f32.mrb[0].mxu0
      %v2006 = vadd.f32 0.0, %v2005
      %v2007 = vpop.f32.mrb[0].mxu0
      %2008 = vmatprep.mubr.bf16.mxu0 0
      %2009 = vmatmul.mubr.bf16.gmra.mrb[0].mxu0 %v1885
      %v2010 = vpop.f32.mrb[0].mxu0
      %v2011 = vadd.f32 0.0, %v2010
      %v2012 = vpop.f32.mrb[0].mxu0
      %v2013 = vpop.f32.mrb[0].mxu0
      %v2014 = vadd.f32 0.0, %v2013
      %v2015 = vpop.f32.mrb[0].mxu0
      %2016 = vmatprep.mubr.bf16.mxu0 0
      %2017 = vmatmul.mubr.bf16.gmra.mrb[0].mxu0 %v1888
      %v2018 = vpop.f32.mrb[0].mxu0
      %v2019 = vadd.f32 0.0, %v2018
      %v2020 = vpop.f32.mrb[0].mxu0
      %v2021 = vpop.f32.mrb[0].mxu0
      %v2022 = vadd.f32 0.0, %v2021
      %v2023 = vpop.f32.mrb[0].mxu0
      %2024 = vmatprep.mubr.bf16.mxu0 0
      %2025 = vmatmul.mubr.bf16.gmra.mrb[0].mxu0 %v1891
      %v2026 = vpop.f32.mrb[0].mxu0
      %v2027 = vadd.f32 0.0, %v2026
      %v2028 = vpop.f32.mrb[0].mxu0
      %v2029 = vpop.f32.mrb[0].mxu0
      %v2030 = vadd.f32 0.0, %v2029
      %v2031 = vpop.f32.mrb[0].mxu0
      %2032 = vmatprep.mubr.bf16.mxu0 0
      %2033 = vmatmul.mubr.bf16.gmra.mrb[0].mxu0 %v1894
      %v2034 = vpop.f32.mrb[0].mxu0
      %v2035 = vadd.f32 0.0, %v2034
      %v2036 = vpop.f32.mrb[0].mxu0
      %v2037 = vpop.f32.mrb[0].mxu0
      %v2038 = vadd.f32 0.0, %v2037
      %v2039 = vpop.f32.mrb[0].mxu0
      %2040 = vmatprep.mubr.bf16.mxu0 0
      %2041 = vmatmul.mubr.bf16.gmra.mrb[0].mxu0 %v1897
      %v2042 = vpop.f32.mrb[0].mxu0
      %v2043 = vadd.f32 0.0, %v2042
      %v2044 = vpop.f32.mrb[0].mxu0
      %v2045 = vpop.f32.mrb[0].mxu0
      %v2046 = vadd.f32 0.0, %v2045
      %v2047 = vpop.f32.mrb[0].mxu0
      %2048 = vmatprep.mubr.bf16.mxu0 0
      %2049 = vmatmul.mubr.bf16.gmra.mrb[0].mxu0 %v1900
      %v2050 = vpop.f32.mrb[0].mxu0
      %v2051 = vadd.f32 0.0, %v2050
      %v2052 = vpop.f32.mrb[0].mxu0
      %v2053 = vpop.f32.mrb[0].mxu0
      %v2054 = vadd.f32 0.0, %v2053
      %v2055 = vpop.f32.mrb[0].mxu0
      %2056 = vmatprep.mubr.bf16.mxu0 0
      %2057 = vmatmul.mubr.bf16.gmra.mrb[0].mxu0 %v1903
      %v2058 = vpop.f32.mrb[0].mxu0
      %v2059 = vadd.f32 0.0, %v2058
      %v2060 = vpop.f32.mrb[0].mxu0
      %v2061 = vpop.f32.mrb[0].mxu0
      %v2062 = vadd.f32 0.0, %v2061
      %v2063 = vpop.f32.mrb[0].mxu0
      %2064 = vmatprep.mubr.bf16.mxu0 0
      %2065 = vmatmul.mubr.bf16.gmra.mrb[0].mxu0 %v1906
      %v2066 = vpop.f32.mrb[0].mxu0
      %v2067 = vadd.f32 0.0, %v2066
      %v2068 = vpop.f32.mrb[0].mxu0
      %v2069 = vpop.f32.mrb[0].mxu0
      %v2070 = vadd.f32 0.0, %v2069
      %v2071 = vpop.f32.mrb[0].mxu0
      %2072 = vmatprep.mubr.bf16.mxu0 0
      %2073 = vmatmul.mubr.bf16.gmra.mrb[0].mxu0 %v1909
      %v2074 = vpop.f32.mrb[0].mxu0
      %v2075 = vadd.f32 0.0, %v2074
      %v2076 = vpop.f32.mrb[0].mxu0
      %v2077 = vpop.f32.mrb[0].mxu0
      %v2078 = vadd.f32 0.0, %v2077
      %v2079 = vpop.f32.mrb[0].mxu0
      %2080 = vmatprep.mubr.bf16.mxu0 0
      %2081 = vmatmul.mubr.bf16.gmra.mrb[0].mxu0 %v1912
      %v2082 = vpop.f32.mrb[0].mxu0
      %v2083 = vadd.f32 0.0, %v2082
      %v2084 = vpop.f32.mrb[0].mxu0
      %v2085 = vpop.f32.mrb[0].mxu0
      %v2086 = vadd.f32 0.0, %v2085
      %v2087 = vpop.f32.mrb[0].mxu0
      %2088 = vmatprep.mubr.bf16.mxu0 0
      %2089 = vmatmul.mubr.bf16.gmra.mrb[0].mxu0 %v1915
      %v2090 = vpop.f32.mrb[0].mxu0
      %v2091 = vadd.f32 0.0, %v2090
      %v2092 = vpop.f32.mrb[0].mxu0
      %v2093 = vpop.f32.mrb[0].mxu0
      %v2094 = vadd.f32 0.0, %v2093
      %v2095 = vpop.f32.mrb[0].mxu0
      %2096 = vdwg.mxu0
      %v2097 = vadd.f32 %v1650, %v1955
      %v2098 = vadd.f32 %v1651, %v1958
      %v2099 = vadd.f32 %v1652, %v1963
      %v2100 = vadd.f32 %v1653, %v1966
      %v2101 = vadd.f32 %v1654, %v1971
      %v2102 = vadd.f32 %v1655, %v1974
      %v2103 = vadd.f32 %v1656, %v1979
      %v2104 = vadd.f32 %v1657, %v1982
      %v2105 = vadd.f32 %v1658, %v1987
      %v2106 = vadd.f32 %v1659, %v1990
      %v2107 = vadd.f32 %v1660, %v1995
      %v2108 = vadd.f32 %v1661, %v1998
      %v2109 = vadd.f32 %v1662, %v2003
      %v2110 = vadd.f32 %v1663, %v2006
      %v2111 = vadd.f32 %v1664, %v2011
      %v2112 = vadd.f32 %v1665, %v2014
      %v2113 = vadd.f32 %v1666, %v2019
      %v2114 = vadd.f32 %v1667, %v2022
      %v2115 = vadd.f32 %v1668, %v2027
      %v2116 = vadd.f32 %v1669, %v2030
      %v2117 = vadd.f32 %v1670, %v2035
      %v2118 = vadd.f32 %v1671, %v2038
      %v2119 = vadd.f32 %v1672, %v2043
      %v2120 = vadd.f32 %v1673, %v2046
      %v2121 = vadd.f32 %v1674, %v2051
      %v2122 = vadd.f32 %v1675, %v2054
      %v2123 = vadd.f32 %v1676, %v2059
      %v2124 = vadd.f32 %v1677, %v2062
      %v2125 = vadd.f32 %v1678, %v2067
      %v2126 = vadd.f32 %v1679, %v2070
      %v2127 = vadd.f32 %v1680, %v2075
      %v2128 = vadd.f32 %v1681, %v2078
      %v2129 = vadd.f32 %v1682, %v2083
      %v2130 = vadd.f32 %v1683, %v2086
      %v2131 = vadd.f32 %v1684, %v2091
      %v2132 = vadd.f32 %v1685, %v2094
      %v2133 = vld [vmem:[%s192 + $0x8] sm:$0xc]
      %s2134 = scalar_lea.vmem %s1, 10
      %v2135 = vld [vmem:[%s2134] sm:$0x3]
      %v2137 = vunpack.c.l.b16 %v2133
      %v2138 = vpack.c.b16 %v1324, %v2137
      %vm2139 = vcmask 1045504
      %v2140 = vrot.slane %v2138, 2
      %v2141 = vrot.slane %v1361, 2
      %v2142 = vsel %vm2139, %v2140, %v2141
      %v2143 = vrot.slane %v1362, 2
      %v2144 = vsel %vm2139, %v2141, %v2143
      %v2145 = vrot.slane %v1363, 2
      %v2146 = vsel %vm2139, %v2143, %v2145
      %v2147 = vrot.slane %v1364, 2
      %v2148 = vsel %vm2139, %v2145, %v2147
      %v2149 = vrot.slane %v1365, 2
      %v2150 = vsel %vm2139, %v2147, %v2149
      %v2151 = vrot.slane %v1366, 2
      %v2152 = vsel %vm2139, %v2149, %v2151
      %v2153 = vrot.slane %v1367, 2
      %v2154 = vsel %vm2139, %v2151, %v2153
      %v2155 = vrot.slane %v1368, 2
      %v2156 = vsel %vm2139, %v2153, %v2155
      %v2157 = vrot.slane %v1369, 2
      %v2158 = vsel %vm2139, %v2155, %v2157
      %v2159 = vrot.slane %v1370, 2
      %v2160 = vsel %vm2139, %v2157, %v2159
      %v2161 = vrot.slane %v1371, 2
      %v2162 = vsel %vm2139, %v2159, %v2161
      %v2163 = vrot.slane %v1372, 2
      %v2164 = vsel %vm2139, %v2161, %v2163
      %v2165 = vrot.slane %v1373, 2
      %v2166 = vsel %vm2139, %v2163, %v2165
      %v2167 = vrot.slane %v1374, 2
      %v2168 = vsel %vm2139, %v2165, %v2167
      %v2169 = vrot.slane %v1375, 2
      %v2170 = vsel %vm2139, %v2167, %v2169
      %v2171 = vrot.slane %v1376, 2
      %v2172 = vsel %vm2139, %v2169, %v2171
      %v2173 = vrot.slane %v1377, 2
      %v2174 = vsel %vm2139, %v2171, %v2173
      %v2175 = vrot.slane %v1691, 2
      %v2176 = vsel %vm2139, %v2173, %v2175
      %v2178 = vsel %vm481, %v2142, 0
      %v2181 = vsel %vm481, %v2144, 0
      %v2184 = vsel %vm481, %v2146, 0
      %v2187 = vsel %vm481, %v2148, 0
      %v2190 = vsel %vm481, %v2150, 0
      %v2193 = vsel %vm481, %v2152, 0
      %v2196 = vsel %vm481, %v2154, 0
      %v2199 = vsel %vm481, %v2156, 0
      %v2202 = vsel %vm481, %v2158, 0
      %v2205 = vsel %vm481, %v2160, 0
      %v2208 = vsel %vm481, %v2162, 0
      %v2211 = vsel %vm481, %v2164, 0
      %v2214 = vsel %vm481, %v2166, 0
      %v2217 = vsel %vm481, %v2168, 0
      %v2220 = vsel %vm481, %v2170, 0
      %v2223 = vsel %vm481, %v2172, 0
      %v2226 = vsel %vm481, %v2174, 0
      %v2229 = vsel %vm481, %v2176, 0
      %v2232 = vsel %vm536, %v2135, 0
      %2234 = vmatprep.subr.bf16.mxu0 0
      %2235 = vmatpush1.bf16.msra.mxu0 %v2232
      %2236 = vmatprep.subr.bf16.mxu0 0
      %2237 = vmatpush1.bf16.msra.mxu0 0
      %2238 = vmatprep.subr.bf16.mxu0 0
      %2239 = vmatpush1.bf16.msra.mxu0 0
      %2240 = vmatprep.subr.bf16.mxu0 0
      %2241 = vmatpush1.bf16.msra.mxu0 0
      %2242 = vmatprep.subr.bf16.mxu0 0
      %2243 = vmatpush1.bf16.msra.mxu0 0
      %2244 = vmatprep.subr.bf16.mxu0 0
      %2245 = vmatpush1.bf16.msra.mxu0 0
      %2246 = vmatprep.subr.bf16.mxu0 0
      %2247 = vmatpush1.bf16.msra.mxu0 0
      %2248 = vmatprep.subr.bf16.mxu0 0
      %2249 = vmatpush1.bf16.msra.mxu0 0
      %2250 = vmatprep.subr.bf16.mxu0 0
      %2251 = vmatpush1.bf16.msra.mxu0 0
      %2252 = vmatprep.subr.bf16.mxu0 0
      %2253 = vmatpush1.bf16.msra.mxu0 0
      %2254 = vmatprep.subr.bf16.mxu0 0
      %2255 = vmatpush1.bf16.msra.mxu0 0
      %2256 = vmatprep.subr.bf16.mxu0 0
      %2257 = vmatpush1.bf16.msra.mxu0 0
      %2258 = vmatprep.subr.bf16.mxu0 0
      %2259 = vmatpush1.bf16.msra.mxu0 0
      %2260 = vmatprep.subr.bf16.mxu0 0
      %2261 = vmatpush1.bf16.msra.mxu0 0
      %2262 = vmatprep.subr.bf16.mxu0 0
      %2263 = vmatpush1.bf16.msra.mxu0 0
      %2264 = vmatprep.subr.bf16.mxu0 0
      %2265 = vmatpush1.bf16.msra.mxu0 0
      %2266 = vmatprep.mubr.bf16.mxu0 0
      %2267 = vmatmul.mubr.bf16.gmra.mrb[0].mxu0 %v2178
      %v2268 = vpop.f32.mrb[0].mxu0
      %v2269 = vadd.f32 0.0, %v2268
      %v2270 = vpop.f32.mrb[0].mxu0
      %v2271 = vpop.f32.mrb[0].mxu0
      %v2272 = vadd.f32 0.0, %v2271
      %v2273 = vpop.f32.mrb[0].mxu0
      %2274 = vmatprep.mubr.bf16.mxu0 0
      %2275 = vmatmul.mubr.bf16.gmra.mrb[0].mxu0 %v2181
      %v2276 = vpop.f32.mrb[0].mxu0
      %v2277 = vadd.f32 0.0, %v2276
      %v2278 = vpop.f32.mrb[0].mxu0
      %v2279 = vpop.f32.mrb[0].mxu0
      %v2280 = vadd.f32 0.0, %v2279
      %v2281 = vpop.f32.mrb[0].mxu0
      %2282 = vmatprep.mubr.bf16.mxu0 0
      %2283 = vmatmul.mubr.bf16.gmra.mrb[0].mxu0 %v2184
      %v2284 = vpop.f32.mrb[0].mxu0
      %v2285 = vadd.f32 0.0, %v2284
      %v2286 = vpop.f32.mrb[0].mxu0
      %v2287 = vpop.f32.mrb[0].mxu0
      %v2288 = vadd.f32 0.0, %v2287
      %v2289 = vpop.f32.mrb[0].mxu0
      %2290 = vmatprep.mubr.bf16.mxu0 0
      %2291 = vmatmul.mubr.bf16.gmra.mrb[0].mxu0 %v2187
      %v2292 = vpop.f32.mrb[0].mxu0
      %v2293 = vadd.f32 0.0, %v2292
      %v2294 = vpop.f32.mrb[0].mxu0
      %v2295 = vpop.f32.mrb[0].mxu0
      %v2296 = vadd.f32 0.0, %v2295
      %v2297 = vpop.f32.mrb[0].mxu0
      %2298 = vmatprep.mubr.bf16.mxu0 0
      %2299 = vmatmul.mubr.bf16.gmra.mrb[0].mxu0 %v2190
      %v2300 = vpop.f32.mrb[0].mxu0
      %v2301 = vadd.f32 0.0, %v2300
      %v2302 = vpop.f32.mrb[0].mxu0
      %v2303 = vpop.f32.mrb[0].mxu0
      %v2304 = vadd.f32 0.0, %v2303
      %v2305 = vpop.f32.mrb[0].mxu0
      %2306 = vmatprep.mubr.bf16.mxu0 0
      %2307 = vmatmul.mubr.bf16.gmra.mrb[0].mxu0 %v2193
      %v2308 = vpop.f32.mrb[0].mxu0
      %v2309 = vadd.f32 0.0, %v2308
      %v2310 = vpop.f32.mrb[0].mxu0
      %v2311 = vpop.f32.mrb[0].mxu0
      %v2312 = vadd.f32 0.0, %v2311
      %v2313 = vpop.f32.mrb[0].mxu0
      %2314 = vmatprep.mubr.bf16.mxu0 0
      %2315 = vmatmul.mubr.bf16.gmra.mrb[0].mxu0 %v2196
      %v2316 = vpop.f32.mrb[0].mxu0
      %v2317 = vadd.f32 0.0, %v2316
      %v2318 = vpop.f32.mrb[0].mxu0
      %v2319 = vpop.f32.mrb[0].mxu0
      %v2320 = vadd.f32 0.0, %v2319
      %v2321 = vpop.f32.mrb[0].mxu0
      %2322 = vmatprep.mubr.bf16.mxu0 0
      %2323 = vmatmul.mubr.bf16.gmra.mrb[0].mxu0 %v2199
      %v2324 = vpop.f32.mrb[0].mxu0
      %v2325 = vadd.f32 0.0, %v2324
      %v2326 = vpop.f32.mrb[0].mxu0
      %v2327 = vpop.f32.mrb[0].mxu0
      %v2328 = vadd.f32 0.0, %v2327
      %v2329 = vpop.f32.mrb[0].mxu0
      %2330 = vmatprep.mubr.bf16.mxu0 0
      %2331 = vmatmul.mubr.bf16.gmra.mrb[0].mxu0 %v2202
      %v2332 = vpop.f32.mrb[0].mxu0
      %v2333 = vadd.f32 0.0, %v2332
      %v2334 = vpop.f32.mrb[0].mxu0
      %v2335 = vpop.f32.mrb[0].mxu0
      %v2336 = vadd.f32 0.0, %v2335
      %v2337 = vpop.f32.mrb[0].mxu0
      %2338 = vmatprep.mubr.bf16.mxu0 0
      %2339 = vmatmul.mubr.bf16.gmra.mrb[0].mxu0 %v2205
      %v2340 = vpop.f32.mrb[0].mxu0
      %v2341 = vadd.f32 0.0, %v2340
      %v2342 = vpop.f32.mrb[0].mxu0
      %v2343 = vpop.f32.mrb[0].mxu0
      %v2344 = vadd.f32 0.0, %v2343
      %v2345 = vpop.f32.mrb[0].mxu0
      %2346 = vmatprep.mubr.bf16.mxu0 0
      %2347 = vmatmul.mubr.bf16.gmra.mrb[0].mxu0 %v2208
      %v2348 = vpop.f32.mrb[0].mxu0
      %v2349 = vadd.f32 0.0, %v2348
      %v2350 = vpop.f32.mrb[0].mxu0
      %v2351 = vpop.f32.mrb[0].mxu0
      %v2352 = vadd.f32 0.0, %v2351
      %v2353 = vpop.f32.mrb[0].mxu0
      %2354 = vmatprep.mubr.bf16.mxu0 0
      %2355 = vmatmul.mubr.bf16.gmra.mrb[0].mxu0 %v2211
      %v2356 = vpop.f32.mrb[0].mxu0
      %v2357 = vadd.f32 0.0, %v2356
      %v2358 = vpop.f32.mrb[0].mxu0
      %v2359 = vpop.f32.mrb[0].mxu0
      %v2360 = vadd.f32 0.0, %v2359
      %v2361 = vpop.f32.mrb[0].mxu0
      %2362 = vmatprep.mubr.bf16.mxu0 0
      %2363 = vmatmul.mubr.bf16.gmra.mrb[0].mxu0 %v2214
      %v2364 = vpop.f32.mrb[0].mxu0
      %v2365 = vadd.f32 0.0, %v2364
      %v2366 = vpop.f32.mrb[0].mxu0
      %v2367 = vpop.f32.mrb[0].mxu0
      %v2368 = vadd.f32 0.0, %v2367
      %v2369 = vpop.f32.mrb[0].mxu0
      %2370 = vmatprep.mubr.bf16.mxu0 0
      %2371 = vmatmul.mubr.bf16.gmra.mrb[0].mxu0 %v2217
      %v2372 = vpop.f32.mrb[0].mxu0
      %v2373 = vadd.f32 0.0, %v2372
      %v2374 = vpop.f32.mrb[0].mxu0
      %v2375 = vpop.f32.mrb[0].mxu0
      %v2376 = vadd.f32 0.0, %v2375
      %v2377 = vpop.f32.mrb[0].mxu0
      %2378 = vmatprep.mubr.bf16.mxu0 0
      %2379 = vmatmul.mubr.bf16.gmra.mrb[0].mxu0 %v2220
      %v2380 = vpop.f32.mrb[0].mxu0
      %v2381 = vadd.f32 0.0, %v2380
      %v2382 = vpop.f32.mrb[0].mxu0
      %v2383 = vpop.f32.mrb[0].mxu0
      %v2384 = vadd.f32 0.0, %v2383
      %v2385 = vpop.f32.mrb[0].mxu0
      %2386 = vmatprep.mubr.bf16.mxu0 0
      %2387 = vmatmul.mubr.bf16.gmra.mrb[0].mxu0 %v2223
      %v2388 = vpop.f32.mrb[0].mxu0
      %v2389 = vadd.f32 0.0, %v2388
      %v2390 = vpop.f32.mrb[0].mxu0
      %v2391 = vpop.f32.mrb[0].mxu0
      %v2392 = vadd.f32 0.0, %v2391
      %v2393 = vpop.f32.mrb[0].mxu0
      %2394 = vmatprep.mubr.bf16.mxu0 0
      %2395 = vmatmul.mubr.bf16.gmra.mrb[0].mxu0 %v2226
      %v2396 = vpop.f32.mrb[0].mxu0
      %v2397 = vadd.f32 0.0, %v2396
      %v2398 = vpop.f32.mrb[0].mxu0
      %v2399 = vpop.f32.mrb[0].mxu0
      %v2400 = vadd.f32 0.0, %v2399
      %v2401 = vpop.f32.mrb[0].mxu0
      %2402 = vmatprep.mubr.bf16.mxu0 0
      %2403 = vmatmul.mubr.bf16.gmra.mrb[0].mxu0 %v2229
      %v2404 = vpop.f32.mrb[0].mxu0
      %v2405 = vadd.f32 0.0, %v2404
      %v2406 = vpop.f32.mrb[0].mxu0
      %v2407 = vpop.f32.mrb[0].mxu0
      %v2408 = vadd.f32 0.0, %v2407
      %v2409 = vpop.f32.mrb[0].mxu0
      %2410 = vdwg.mxu0
      %v2411 = vadd.f32 %v2097, %v2269
      %v2412 = vadd.f32 %v2098, %v2272
      %v2413 = vadd.f32 %v2099, %v2277
      %v2414 = vadd.f32 %v2100, %v2280
      %v2415 = vadd.f32 %v2101, %v2285
      %v2416 = vadd.f32 %v2102, %v2288
      %v2417 = vadd.f32 %v2103, %v2293
      %v2418 = vadd.f32 %v2104, %v2296
      %v2419 = vadd.f32 %v2105, %v2301
      %v2420 = vadd.f32 %v2106, %v2304
      %v2421 = vadd.f32 %v2107, %v2309
      %v2422 = vadd.f32 %v2108, %v2312
      %v2423 = vadd.f32 %v2109, %v2317
      %v2424 = vadd.f32 %v2110, %v2320
      %v2425 = vadd.f32 %v2111, %v2325
      %v2426 = vadd.f32 %v2112, %v2328
      %v2427 = vadd.f32 %v2113, %v2333
      %v2428 = vadd.f32 %v2114, %v2336
      %v2429 = vadd.f32 %v2115, %v2341
      %v2430 = vadd.f32 %v2116, %v2344
      %v2431 = vadd.f32 %v2117, %v2349
      %v2432 = vadd.f32 %v2118, %v2352
      %v2433 = vadd.f32 %v2119, %v2357
      %v2434 = vadd.f32 %v2120, %v2360
      %v2435 = vadd.f32 %v2121, %v2365
      %v2436 = vadd.f32 %v2122, %v2368
      %v2437 = vadd.f32 %v2123, %v2373
      %v2438 = vadd.f32 %v2124, %v2376
      %v2439 = vadd.f32 %v2125, %v2381
      %v2440 = vadd.f32 %v2126, %v2384
      %v2441 = vadd.f32 %v2127, %v2389
      %v2442 = vadd.f32 %v2128, %v2392
      %v2443 = vadd.f32 %v2129, %v2397
      %v2444 = vadd.f32 %v2130, %v2400
      %v2445 = vadd.f32 %v2131, %v2405
      %v2446 = vadd.f32 %v2132, %v2408
      %v2447 = vld [vmem:[%s192 + $0x10] sm:$0xc]
      %v2448 = vld [vmem:[%s192 + $0x14] sm:$0xf]
      %v2449 = vld [vmem:[%s192 + $0x18] sm:$0xf]
      %v2450 = vld [vmem:[%s192 + $0x1c] sm:$0xf]
      %v2451 = vld [vmem:[%s192 + $0x20] sm:$0xf]
      %v2452 = vld [vmem:[%s192 + $0x24] sm:$0xf]
      %v2453 = vld [vmem:[%s192 + $0x28] sm:$0xf]
      %v2454 = vld [vmem:[%s192 + $0x2c] sm:$0xf]
      %v2455 = vld [vmem:[%s192 + $0x30] sm:$0xf]
      %v2456 = vld [vmem:[%s192 + $0x34] sm:$0xf]
      %v2457 = vld [vmem:[%s192 + $0x38] sm:$0xf]
      %v2458 = vld [vmem:[%s192 + $0x3c] sm:$0xf]
      %v2459 = vld [vmem:[%s192 + $0x40] sm:$0xf]
      %v2460 = vld [vmem:[%s192 + $0x44] sm:$0xf]
      %v2461 = vld [vmem:[%s192 + $0x48] sm:$0xf]
      %v2462 = vld [vmem:[%s192 + $0x4c] sm:$0xf]
      %v2463 = vld [vmem:[%s192 + $0x50] sm:$0xf]
      %v2464 = vld [vmem:[%s192 + $0x54] sm:$0xf]
      %v2465 = vld [vmem:[%s192 + $0x58] sm:$0xf]
      %v2466 = vld [vmem:[%s192 + $0x5c] sm:$0xf]
      %v2467 = vld [vmem:[%s192 + $0x60] sm:$0xf]
      %v2468 = vld [vmem:[%s192 + $0x64] sm:$0xf]
      %v2469 = vld [vmem:[%s192 + $0x68] sm:$0xf]
      %v2470 = vld [vmem:[%s192 + $0x6c] sm:$0xf]
      %v2471 = vld [vmem:[%s192 + $0x70] sm:$0xf]
      %v2472 = vld [vmem:[%s192 + $0x74] sm:$0xf]
      %v2473 = vld [vmem:[%s192 + $0x78] sm:$0xf]
      %v2474 = vld [vmem:[%s192 + $0x7c] sm:$0xf]
      %v2475 = vld [vmem:[%s192 + $0x80] sm:$0xf]
      %v2476 = vld [vmem:[%s192 + $0x84] sm:$0xf]
      %v2477 = vld [vmem:[%s192 + $0x88] sm:$0xf]
      %v2478 = vld [vmem:[%s192 + $0x8c] sm:$0xf]
      %v2479 = vld [vmem:[%s192 + $0x90] sm:$0xf]
      %v2480 = vld [vmem:[%s192 + $0x94] sm:$0xf]
      %v2481 = vld [vmem:[%s192 + $0x98] sm:$0xf]
      %v2482 = vld [vmem:[%s192 + $0x9c] sm:$0xf]
      %v2483 = vld [vmem:[%s192 + $0xa0] sm:$0x3]
      %s2484 = scalar_lea.vmem %s1, 12
      %v2485 = vld [vmem:[%s2484] sm:$0x3]
      %v2523 = vunpack.c.l.b16 %v2447
      %v2524 = vunpack.c.l.b16 %v2448
      %v2525 = vunpack.c.l.b16 %v2449
      %v2526 = vunpack.c.l.b16 %v2450
      %v2527 = vunpack.c.l.b16 %v2451
      %v2528 = vunpack.c.l.b16 %v2452
      %v2529 = vunpack.c.l.b16 %v2453
      %v2530 = vunpack.c.l.b16 %v2454
      %v2531 = vunpack.c.l.b16 %v2455
      %v2532 = vunpack.c.l.b16 %v2456
      %v2533 = vunpack.c.l.b16 %v2457
      %v2534 = vunpack.c.l.b16 %v2458
      %v2535 = vunpack.c.l.b16 %v2459
      %v2536 = vunpack.c.l.b16 %v2460
      %v2537 = vunpack.c.l.b16 %v2461
      %v2538 = vunpack.c.l.b16 %v2462
      %v2539 = vunpack.c.l.b16 %v2463
      %v2540 = vunpack.c.l.b16 %v2464
      %v2541 = vunpack.c.l.b16 %v2465
      %v2542 = vunpack.c.l.b16 %v2466
      %v2543 = vunpack.c.l.b16 %v2467
      %v2544 = vunpack.c.l.b16 %v2468
      %v2545 = vunpack.c.l.b16 %v2469
      %v2546 = vunpack.c.l.b16 %v2470
      %v2547 = vunpack.c.l.b16 %v2471
      %v2548 = vunpack.c.l.b16 %v2472
      %v2549 = vunpack.c.l.b16 %v2473
      %v2550 = vunpack.c.l.b16 %v2474
      %v2551 = vunpack.c.l.b16 %v2475
      %v2552 = vunpack.c.l.b16 %v2476
      %v2553 = vunpack.c.l.b16 %v2477
      %v2554 = vunpack.c.l.b16 %v2478
      %v2555 = vunpack.c.l.b16 %v2479
      %v2556 = vunpack.c.l.b16 %v2480
      %v2557 = vunpack.c.l.b16 %v2481
      %v2558 = vunpack.c.l.b16 %v2482
      %v2559 = vunpack.c.l.b16 %v2483
      %v2560 = vpack.c.b16 %v2524, %v2523
      %v2561 = vpack.c.b16 %v2526, %v2525
      %v2562 = vpack.c.b16 %v2528, %v2527
      %v2563 = vpack.c.b16 %v2530, %v2529
      %v2564 = vpack.c.b16 %v2532, %v2531
      %v2565 = vpack.c.b16 %v2534, %v2533
      %v2566 = vpack.c.b16 %v2536, %v2535
      %v2567 = vpack.c.b16 %v2538, %v2537
      %v2568 = vpack.c.b16 %v2540, %v2539
      %v2569 = vpack.c.b16 %v2542, %v2541
      %v2570 = vpack.c.b16 %v2544, %v2543
      %v2571 = vpack.c.b16 %v2546, %v2545
      %v2572 = vpack.c.b16 %v2548, %v2547
      %v2573 = vpack.c.b16 %v2550, %v2549
      %v2574 = vpack.c.b16 %v2552, %v2551
      %v2575 = vpack.c.b16 %v2554, %v2553
      %v2576 = vpack.c.b16 %v2556, %v2555
      %v2577 = vpack.c.b16 %v2558, %v2557
      %v2578 = vpack.c.b16 %v2559, %v2559
      %v2579 = vrot.slane %v2560, 2
      %v2580 = vrot.slane %v2561, 2
      %v2581 = vsel %vm2139, %v2579, %v2580
      %v2582 = vrot.slane %v2562, 2
      %v2583 = vsel %vm2139, %v2580, %v2582
      %v2584 = vrot.slane %v2563, 2
      %v2585 = vsel %vm2139, %v2582, %v2584
      %v2586 = vrot.slane %v2564, 2
      %v2587 = vsel %vm2139, %v2584, %v2586
      %v2588 = vrot.slane %v2565, 2
      %v2589 = vsel %vm2139, %v2586, %v2588
      %v2590 = vrot.slane %v2566, 2
      %v2591 = vsel %vm2139, %v2588, %v2590
      %v2592 = vrot.slane %v2567, 2
      %v2593 = vsel %vm2139, %v2590, %v2592
      %v2594 = vrot.slane %v2568, 2
      %v2595 = vsel %vm2139, %v2592, %v2594
      %v2596 = vrot.slane %v2569, 2
      %v2597 = vsel %vm2139, %v2594, %v2596
      %v2598 = vrot.slane %v2570, 2
      %v2599 = vsel %vm2139, %v2596, %v2598
      %v2600 = vrot.slane %v2571, 2
      %v2601 = vsel %vm2139, %v2598, %v2600
      %v2602 = vrot.slane %v2572, 2
      %v2603 = vsel %vm2139, %v2600, %v2602
      %v2604 = vrot.slane %v2573, 2
      %v2605 = vsel %vm2139, %v2602, %v2604
      %v2606 = vrot.slane %v2574, 2
      %v2607 = vsel %vm2139, %v2604, %v2606
      %v2608 = vrot.slane %v2575, 2
      %v2609 = vsel %vm2139, %v2606, %v2608
      %v2610 = vrot.slane %v2576, 2
      %v2611 = vsel %vm2139, %v2608, %v2610
      %v2612 = vrot.slane %v2577, 2
      %v2613 = vsel %vm2139, %v2610, %v2612
      %v2614 = vrot.slane %v2578, 2
      %v2615 = vsel %vm2139, %v2612, %v2614
      %v2617 = vsel %vm481, %v2581, 0
      %v2620 = vsel %vm481, %v2583, 0
      %v2623 = vsel %vm481, %v2585, 0
      %v2626 = vsel %vm481, %v2587, 0
      %v2629 = vsel %vm481, %v2589, 0
      %v2632 = vsel %vm481, %v2591, 0
      %v2635 = vsel %vm481, %v2593, 0
      %v2638 = vsel %vm481, %v2595, 0
      %v2641 = vsel %vm481, %v2597, 0
      %v2644 = vsel %vm481, %v2599, 0
      %v2647 = vsel %vm481, %v2601, 0
      %v2650 = vsel %vm481, %v2603, 0
      %v2653 = vsel %vm481, %v2605, 0
      %v2656 = vsel %vm481, %v2607, 0
      %v2659 = vsel %vm481, %v2609, 0
      %v2662 = vsel %vm481, %v2611, 0
      %v2665 = vsel %vm481, %v2613, 0
      %v2668 = vsel %vm481, %v2615, 0
      %v2671 = vsel %vm536, %v2485, 0
      %2673 = vmatprep.subr.bf16.mxu0 0
      %2674 = vmatpush1.bf16.msra.mxu0 %v2671
      %2675 = vmatprep.subr.bf16.mxu0 0
      %2676 = vmatpush1.bf16.msra.mxu0 0
      %2677 = vmatprep.subr.bf16.mxu0 0
      %2678 = vmatpush1.bf16.msra.mxu0 0
      %2679 = vmatprep.subr.bf16.mxu0 0
      %2680 = vmatpush1.bf16.msra.mxu0 0
      %2681 = vmatprep.subr.bf16.mxu0 0
      %2682 = vmatpush1.bf16.msra.mxu0 0
      %2683 = vmatprep.subr.bf16.mxu0 0
      %2684 = vmatpush1.bf16.msra.mxu0 0
      %2685 = vmatprep.subr.bf16.mxu0 0
      %2686 = vmatpush1.bf16.msra.mxu0 0
      %2687 = vmatprep.subr.bf16.mxu0 0
      %2688 = vmatpush1.bf16.msra.mxu0 0
      %2689 = vmatprep.subr.bf16.mxu0 0
      %2690 = vmatpush1.bf16.msra.mxu0 0
      %2691 = vmatprep.subr.bf16.mxu0 0
      %2692 = vmatpush1.bf16.msra.mxu0 0
      %2693 = vmatprep.subr.bf16.mxu0 0
      %2694 = vmatpush1.bf16.msra.mxu0 0
      %2695 = vmatprep.subr.bf16.mxu0 0
      %2696 = vmatpush1.bf16.msra.mxu0 0
      %2697 = vmatprep.subr.bf16.mxu0 0
      %2698 = vmatpush1.bf16.msra.mxu0 0
      %2699 = vmatprep.subr.bf16.mxu0 0
      %2700 = vmatpush1.bf16.msra.mxu0 0
      %2701 = vmatprep.subr.bf16.mxu0 0
      %2702 = vmatpush1.bf16.msra.mxu0 0
      %2703 = vmatprep.subr.bf16.mxu0 0
      %2704 = vmatpush1.bf16.msra.mxu0 0
      %2705 = vmatprep.mubr.bf16.mxu0 0
      %2706 = vmatmul.mubr.bf16.gmra.mrb[0].mxu0 %v2617
      %v2707 = vpop.f32.mrb[0].mxu0
      %v2708 = vadd.f32 0.0, %v2707
      %v2709 = vpop.f32.mrb[0].mxu0
      %v2710 = vpop.f32.mrb[0].mxu0
      %v2711 = vadd.f32 0.0, %v2710
      %v2712 = vpop.f32.mrb[0].mxu0
      %2713 = vmatprep.mubr.bf16.mxu0 0
      %2714 = vmatmul.mubr.bf16.gmra.mrb[0].mxu0 %v2620
      %v2715 = vpop.f32.mrb[0].mxu0
      %v2716 = vadd.f32 0.0, %v2715
      %v2717 = vpop.f32.mrb[0].mxu0
      %v2718 = vpop.f32.mrb[0].mxu0
      %v2719 = vadd.f32 0.0, %v2718
      %v2720 = vpop.f32.mrb[0].mxu0
      %2721 = vmatprep.mubr.bf16.mxu0 0
      %2722 = vmatmul.mubr.bf16.gmra.mrb[0].mxu0 %v2623
      %v2723 = vpop.f32.mrb[0].mxu0
      %v2724 = vadd.f32 0.0, %v2723
      %v2725 = vpop.f32.mrb[0].mxu0
      %v2726 = vpop.f32.mrb[0].mxu0
      %v2727 = vadd.f32 0.0, %v2726
      %v2728 = vpop.f32.mrb[0].mxu0
      %2729 = vmatprep.mubr.bf16.mxu0 0
      %2730 = vmatmul.mubr.bf16.gmra.mrb[0].mxu0 %v2626
      %v2731 = vpop.f32.mrb[0].mxu0
      %v2732 = vadd.f32 0.0, %v2731
      %v2733 = vpop.f32.mrb[0].mxu0
      %v2734 = vpop.f32.mrb[0].mxu0
      %v2735 = vadd.f32 0.0, %v2734
      %v2736 = vpop.f32.mrb[0].mxu0
      %2737 = vmatprep.mubr.bf16.mxu0 0
      %2738 = vmatmul.mubr.bf16.gmra.mrb[0].mxu0 %v2629
      %v2739 = vpop.f32.mrb[0].mxu0
      %v2740 = vadd.f32 0.0, %v2739
      %v2741 = vpop.f32.mrb[0].mxu0
      %v2742 = vpop.f32.mrb[0].mxu0
      %v2743 = vadd.f32 0.0, %v2742
      %v2744 = vpop.f32.mrb[0].mxu0
      %2745 = vmatprep.mubr.bf16.mxu0 0
      %2746 = vmatmul.mubr.bf16.gmra.mrb[0].mxu0 %v2632
      %v2747 = vpop.f32.mrb[0].mxu0
      %v2748 = vadd.f32 0.0, %v2747
      %v2749 = vpop.f32.mrb[0].mxu0
      %v2750 = vpop.f32.mrb[0].mxu0
      %v2751 = vadd.f32 0.0, %v2750
      %v2752 = vpop.f32.mrb[0].mxu0
      %2753 = vmatprep.mubr.bf16.mxu0 0
      %2754 = vmatmul.mubr.bf16.gmra.mrb[0].mxu0 %v2635
      %v2755 = vpop.f32.mrb[0].mxu0
      %v2756 = vadd.f32 0.0, %v2755
      %v2757 = vpop.f32.mrb[0].mxu0
      %v2758 = vpop.f32.mrb[0].mxu0
      %v2759 = vadd.f32 0.0, %v2758
      %v2760 = vpop.f32.mrb[0].mxu0
      %2761 = vmatprep.mubr.bf16.mxu0 0
      %2762 = vmatmul.mubr.bf16.gmra.mrb[0].mxu0 %v2638
      %v2763 = vpop.f32.mrb[0].mxu0
      %v2764 = vadd.f32 0.0, %v2763
      %v2765 = vpop.f32.mrb[0].mxu0
      %v2766 = vpop.f32.mrb[0].mxu0
      %v2767 = vadd.f32 0.0, %v2766
      %v2768 = vpop.f32.mrb[0].mxu0
      %2769 = vmatprep.mubr.bf16.mxu0 0
      %2770 = vmatmul.mubr.bf16.gmra.mrb[0].mxu0 %v2641
      %v2771 = vpop.f32.mrb[0].mxu0
      %v2772 = vadd.f32 0.0, %v2771
      %v2773 = vpop.f32.mrb[0].mxu0
      %v2774 = vpop.f32.mrb[0].mxu0
      %v2775 = vadd.f32 0.0, %v2774
      %v2776 = vpop.f32.mrb[0].mxu0
      %2777 = vmatprep.mubr.bf16.mxu0 0
      %2778 = vmatmul.mubr.bf16.gmra.mrb[0].mxu0 %v2644
      %v2779 = vpop.f32.mrb[0].mxu0
      %v2780 = vadd.f32 0.0, %v2779
      %v2781 = vpop.f32.mrb[0].mxu0
      %v2782 = vpop.f32.mrb[0].mxu0
      %v2783 = vadd.f32 0.0, %v2782
      %v2784 = vpop.f32.mrb[0].mxu0
      %2785 = vmatprep.mubr.bf16.mxu0 0
      %2786 = vmatmul.mubr.bf16.gmra.mrb[0].mxu0 %v2647
      %v2787 = vpop.f32.mrb[0].mxu0
      %v2788 = vadd.f32 0.0, %v2787
      %v2789 = vpop.f32.mrb[0].mxu0
      %v2790 = vpop.f32.mrb[0].mxu0
      %v2791 = vadd.f32 0.0, %v2790
      %v2792 = vpop.f32.mrb[0].mxu0
      %2793 = vmatprep.mubr.bf16.mxu0 0
      %2794 = vmatmul.mubr.bf16.gmra.mrb[0].mxu0 %v2650
      %v2795 = vpop.f32.mrb[0].mxu0
      %v2796 = vadd.f32 0.0, %v2795
      %v2797 = vpop.f32.mrb[0].mxu0
      %v2798 = vpop.f32.mrb[0].mxu0
      %v2799 = vadd.f32 0.0, %v2798
      %v2800 = vpop.f32.mrb[0].mxu0
      %2801 = vmatprep.mubr.bf16.mxu0 0
      %2802 = vmatmul.mubr.bf16.gmra.mrb[0].mxu0 %v2653
      %v2803 = vpop.f32.mrb[0].mxu0
      %v2804 = vadd.f32 0.0, %v2803
      %v2805 = vpop.f32.mrb[0].mxu0
      %v2806 = vpop.f32.mrb[0].mxu0
      %v2807 = vadd.f32 0.0, %v2806
      %v2808 = vpop.f32.mrb[0].mxu0
      %2809 = vmatprep.mubr.bf16.mxu0 0
      %2810 = vmatmul.mubr.bf16.gmra.mrb[0].mxu0 %v2656
      %v2811 = vpop.f32.mrb[0].mxu0
      %v2812 = vadd.f32 0.0, %v2811
      %v2813 = vpop.f32.mrb[0].mxu0
      %v2814 = vpop.f32.mrb[0].mxu0
      %v2815 = vadd.f32 0.0, %v2814
      %v2816 = vpop.f32.mrb[0].mxu0
      %2817 = vmatprep.mubr.bf16.mxu0 0
      %2818 = vmatmul.mubr.bf16.gmra.mrb[0].mxu0 %v2659
      %v2819 = vpop.f32.mrb[0].mxu0
      %v2820 = vadd.f32 0.0, %v2819
      %v2821 = vpop.f32.mrb[0].mxu0
      %v2822 = vpop.f32.mrb[0].mxu0
      %v2823 = vadd.f32 0.0, %v2822
      %v2824 = vpop.f32.mrb[0].mxu0
      %2825 = vmatprep.mubr.bf16.mxu0 0
      %2826 = vmatmul.mubr.bf16.gmra.mrb[0].mxu0 %v2662
      %v2827 = vpop.f32.mrb[0].mxu0
      %v2828 = vadd.f32 0.0, %v2827
      %v2829 = vpop.f32.mrb[0].mxu0
      %v2830 = vpop.f32.mrb[0].mxu0
      %v2831 = vadd.f32 0.0, %v2830
      %v2832 = vpop.f32.mrb[0].mxu0
      %2833 = vmatprep.mubr.bf16.mxu0 0
      %2834 = vmatmul.mubr.bf16.gmra.mrb[0].mxu0 %v2665
      %v2835 = vpop.f32.mrb[0].mxu0
      %v2836 = vadd.f32 0.0, %v2835
      %v2837 = vpop.f32.mrb[0].mxu0
      %v2838 = vpop.f32.mrb[0].mxu0
      %v2839 = vadd.f32 0.0, %v2838
      %v2840 = vpop.f32.mrb[0].mxu0
      %2841 = vmatprep.mubr.bf16.mxu0 0
      %2842 = vmatmul.mubr.bf16.gmra.mrb[0].mxu0 %v2668
      %v2843 = vpop.f32.mrb[0].mxu0
      %v2844 = vadd.f32 0.0, %v2843
      %v2845 = vpop.f32.mrb[0].mxu0
      %v2846 = vpop.f32.mrb[0].mxu0
      %v2847 = vadd.f32 0.0, %v2846
      %v2848 = vpop.f32.mrb[0].mxu0
      %2849 = vdwg.mxu0
      %v2850 = vadd.f32 %v2411, %v2708
      %v2851 = vadd.f32 %v2412, %v2711
      %v2852 = vadd.f32 %v2413, %v2716
      %v2853 = vadd.f32 %v2414, %v2719
      %v2854 = vadd.f32 %v2415, %v2724
      %v2855 = vadd.f32 %v2416, %v2727
      %v2856 = vadd.f32 %v2417, %v2732
      %v2857 = vadd.f32 %v2418, %v2735
      %v2858 = vadd.f32 %v2419, %v2740
      %v2859 = vadd.f32 %v2420, %v2743
      %v2860 = vadd.f32 %v2421, %v2748
      %v2861 = vadd.f32 %v2422, %v2751
      %v2862 = vadd.f32 %v2423, %v2756
      %v2863 = vadd.f32 %v2424, %v2759
      %v2864 = vadd.f32 %v2425, %v2764
      %v2865 = vadd.f32 %v2426, %v2767
      %v2866 = vadd.f32 %v2427, %v2772
      %v2867 = vadd.f32 %v2428, %v2775
      %v2868 = vadd.f32 %v2429, %v2780
      %v2869 = vadd.f32 %v2430, %v2783
      %v2870 = vadd.f32 %v2431, %v2788
      %v2871 = vadd.f32 %v2432, %v2791
      %v2872 = vadd.f32 %v2433, %v2796
      %v2873 = vadd.f32 %v2434, %v2799
      %v2874 = vadd.f32 %v2435, %v2804
      %v2875 = vadd.f32 %v2436, %v2807
      %v2876 = vadd.f32 %v2437, %v2812
      %v2877 = vadd.f32 %v2438, %v2815
      %v2878 = vadd.f32 %v2439, %v2820
      %v2879 = vadd.f32 %v2440, %v2823
      %v2880 = vadd.f32 %v2441, %v2828
      %v2881 = vadd.f32 %v2442, %v2831
      %v2882 = vadd.f32 %v2443, %v2836
      %v2883 = vadd.f32 %v2444, %v2839
      %v2884 = vadd.f32 %v2445, %v2844
      %v2885 = vadd.f32 %v2446, %v2847
      %v2886 = vld [vmem:[%s192 + $0xa0] sm:$0x7]
      %s2887 = scalar_lea.vmem %s1, 14
      %v2888 = vld [vmem:[%s2887] sm:$0x3]
      %v2890 = vunpack.c.l.b16 %v2886
      %v2891 = vpack.c.b16 %v2890, %v2890
      %vm2892 = vsmask.f32 5376
      %v2894 = vshrl.u32 %v2560, 16
      %v2896 = vrot.slane %v2894, 2
      %v2897 = vshll.u32 %v2560, 16
      %v2899 = vrot.slane %v2897, 3
      %v2900 = vor.u32 %v2896, %v2899
      %v2902 = vshrl.u32 %v2561, 16
      %v2904 = vrot.slane %v2902, 2
      %v2905 = vshll.u32 %v2561, 16
      %v2907 = vrot.slane %v2905, 3
      %v2908 = vor.u32 %v2904, %v2907
      %v2909 = vsel %vm2892, %v2900, %v2908
      %v2911 = vshrl.u32 %v2562, 16
      %v2913 = vrot.slane %v2911, 2
      %v2914 = vshll.u32 %v2562, 16
      %v2916 = vrot.slane %v2914, 3
      %v2917 = vor.u32 %v2913, %v2916
      %v2918 = vsel %vm2892, %v2908, %v2917
      %v2920 = vshrl.u32 %v2563, 16
      %v2922 = vrot.slane %v2920, 2
      %v2923 = vshll.u32 %v2563, 16
      %v2925 = vrot.slane %v2923, 3
      %v2926 = vor.u32 %v2922, %v2925
      %v2927 = vsel %vm2892, %v2917, %v2926
      %v2929 = vshrl.u32 %v2564, 16
      %v2931 = vrot.slane %v2929, 2
      %v2932 = vshll.u32 %v2564, 16
      %v2934 = vrot.slane %v2932, 3
      %v2935 = vor.u32 %v2931, %v2934
      %v2936 = vsel %vm2892, %v2926, %v2935
      %v2938 = vshrl.u32 %v2565, 16
      %v2940 = vrot.slane %v2938, 2
      %v2941 = vshll.u32 %v2565, 16
      %v2943 = vrot.slane %v2941, 3
      %v2944 = vor.u32 %v2940, %v2943
      %v2945 = vsel %vm2892, %v2935, %v2944
      %v2947 = vshrl.u32 %v2566, 16
      %v2949 = vrot.slane %v2947, 2
      %v2950 = vshll.u32 %v2566, 16
      %v2952 = vrot.slane %v2950, 3
      %v2953 = vor.u32 %v2949, %v2952
      %v2954 = vsel %vm2892, %v2944, %v2953
      %v2956 = vshrl.u32 %v2567, 16
      %v2958 = vrot.slane %v2956, 2
      %v2959 = vshll.u32 %v2567, 16
      %v2961 = vrot.slane %v2959, 3
      %v2962 = vor.u32 %v2958, %v2961
      %v2963 = vsel %vm2892, %v2953, %v2962
      %v2965 = vshrl.u32 %v2568, 16
      %v2967 = vrot.slane %v2965, 2
      %v2968 = vshll.u32 %v2568, 16
      %v2970 = vrot.slane %v2968, 3
      %v2971 = vor.u32 %v2967, %v2970
      %v2972 = vsel %vm2892, %v2962, %v2971
      %v2974 = vshrl.u32 %v2569, 16
      %v2976 = vrot.slane %v2974, 2
      %v2977 = vshll.u32 %v2569, 16
      %v2979 = vrot.slane %v2977, 3
      %v2980 = vor.u32 %v2976, %v2979
      %v2981 = vsel %vm2892, %v2971, %v2980
      %v2983 = vshrl.u32 %v2570, 16
      %v2985 = vrot.slane %v2983, 2
      %v2986 = vshll.u32 %v2570, 16
      %v2988 = vrot.slane %v2986, 3
      %v2989 = vor.u32 %v2985, %v2988
      %v2990 = vsel %vm2892, %v2980, %v2989
      %v2992 = vshrl.u32 %v2571, 16
      %v2994 = vrot.slane %v2992, 2
      %v2995 = vshll.u32 %v2571, 16
      %v2997 = vrot.slane %v2995, 3
      %v2998 = vor.u32 %v2994, %v2997
      %v2999 = vsel %vm2892, %v2989, %v2998
      %v3001 = vshrl.u32 %v2572, 16
      %v3003 = vrot.slane %v3001, 2
      %v3004 = vshll.u32 %v2572, 16
      %v3006 = vrot.slane %v3004, 3
      %v3007 = vor.u32 %v3003, %v3006
      %v3008 = vsel %vm2892, %v2998, %v3007
      %v3010 = vshrl.u32 %v2573, 16
      %v3012 = vrot.slane %v3010, 2
      %v3013 = vshll.u32 %v2573, 16
      %v3015 = vrot.slane %v3013, 3
      %v3016 = vor.u32 %v3012, %v3015
      %v3017 = vsel %vm2892, %v3007, %v3016
      %v3019 = vshrl.u32 %v2574, 16
      %v3021 = vrot.slane %v3019, 2
      %v3022 = vshll.u32 %v2574, 16
      %v3024 = vrot.slane %v3022, 3
      %v3025 = vor.u32 %v3021, %v3024
      %v3026 = vsel %vm2892, %v3016, %v3025
      %v3028 = vshrl.u32 %v2575, 16
      %v3030 = vrot.slane %v3028, 2
      %v3031 = vshll.u32 %v2575, 16
      %v3033 = vrot.slane %v3031, 3
      %v3034 = vor.u32 %v3030, %v3033
      %v3035 = vsel %vm2892, %v3025, %v3034
      %v3037 = vshrl.u32 %v2576, 16
      %v3039 = vrot.slane %v3037, 2
      %v3040 = vshll.u32 %v2576, 16
      %v3042 = vrot.slane %v3040, 3
      %v3043 = vor.u32 %v3039, %v3042
      %v3044 = vsel %vm2892, %v3034, %v3043
      %v3046 = vshrl.u32 %v2577, 16
      %v3048 = vrot.slane %v3046, 2
      %v3049 = vshll.u32 %v2577, 16
      %v3051 = vrot.slane %v3049, 3
      %v3052 = vor.u32 %v3048, %v3051
      %v3053 = vsel %vm2892, %v3043, %v3052
      %v3055 = vshrl.u32 %v2891, 16
      %v3057 = vrot.slane %v3055, 2
      %v3058 = vshll.u32 %v2891, 16
      %v3060 = vrot.slane %v3058, 3
      %v3061 = vor.u32 %v3057, %v3060
      %v3062 = vsel %vm2892, %v3052, %v3061
      %v3064 = vsel %vm481, %v2909, 0
      %v3067 = vsel %vm481, %v2918, 0
      %v3070 = vsel %vm481, %v2927, 0
      %v3073 = vsel %vm481, %v2936, 0
      %v3076 = vsel %vm481, %v2945, 0
      %v3079 = vsel %vm481, %v2954, 0
      %v3082 = vsel %vm481, %v2963, 0
      %v3085 = vsel %vm481, %v2972, 0
      %v3088 = vsel %vm481, %v2981, 0
      %v3091 = vsel %vm481, %v2990, 0
      %v3094 = vsel %vm481, %v2999, 0
      %v3097 = vsel %vm481, %v3008, 0
      %v3100 = vsel %vm481, %v3017, 0
      %v3103 = vsel %vm481, %v3026, 0
      %v3106 = vsel %vm481, %v3035, 0
      %v3109 = vsel %vm481, %v3044, 0
      %v3112 = vsel %vm481, %v3053, 0
      %v3115 = vsel %vm481, %v3062, 0
      %v3118 = vsel %vm536, %v2888, 0
      %3120 = vmatprep.subr.bf16.mxu0 0
      %3121 = vmatpush1.bf16.msra.mxu0 %v3118
      %3122 = vmatprep.subr.bf16.mxu0 0
      %3123 = vmatpush1.bf16.msra.mxu0 0
      %3124 = vmatprep.subr.bf16.mxu0 0
      %3125 = vmatpush1.bf16.msra.mxu0 0
      %3126 = vmatprep.subr.bf16.mxu0 0
      %3127 = vmatpush1.bf16.msra.mxu0 0
      %3128 = vmatprep.subr.bf16.mxu0 0
      %3129 = vmatpush1.bf16.msra.mxu0 0
      %3130 = vmatprep.subr.bf16.mxu0 0
      %3131 = vmatpush1.bf16.msra.mxu0 0
      %3132 = vmatprep.subr.bf16.mxu0 0
      %3133 = vmatpush1.bf16.msra.mxu0 0
      %3134 = vmatprep.subr.bf16.mxu0 0
      %3135 = vmatpush1.bf16.msra.mxu0 0
      %3136 = vmatprep.subr.bf16.mxu0 0
      %3137 = vmatpush1.bf16.msra.mxu0 0
      %3138 = vmatprep.subr.bf16.mxu0 0
      %3139 = vmatpush1.bf16.msra.mxu0 0
      %3140 = vmatprep.subr.bf16.mxu0 0
      %3141 = vmatpush1.bf16.msra.mxu0 0
      %3142 = vmatprep.subr.bf16.mxu0 0
      %3143 = vmatpush1.bf16.msra.mxu0 0
      %3144 = vmatprep.subr.bf16.mxu0 0
      %3145 = vmatpush1.bf16.msra.mxu0 0
      %3146 = vmatprep.subr.bf16.mxu0 0
      %3147 = vmatpush1.bf16.msra.mxu0 0
      %3148 = vmatprep.subr.bf16.mxu0 0
      %3149 = vmatpush1.bf16.msra.mxu0 0
      %3150 = vmatprep.subr.bf16.mxu0 0
      %3151 = vmatpush1.bf16.msra.mxu0 0
      %3152 = vmatprep.mubr.bf16.mxu0 0
      %3153 = vmatmul.mubr.bf16.gmra.mrb[0].mxu0 %v3064
      %v3154 = vpop.f32.mrb[0].mxu0
      %v3155 = vadd.f32 0.0, %v3154
      %v3156 = vpop.f32.mrb[0].mxu0
      %v3157 = vpop.f32.mrb[0].mxu0
      %v3158 = vadd.f32 0.0, %v3157
      %v3159 = vpop.f32.mrb[0].mxu0
      %3160 = vmatprep.mubr.bf16.mxu0 0
      %3161 = vmatmul.mubr.bf16.gmra.mrb[0].mxu0 %v3067
      %v3162 = vpop.f32.mrb[0].mxu0
      %v3163 = vadd.f32 0.0, %v3162
      %v3164 = vpop.f32.mrb[0].mxu0
      %v3165 = vpop.f32.mrb[0].mxu0
      %v3166 = vadd.f32 0.0, %v3165
      %v3167 = vpop.f32.mrb[0].mxu0
      %3168 = vmatprep.mubr.bf16.mxu0 0
      %3169 = vmatmul.mubr.bf16.gmra.mrb[0].mxu0 %v3070
      %v3170 = vpop.f32.mrb[0].mxu0
      %v3171 = vadd.f32 0.0, %v3170
      %v3172 = vpop.f32.mrb[0].mxu0
      %v3173 = vpop.f32.mrb[0].mxu0
      %v3174 = vadd.f32 0.0, %v3173
      %v3175 = vpop.f32.mrb[0].mxu0
      %3176 = vmatprep.mubr.bf16.mxu0 0
      %3177 = vmatmul.mubr.bf16.gmra.mrb[0].mxu0 %v3073
      %v3178 = vpop.f32.mrb[0].mxu0
      %v3179 = vadd.f32 0.0, %v3178
      %v3180 = vpop.f32.mrb[0].mxu0
      %v3181 = vpop.f32.mrb[0].mxu0
      %v3182 = vadd.f32 0.0, %v3181
      %v3183 = vpop.f32.mrb[0].mxu0
      %3184 = vmatprep.mubr.bf16.mxu0 0
      %3185 = vmatmul.mubr.bf16.gmra.mrb[0].mxu0 %v3076
      %v3186 = vpop.f32.mrb[0].mxu0
      %v3187 = vadd.f32 0.0, %v3186
      %v3188 = vpop.f32.mrb[0].mxu0
      %v3189 = vpop.f32.mrb[0].mxu0
      %v3190 = vadd.f32 0.0, %v3189
      %v3191 = vpop.f32.mrb[0].mxu0
      %3192 = vmatprep.mubr.bf16.mxu0 0
      %3193 = vmatmul.mubr.bf16.gmra.mrb[0].mxu0 %v3079
      %v3194 = vpop.f32.mrb[0].mxu0
      %v3195 = vadd.f32 0.0, %v3194
      %v3196 = vpop.f32.mrb[0].mxu0
      %v3197 = vpop.f32.mrb[0].mxu0
      %v3198 = vadd.f32 0.0, %v3197
      %v3199 = vpop.f32.mrb[0].mxu0
      %3200 = vmatprep.mubr.bf16.mxu0 0
      %3201 = vmatmul.mubr.bf16.gmra.mrb[0].mxu0 %v3082
      %v3202 = vpop.f32.mrb[0].mxu0
      %v3203 = vadd.f32 0.0, %v3202
      %v3204 = vpop.f32.mrb[0].mxu0
      %v3205 = vpop.f32.mrb[0].mxu0
      %v3206 = vadd.f32 0.0, %v3205
      %v3207 = vpop.f32.mrb[0].mxu0
      %3208 = vmatprep.mubr.bf16.mxu0 0
      %3209 = vmatmul.mubr.bf16.gmra.mrb[0].mxu0 %v3085
      %v3210 = vpop.f32.mrb[0].mxu0
      %v3211 = vadd.f32 0.0, %v3210
      %v3212 = vpop.f32.mrb[0].mxu0
      %v3213 = vpop.f32.mrb[0].mxu0
      %v3214 = vadd.f32 0.0, %v3213
      %v3215 = vpop.f32.mrb[0].mxu0
      %3216 = vmatprep.mubr.bf16.mxu0 0
      %3217 = vmatmul.mubr.bf16.gmra.mrb[0].mxu0 %v3088
      %v3218 = vpop.f32.mrb[0].mxu0
      %v3219 = vadd.f32 0.0, %v3218
      %v3220 = vpop.f32.mrb[0].mxu0
      %v3221 = vpop.f32.mrb[0].mxu0
      %v3222 = vadd.f32 0.0, %v3221
      %v3223 = vpop.f32.mrb[0].mxu0
      %3224 = vmatprep.mubr.bf16.mxu0 0
      %3225 = vmatmul.mubr.bf16.gmra.mrb[0].mxu0 %v3091
      %v3226 = vpop.f32.mrb[0].mxu0
      %v3227 = vadd.f32 0.0, %v3226
      %v3228 = vpop.f32.mrb[0].mxu0
      %v3229 = vpop.f32.mrb[0].mxu0
      %v3230 = vadd.f32 0.0, %v3229
      %v3231 = vpop.f32.mrb[0].mxu0
      %3232 = vmatprep.mubr.bf16.mxu0 0
      %3233 = vmatmul.mubr.bf16.gmra.mrb[0].mxu0 %v3094
      %v3234 = vpop.f32.mrb[0].mxu0
      %v3235 = vadd.f32 0.0, %v3234
      %v3236 = vpop.f32.mrb[0].mxu0
      %v3237 = vpop.f32.mrb[0].mxu0
      %v3238 = vadd.f32 0.0, %v3237
      %v3239 = vpop.f32.mrb[0].mxu0
      %3240 = vmatprep.mubr.bf16.mxu0 0
      %3241 = vmatmul.mubr.bf16.gmra.mrb[0].mxu0 %v3097
      %v3242 = vpop.f32.mrb[0].mxu0
      %v3243 = vadd.f32 0.0, %v3242
      %v3244 = vpop.f32.mrb[0].mxu0
      %v3245 = vpop.f32.mrb[0].mxu0
      %v3246 = vadd.f32 0.0, %v3245
      %v3247 = vpop.f32.mrb[0].mxu0
      %3248 = vmatprep.mubr.bf16.mxu0 0
      %3249 = vmatmul.mubr.bf16.gmra.mrb[0].mxu0 %v3100
      %v3250 = vpop.f32.mrb[0].mxu0
      %v3251 = vadd.f32 0.0, %v3250
      %v3252 = vpop.f32.mrb[0].mxu0
      %v3253 = vpop.f32.mrb[0].mxu0
      %v3254 = vadd.f32 0.0, %v3253
      %v3255 = vpop.f32.mrb[0].mxu0
      %3256 = vmatprep.mubr.bf16.mxu0 0
      %3257 = vmatmul.mubr.bf16.gmra.mrb[0].mxu0 %v3103
      %v3258 = vpop.f32.mrb[0].mxu0
      %v3259 = vadd.f32 0.0, %v3258
      %v3260 = vpop.f32.mrb[0].mxu0
      %v3261 = vpop.f32.mrb[0].mxu0
      %v3262 = vadd.f32 0.0, %v3261
      %v3263 = vpop.f32.mrb[0].mxu0
      %3264 = vmatprep.mubr.bf16.mxu0 0
      %3265 = vmatmul.mubr.bf16.gmra.mrb[0].mxu0 %v3106
      %v3266 = vpop.f32.mrb[0].mxu0
      %v3267 = vadd.f32 0.0, %v3266
      %v3268 = vpop.f32.mrb[0].mxu0
      %v3269 = vpop.f32.mrb[0].mxu0
      %v3270 = vadd.f32 0.0, %v3269
      %v3271 = vpop.f32.mrb[0].mxu0
      %3272 = vmatprep.mubr.bf16.mxu0 0
      %3273 = vmatmul.mubr.bf16.gmra.mrb[0].mxu0 %v3109
      %v3274 = vpop.f32.mrb[0].mxu0
      %v3275 = vadd.f32 0.0, %v3274
      %v3276 = vpop.f32.mrb[0].mxu0
      %v3277 = vpop.f32.mrb[0].mxu0
      %v3278 = vadd.f32 0.0, %v3277
      %v3279 = vpop.f32.mrb[0].mxu0
      %3280 = vmatprep.mubr.bf16.mxu0 0
      %3281 = vmatmul.mubr.bf16.gmra.mrb[0].mxu0 %v3112
      %v3282 = vpop.f32.mrb[0].mxu0
      %v3283 = vadd.f32 0.0, %v3282
      %v3284 = vpop.f32.mrb[0].mxu0
      %v3285 = vpop.f32.mrb[0].mxu0
      %v3286 = vadd.f32 0.0, %v3285
      %v3287 = vpop.f32.mrb[0].mxu0
      %3288 = vmatprep.mubr.bf16.mxu0 0
      %3289 = vmatmul.mubr.bf16.gmra.mrb[0].mxu0 %v3115
      %v3290 = vpop.f32.mrb[0].mxu0
      %v3291 = vadd.f32 0.0, %v3290
      %v3292 = vpop.f32.mrb[0].mxu0
      %v3293 = vpop.f32.mrb[0].mxu0
      %v3294 = vadd.f32 0.0, %v3293
      %v3295 = vpop.f32.mrb[0].mxu0
      %3296 = vdwg.mxu0
      %v3297 = vadd.f32 %v2850, %v3155
      %v3298 = vadd.f32 %v2851, %v3158
      %v3299 = vadd.f32 %v2852, %v3163
      %v3300 = vadd.f32 %v2853, %v3166
      %v3301 = vadd.f32 %v2854, %v3171
      %v3302 = vadd.f32 %v2855, %v3174
      %v3303 = vadd.f32 %v2856, %v3179
      %v3304 = vadd.f32 %v2857, %v3182
      %v3305 = vadd.f32 %v2858, %v3187
      %v3306 = vadd.f32 %v2859, %v3190
      %v3307 = vadd.f32 %v2860, %v3195
      %v3308 = vadd.f32 %v2861, %v3198
      %v3309 = vadd.f32 %v2862, %v3203
      %v3310 = vadd.f32 %v2863, %v3206
      %v3311 = vadd.f32 %v2864, %v3211
      %v3312 = vadd.f32 %v2865, %v3214
      %v3313 = vadd.f32 %v2866, %v3219
      %v3314 = vadd.f32 %v2867, %v3222
      %v3315 = vadd.f32 %v2868, %v3227
      %v3316 = vadd.f32 %v2869, %v3230
      %v3317 = vadd.f32 %v2870, %v3235
      %v3318 = vadd.f32 %v2871, %v3238
      %v3319 = vadd.f32 %v2872, %v3243
      %v3320 = vadd.f32 %v2873, %v3246
      %v3321 = vadd.f32 %v2874, %v3251
      %v3322 = vadd.f32 %v2875, %v3254
      %v3323 = vadd.f32 %v2876, %v3259
      %v3324 = vadd.f32 %v2877, %v3262
      %v3325 = vadd.f32 %v2878, %v3267
      %v3326 = vadd.f32 %v2879, %v3270
      %v3327 = vadd.f32 %v2880, %v3275
      %v3328 = vadd.f32 %v2881, %v3278
      %v3329 = vadd.f32 %v2882, %v3283
      %v3330 = vadd.f32 %v2883, %v3286
      %v3331 = vadd.f32 %v2884, %v3291
      %v3332 = vadd.f32 %v2885, %v3294
      %v3333 = vld [vmem:[%s192 + $0x10] sm:$0x8]
      %s3334 = scalar_lea.vmem %s1, 16
      %v3335 = vld [vmem:[%s3334] sm:$0x3]
      %v3337 = vunpack.c.l.b16 %v3333
      %v3338 = vpack.c.b16 %v2524, %v3337
      %vm3339 = vcmask 1044480
      %v3340 = vrot.slane %v3338, 3
      %v3341 = vrot.slane %v2561, 3
      %v3342 = vsel %vm3339, %v3340, %v3341
      %v3343 = vrot.slane %v2562, 3
      %v3344 = vsel %vm3339, %v3341, %v3343
      %v3345 = vrot.slane %v2563, 3
      %v3346 = vsel %vm3339, %v3343, %v3345
      %v3347 = vrot.slane %v2564, 3
      %v3348 = vsel %vm3339, %v3345, %v3347
      %v3349 = vrot.slane %v2565, 3
      %v3350 = vsel %vm3339, %v3347, %v3349
      %v3351 = vrot.slane %v2566, 3
      %v3352 = vsel %vm3339, %v3349, %v3351
      %v3353 = vrot.slane %v2567, 3
      %v3354 = vsel %vm3339, %v3351, %v3353
      %v3355 = vrot.slane %v2568, 3
      %v3356 = vsel %vm3339, %v3353, %v3355
      %v3357 = vrot.slane %v2569, 3
      %v3358 = vsel %vm3339, %v3355, %v3357
      %v3359 = vrot.slane %v2570, 3
      %v3360 = vsel %vm3339, %v3357, %v3359
      %v3361 = vrot.slane %v2571, 3
      %v3362 = vsel %vm3339, %v3359, %v3361
      %v3363 = vrot.slane %v2572, 3
      %v3364 = vsel %vm3339, %v3361, %v3363
      %v3365 = vrot.slane %v2573, 3
      %v3366 = vsel %vm3339, %v3363, %v3365
      %v3367 = vrot.slane %v2574, 3
      %v3368 = vsel %vm3339, %v3365, %v3367
      %v3369 = vrot.slane %v2575, 3
      %v3370 = vsel %vm3339, %v3367, %v3369
      %v3371 = vrot.slane %v2576, 3
      %v3372 = vsel %vm3339, %v3369, %v3371
      %v3373 = vrot.slane %v2577, 3
      %v3374 = vsel %vm3339, %v3371, %v3373
      %v3375 = vrot.slane %v2891, 3
      %v3376 = vsel %vm3339, %v3373, %v3375
      %v3378 = vsel %vm481, %v3342, 0
      %v3381 = vsel %vm481, %v3344, 0
      %v3384 = vsel %vm481, %v3346, 0
      %v3387 = vsel %vm481, %v3348, 0
      %v3390 = vsel %vm481, %v3350, 0
      %v3393 = vsel %vm481, %v3352, 0
      %v3396 = vsel %vm481, %v3354, 0
      %v3399 = vsel %vm481, %v3356, 0
      %v3402 = vsel %vm481, %v3358, 0
      %v3405 = vsel %vm481, %v3360, 0
      %v3408 = vsel %vm481, %v3362, 0
      %v3411 = vsel %vm481, %v3364, 0
      %v3414 = vsel %vm481, %v3366, 0
      %v3417 = vsel %vm481, %v3368, 0
      %v3420 = vsel %vm481, %v3370, 0
      %v3423 = vsel %vm481, %v3372, 0
      %v3426 = vsel %vm481, %v3374, 0
      %v3429 = vsel %vm481, %v3376, 0
      %v3432 = vsel %vm536, %v3335, 0
      %3434 = vmatprep.subr.bf16.mxu0 0
      %3435 = vmatpush1.bf16.msra.mxu0 %v3432
      %3436 = vmatprep.subr.bf16.mxu0 0
      %3437 = vmatpush1.bf16.msra.mxu0 0
      %3438 = vmatprep.subr.bf16.mxu0 0
      %3439 = vmatpush1.bf16.msra.mxu0 0
      %3440 = vmatprep.subr.bf16.mxu0 0
      %3441 = vmatpush1.bf16.msra.mxu0 0
      %3442 = vmatprep.subr.bf16.mxu0 0
      %3443 = vmatpush1.bf16.msra.mxu0 0
      %3444 = vmatprep.subr.bf16.mxu0 0
      %3445 = vmatpush1.bf16.msra.mxu0 0
      %3446 = vmatprep.subr.bf16.mxu0 0
      %3447 = vmatpush1.bf16.msra.mxu0 0
      %3448 = vmatprep.subr.bf16.mxu0 0
      %3449 = vmatpush1.bf16.msra.mxu0 0
      %3450 = vmatprep.subr.bf16.mxu0 0
      %3451 = vmatpush1.bf16.msra.mxu0 0
      %3452 = vmatprep.subr.bf16.mxu0 0
      %3453 = vmatpush1.bf16.msra.mxu0 0
      %3454 = vmatprep.subr.bf16.mxu0 0
      %3455 = vmatpush1.bf16.msra.mxu0 0
      %3456 = vmatprep.subr.bf16.mxu0 0
      %3457 = vmatpush1.bf16.msra.mxu0 0
      %3458 = vmatprep.subr.bf16.mxu0 0
      %3459 = vmatpush1.bf16.msra.mxu0 0
      %3460 = vmatprep.subr.bf16.mxu0 0
      %3461 = vmatpush1.bf16.msra.mxu0 0
      %3462 = vmatprep.subr.bf16.mxu0 0
      %3463 = vmatpush1.bf16.msra.mxu0 0
      %3464 = vmatprep.subr.bf16.mxu0 0
      %3465 = vmatpush1.bf16.msra.mxu0 0
      %3466 = vmatprep.mubr.bf16.mxu0 0
      %3467 = vmatmul.mubr.bf16.gmra.mrb[0].mxu0 %v3378
      %v3468 = vpop.f32.mrb[0].mxu0
      %v3469 = vadd.f32 0.0, %v3468
      %v3470 = vpop.f32.mrb[0].mxu0
      %v3471 = vpop.f32.mrb[0].mxu0
      %v3472 = vadd.f32 0.0, %v3471
      %v3473 = vpop.f32.mrb[0].mxu0
      %3474 = vmatprep.mubr.bf16.mxu0 0
      %3475 = vmatmul.mubr.bf16.gmra.mrb[0].mxu0 %v3381
      %v3476 = vpop.f32.mrb[0].mxu0
      %v3477 = vadd.f32 0.0, %v3476
      %v3478 = vpop.f32.mrb[0].mxu0
      %v3479 = vpop.f32.mrb[0].mxu0
      %v3480 = vadd.f32 0.0, %v3479
      %v3481 = vpop.f32.mrb[0].mxu0
      %3482 = vmatprep.mubr.bf16.mxu0 0
      %3483 = vmatmul.mubr.bf16.gmra.mrb[0].mxu0 %v3384
      %v3484 = vpop.f32.mrb[0].mxu0
      %v3485 = vadd.f32 0.0, %v3484
      %v3486 = vpop.f32.mrb[0].mxu0
      %v3487 = vpop.f32.mrb[0].mxu0
      %v3488 = vadd.f32 0.0, %v3487
      %v3489 = vpop.f32.mrb[0].mxu0
      %3490 = vmatprep.mubr.bf16.mxu0 0
      %3491 = vmatmul.mubr.bf16.gmra.mrb[0].mxu0 %v3387
      %v3492 = vpop.f32.mrb[0].mxu0
      %v3493 = vadd.f32 0.0, %v3492
      %v3494 = vpop.f32.mrb[0].mxu0
      %v3495 = vpop.f32.mrb[0].mxu0
      %v3496 = vadd.f32 0.0, %v3495
      %v3497 = vpop.f32.mrb[0].mxu0
      %3498 = vmatprep.mubr.bf16.mxu0 0
      %3499 = vmatmul.mubr.bf16.gmra.mrb[0].mxu0 %v3390
      %v3500 = vpop.f32.mrb[0].mxu0
      %v3501 = vadd.f32 0.0, %v3500
      %v3502 = vpop.f32.mrb[0].mxu0
      %v3503 = vpop.f32.mrb[0].mxu0
      %v3504 = vadd.f32 0.0, %v3503
      %v3505 = vpop.f32.mrb[0].mxu0
      %3506 = vmatprep.mubr.bf16.mxu0 0
      %3507 = vmatmul.mubr.bf16.gmra.mrb[0].mxu0 %v3393
      %v3508 = vpop.f32.mrb[0].mxu0
      %v3509 = vadd.f32 0.0, %v3508
      %v3510 = vpop.f32.mrb[0].mxu0
      %v3511 = vpop.f32.mrb[0].mxu0
      %v3512 = vadd.f32 0.0, %v3511
      %v3513 = vpop.f32.mrb[0].mxu0
      %3514 = vmatprep.mubr.bf16.mxu0 0
      %3515 = vmatmul.mubr.bf16.gmra.mrb[0].mxu0 %v3396
      %v3516 = vpop.f32.mrb[0].mxu0
      %v3517 = vadd.f32 0.0, %v3516
      %v3518 = vpop.f32.mrb[0].mxu0
      %v3519 = vpop.f32.mrb[0].mxu0
      %v3520 = vadd.f32 0.0, %v3519
      %v3521 = vpop.f32.mrb[0].mxu0
      %3522 = vmatprep.mubr.bf16.mxu0 0
      %3523 = vmatmul.mubr.bf16.gmra.mrb[0].mxu0 %v3399
      %v3524 = vpop.f32.mrb[0].mxu0
      %v3525 = vadd.f32 0.0, %v3524
      %v3526 = vpop.f32.mrb[0].mxu0
      %v3527 = vpop.f32.mrb[0].mxu0
      %v3528 = vadd.f32 0.0, %v3527
      %v3529 = vpop.f32.mrb[0].mxu0
      %3530 = vmatprep.mubr.bf16.mxu0 0
      %3531 = vmatmul.mubr.bf16.gmra.mrb[0].mxu0 %v3402
      %v3532 = vpop.f32.mrb[0].mxu0
      %v3533 = vadd.f32 0.0, %v3532
      %v3534 = vpop.f32.mrb[0].mxu0
      %v3535 = vpop.f32.mrb[0].mxu0
      %v3536 = vadd.f32 0.0, %v3535
      %v3537 = vpop.f32.mrb[0].mxu0
      %3538 = vmatprep.mubr.bf16.mxu0 0
      %3539 = vmatmul.mubr.bf16.gmra.mrb[0].mxu0 %v3405
      %v3540 = vpop.f32.mrb[0].mxu0
      %v3541 = vadd.f32 0.0, %v3540
      %v3542 = vpop.f32.mrb[0].mxu0
      %v3543 = vpop.f32.mrb[0].mxu0
      %v3544 = vadd.f32 0.0, %v3543
      %v3545 = vpop.f32.mrb[0].mxu0
      %3546 = vmatprep.mubr.bf16.mxu0 0
      %3547 = vmatmul.mubr.bf16.gmra.mrb[0].mxu0 %v3408
      %v3548 = vpop.f32.mrb[0].mxu0
      %v3549 = vadd.f32 0.0, %v3548
      %v3550 = vpop.f32.mrb[0].mxu0
      %v3551 = vpop.f32.mrb[0].mxu0
      %v3552 = vadd.f32 0.0, %v3551
      %v3553 = vpop.f32.mrb[0].mxu0
      %3554 = vmatprep.mubr.bf16.mxu0 0
      %3555 = vmatmul.mubr.bf16.gmra.mrb[0].mxu0 %v3411
      %v3556 = vpop.f32.mrb[0].mxu0
      %v3557 = vadd.f32 0.0, %v3556
      %v3558 = vpop.f32.mrb[0].mxu0
      %v3559 = vpop.f32.mrb[0].mxu0
      %v3560 = vadd.f32 0.0, %v3559
      %v3561 = vpop.f32.mrb[0].mxu0
      %3562 = vmatprep.mubr.bf16.mxu0 0
      %3563 = vmatmul.mubr.bf16.gmra.mrb[0].mxu0 %v3414
      %v3564 = vpop.f32.mrb[0].mxu0
      %v3565 = vadd.f32 0.0, %v3564
      %v3566 = vpop.f32.mrb[0].mxu0
      %v3567 = vpop.f32.mrb[0].mxu0
      %v3568 = vadd.f32 0.0, %v3567
      %v3569 = vpop.f32.mrb[0].mxu0
      %3570 = vmatprep.mubr.bf16.mxu0 0
      %3571 = vmatmul.mubr.bf16.gmra.mrb[0].mxu0 %v3417
      %v3572 = vpop.f32.mrb[0].mxu0
      %v3573 = vadd.f32 0.0, %v3572
      %v3574 = vpop.f32.mrb[0].mxu0
      %v3575 = vpop.f32.mrb[0].mxu0
      %v3576 = vadd.f32 0.0, %v3575
      %v3577 = vpop.f32.mrb[0].mxu0
      %3578 = vmatprep.mubr.bf16.mxu0 0
      %3579 = vmatmul.mubr.bf16.gmra.mrb[0].mxu0 %v3420
      %v3580 = vpop.f32.mrb[0].mxu0
      %v3581 = vadd.f32 0.0, %v3580
      %v3582 = vpop.f32.mrb[0].mxu0
      %v3583 = vpop.f32.mrb[0].mxu0
      %v3584 = vadd.f32 0.0, %v3583
      %v3585 = vpop.f32.mrb[0].mxu0
      %3586 = vmatprep.mubr.bf16.mxu0 0
      %3587 = vmatmul.mubr.bf16.gmra.mrb[0].mxu0 %v3423
      %v3588 = vpop.f32.mrb[0].mxu0
      %v3589 = vadd.f32 0.0, %v3588
      %v3590 = vpop.f32.mrb[0].mxu0
      %v3591 = vpop.f32.mrb[0].mxu0
      %v3592 = vadd.f32 0.0, %v3591
      %v3593 = vpop.f32.mrb[0].mxu0
      %3594 = vmatprep.mubr.bf16.mxu0 0
      %3595 = vmatmul.mubr.bf16.gmra.mrb[0].mxu0 %v3426
      %v3596 = vpop.f32.mrb[0].mxu0
      %v3597 = vadd.f32 0.0, %v3596
      %v3598 = vpop.f32.mrb[0].mxu0
      %v3599 = vpop.f32.mrb[0].mxu0
      %v3600 = vadd.f32 0.0, %v3599
      %v3601 = vpop.f32.mrb[0].mxu0
      %3602 = vmatprep.mubr.bf16.mxu0 0
      %3603 = vmatmul.mubr.bf16.gmra.mrb[0].mxu0 %v3429
      %v3604 = vpop.f32.mrb[0].mxu0
      %v3605 = vadd.f32 0.0, %v3604
      %v3606 = vpop.f32.mrb[0].mxu0
      %v3607 = vpop.f32.mrb[0].mxu0
      %v3608 = vadd.f32 0.0, %v3607
      %v3609 = vpop.f32.mrb[0].mxu0
      %3610 = vdwg.mxu0
      %v3611 = vadd.f32 %v3297, %v3469
      %v3612 = vadd.f32 %v3298, %v3472
      %v3613 = vadd.f32 %v3299, %v3477
      %v3614 = vadd.f32 %v3300, %v3480
      %v3615 = vadd.f32 %v3301, %v3485
      %v3616 = vadd.f32 %v3302, %v3488
      %v3617 = vadd.f32 %v3303, %v3493
      %v3618 = vadd.f32 %v3304, %v3496
      %v3619 = vadd.f32 %v3305, %v3501
      %v3620 = vadd.f32 %v3306, %v3504
      %v3621 = vadd.f32 %v3307, %v3509
      %v3622 = vadd.f32 %v3308, %v3512
      %v3623 = vadd.f32 %v3309, %v3517
      %v3624 = vadd.f32 %v3310, %v3520
      %v3625 = vadd.f32 %v3311, %v3525
      %v3626 = vadd.f32 %v3312, %v3528
      %v3627 = vadd.f32 %v3313, %v3533
      %v3628 = vadd.f32 %v3314, %v3536
      %v3629 = vadd.f32 %v3315, %v3541
      %v3630 = vadd.f32 %v3316, %v3544
      %v3631 = vadd.f32 %v3317, %v3549
      %v3632 = vadd.f32 %v3318, %v3552
      %v3633 = vadd.f32 %v3319, %v3557
      %v3634 = vadd.f32 %v3320, %v3560
      %v3635 = vadd.f32 %v3321, %v3565
      %v3636 = vadd.f32 %v3322, %v3568
      %v3637 = vadd.f32 %v3323, %v3573
      %v3638 = vadd.f32 %v3324, %v3576
      %v3639 = vadd.f32 %v3325, %v3581
      %v3640 = vadd.f32 %v3326, %v3584
      %v3641 = vadd.f32 %v3327, %v3589
      %v3642 = vadd.f32 %v3328, %v3592
      %v3643 = vadd.f32 %v3329, %v3597
      %v3644 = vadd.f32 %v3330, %v3600
      %v3645 = vadd.f32 %v3331, %v3605
      %v3646 = vadd.f32 %v3332, %v3608
      %v3647 = vld [vmem:[%s2] sm:$0x1]
      %v3649 = vlaneseq
      %v3650 = vshrl.u32 %v3649, 7
      %v3651 = vsub.s32 0, %v3650
      %v3652 = vrot.slane %v3647, %v3651
      %v3654 = vmul.f32 %v3611, %v3652
      %v3655 = vmul.f32 %v3612, %v3652
      %v3656 = vmul.f32 %v3613, %v3652
      %v3657 = vmul.f32 %v3614, %v3652
      %v3658 = vmul.f32 %v3615, %v3652
      %v3659 = vmul.f32 %v3616, %v3652
      %v3660 = vmul.f32 %v3617, %v3652
      %v3661 = vmul.f32 %v3618, %v3652
      %v3662 = vmul.f32 %v3619, %v3652
      %v3663 = vmul.f32 %v3620, %v3652
      %v3664 = vmul.f32 %v3621, %v3652
      %v3665 = vmul.f32 %v3622, %v3652
      %v3666 = vmul.f32 %v3623, %v3652
      %v3667 = vmul.f32 %v3624, %v3652
      %v3668 = vmul.f32 %v3625, %v3652
      %v3669 = vmul.f32 %v3626, %v3652
      %v3670 = vmul.f32 %v3627, %v3652
      %v3671 = vmul.f32 %v3628, %v3652
      %v3672 = vmul.f32 %v3629, %v3652
      %v3673 = vmul.f32 %v3630, %v3652
      %v3674 = vmul.f32 %v3631, %v3652
      %v3675 = vmul.f32 %v3632, %v3652
      %v3676 = vmul.f32 %v3633, %v3652
      %v3677 = vmul.f32 %v3634, %v3652
      %v3678 = vmul.f32 %v3635, %v3652
      %v3679 = vmul.f32 %v3636, %v3652
      %v3680 = vmul.f32 %v3637, %v3652
      %v3681 = vmul.f32 %v3638, %v3652
      %v3682 = vmul.f32 %v3639, %v3652
      %v3683 = vmul.f32 %v3640, %v3652
      %v3684 = vmul.f32 %v3641, %v3652
      %v3685 = vmul.f32 %v3642, %v3652
      %v3686 = vmul.f32 %v3643, %v3652
      %v3687 = vmul.f32 %v3644, %v3652
      %v3688 = vmul.f32 %v3645, %v3652
      %v3689 = vmul.f32 %v3646, %v3652
      %v3690 = vld [vmem:[%s3] sm:$0x1]
      %v3692 = vlaneseq
      %v3693 = vshrl.u32 %v3692, 7
      %v3694 = vsub.s32 0, %v3693
      %v3695 = vrot.slane %v3690, %v3694
      %v3697 = vadd.f32 %v3654, %v3695
      %v3698 = vadd.f32 %v3655, %v3695
      %v3699 = vadd.f32 %v3656, %v3695
      %v3700 = vadd.f32 %v3657, %v3695
      %v3701 = vadd.f32 %v3658, %v3695
      %v3702 = vadd.f32 %v3659, %v3695
      %v3703 = vadd.f32 %v3660, %v3695
      %v3704 = vadd.f32 %v3661, %v3695
      %v3705 = vadd.f32 %v3662, %v3695
      %v3706 = vadd.f32 %v3663, %v3695
      %v3707 = vadd.f32 %v3664, %v3695
      %v3708 = vadd.f32 %v3665, %v3695
      %v3709 = vadd.f32 %v3666, %v3695
      %v3710 = vadd.f32 %v3667, %v3695
      %v3711 = vadd.f32 %v3668, %v3695
      %v3712 = vadd.f32 %v3669, %v3695
      %v3713 = vadd.f32 %v3670, %v3695
      %v3714 = vadd.f32 %v3671, %v3695
      %v3715 = vadd.f32 %v3672, %v3695
      %v3716 = vadd.f32 %v3673, %v3695
      %v3717 = vadd.f32 %v3674, %v3695
      %v3718 = vadd.f32 %v3675, %v3695
      %v3719 = vadd.f32 %v3676, %v3695
      %v3720 = vadd.f32 %v3677, %v3695
      %v3721 = vadd.f32 %v3678, %v3695
      %v3722 = vadd.f32 %v3679, %v3695
      %v3723 = vadd.f32 %v3680, %v3695
      %v3724 = vadd.f32 %v3681, %v3695
      %v3725 = vadd.f32 %v3682, %v3695
      %v3726 = vadd.f32 %v3683, %v3695
      %v3727 = vadd.f32 %v3684, %v3695
      %v3728 = vadd.f32 %v3685, %v3695
      %v3729 = vadd.f32 %v3686, %v3695
      %v3730 = vadd.f32 %v3687, %v3695
      %v3731 = vadd.f32 %v3688, %v3695
      %v3732 = vadd.f32 %v3689, %v3695
      %v3733 = vmax.f32 %v3697, 0.0
      %v3734 = vmax.f32 %v3698, 0.0
      %v3735 = vmax.f32 %v3699, 0.0
      %v3736 = vmax.f32 %v3700, 0.0
      %v3737 = vmax.f32 %v3701, 0.0
      %v3738 = vmax.f32 %v3702, 0.0
      %v3739 = vmax.f32 %v3703, 0.0
      %v3740 = vmax.f32 %v3704, 0.0
      %v3741 = vmax.f32 %v3705, 0.0
      %v3742 = vmax.f32 %v3706, 0.0
      %v3743 = vmax.f32 %v3707, 0.0
      %v3744 = vmax.f32 %v3708, 0.0
      %v3745 = vmax.f32 %v3709, 0.0
      %v3746 = vmax.f32 %v3710, 0.0
      %v3747 = vmax.f32 %v3711, 0.0
      %v3748 = vmax.f32 %v3712, 0.0
      %v3749 = vmax.f32 %v3713, 0.0
      %v3750 = vmax.f32 %v3714, 0.0
      %v3751 = vmax.f32 %v3715, 0.0
      %v3752 = vmax.f32 %v3716, 0.0
      %v3753 = vmax.f32 %v3717, 0.0
      %v3754 = vmax.f32 %v3718, 0.0
      %v3755 = vmax.f32 %v3719, 0.0
      %v3756 = vmax.f32 %v3720, 0.0
      %v3757 = vmax.f32 %v3721, 0.0
      %v3758 = vmax.f32 %v3722, 0.0
      %v3759 = vmax.f32 %v3723, 0.0
      %v3760 = vmax.f32 %v3724, 0.0
      %v3761 = vmax.f32 %v3725, 0.0
      %v3762 = vmax.f32 %v3726, 0.0
      %v3763 = vmax.f32 %v3727, 0.0
      %v3764 = vmax.f32 %v3728, 0.0
      %v3765 = vmax.f32 %v3729, 0.0
      %v3766 = vmax.f32 %v3730, 0.0
      %v3767 = vmax.f32 %v3731, 0.0
      %v3768 = vmax.f32 %v3732, 0.0
      %vm3769 = vcmask 64512
      %3770 = vst.msk [vmem:[%s197] sm:$0xff] %vm3769, %v3733
      %3771 = vst.msk [vmem:[%s197 + $0x8] sm:$0xff] %vm3769, %v3734
      %3772 = vst.msk [vmem:[%s197 + $0x10] sm:$0xff] %vm3769, %v3735
      %3773 = vst.msk [vmem:[%s197 + $0x18] sm:$0xff] %vm3769, %v3736
      %3774 = vst.msk [vmem:[%s197 + $0x20] sm:$0xff] %vm3769, %v3737
      %3775 = vst.msk [vmem:[%s197 + $0x28] sm:$0xff] %vm3769, %v3738
      %3776 = vst.msk [vmem:[%s197 + $0x30] sm:$0xff] %vm3769, %v3739
      %3777 = vst.msk [vmem:[%s197 + $0x38] sm:$0xff] %vm3769, %v3740
      %3778 = vst.msk [vmem:[%s197 + $0x40] sm:$0xff] %vm3769, %v3741
      %3779 = vst.msk [vmem:[%s197 + $0x48] sm:$0xff] %vm3769, %v3742
      %3780 = vst.msk [vmem:[%s197 + $0x50] sm:$0xff] %vm3769, %v3743
      %3781 = vst.msk [vmem:[%s197 + $0x58] sm:$0xff] %vm3769, %v3744
      %3782 = vst.msk [vmem:[%s197 + $0x60] sm:$0xff] %vm3769, %v3745
      %3783 = vst.msk [vmem:[%s197 + $0x68] sm:$0xff] %vm3769, %v3746
      %3784 = vst.msk [vmem:[%s197 + $0x70] sm:$0xff] %vm3769, %v3747
      %3785 = vst.msk [vmem:[%s197 + $0x78] sm:$0xff] %vm3769, %v3748
      %3786 = vst.msk [vmem:[%s197 + $0x80] sm:$0xff] %vm3769, %v3749
      %3787 = vst.msk [vmem:[%s197 + $0x88] sm:$0xff] %vm3769, %v3750
      %3788 = vst.msk [vmem:[%s197 + $0x90] sm:$0xff] %vm3769, %v3751
      %3789 = vst.msk [vmem:[%s197 + $0x98] sm:$0xff] %vm3769, %v3752
      %3790 = vst.msk [vmem:[%s197 + $0xa0] sm:$0xff] %vm3769, %v3753
      %3791 = vst.msk [vmem:[%s197 + $0xa8] sm:$0xff] %vm3769, %v3754
      %3792 = vst.msk [vmem:[%s197 + $0xb0] sm:$0xff] %vm3769, %v3755
      %3793 = vst.msk [vmem:[%s197 + $0xb8] sm:$0xff] %vm3769, %v3756
      %3794 = vst.msk [vmem:[%s197 + $0xc0] sm:$0xff] %vm3769, %v3757
      %3795 = vst.msk [vmem:[%s197 + $0xc8] sm:$0xff] %vm3769, %v3758
      %3796 = vst.msk [vmem:[%s197 + $0xd0] sm:$0xff] %vm3769, %v3759
      %3797 = vst.msk [vmem:[%s197 + $0xd8] sm:$0xff] %vm3769, %v3760
      %3798 = vst.msk [vmem:[%s197 + $0xe0] sm:$0xff] %vm3769, %v3761
      %3799 = vst.msk [vmem:[%s197 + $0xe8] sm:$0xff] %vm3769, %v3762
      %3800 = vst.msk [vmem:[%s197 + $0xf0] sm:$0xff] %vm3769, %v3763
      %3801 = vst.msk [vmem:[%s197 + $0xf8] sm:$0xff] %vm3769, %v3764
      %3802 = vst.msk [vmem:[%s197 + $0x100] sm:$0xff] %vm3769, %v3765
      %3803 = vst.msk [vmem:[%s197 + $0x108] sm:$0xff] %vm3769, %v3766
      %3804 = vst.msk [vmem:[%s197 + $0x110] sm:$0xff] %vm3769, %v3767
      %3805 = vst.msk [vmem:[%s197 + $0x118] sm:$0xff] %vm3769, %v3768
      %p3806 = scmp.lt.s32.totalorder %s15, 1
      %s3807 = scalar_select %p3806, %s15, 1
      %s3808 = smul.addr %s3807, 36
      %s3809 = smul.addr %s3808, 8
      %s3810 = scalar_lea.vmem %s4, %s3809
      // Predicated region
      $region37: #{_block_forward_impl.3} parent=35 // pred_check
        %p3811 = pneg %p122
      $region38: #{_block_forward_impl.3} parent=35 // pred_check_branch
        %3813 = sbr.rel (%p3811) target = $region40
      $region39: #{_block_forward_impl.3} parent=35 // pred_region
        _
      $region40: #{_block_forward_impl.3} parent=35 // pred_fallthru
        _
    $region36: #{_block_forward_impl.3} parent=5 // pred_fallthru
      _
    %p3814 = scmp.le.s32.totalorder 2, %s10
    // Predicated region
    $region41: #{_block_forward_impl.3} parent=5 // pred_check
      %p3815 = pneg %p3814
    $region42: #{_block_forward_impl.3} parent=5 // pred_check_branch
      %3817 = sbr.rel (%p3815) target = $region44
    $region43: #{_block_forward_impl.3} parent=5 // pred_region
      %s3818 = ssub.s32 %s10, 2
      // Predicated region
      $region45: #{_block_forward_impl.3} parent=43 // pred_check
        %p3819 = pneg %p128
      $region46: #{_block_forward_impl.3} parent=43 // pred_check_branch
        %3821 = sbr.rel (%p3819) target = $region48
      $region47: #{_block_forward_impl.3} parent=43 // pred_region
        %p3822 = scmp.lt.s32.totalorder %s16, 1
        %s3823 = scalar_select %p3822, %s16, 1
        %s3824 = smul.addr %s3823, 36
        %s3825 = smul.addr %s3824, 8
        %s3826 = scalar_lea.vmem %s4, %s3825
      $region48: #{_block_forward_impl.3} parent=43 // pred_fallthru
        _
    $region44: #{_block_forward_impl.3} parent=5 // pred_fallthru
      _
  $region6: #{_block_forward_impl.3} parent=0 // loop_footer
    %s14 = sadd.s32 1, %s10
  $region7: #{_block_forward_impl.3} parent=0 // loop_footer_branch
    %9 = sbr.rel target = $region3
  $region8: #{_block_forward_impl.3} parent=0 // loop_exit
    _

</llo_original>
